<compile_context>
chip_gen: v6e
topology: v6e:2x2x1
jax: 0.10.0
libtpu: 0.0.40
codegen_flags: <defaults>
</compile_context>

<pallas_src>
import functools

import jax
import jax.numpy as jnp
import numpy as np
from jax.experimental import pallas as pl
from jax.experimental.pallas import tpu as pltpu


# ----------------------------------------------------------------------------
# Pallas kernels
# ----------------------------------------------------------------------------
def _conv_pool_kernel(p_ref, w_ref, b_ref, o_ref, *, mp):
    """Fused conv-as-matmul + 2x2 maxpool + bias + ReLU.

    p_ref: (4*mp, K) bf16  im2col patches, quadrant-major: rows [q*mp,(q+1)*mp)
                           hold pool-window quadrant q, ordered (b, h_p, w_p);
                           mp is the per-quadrant row count padded up to a
                           multiple of 8 so slicing stays sublane-aligned.
    w_ref: (K, OC)   bf16  conv weight as a matmul matrix, rows (di, dj, ic).
    b_ref: (1, OC)   f32
    o_ref: (mp, OC)  bf16  pooled activation, rows (b, h_p, w_p), channels last.
    """
    # One long MXU push over all four quadrants (amortizes fill/drain once),
    # f32 accumulation.
    y = jnp.dot(p_ref[...], w_ref[...], preferred_element_type=jnp.float32)
    # 2x2 max pool via sublane-aligned static value slices (no reshape).
    m = jnp.maximum(jnp.maximum(y[0 * mp:1 * mp, :], y[1 * mp:2 * mp, :]),
                    jnp.maximum(y[2 * mp:3 * mp, :], y[3 * mp:4 * mp, :]))
    # Bias + ReLU hoisted out of the quadrant reduction: max distributes over a
    # shared +b, and ReLU is monotone, so pool-before-(bias,ReLU) is exact.
    o_ref[...] = jnp.maximum(m + b_ref[...], 0.0).astype(o_ref.dtype)


def _mlp_kernel(x_ref, w1_ref, b1_ref, w2_ref, b2_ref, o_ref):
    """Fused fc1 + ReLU + fc2; the grid axis tiles fc1's output width.

    x_ref : (B, K)  bf16  resident across all grid steps
    w1_ref: (K, tn) bf16  tile of the fc1 weight (streamed from HBM)
    b1_ref: (1, tn) f32
    w2_ref: (tn, N) f32   matching tile of the fc2 weight
    b2_ref: (1, N)  f32
    o_ref : (B, N)  f32   resident accumulator (same block index every step)
    """
    j = pl.program_id(0)

    @pl.when(j == 0)
    def _init():
        o_ref[...] = jnp.broadcast_to(b2_ref[...], o_ref.shape).astype(o_ref.dtype)

    # Native bf16 x bf16 MXU matmul, f32 accumulation (no f32 weight upcast).
    h = jnp.dot(x_ref[...], w1_ref[...], preferred_element_type=jnp.float32)
    h = jnp.maximum(h + b1_ref[...], 0.0)
    o_ref[...] += jnp.dot(h, w2_ref[...], preferred_element_type=jnp.float32)


# ----------------------------------------------------------------------------
# Pallas wrappers
# ----------------------------------------------------------------------------
def pallas_conv_pool(p, w, b):
    """p: (4*mp, K) bf16, w: (K, OC) bf16, b: (1, OC) f32 -> (mp, OC) bf16."""
    QM, K = p.shape
    assert QM % 4 == 0
    mp = QM // 4
    assert mp % 8 == 0
    K2, N = w.shape
    assert K == K2
    return pl.pallas_call(
        functools.partial(_conv_pool_kernel, mp=mp),
        out_shape=jax.ShapeDtypeStruct((mp, N), jnp.bfloat16),
        grid=(1,),
        in_specs=[
            pl.BlockSpec((QM, K), lambda i: (0, 0)),
            pl.BlockSpec((K, N), lambda i: (0, 0)),
            pl.BlockSpec((1, N), lambda i: (0, 0)),
        ],
        out_specs=pl.BlockSpec((mp, N), lambda i: (0, 0)),
    )(p, w, b)


def pallas_mlp(x, w1, b1, w2, b2, *, tn=512):
    """x: (B, K) bf16, w1: (K, H) bf16, w2: (H, N) f32 -> (B, N) f32.

    Streams w1 in tn-column tiles along an 'arbitrary' reduction grid; the
    (B, N) output block stays resident and accumulates the fc2 partials, so
    the fc1 activation never touches HBM.
    """
    M, K = x.shape
    K2, H = w1.shape
    H2, N = w2.shape
    assert K == K2 and H == H2 and H % tn == 0
    return pl.pallas_call(
        _mlp_kernel,
        out_shape=jax.ShapeDtypeStruct((M, N), jnp.float32),
        grid=(H // tn,),
        in_specs=[
            pl.BlockSpec((M, K), lambda j: (0, 0)),
            pl.BlockSpec((K, tn), lambda j: (0, j)),
            pl.BlockSpec((1, tn), lambda j: (0, j)),
            pl.BlockSpec((tn, N), lambda j: (j, 0)),
            pl.BlockSpec((1, N), lambda j: (0, 0)),
        ],
        out_specs=pl.BlockSpec((M, N), lambda j: (0, 0)),
        compiler_params=pltpu.CompilerParams(
            dimension_semantics=("arbitrary",),   # reduction over fc1-width tiles
            vmem_limit_bytes=32 * 1024 * 1024,    # explicit: safe even on v5e
        ),
    )(x, w1, b1, w2, b2)


# ----------------------------------------------------------------------------
# Glue: im2col patch extraction, grouped by 2x2 pool-window quadrant
# ----------------------------------------------------------------------------
def im2col_pooled(x, k=5, pad=2):
    """x: (B, H, W, C) NHWC -> (4*mp, k*k*C) quadrant-major patches.

    Rows [q*mp, (q+1)*mp) hold pool-window quadrant q, ordered (b, h_p, w_p);
    mp = B*(H//2)*(W//2) rounded up to a multiple of 8 (extra rows are zero).
    Patch columns are in (di, dj, c) order to match conv_weight_to_matrix().
    """
    B, H, W, C = x.shape
    H2, W2 = H // 2, W // 2
    xp = jnp.pad(x, ((0, 0), (pad, pad), (pad, pad), (0, 0)))
    cols = [xp[:, di:di + H, dj:dj + W, :] for di in range(k) for dj in range(k)]
    p = jnp.concatenate(cols, axis=-1)                   # (B, H, W, k*k*C)
    p = p.reshape(B, H2, 2, W2, 2, k * k * C)
    p = jnp.transpose(p, (2, 4, 0, 1, 3, 5))             # (2, 2, B, H2, W2, kkC)
    m = B * H2 * W2
    mp = ((m + 7) // 8) * 8
    p = p.reshape(4, m, k * k * C)
    if mp != m:
        p = jnp.pad(p, ((0, 0), (0, mp - m), (0, 0)))
    return p.reshape(4 * mp, k * k * C)


def conv_weight_to_matrix(w):
    """PyTorch conv weight (OC, IC, K, K) -> matmul weight (K*K*IC, OC)."""
    OC, IC, K, _ = w.shape
    return jnp.transpose(w, (2, 3, 1, 0)).reshape(K * K * IC, OC)


# ----------------------------------------------------------------------------
# Parameters: PyTorch-shaped init + one-time kernel-layout preparation
# ----------------------------------------------------------------------------
def init_params(key, out_dim=10, width=1024):
    ks = jax.random.split(key, 8)

    def unif(k, shape, fan_in):
        bound = 1.0 / np.sqrt(fan_in)
        return jax.random.uniform(k, shape, jnp.float32, -bound, bound)

    w1 = unif(ks[0], (32, 1, 5, 5), 1 * 5 * 5)
    b1 = unif(ks[1], (32,), 1 * 5 * 5)
    w2 = unif(ks[2], (64, 32, 5, 5), 32 * 5 * 5)
    b2 = unif(ks[3], (64,), 32 * 5 * 5)
    wf1 = unif(ks[4], (width, 7 * 7 * 64), 7 * 7 * 64)
    bf1 = unif(ks[5], (width,), 7 * 7 * 64)
    wf2 = unif(ks[6], (out_dim, width), width)
    bf2 = unif(ks[7], (out_dim,), width)
    return (w1, b1, w2, b2, wf1, bf1, wf2, bf2)


def prepare_params(params):
    """One-time weight reformatting, hoisted OUT of the jitted forward."""
    w1, b1, w2, b2, wf1, bf1, wf2, bf2 = params
    width = wf1.shape[0]

    w1m = conv_weight_to_matrix(w1).astype(jnp.bfloat16)   # (25, 32)  bf16
    w2m = conv_weight_to_matrix(w2).astype(jnp.bfloat16)   # (800, 64) bf16

    # Fold PyTorch's NCHW flatten (c, h, w column order) into fc1's columns so
    # the kernel consumes the NHWC-flat (h, w, c) feature vector directly; also
    # pre-transpose and cast the big fc1 weight to bf16 (halves its HBM stream,
    # f32 accumulation is kept inside the kernel).
    wf1p = wf1.reshape(width, 64, 7, 7)
    wf1p = jnp.transpose(wf1p, (0, 2, 3, 1)).reshape(width, 7 * 7 * 64)
    wf1p = wf1p.T.astype(jnp.bfloat16)                      # (3136, width) bf16
    wf2p = wf2.T                                            # (width, out_dim) f32

    return (w1m, b1.reshape(1, -1), w2m, b2.reshape(1, -1),
            wf1p, bf1.reshape(1, -1), wf2p, bf2.reshape(1, -1))


# ----------------------------------------------------------------------------
# Forward pass (3 pallas_calls total)
# ----------------------------------------------------------------------------
@jax.jit
def cnn_forward(x_nchw, prepped):
    w1m, b1, w2m, b2, wf1p, bf1, wf2p, bf2 = prepped
    B = x_nchw.shape[0]

    # NCHW -> NHWC, bf16 activation pipeline (f32 accumulation in-kernel).
    x = jnp.transpose(x_nchw, (0, 2, 3, 1)).astype(jnp.bfloat16)   # (B,28,28,1)

    # conv1 (1->32, 5x5, pad 2) + 2x2 maxpool + bias + ReLU, fused.
    p = im2col_pooled(x, k=5, pad=2)                      # (4*392, 25)  bf16
    h = pallas_conv_pool(p, w1m, b1)                      # (392, 32)    bf16
    h = h.reshape(B, 14, 14, 32)

    # conv2 (32->64, 5x5, pad 2) + 2x2 maxpool + bias + ReLU, fused.
    p = im2col_pooled(h, k=5, pad=2)                      # (4*104, 800) bf16
    h = pallas_conv_pool(p, w2m, b2)                      # (104, 64)    bf16

    # Drop the 8-alignment pad rows and flatten; PyTorch's NCHW flatten order
    # is already folded into wf1p's columns.
    feat = h[:B * 49].reshape(B, 7 * 7 * 64)              # (B, 3136) bf16

    # fc1 + ReLU + fc2, fused; wf1 streamed in 512-column bf16 tiles.
    return pallas_mlp(feat, wf1p, bf1, wf2p, bf2, tn=512)  # (B, 10) f32


# ----------------------------------------------------------------------------
# Pure-JAX f32 reference (for correctness check, takes PyTorch-shaped params)
# ----------------------------------------------------------------------------
def reference_forward(x_nchw, params):
    w1, b1, w2, b2, wf1, bf1, wf2, bf2 = params
    dn = ("NCHW", "OIHW", "NCHW")

    def pool(h):
        return jax.lax.reduce_window(h, -jnp.inf, jax.lax.max,
                                     (1, 1, 2, 2), (1, 1, 2, 2), "VALID")

    h = jax.lax.conv_general_dilated(x_nchw, w1, (1, 1), ((2, 2), (2, 2)),
                                     dimension_numbers=dn)
    h = jax.nn.relu(h + b1[None, :, None, None])
    h = pool(h)
    h = jax.lax.conv_general_dilated(h, w2, (1, 1), ((2, 2), (2, 2)),
                                     dimension_numbers=dn)
    h = jax.nn.relu(h + b2[None, :, None, None])
    h = pool(h)
    h = h.reshape(h.shape[0], -1)
    h = jax.nn.relu(h @ wf1.T + bf1)
    return h @ wf2.T + bf2


if __name__ == "__main__":
    key = jax.random.PRNGKey(0)
    pkey, xkey = jax.random.split(key)

    params = init_params(pkey, out_dim=10, width=1024)
    prepped = jax.block_until_ready(prepare_params(params))   # one-time, outside jit

    x = jax.random.normal(xkey, (2, 1, 28, 28), jnp.float32)  # NCHW like PyTorch

    out = jax.block_until_ready(cnn_forward(x, prepped))
    assert out.shape == (2, 10), out.shape

    # Tolerance reflects the end-to-end bf16 activation/weight pipeline
    # (f32 accumulation) vs. the full-f32 reference.
    ref = jax.block_until_ready(reference_forward(x, params))
    np.testing.assert_allclose(np.asarray(out), np.asarray(ref),
                               rtol=1e-2, atol=1e-2)

    print("KERNEL_OK")
</pallas_src>

<mosaic_0001>
module attributes {stable_mosaic.version = 11 : i64} {
  func.func @_conv_pool_kernel(%arg0: i32, %arg1: memref<1568x25xbf16, #tpu.memory_space<vmem>>, %arg2: memref<25x32xbf16, #tpu.memory_space<vmem>>, %arg3: memref<1x32xf32, #tpu.memory_space<vmem>>, %arg4: memref<392x32xbf16, #tpu.memory_space<vmem>>) attributes {dimension_semantics = [#tpu.dimension_semantics<arbitrary>], iteration_bounds = array<i64: 1>, scalar_prefetch = 0 : i64, scratch_operands = 0 : i64, tpu.core_type = #tpu.core_type<tc>, window_params = [{pipeline_mode = #tpu.pipeline_mode<synchronous>, transform_indices = @transform_0, window_bounds = array<i64: 1568, 25>}, {pipeline_mode = #tpu.pipeline_mode<synchronous>, transform_indices = @transform_1, window_bounds = array<i64: 25, 32>}, {pipeline_mode = #tpu.pipeline_mode<synchronous>, transform_indices = @transform_2, window_bounds = array<i64: 1, 32>}, {pipeline_mode = #tpu.pipeline_mode<synchronous>, transform_indices = @transform_3, window_bounds = array<i64: 392, 32>}]} {
    %c0 = arith.constant 0 : index
    %c0_0 = arith.constant 0 : index
    %0 = vector.load %arg1[%c0, %c0_0] : memref<1568x25xbf16, #tpu.memory_space<vmem>>, vector<1568x25xbf16>
    %c0_1 = arith.constant 0 : index
    %c0_2 = arith.constant 0 : index
    %1 = vector.load %arg2[%c0_1, %c0_2] : memref<25x32xbf16, #tpu.memory_space<vmem>>, vector<25x32xbf16>
    %cst = arith.constant dense<0.000000e+00> : vector<1568x32xf32>
    %2 = tpu.matmul %0, %1, %cst {dimension_numbers = #tpu.dot_dimension_numbers<[1], [0], [0], [1], [0, 0, 1, 1], [], []>} : vector<1568x25xbf16>, vector<25x32xbf16>, vector<1568x32xf32> -> vector<1568x32xf32>
    %3 = vector.extract_strided_slice %2 {offsets = [0, 0], sizes = [392, 32], strides = [1, 1]} : vector<1568x32xf32> to vector<392x32xf32>
    %4 = vector.extract_strided_slice %2 {offsets = [392, 0], sizes = [392, 32], strides = [1, 1]} : vector<1568x32xf32> to vector<392x32xf32>
    %5 = arith.maximumf %3, %4 : vector<392x32xf32>
    %6 = vector.extract_strided_slice %2 {offsets = [784, 0], sizes = [392, 32], strides = [1, 1]} : vector<1568x32xf32> to vector<392x32xf32>
    %7 = vector.extract_strided_slice %2 {offsets = [1176, 0], sizes = [392, 32], strides = [1, 1]} : vector<1568x32xf32> to vector<392x32xf32>
    %8 = arith.maximumf %6, %7 : vector<392x32xf32>
    %9 = arith.maximumf %5, %8 : vector<392x32xf32>
    %c0_3 = arith.constant 0 : index
    %c0_4 = arith.constant 0 : index
    %10 = vector.load %arg3[%c0_3, %c0_4] : memref<1x32xf32, #tpu.memory_space<vmem>>, vector<1x32xf32>
    %11 = vector.broadcast %10 : vector<1x32xf32> to vector<392x32xf32>
    %12 = arith.addf %9, %11 : vector<392x32xf32>
    %cst_5 = arith.constant 0.000000e+00 : f32
    %13 = vector.broadcast %cst_5 : f32 to vector<392x32xf32>
    %14 = arith.maximumf %12, %13 : vector<392x32xf32>
    %15 = arith.truncf %14 : vector<392x32xf32> to vector<392x32xbf16>
    %c0_6 = arith.constant 0 : index
    %c0_7 = arith.constant 0 : index
    %16 = vector.load %arg4[%c0_6, %c0_7] : memref<392x32xbf16, #tpu.memory_space<vmem>>, vector<392x32xbf16>
    tpu.vector_store %arg4[%c0_6, %c0_7], %15 {strides = array<i32>} : memref<392x32xbf16, #tpu.memory_space<vmem>>, vector<392x32xbf16>,
    return
  }
  func.func @transform_0(%arg0: i32) -> (i32, i32) {
    %c0_i32 = arith.constant 0 : i32
    %c0_i32_0 = arith.constant 0 : i32
    %c0_i32_1 = arith.constant 0 : i32
    return %c0_i32, %c0_i32_0 : i32, i32
  }
  func.func @transform_1(%arg0: i32) -> (i32, i32) {
    %c0_i32 = arith.constant 0 : i32
    %c0_i32_0 = arith.constant 0 : i32
    %c0_i32_1 = arith.constant 0 : i32
    return %c0_i32, %c0_i32_0 : i32, i32
  }
  func.func @transform_2(%arg0: i32) -> (i32, i32) {
    %c0_i32 = arith.constant 0 : i32
    %c0_i32_0 = arith.constant 0 : i32
    %c0_i32_1 = arith.constant 0 : i32
    return %c0_i32, %c0_i32_0 : i32, i32
  }
  func.func @transform_3(%arg0: i32) -> (i32, i32) {
    %c0_i32 = arith.constant 0 : i32
    %c0_i32_0 = arith.constant 0 : i32
    %c0_i32_1 = arith.constant 0 : i32
    return %c0_i32, %c0_i32_0 : i32, i32
  }
}

module attributes {stable_mosaic.version = 11 : i64} {
  func.func @_conv_pool_kernel(%arg0: i32, %arg1: memref<416x800xbf16, #tpu.memory_space<vmem>>, %arg2: memref<800x64xbf16, #tpu.memory_space<vmem>>, %arg3: memref<1x64xf32, #tpu.memory_space<vmem>>, %arg4: memref<104x64xbf16, #tpu.memory_space<vmem>>) attributes {dimension_semantics = [#tpu.dimension_semantics<arbitrary>], iteration_bounds = array<i64: 1>, scalar_prefetch = 0 : i64, scratch_operands = 0 : i64, tpu.core_type = #tpu.core_type<tc>, window_params = [{pipeline_mode = #tpu.pipeline_mode<synchronous>, transform_indices = @transform_0, window_bounds = array<i64: 416, 800>}, {pipeline_mode = #tpu.pipeline_mode<synchronous>, transform_indices = @transform_1, window_bounds = array<i64: 800, 64>}, {pipeline_mode = #tpu.pipeline_mode<synchronous>, transform_indices = @transform_2, window_bounds = array<i64: 1, 64>}, {pipeline_mode = #tpu.pipeline_mode<synchronous>, transform_indices = @transform_3, window_bounds = array<i64: 104, 64>}]} {
    %c0 = arith.constant 0 : index
    %c0_0 = arith.constant 0 : index
    %0 = vector.load %arg1[%c0, %c0_0] : memref<416x800xbf16, #tpu.memory_space<vmem>>, vector<416x800xbf16>
    %c0_1 = arith.constant 0 : index
    %c0_2 = arith.constant 0 : index
    %1 = vector.load %arg2[%c0_1, %c0_2] : memref<800x64xbf16, #tpu.memory_space<vmem>>, vector<800x64xbf16>
    %cst = arith.constant dense<0.000000e+00> : vector<416x64xf32>
    %2 = tpu.matmul %0, %1, %cst {dimension_numbers = #tpu.dot_dimension_numbers<[1], [0], [0], [1], [0, 0, 1, 1], [], []>} : vector<416x800xbf16>, vector<800x64xbf16>, vector<416x64xf32> -> vector<416x64xf32>
    %3 = vector.extract_strided_slice %2 {offsets = [0, 0], sizes = [104, 64], strides = [1, 1]} : vector<416x64xf32> to vector<104x64xf32>
    %4 = vector.extract_strided_slice %2 {offsets = [104, 0], sizes = [104, 64], strides = [1, 1]} : vector<416x64xf32> to vector<104x64xf32>
    %5 = arith.maximumf %3, %4 : vector<104x64xf32>
    %6 = vector.extract_strided_slice %2 {offsets = [208, 0], sizes = [104, 64], strides = [1, 1]} : vector<416x64xf32> to vector<104x64xf32>
    %7 = vector.extract_strided_slice %2 {offsets = [312, 0], sizes = [104, 64], strides = [1, 1]} : vector<416x64xf32> to vector<104x64xf32>
    %8 = arith.maximumf %6, %7 : vector<104x64xf32>
    %9 = arith.maximumf %5, %8 : vector<104x64xf32>
    %c0_3 = arith.constant 0 : index
    %c0_4 = arith.constant 0 : index
    %10 = vector.load %arg3[%c0_3, %c0_4] : memref<1x64xf32, #tpu.memory_space<vmem>>, vector<1x64xf32>
    %11 = vector.broadcast %10 : vector<1x64xf32> to vector<104x64xf32>
    %12 = arith.addf %9, %11 : vector<104x64xf32>
    %cst_5 = arith.constant 0.000000e+00 : f32
    %13 = vector.broadcast %cst_5 : f32 to vector<104x64xf32>
    %14 = arith.maximumf %12, %13 : vector<104x64xf32>
    %15 = arith.truncf %14 : vector<104x64xf32> to vector<104x64xbf16>
    %c0_6 = arith.constant 0 : index
    %c0_7 = arith.constant 0 : index
    %16 = vector.load %arg4[%c0_6, %c0_7] : memref<104x64xbf16, #tpu.memory_space<vmem>>, vector<104x64xbf16>
    tpu.vector_store %arg4[%c0_6, %c0_7], %15 {strides = array<i32>} : memref<104x64xbf16, #tpu.memory_space<vmem>>, vector<104x64xbf16>,
    return
  }
  func.func @transform_0(%arg0: i32) -> (i32, i32) {
    %c0_i32 = arith.constant 0 : i32
    %c0_i32_0 = arith.constant 0 : i32
    %c0_i32_1 = arith.constant 0 : i32
    return %c0_i32, %c0_i32_0 : i32, i32
  }
  func.func @transform_1(%arg0: i32) -> (i32, i32) {
    %c0_i32 = arith.constant 0 : i32
    %c0_i32_0 = arith.constant 0 : i32
    %c0_i32_1 = arith.constant 0 : i32
    return %c0_i32, %c0_i32_0 : i32, i32
  }
  func.func @transform_2(%arg0: i32) -> (i32, i32) {
    %c0_i32 = arith.constant 0 : i32
    %c0_i32_0 = arith.constant 0 : i32
    %c0_i32_1 = arith.constant 0 : i32
    return %c0_i32, %c0_i32_0 : i32, i32
  }
  func.func @transform_3(%arg0: i32) -> (i32, i32) {
    %c0_i32 = arith.constant 0 : i32
    %c0_i32_0 = arith.constant 0 : i32
    %c0_i32_1 = arith.constant 0 : i32
    return %c0_i32, %c0_i32_0 : i32, i32
  }
}

module attributes {stable_mosaic.version = 11 : i64} {
  func.func @_mlp_kernel(%arg0: i32, %arg1: memref<2x3136xbf16, #tpu.memory_space<vmem>>, %arg2: memref<3136x512xbf16, #tpu.memory_space<vmem>>, %arg3: memref<1x512xf32, #tpu.memory_space<vmem>>, %arg4: memref<512x10xf32, #tpu.memory_space<vmem>>, %arg5: memref<1x10xf32, #tpu.memory_space<vmem>>, %arg6: memref<2x10xf32, #tpu.memory_space<vmem>>) attributes {dimension_semantics = [#tpu.dimension_semantics<arbitrary>], iteration_bounds = array<i64: 2>, scalar_prefetch = 0 : i64, scratch_operands = 0 : i64, tpu.core_type = #tpu.core_type<tc>, window_params = [{pipeline_mode = #tpu.pipeline_mode<synchronous>, transform_indices = @transform_0, window_bounds = array<i64: 2, 3136>}, {transform_indices = @transform_1, window_bounds = array<i64: 3136, 512>}, {transform_indices = @transform_2, window_bounds = array<i64: 1, 512>}, {transform_indices = @transform_3, window_bounds = array<i64: 512, 10>}, {pipeline_mode = #tpu.pipeline_mode<synchronous>, transform_indices = @transform_4, window_bounds = array<i64: 1, 10>}, {pipeline_mode = #tpu.pipeline_mode<synchronous>, transform_indices = @transform_5, window_bounds = array<i64: 2, 10>}]} {
    %c0_i32 = arith.constant 0 : i32
    %0 = arith.cmpi eq, %arg0, %c0_i32 : i32
    %1 = arith.extui %0 : i1 to i32
    %c0_i32_0 = arith.constant 0 : i32
    %2 = arith.cmpi ne, %1, %c0_i32_0 : i32
    scf.if %2 {
      %c0_14 = arith.constant 0 : index
      %c0_15 = arith.constant 0 : index
      %16 = vector.load %arg5[%c0_14, %c0_15] : memref<1x10xf32, #tpu.memory_space<vmem>>, vector<1x10xf32>
      %17 = vector.shape_cast %16 : vector<1x10xf32> to vector<1x10xf32>
      %18 = vector.broadcast %17 : vector<1x10xf32> to vector<2x10xf32>
      %c0_16 = arith.constant 0 : index
      %c0_17 = arith.constant 0 : index
      %19 = vector.load %arg6[%c0_16, %c0_17] : memref<2x10xf32, #tpu.memory_space<vmem>>, vector<2x10xf32>
      tpu.vector_store %arg6[%c0_16, %c0_17], %18 {strides = array<i32>} : memref<2x10xf32, #tpu.memory_space<vmem>>, vector<2x10xf32>,
    } else {
    }
    %c0 = arith.constant 0 : index
    %c0_1 = arith.constant 0 : index
    %3 = vector.load %arg1[%c0, %c0_1] : memref<2x3136xbf16, #tpu.memory_space<vmem>>, vector<2x3136xbf16>
    %c0_2 = arith.constant 0 : index
    %c0_3 = arith.constant 0 : index
    %4 = vector.load %arg2[%c0_2, %c0_3] : memref<3136x512xbf16, #tpu.memory_space<vmem>>, vector<3136x512xbf16>
    %cst = arith.constant dense<0.000000e+00> : vector<2x512xf32>
    %5 = tpu.matmul %3, %4, %cst {dimension_numbers = #tpu.dot_dimension_numbers<[1], [0], [0], [1], [0, 0, 1, 1], [], []>} : vector<2x3136xbf16>, vector<3136x512xbf16>, vector<2x512xf32> -> vector<2x512xf32>
    %c0_4 = arith.constant 0 : index
    %c0_5 = arith.constant 0 : index
    %6 = vector.load %arg3[%c0_4, %c0_5] : memref<1x512xf32, #tpu.memory_space<vmem>>, vector<1x512xf32>
    %7 = vector.broadcast %6 : vector<1x512xf32> to vector<2x512xf32>
    %8 = arith.addf %5, %7 : vector<2x512xf32>
    %cst_6 = arith.constant 0.000000e+00 : f32
    %9 = vector.broadcast %cst_6 : f32 to vector<2x512xf32>
    %10 = arith.maximumf %8, %9 : vector<2x512xf32>
    %c0_7 = arith.constant 0 : index
    %c0_8 = arith.constant 0 : index
    %11 = vector.load %arg6[%c0_7, %c0_8] : memref<2x10xf32, #tpu.memory_space<vmem>>, vector<2x10xf32>
    %c0_9 = arith.constant 0 : index
    %c0_10 = arith.constant 0 : index
    %12 = vector.load %arg4[%c0_9, %c0_10] : memref<512x10xf32, #tpu.memory_space<vmem>>, vector<512x10xf32>
    %cst_11 = arith.constant dense<0.000000e+00> : vector<2x10xf32>
    %13 = tpu.matmul %10, %12, %cst_11 {dimension_numbers = #tpu.dot_dimension_numbers<[1], [0], [0], [1], [0, 0, 1, 1], [], []>} : vector<2x512xf32>, vector<512x10xf32>, vector<2x10xf32> -> vector<2x10xf32>
    %14 = arith.addf %11, %13 : vector<2x10xf32>
    %c0_12 = arith.constant 0 : index
    %c0_13 = arith.constant 0 : index
    %15 = vector.load %arg6[%c0_12, %c0_13] : memref<2x10xf32, #tpu.memory_space<vmem>>, vector<2x10xf32>
    tpu.vector_store %arg6[%c0_12, %c0_13], %14 {strides = array<i32>} : memref<2x10xf32, #tpu.memory_space<vmem>>, vector<2x10xf32>,
    return
  }
  func.func @transform_0(%arg0: i32) -> (i32, i32) {
    %c0_i32 = arith.constant 0 : i32
    %c0_i32_0 = arith.constant 0 : i32
    %c0_i32_1 = arith.constant 0 : i32
    return %c0_i32, %c0_i32_0 : i32, i32
  }
  func.func @transform_1(%arg0: i32) -> (i32, i32) {
    %c0_i32 = arith.constant 0 : i32
    %c0_i32_0 = arith.constant 0 : i32
    return %c0_i32, %arg0 : i32, i32
  }
  func.func @transform_2(%arg0: i32) -> (i32, i32) {
    %c0_i32 = arith.constant 0 : i32
    %c0_i32_0 = arith.constant 0 : i32
    return %c0_i32, %arg0 : i32, i32
  }
  func.func @transform_3(%arg0: i32) -> (i32, i32) {
    %c0_i32 = arith.constant 0 : i32
    %c0_i32_0 = arith.constant 0 : i32
    return %arg0, %c0_i32 : i32, i32
  }
  func.func @transform_4(%arg0: i32) -> (i32, i32) {
    %c0_i32 = arith.constant 0 : i32
    %c0_i32_0 = arith.constant 0 : i32
    %c0_i32_1 = arith.constant 0 : i32
    return %c0_i32, %c0_i32_0 : i32, i32
  }
  func.func @transform_5(%arg0: i32) -> (i32, i32) {
    %c0_i32 = arith.constant 0 : i32
    %c0_i32_0 = arith.constant 0 : i32
    %c0_i32_1 = arith.constant 0 : i32
    return %c0_i32, %c0_i32_0 : i32, i32
  }
}

</mosaic_0001>

<llo_original>
// kernel: cnn_forward.3
$region0: #{cnn_forward.3}
  #allocation0 [shape = 'u32[]', space=smem, size = 0x4, offset = 0x4, fixed_abs, tag = 'smem constant byte address 0x4 - core index']
  #allocation1 [shape = 'u32[144,128]{1,0:T(1,128)}', space=vmem, size = 0x12000, scoped, tag = 'internal scratch']
  %s0 = inlined_call_operand.vmem [shape: bf16[1568,25], index: 0, kind: input, shape index: {}]
  %s1 = inlined_call_operand.vmem [shape: bf16[25,32], index: 1, kind: input, shape index: {}]
  %s2 = inlined_call_operand.vmem [shape: f32[1,32], index: 2, kind: input, shape index: {}]
  %s3 = inlined_call_operand.vmem [shape: bf16[392,32], index: 3, kind: output, shape index: {}]
  %s4 = sld [smem:[#allocation0]]
  $region22: #{cnn_forward.3} parent=0
    _
  %s6 = ssub.s32 1, %s4
  %s7 = scalar_select 0, %s6, %s4
  // Predicated region
  $region2: #{cnn_forward.3} parent=0 // pred_check
    _
  $region3: #{cnn_forward.3} parent=0 // pred_check_branch
    %9 = sbr.rel (0) target = $region5
  $region4: #{cnn_forward.3} parent=0 // pred_region
    _
  $region5: #{cnn_forward.3} parent=0 // pred_fallthru
    _
  // Predicated region
  $region6: #{cnn_forward.3} parent=0 // pred_check
    _
  $region7: #{cnn_forward.3} parent=0 // pred_check_branch
    %11 = sbr.rel (0) target = $region9
  $region8: #{cnn_forward.3} parent=0 // pred_region
    _
  $region9: #{cnn_forward.3} parent=0 // pred_fallthru
    _
  // Predicated region
  $region10: #{cnn_forward.3} parent=0 // pred_check
    _
  $region11: #{cnn_forward.3} parent=0 // pred_check_branch
    %13 = sbr.rel (0) target = $region13
  $region12: #{cnn_forward.3} parent=0 // pred_region
    _
  $region13: #{cnn_forward.3} parent=0 // pred_fallthru
    _
  %v15 = vld [vmem:[%s0] sm:$0xf]
  %v16 = vld [vmem:[%s0 + $0x4] sm:$0xf]
  %v17 = vld [vmem:[%s0 + $0x8] sm:$0xf]
  %v18 = vld [vmem:[%s0 + $0xc] sm:$0xf]
  %v19 = vld [vmem:[%s0 + $0x10] sm:$0xf]
  %v20 = vld [vmem:[%s0 + $0x14] sm:$0xf]
  %v21 = vld [vmem:[%s0 + $0x18] sm:$0xf]
  %v22 = vld [vmem:[%s0 + $0x1c] sm:$0xf]
  %v23 = vld [vmem:[%s0 + $0x20] sm:$0xf]
  %v24 = vld [vmem:[%s0 + $0x24] sm:$0xf]
  %v25 = vld [vmem:[%s0 + $0x28] sm:$0xf]
  %v26 = vld [vmem:[%s0 + $0x2c] sm:$0xf]
  %v27 = vld [vmem:[%s0 + $0x30] sm:$0xf]
  %v28 = vld [vmem:[%s0 + $0x34] sm:$0xf]
  %v29 = vld [vmem:[%s0 + $0x38] sm:$0xf]
  %v30 = vld [vmem:[%s0 + $0x3c] sm:$0xf]
  %v31 = vld [vmem:[%s0 + $0x40] sm:$0xf]
  %v32 = vld [vmem:[%s0 + $0x44] sm:$0xf]
  %v33 = vld [vmem:[%s0 + $0x48] sm:$0xf]
  %v34 = vld [vmem:[%s0 + $0x4c] sm:$0xf]
  %v35 = vld [vmem:[%s0 + $0x50] sm:$0xf]
  %v36 = vld [vmem:[%s0 + $0x54] sm:$0xf]
  %v37 = vld [vmem:[%s0 + $0x58] sm:$0xf]
  %v38 = vld [vmem:[%s0 + $0x5c] sm:$0xf]
  %v39 = vld [vmem:[%s0 + $0x60] sm:$0xf]
  %v40 = vld [vmem:[%s0 + $0x64] sm:$0xf]
  %v41 = vld [vmem:[%s0 + $0x68] sm:$0xf]
  %v42 = vld [vmem:[%s0 + $0x6c] sm:$0xf]
  %v43 = vld [vmem:[%s0 + $0x70] sm:$0xf]
  %v44 = vld [vmem:[%s0 + $0x74] sm:$0xf]
  %v45 = vld [vmem:[%s0 + $0x78] sm:$0xf]
  %v46 = vld [vmem:[%s0 + $0x7c] sm:$0xf]
  %v47 = vld [vmem:[%s0 + $0x80] sm:$0xf]
  %v48 = vld [vmem:[%s0 + $0x84] sm:$0xf]
  %v49 = vld [vmem:[%s0 + $0x88] sm:$0xf]
  %v50 = vld [vmem:[%s0 + $0x8c] sm:$0xf]
  %v51 = vld [vmem:[%s0 + $0x90] sm:$0xf]
  %v52 = vld [vmem:[%s0 + $0x94] sm:$0xf]
  %v53 = vld [vmem:[%s0 + $0x98] sm:$0xf]
  %v54 = vld [vmem:[%s0 + $0x9c] sm:$0xf]
  %v55 = vld [vmem:[%s0 + $0xa0] sm:$0xf]
  %v56 = vld [vmem:[%s0 + $0xa4] sm:$0xf]
  %v57 = vld [vmem:[%s0 + $0xa8] sm:$0xf]
  %v58 = vld [vmem:[%s0 + $0xac] sm:$0xf]
  %v59 = vld [vmem:[%s0 + $0xb0] sm:$0xf]
  %v60 = vld [vmem:[%s0 + $0xb4] sm:$0xf]
  %v61 = vld [vmem:[%s0 + $0xb8] sm:$0xf]
  %v62 = vld [vmem:[%s0 + $0xbc] sm:$0xf]
  %v63 = vld [vmem:[%s0 + $0xc0] sm:$0xf]
  %v64 = vld [vmem:[%s0 + $0xc4] sm:$0xf]
  %v65 = vld [vmem:[%s0 + $0xc8] sm:$0xf]
  %v66 = vld [vmem:[%s0 + $0xcc] sm:$0xf]
  %v67 = vld [vmem:[%s0 + $0xd0] sm:$0xf]
  %v68 = vld [vmem:[%s0 + $0xd4] sm:$0xf]
  %v69 = vld [vmem:[%s0 + $0xd8] sm:$0xf]
  %v70 = vld [vmem:[%s0 + $0xdc] sm:$0xf]
  %v71 = vld [vmem:[%s0 + $0xe0] sm:$0xf]
  %v72 = vld [vmem:[%s0 + $0xe4] sm:$0xf]
  %v73 = vld [vmem:[%s0 + $0xe8] sm:$0xf]
  %v74 = vld [vmem:[%s0 + $0xec] sm:$0xf]
  %v75 = vld [vmem:[%s0 + $0xf0] sm:$0xf]
  %v76 = vld [vmem:[%s0 + $0xf4] sm:$0xf]
  %v77 = vld [vmem:[%s0 + $0xf8] sm:$0xf]
  %v78 = vld [vmem:[%s0 + $0xfc] sm:$0xf]
  %v79 = vld [vmem:[%s0 + $0x100] sm:$0xf]
  %v80 = vld [vmem:[%s0 + $0x104] sm:$0xf]
  %v81 = vld [vmem:[%s0 + $0x108] sm:$0xf]
  %v82 = vld [vmem:[%s0 + $0x10c] sm:$0xf]
  %v83 = vld [vmem:[%s0 + $0x110] sm:$0xf]
  %v84 = vld [vmem:[%s0 + $0x114] sm:$0xf]
  %v85 = vld [vmem:[%s0 + $0x118] sm:$0xf]
  %v86 = vld [vmem:[%s0 + $0x11c] sm:$0xf]
  %v87 = vld [vmem:[%s0 + $0x120] sm:$0xf]
  %v88 = vld [vmem:[%s0 + $0x124] sm:$0xf]
  %v89 = vld [vmem:[%s0 + $0x128] sm:$0xf]
  %v90 = vld [vmem:[%s0 + $0x12c] sm:$0xf]
  %v91 = vld [vmem:[%s0 + $0x130] sm:$0xf]
  %v92 = vld [vmem:[%s0 + $0x134] sm:$0xf]
  %v93 = vld [vmem:[%s0 + $0x138] sm:$0xf]
  %v94 = vld [vmem:[%s0 + $0x13c] sm:$0xf]
  %v95 = vld [vmem:[%s0 + $0x140] sm:$0xf]
  %v96 = vld [vmem:[%s0 + $0x144] sm:$0xf]
  %v97 = vld [vmem:[%s0 + $0x148] sm:$0xf]
  %v98 = vld [vmem:[%s0 + $0x14c] sm:$0xf]
  %v99 = vld [vmem:[%s0 + $0x150] sm:$0xf]
  %v100 = vld [vmem:[%s0 + $0x154] sm:$0xf]
  %v101 = vld [vmem:[%s0 + $0x158] sm:$0xf]
  %v102 = vld [vmem:[%s0 + $0x15c] sm:$0xf]
  %v103 = vld [vmem:[%s0 + $0x160] sm:$0xf]
  %v104 = vld [vmem:[%s0 + $0x164] sm:$0xf]
  %v105 = vld [vmem:[%s0 + $0x168] sm:$0xf]
  %v106 = vld [vmem:[%s0 + $0x16c] sm:$0xf]
  %v107 = vld [vmem:[%s0 + $0x170] sm:$0xf]
  %v108 = vld [vmem:[%s0 + $0x174] sm:$0xf]
  %v109 = vld [vmem:[%s0 + $0x178] sm:$0xf]
  %v110 = vld [vmem:[%s0 + $0x17c] sm:$0xf]
  %v111 = vld [vmem:[%s0 + $0x180] sm:$0xf]
  %v112 = vld [vmem:[%s0 + $0x184] sm:$0xf]
  %v113 = vld [vmem:[%s0 + $0x188] sm:$0xf]
  %v114 = vld [vmem:[%s0 + $0x18c] sm:$0xf]
  %v115 = vld [vmem:[%s0 + $0x190] sm:$0xf]
  %v116 = vld [vmem:[%s0 + $0x194] sm:$0xf]
  %v117 = vld [vmem:[%s0 + $0x198] sm:$0xf]
  %v118 = vld [vmem:[%s0 + $0x19c] sm:$0xf]
  %v119 = vld [vmem:[%s0 + $0x1a0] sm:$0xf]
  %v120 = vld [vmem:[%s0 + $0x1a4] sm:$0xf]
  %v121 = vld [vmem:[%s0 + $0x1a8] sm:$0xf]
  %v122 = vld [vmem:[%s0 + $0x1ac] sm:$0xf]
  %v123 = vld [vmem:[%s0 + $0x1b0] sm:$0xf]
  %v124 = vld [vmem:[%s0 + $0x1b4] sm:$0xf]
  %v125 = vld [vmem:[%s0 + $0x1b8] sm:$0xf]
  %v126 = vld [vmem:[%s0 + $0x1bc] sm:$0xf]
  %v127 = vld [vmem:[%s0 + $0x1c0] sm:$0xf]
  %v128 = vld [vmem:[%s0 + $0x1c4] sm:$0xf]
  %v129 = vld [vmem:[%s0 + $0x1c8] sm:$0xf]
  %v130 = vld [vmem:[%s0 + $0x1cc] sm:$0xf]
  %v131 = vld [vmem:[%s0 + $0x1d0] sm:$0xf]
  %v132 = vld [vmem:[%s0 + $0x1d4] sm:$0xf]
  %v133 = vld [vmem:[%s0 + $0x1d8] sm:$0xf]
  %v134 = vld [vmem:[%s0 + $0x1dc] sm:$0xf]
  %v135 = vld [vmem:[%s0 + $0x1e0] sm:$0xf]
  %v136 = vld [vmem:[%s0 + $0x1e4] sm:$0xf]
  %v137 = vld [vmem:[%s0 + $0x1e8] sm:$0xf]
  %v138 = vld [vmem:[%s0 + $0x1ec] sm:$0xf]
  %v139 = vld [vmem:[%s0 + $0x1f0] sm:$0xf]
  %v140 = vld [vmem:[%s0 + $0x1f4] sm:$0xf]
  %v141 = vld [vmem:[%s0 + $0x1f8] sm:$0xf]
  %v142 = vld [vmem:[%s0 + $0x1fc] sm:$0xf]
  %v143 = vld [vmem:[%s0 + $0x200] sm:$0xf]
  %v144 = vld [vmem:[%s0 + $0x204] sm:$0xf]
  %v145 = vld [vmem:[%s0 + $0x208] sm:$0xf]
  %v146 = vld [vmem:[%s0 + $0x20c] sm:$0xf]
  %v147 = vld [vmem:[%s0 + $0x210] sm:$0xf]
  %v148 = vld [vmem:[%s0 + $0x214] sm:$0xf]
  %v149 = vld [vmem:[%s0 + $0x218] sm:$0xf]
  %v150 = vld [vmem:[%s0 + $0x21c] sm:$0xf]
  %v151 = vld [vmem:[%s0 + $0x220] sm:$0xf]
  %v152 = vld [vmem:[%s0 + $0x224] sm:$0xf]
  %v153 = vld [vmem:[%s0 + $0x228] sm:$0xf]
  %v154 = vld [vmem:[%s0 + $0x22c] sm:$0xf]
  %v155 = vld [vmem:[%s0 + $0x230] sm:$0xf]
  %v156 = vld [vmem:[%s0 + $0x234] sm:$0xf]
  %v157 = vld [vmem:[%s0 + $0x238] sm:$0xf]
  %v158 = vld [vmem:[%s0 + $0x23c] sm:$0xf]
  %v159 = vld [vmem:[%s0 + $0x240] sm:$0xf]
  %v160 = vld [vmem:[%s0 + $0x244] sm:$0xf]
  %v161 = vld [vmem:[%s0 + $0x248] sm:$0xf]
  %v162 = vld [vmem:[%s0 + $0x24c] sm:$0xf]
  %v163 = vld [vmem:[%s0 + $0x250] sm:$0xf]
  %v164 = vld [vmem:[%s0 + $0x254] sm:$0xf]
  %v165 = vld [vmem:[%s0 + $0x258] sm:$0xf]
  %v166 = vld [vmem:[%s0 + $0x25c] sm:$0xf]
  %v167 = vld [vmem:[%s0 + $0x260] sm:$0xf]
  %v168 = vld [vmem:[%s0 + $0x264] sm:$0xf]
  %v169 = vld [vmem:[%s0 + $0x268] sm:$0xf]
  %v170 = vld [vmem:[%s0 + $0x26c] sm:$0xf]
  %v171 = vld [vmem:[%s0 + $0x270] sm:$0xf]
  %v172 = vld [vmem:[%s0 + $0x274] sm:$0xf]
  %v173 = vld [vmem:[%s0 + $0x278] sm:$0xf]
  %v174 = vld [vmem:[%s0 + $0x27c] sm:$0xf]
  %v175 = vld [vmem:[%s0 + $0x280] sm:$0xf]
  %v176 = vld [vmem:[%s0 + $0x284] sm:$0xf]
  %v177 = vld [vmem:[%s0 + $0x288] sm:$0xf]
  %v178 = vld [vmem:[%s0 + $0x28c] sm:$0xf]
  %v179 = vld [vmem:[%s0 + $0x290] sm:$0xf]
  %v180 = vld [vmem:[%s0 + $0x294] sm:$0xf]
  %v181 = vld [vmem:[%s0 + $0x298] sm:$0xf]
  %v182 = vld [vmem:[%s0 + $0x29c] sm:$0xf]
  %v183 = vld [vmem:[%s0 + $0x2a0] sm:$0xf]
  %v184 = vld [vmem:[%s0 + $0x2a4] sm:$0xf]
  %v185 = vld [vmem:[%s0 + $0x2a8] sm:$0xf]
  %v186 = vld [vmem:[%s0 + $0x2ac] sm:$0xf]
  %v187 = vld [vmem:[%s0 + $0x2b0] sm:$0xf]
  %v188 = vld [vmem:[%s0 + $0x2b4] sm:$0xf]
  %v189 = vld [vmem:[%s0 + $0x2b8] sm:$0xf]
  %v190 = vld [vmem:[%s0 + $0x2bc] sm:$0xf]
  %v191 = vld [vmem:[%s0 + $0x2c0] sm:$0xf]
  %v192 = vld [vmem:[%s0 + $0x2c4] sm:$0xf]
  %v193 = vld [vmem:[%s0 + $0x2c8] sm:$0xf]
  %v194 = vld [vmem:[%s0 + $0x2cc] sm:$0xf]
  %v195 = vld [vmem:[%s0 + $0x2d0] sm:$0xf]
  %v196 = vld [vmem:[%s0 + $0x2d4] sm:$0xf]
  %v197 = vld [vmem:[%s0 + $0x2d8] sm:$0xf]
  %v198 = vld [vmem:[%s0 + $0x2dc] sm:$0xf]
  %v199 = vld [vmem:[%s0 + $0x2e0] sm:$0xf]
  %v200 = vld [vmem:[%s0 + $0x2e4] sm:$0xf]
  %v201 = vld [vmem:[%s0 + $0x2e8] sm:$0xf]
  %v202 = vld [vmem:[%s0 + $0x2ec] sm:$0xf]
  %v203 = vld [vmem:[%s0 + $0x2f0] sm:$0xf]
  %v204 = vld [vmem:[%s0 + $0x2f4] sm:$0xf]
  %v205 = vld [vmem:[%s0 + $0x2f8] sm:$0xf]
  %v206 = vld [vmem:[%s0 + $0x2fc] sm:$0xf]
  %v207 = vld [vmem:[%s0 + $0x300] sm:$0xf]
  %v208 = vld [vmem:[%s0 + $0x304] sm:$0xf]
  %v209 = vld [vmem:[%s0 + $0x308] sm:$0xf]
  %v210 = vld [vmem:[%s0 + $0x30c] sm:$0xf]
  %v211 = vld [vmem:[%s1] sm:$0xf]
  %v212 = vld [vmem:[%s1 + $0x4] sm:$0xf]
  %v213 = vld [vmem:[%s1 + $0x8] sm:$0xf]
  %v214 = vld [vmem:[%s1 + $0xc] sm:$0x1]
  %v411 = vunpack.c.l.b16 %v15
  %v412 = vunpack.c.l.b16 %v16
  %v413 = vunpack.c.l.b16 %v17
  %v414 = vunpack.c.l.b16 %v18
  %v415 = vunpack.c.l.b16 %v19
  %v416 = vunpack.c.l.b16 %v20
  %v417 = vunpack.c.l.b16 %v21
  %v418 = vunpack.c.l.b16 %v22
  %v419 = vunpack.c.l.b16 %v23
  %v420 = vunpack.c.l.b16 %v24
  %v421 = vunpack.c.l.b16 %v25
  %v422 = vunpack.c.l.b16 %v26
  %v423 = vunpack.c.l.b16 %v27
  %v424 = vunpack.c.l.b16 %v28
  %v425 = vunpack.c.l.b16 %v29
  %v426 = vunpack.c.l.b16 %v30
  %v427 = vunpack.c.l.b16 %v31
  %v428 = vunpack.c.l.b16 %v32
  %v429 = vunpack.c.l.b16 %v33
  %v430 = vunpack.c.l.b16 %v34
  %v431 = vunpack.c.l.b16 %v35
  %v432 = vunpack.c.l.b16 %v36
  %v433 = vunpack.c.l.b16 %v37
  %v434 = vunpack.c.l.b16 %v38
  %v435 = vunpack.c.l.b16 %v39
  %v436 = vunpack.c.l.b16 %v40
  %v437 = vunpack.c.l.b16 %v41
  %v438 = vunpack.c.l.b16 %v42
  %v439 = vunpack.c.l.b16 %v43
  %v440 = vunpack.c.l.b16 %v44
  %v441 = vunpack.c.l.b16 %v45
  %v442 = vunpack.c.l.b16 %v46
  %v443 = vunpack.c.l.b16 %v47
  %v444 = vunpack.c.l.b16 %v48
  %v445 = vunpack.c.l.b16 %v49
  %v446 = vunpack.c.l.b16 %v50
  %v447 = vunpack.c.l.b16 %v51
  %v448 = vunpack.c.l.b16 %v52
  %v449 = vunpack.c.l.b16 %v53
  %v450 = vunpack.c.l.b16 %v54
  %v451 = vunpack.c.l.b16 %v55
  %v452 = vunpack.c.l.b16 %v56
  %v453 = vunpack.c.l.b16 %v57
  %v454 = vunpack.c.l.b16 %v58
  %v455 = vunpack.c.l.b16 %v59
  %v456 = vunpack.c.l.b16 %v60
  %v457 = vunpack.c.l.b16 %v61
  %v458 = vunpack.c.l.b16 %v62
  %v459 = vunpack.c.l.b16 %v63
  %v460 = vunpack.c.l.b16 %v64
  %v461 = vunpack.c.l.b16 %v65
  %v462 = vunpack.c.l.b16 %v66
  %v463 = vunpack.c.l.b16 %v67
  %v464 = vunpack.c.l.b16 %v68
  %v465 = vunpack.c.l.b16 %v69
  %v466 = vunpack.c.l.b16 %v70
  %v467 = vunpack.c.l.b16 %v71
  %v468 = vunpack.c.l.b16 %v72
  %v469 = vunpack.c.l.b16 %v73
  %v470 = vunpack.c.l.b16 %v74
  %v471 = vunpack.c.l.b16 %v75
  %v472 = vunpack.c.l.b16 %v76
  %v473 = vunpack.c.l.b16 %v77
  %v474 = vunpack.c.l.b16 %v78
  %v475 = vunpack.c.l.b16 %v79
  %v476 = vunpack.c.l.b16 %v80
  %v477 = vunpack.c.l.b16 %v81
  %v478 = vunpack.c.l.b16 %v82
  %v479 = vunpack.c.l.b16 %v83
  %v480 = vunpack.c.l.b16 %v84
  %v481 = vunpack.c.l.b16 %v85
  %v482 = vunpack.c.l.b16 %v86
  %v483 = vunpack.c.l.b16 %v87
  %v484 = vunpack.c.l.b16 %v88
  %v485 = vunpack.c.l.b16 %v89
  %v486 = vunpack.c.l.b16 %v90
  %v487 = vunpack.c.l.b16 %v91
  %v488 = vunpack.c.l.b16 %v92
  %v489 = vunpack.c.l.b16 %v93
  %v490 = vunpack.c.l.b16 %v94
  %v491 = vunpack.c.l.b16 %v95
  %v492 = vunpack.c.l.b16 %v96
  %v493 = vunpack.c.l.b16 %v97
  %v494 = vunpack.c.l.b16 %v98
  %v495 = vunpack.c.l.b16 %v99
  %v496 = vunpack.c.l.b16 %v100
  %v497 = vunpack.c.l.b16 %v101
  %v498 = vunpack.c.l.b16 %v102
  %v499 = vunpack.c.l.b16 %v103
  %v500 = vunpack.c.l.b16 %v104
  %v501 = vunpack.c.l.b16 %v105
  %v502 = vunpack.c.l.b16 %v106
  %v503 = vunpack.c.l.b16 %v107
  %v504 = vunpack.c.l.b16 %v108
  %v505 = vunpack.c.l.b16 %v109
  %v506 = vunpack.c.l.b16 %v110
  %v507 = vunpack.c.l.b16 %v111
  %v508 = vunpack.c.l.b16 %v112
  %v509 = vunpack.c.l.b16 %v113
  %v510 = vunpack.c.l.b16 %v114
  %v511 = vunpack.c.l.b16 %v115
  %v512 = vunpack.c.l.b16 %v116
  %v513 = vunpack.c.l.b16 %v117
  %v514 = vunpack.c.l.b16 %v118
  %v515 = vunpack.c.l.b16 %v119
  %v516 = vunpack.c.l.b16 %v120
  %v517 = vunpack.c.l.b16 %v121
  %v518 = vunpack.c.l.b16 %v122
  %v519 = vunpack.c.l.b16 %v123
  %v520 = vunpack.c.l.b16 %v124
  %v521 = vunpack.c.l.b16 %v125
  %v522 = vunpack.c.l.b16 %v126
  %v523 = vunpack.c.l.b16 %v127
  %v524 = vunpack.c.l.b16 %v128
  %v525 = vunpack.c.l.b16 %v129
  %v526 = vunpack.c.l.b16 %v130
  %v527 = vunpack.c.l.b16 %v131
  %v528 = vunpack.c.l.b16 %v132
  %v529 = vunpack.c.l.b16 %v133
  %v530 = vunpack.c.l.b16 %v134
  %v531 = vunpack.c.l.b16 %v135
  %v532 = vunpack.c.l.b16 %v136
  %v533 = vunpack.c.l.b16 %v137
  %v534 = vunpack.c.l.b16 %v138
  %v535 = vunpack.c.l.b16 %v139
  %v536 = vunpack.c.l.b16 %v140
  %v537 = vunpack.c.l.b16 %v141
  %v538 = vunpack.c.l.b16 %v142
  %v539 = vunpack.c.l.b16 %v143
  %v540 = vunpack.c.l.b16 %v144
  %v541 = vunpack.c.l.b16 %v145
  %v542 = vunpack.c.l.b16 %v146
  %v543 = vunpack.c.l.b16 %v147
  %v544 = vunpack.c.l.b16 %v148
  %v545 = vunpack.c.l.b16 %v149
  %v546 = vunpack.c.l.b16 %v150
  %v547 = vunpack.c.l.b16 %v151
  %v548 = vunpack.c.l.b16 %v152
  %v549 = vunpack.c.l.b16 %v153
  %v550 = vunpack.c.l.b16 %v154
  %v551 = vunpack.c.l.b16 %v155
  %v552 = vunpack.c.l.b16 %v156
  %v553 = vunpack.c.l.b16 %v157
  %v554 = vunpack.c.l.b16 %v158
  %v555 = vunpack.c.l.b16 %v159
  %v556 = vunpack.c.l.b16 %v160
  %v557 = vunpack.c.l.b16 %v161
  %v558 = vunpack.c.l.b16 %v162
  %v559 = vunpack.c.l.b16 %v163
  %v560 = vunpack.c.l.b16 %v164
  %v561 = vunpack.c.l.b16 %v165
  %v562 = vunpack.c.l.b16 %v166
  %v563 = vunpack.c.l.b16 %v167
  %v564 = vunpack.c.l.b16 %v168
  %v565 = vunpack.c.l.b16 %v169
  %v566 = vunpack.c.l.b16 %v170
  %v567 = vunpack.c.l.b16 %v171
  %v568 = vunpack.c.l.b16 %v172
  %v569 = vunpack.c.l.b16 %v173
  %v570 = vunpack.c.l.b16 %v174
  %v571 = vunpack.c.l.b16 %v175
  %v572 = vunpack.c.l.b16 %v176
  %v573 = vunpack.c.l.b16 %v177
  %v574 = vunpack.c.l.b16 %v178
  %v575 = vunpack.c.l.b16 %v179
  %v576 = vunpack.c.l.b16 %v180
  %v577 = vunpack.c.l.b16 %v181
  %v578 = vunpack.c.l.b16 %v182
  %v579 = vunpack.c.l.b16 %v183
  %v580 = vunpack.c.l.b16 %v184
  %v581 = vunpack.c.l.b16 %v185
  %v582 = vunpack.c.l.b16 %v186
  %v583 = vunpack.c.l.b16 %v187
  %v584 = vunpack.c.l.b16 %v188
  %v585 = vunpack.c.l.b16 %v189
  %v586 = vunpack.c.l.b16 %v190
  %v587 = vunpack.c.l.b16 %v191
  %v588 = vunpack.c.l.b16 %v192
  %v589 = vunpack.c.l.b16 %v193
  %v590 = vunpack.c.l.b16 %v194
  %v591 = vunpack.c.l.b16 %v195
  %v592 = vunpack.c.l.b16 %v196
  %v593 = vunpack.c.l.b16 %v197
  %v594 = vunpack.c.l.b16 %v198
  %v595 = vunpack.c.l.b16 %v199
  %v596 = vunpack.c.l.b16 %v200
  %v597 = vunpack.c.l.b16 %v201
  %v598 = vunpack.c.l.b16 %v202
  %v599 = vunpack.c.l.b16 %v203
  %v600 = vunpack.c.l.b16 %v204
  %v601 = vunpack.c.l.b16 %v205
  %v602 = vunpack.c.l.b16 %v206
  %v603 = vunpack.c.l.b16 %v207
  %v604 = vunpack.c.l.b16 %v208
  %v605 = vunpack.c.l.b16 %v209
  %v606 = vunpack.c.l.b16 %v210
  %v607 = vpack.c.b16 %v412, %v411
  %v608 = vpack.c.b16 %v414, %v413
  %v609 = vpack.c.b16 %v416, %v415
  %v610 = vpack.c.b16 %v418, %v417
  %v611 = vpack.c.b16 %v420, %v419
  %v612 = vpack.c.b16 %v422, %v421
  %v613 = vpack.c.b16 %v424, %v423
  %v614 = vpack.c.b16 %v426, %v425
  %v615 = vpack.c.b16 %v428, %v427
  %v616 = vpack.c.b16 %v430, %v429
  %v617 = vpack.c.b16 %v432, %v431
  %v618 = vpack.c.b16 %v434, %v433
  %v619 = vpack.c.b16 %v436, %v435
  %v620 = vpack.c.b16 %v438, %v437
  %v621 = vpack.c.b16 %v440, %v439
  %v622 = vpack.c.b16 %v442, %v441
  %v623 = vpack.c.b16 %v444, %v443
  %v624 = vpack.c.b16 %v446, %v445
  %v625 = vpack.c.b16 %v448, %v447
  %v626 = vpack.c.b16 %v450, %v449
  %v627 = vpack.c.b16 %v452, %v451
  %v628 = vpack.c.b16 %v454, %v453
  %v629 = vpack.c.b16 %v456, %v455
  %v630 = vpack.c.b16 %v458, %v457
  %v631 = vpack.c.b16 %v460, %v459
  %v632 = vpack.c.b16 %v462, %v461
  %v633 = vpack.c.b16 %v464, %v463
  %v634 = vpack.c.b16 %v466, %v465
  %v635 = vpack.c.b16 %v468, %v467
  %v636 = vpack.c.b16 %v470, %v469
  %v637 = vpack.c.b16 %v472, %v471
  %v638 = vpack.c.b16 %v474, %v473
  %v639 = vpack.c.b16 %v476, %v475
  %v640 = vpack.c.b16 %v478, %v477
  %v641 = vpack.c.b16 %v480, %v479
  %v642 = vpack.c.b16 %v482, %v481
  %v643 = vpack.c.b16 %v484, %v483
  %v644 = vpack.c.b16 %v486, %v485
  %v645 = vpack.c.b16 %v488, %v487
  %v646 = vpack.c.b16 %v490, %v489
  %v647 = vpack.c.b16 %v492, %v491
  %v648 = vpack.c.b16 %v494, %v493
  %v649 = vpack.c.b16 %v496, %v495
  %v650 = vpack.c.b16 %v498, %v497
  %v651 = vpack.c.b16 %v500, %v499
  %v652 = vpack.c.b16 %v502, %v501
  %v653 = vpack.c.b16 %v504, %v503
  %v654 = vpack.c.b16 %v506, %v505
  %v655 = vpack.c.b16 %v508, %v507
  %v656 = vpack.c.b16 %v510, %v509
  %v657 = vpack.c.b16 %v512, %v511
  %v658 = vpack.c.b16 %v514, %v513
  %v659 = vpack.c.b16 %v516, %v515
  %v660 = vpack.c.b16 %v518, %v517
  %v661 = vpack.c.b16 %v520, %v519
  %v662 = vpack.c.b16 %v522, %v521
  %v663 = vpack.c.b16 %v524, %v523
  %v664 = vpack.c.b16 %v526, %v525
  %v665 = vpack.c.b16 %v528, %v527
  %v666 = vpack.c.b16 %v530, %v529
  %v667 = vpack.c.b16 %v532, %v531
  %v668 = vpack.c.b16 %v534, %v533
  %v669 = vpack.c.b16 %v536, %v535
  %v670 = vpack.c.b16 %v538, %v537
  %v671 = vpack.c.b16 %v540, %v539
  %v672 = vpack.c.b16 %v542, %v541
  %v673 = vpack.c.b16 %v544, %v543
  %v674 = vpack.c.b16 %v546, %v545
  %v675 = vpack.c.b16 %v548, %v547
  %v676 = vpack.c.b16 %v550, %v549
  %v677 = vpack.c.b16 %v552, %v551
  %v678 = vpack.c.b16 %v554, %v553
  %v679 = vpack.c.b16 %v556, %v555
  %v680 = vpack.c.b16 %v558, %v557
  %v681 = vpack.c.b16 %v560, %v559
  %v682 = vpack.c.b16 %v562, %v561
  %v683 = vpack.c.b16 %v564, %v563
  %v684 = vpack.c.b16 %v566, %v565
  %v685 = vpack.c.b16 %v568, %v567
  %v686 = vpack.c.b16 %v570, %v569
  %v687 = vpack.c.b16 %v572, %v571
  %v688 = vpack.c.b16 %v574, %v573
  %v689 = vpack.c.b16 %v576, %v575
  %v690 = vpack.c.b16 %v578, %v577
  %v691 = vpack.c.b16 %v580, %v579
  %v692 = vpack.c.b16 %v582, %v581
  %v693 = vpack.c.b16 %v584, %v583
  %v694 = vpack.c.b16 %v586, %v585
  %v695 = vpack.c.b16 %v588, %v587
  %v696 = vpack.c.b16 %v590, %v589
  %v697 = vpack.c.b16 %v592, %v591
  %v698 = vpack.c.b16 %v594, %v593
  %v699 = vpack.c.b16 %v596, %v595
  %v700 = vpack.c.b16 %v598, %v597
  %v701 = vpack.c.b16 %v600, %v599
  %v702 = vpack.c.b16 %v602, %v601
  %v703 = vpack.c.b16 %v604, %v603
  %v704 = vpack.c.b16 %v606, %v605
  %v709 = vunpack.c.l.b16 %v211
  %v710 = vunpack.c.l.b16 %v212
  %v711 = vunpack.c.l.b16 %v213
  %v712 = vunpack.c.l.b16 %v214
  %v713 = vpack.c.b16 %v710, %v709
  %v714 = vpack.c.b16 %v712, %v711
  %vm716 = vcmask 203776
  %v718 = vsel %vm716, %v607, 0
  %v721 = vsel %vm716, %v608, 0
  %v724 = vsel %vm716, %v609, 0
  %v727 = vsel %vm716, %v610, 0
  %v730 = vsel %vm716, %v611, 0
  %v733 = vsel %vm716, %v612, 0
  %v736 = vsel %vm716, %v613, 0
  %v739 = vsel %vm716, %v614, 0
  %v742 = vsel %vm716, %v615, 0
  %v745 = vsel %vm716, %v616, 0
  %v748 = vsel %vm716, %v617, 0
  %v751 = vsel %vm716, %v618, 0
  %v754 = vsel %vm716, %v619, 0
  %v757 = vsel %vm716, %v620, 0
  %v760 = vsel %vm716, %v621, 0
  %v763 = vsel %vm716, %v622, 0
  %v766 = vsel %vm716, %v623, 0
  %v769 = vsel %vm716, %v624, 0
  %v772 = vsel %vm716, %v625, 0
  %v775 = vsel %vm716, %v626, 0
  %v778 = vsel %vm716, %v627, 0
  %v781 = vsel %vm716, %v628, 0
  %v784 = vsel %vm716, %v629, 0
  %v787 = vsel %vm716, %v630, 0
  %v790 = vsel %vm716, %v631, 0
  %v793 = vsel %vm716, %v632, 0
  %v796 = vsel %vm716, %v633, 0
  %v799 = vsel %vm716, %v634, 0
  %v802 = vsel %vm716, %v635, 0
  %v805 = vsel %vm716, %v636, 0
  %v808 = vsel %vm716, %v637, 0
  %v811 = vsel %vm716, %v638, 0
  %v814 = vsel %vm716, %v639, 0
  %v817 = vsel %vm716, %v640, 0
  %v820 = vsel %vm716, %v641, 0
  %v823 = vsel %vm716, %v642, 0
  %v826 = vsel %vm716, %v643, 0
  %v829 = vsel %vm716, %v644, 0
  %v832 = vsel %vm716, %v645, 0
  %v835 = vsel %vm716, %v646, 0
  %v838 = vsel %vm716, %v647, 0
  %v841 = vsel %vm716, %v648, 0
  %v844 = vsel %vm716, %v649, 0
  %v847 = vsel %vm716, %v650, 0
  %v850 = vsel %vm716, %v651, 0
  %v853 = vsel %vm716, %v652, 0
  %v856 = vsel %vm716, %v653, 0
  %v859 = vsel %vm716, %v654, 0
  %v862 = vsel %vm716, %v655, 0
  %v865 = vsel %vm716, %v656, 0
  %v868 = vsel %vm716, %v657, 0
  %v871 = vsel %vm716, %v658, 0
  %v874 = vsel %vm716, %v659, 0
  %v877 = vsel %vm716, %v660, 0
  %v880 = vsel %vm716, %v661, 0
  %v883 = vsel %vm716, %v662, 0
  %v886 = vsel %vm716, %v663, 0
  %v889 = vsel %vm716, %v664, 0
  %v892 = vsel %vm716, %v665, 0
  %v895 = vsel %vm716, %v666, 0
  %v898 = vsel %vm716, %v667, 0
  %v901 = vsel %vm716, %v668, 0
  %v904 = vsel %vm716, %v669, 0
  %v907 = vsel %vm716, %v670, 0
  %v910 = vsel %vm716, %v671, 0
  %v913 = vsel %vm716, %v672, 0
  %v916 = vsel %vm716, %v673, 0
  %v919 = vsel %vm716, %v674, 0
  %v922 = vsel %vm716, %v675, 0
  %v925 = vsel %vm716, %v676, 0
  %v928 = vsel %vm716, %v677, 0
  %v931 = vsel %vm716, %v678, 0
  %v934 = vsel %vm716, %v679, 0
  %v937 = vsel %vm716, %v680, 0
  %v940 = vsel %vm716, %v681, 0
  %v943 = vsel %vm716, %v682, 0
  %v946 = vsel %vm716, %v683, 0
  %v949 = vsel %vm716, %v684, 0
  %v952 = vsel %vm716, %v685, 0
  %v955 = vsel %vm716, %v686, 0
  %v958 = vsel %vm716, %v687, 0
  %v961 = vsel %vm716, %v688, 0
  %v964 = vsel %vm716, %v689, 0
  %v967 = vsel %vm716, %v690, 0
  %v970 = vsel %vm716, %v691, 0
  %v973 = vsel %vm716, %v692, 0
  %v976 = vsel %vm716, %v693, 0
  %v979 = vsel %vm716, %v694, 0
  %v982 = vsel %vm716, %v695, 0
  %v985 = vsel %vm716, %v696, 0
  %v988 = vsel %vm716, %v697, 0
  %v991 = vsel %vm716, %v698, 0
  %v994 = vsel %vm716, %v699, 0
  %v997 = vsel %vm716, %v700, 0
  %v1000 = vsel %vm716, %v701, 0
  %v1003 = vsel %vm716, %v702, 0
  %v1006 = vsel %vm716, %v703, 0
  %v1009 = vsel %vm716, %v704, 0
  %vm1011 = vcmask 1043456
  %vm1012 = vcmask 1044480
  %v1013 = vsel %vm1011, 4294967295, 65535
  %v1014 = vsel %vm1012, %v1013, 0
  %v1016 = vand.u32 %v714, %v1014
  %1018 = vmatprep.subr.bf16.mxu0 0
  %1019 = vmatpush1.bf16.msra.mxu0 0
  %1020 = vmatprep.subr.bf16.mxu0 0
  %1021 = vmatpush1.bf16.msra.mxu0 0
  %1022 = vmatprep.subr.bf16.mxu0 0
  %1023 = vmatpush1.bf16.msra.mxu0 0
  %1024 = vmatprep.subr.bf16.mxu0 0
  %1025 = vmatpush1.bf16.msra.mxu0 0
  %1026 = vmatprep.subr.bf16.mxu0 0
  %1027 = vmatpush1.bf16.msra.mxu0 0
  %1028 = vmatprep.subr.bf16.mxu0 0
  %1029 = vmatpush1.bf16.msra.mxu0 0
  %1030 = vmatprep.subr.bf16.mxu0 0
  %1031 = vmatpush1.bf16.msra.mxu0 %v1016
  %1032 = vmatprep.subr.bf16.mxu0 0
  %1033 = vmatpush1.bf16.msra.mxu0 %v713
  %1034 = vmatprep.subr.bf16.mxu0 0
  %1035 = vmatpush2.bf16.msra.mxu0 0
  %1036 = vmatprep.subr.bf16.mxu0 0
  %1037 = vmatpush2.bf16.msra.mxu0 0
  %1038 = vmatprep.subr.bf16.mxu0 0
  %1039 = vmatpush2.bf16.msra.mxu0 0
  %1040 = vmatprep.subr.bf16.mxu0 0
  %1041 = vmatpush2.bf16.msra.mxu0 0
  %1042 = vmatprep.subr.bf16.mxu0 0
  %1043 = vmatpush2.bf16.msra.mxu0 0
  %1044 = vmatprep.subr.bf16.mxu0 0
  %1045 = vmatpush2.bf16.msra.mxu0 0
  %1046 = vmatprep.subr.bf16.mxu0 0
  %1047 = vmatpush2.bf16.msra.mxu0 0
  %1048 = vmatprep.subr.bf16.mxu0 0
  %1049 = vmatpush2.bf16.msra.mxu0 0
  %1050 = vmatprep.mubr.bf16.mxu0 0
  %1051 = vmatmul.mubr.bf16.gmra.mxu0 %v718
  %v1052 = vpop.f32.mrf.mxu0
  %v1053 = vadd.f32 0.0, %v1052
  %v1054 = vpop.f32.mrf.mxu0
  %v1055 = vpop.f32.mrf.mxu0
  %v1056 = vadd.f32 0.0, %v1055
  %v1057 = vpop.f32.mrf.mxu0
  %1058 = vmatprep.mubr.bf16.mxu0 0
  %1059 = vmatmul.mubr.bf16.gmra.mxu0 %v721
  %v1060 = vpop.f32.mrf.mxu0
  %v1061 = vadd.f32 0.0, %v1060
  %v1062 = vpop.f32.mrf.mxu0
  %v1063 = vpop.f32.mrf.mxu0
  %v1064 = vadd.f32 0.0, %v1063
  %v1065 = vpop.f32.mrf.mxu0
  %1066 = vmatprep.mubr.bf16.mxu0 0
  %1067 = vmatmul.mubr.bf16.gmra.mxu0 %v724
  %v1068 = vpop.f32.mrf.mxu0
  %v1069 = vadd.f32 0.0, %v1068
  %v1070 = vpop.f32.mrf.mxu0
  %v1071 = vpop.f32.mrf.mxu0
  %v1072 = vadd.f32 0.0, %v1071
  %v1073 = vpop.f32.mrf.mxu0
  %1074 = vmatprep.mubr.bf16.mxu0 0
  %1075 = vmatmul.mubr.bf16.gmra.mxu0 %v727
  %v1076 = vpop.f32.mrf.mxu0
  %v1077 = vadd.f32 0.0, %v1076
  %v1078 = vpop.f32.mrf.mxu0
  %v1079 = vpop.f32.mrf.mxu0
  %v1080 = vadd.f32 0.0, %v1079
  %v1081 = vpop.f32.mrf.mxu0
  %1082 = vmatprep.mubr.bf16.mxu0 0
  %1083 = vmatmul.mubr.bf16.gmra.mxu0 %v730
  %v1084 = vpop.f32.mrf.mxu0
  %v1085 = vadd.f32 0.0, %v1084
  %v1086 = vpop.f32.mrf.mxu0
  %v1087 = vpop.f32.mrf.mxu0
  %v1088 = vadd.f32 0.0, %v1087
  %v1089 = vpop.f32.mrf.mxu0
  %1090 = vmatprep.mubr.bf16.mxu0 0
  %1091 = vmatmul.mubr.bf16.gmra.mxu0 %v733
  %v1092 = vpop.f32.mrf.mxu0
  %v1093 = vadd.f32 0.0, %v1092
  %v1094 = vpop.f32.mrf.mxu0
  %v1095 = vpop.f32.mrf.mxu0
  %v1096 = vadd.f32 0.0, %v1095
  %v1097 = vpop.f32.mrf.mxu0
  %1098 = vmatprep.mubr.bf16.mxu0 0
  %1099 = vmatmul.mubr.bf16.gmra.mxu0 %v736
  %v1100 = vpop.f32.mrf.mxu0
  %v1101 = vadd.f32 0.0, %v1100
  %v1102 = vpop.f32.mrf.mxu0
  %v1103 = vpop.f32.mrf.mxu0
  %v1104 = vadd.f32 0.0, %v1103
  %v1105 = vpop.f32.mrf.mxu0
  %1106 = vmatprep.mubr.bf16.mxu0 0
  %1107 = vmatmul.mubr.bf16.gmra.mxu0 %v739
  %v1108 = vpop.f32.mrf.mxu0
  %v1109 = vadd.f32 0.0, %v1108
  %v1110 = vpop.f32.mrf.mxu0
  %v1111 = vpop.f32.mrf.mxu0
  %v1112 = vadd.f32 0.0, %v1111
  %v1113 = vpop.f32.mrf.mxu0
  %1114 = vmatprep.mubr.bf16.mxu0 0
  %1115 = vmatmul.mubr.bf16.gmra.mxu0 %v742
  %v1116 = vpop.f32.mrf.mxu0
  %v1117 = vadd.f32 0.0, %v1116
  %v1118 = vpop.f32.mrf.mxu0
  %v1119 = vpop.f32.mrf.mxu0
  %v1120 = vadd.f32 0.0, %v1119
  %v1121 = vpop.f32.mrf.mxu0
  %1122 = vmatprep.mubr.bf16.mxu0 0
  %1123 = vmatmul.mubr.bf16.gmra.mxu0 %v745
  %v1124 = vpop.f32.mrf.mxu0
  %v1125 = vadd.f32 0.0, %v1124
  %v1126 = vpop.f32.mrf.mxu0
  %v1127 = vpop.f32.mrf.mxu0
  %v1128 = vadd.f32 0.0, %v1127
  %v1129 = vpop.f32.mrf.mxu0
  %1130 = vmatprep.mubr.bf16.mxu0 0
  %1131 = vmatmul.mubr.bf16.gmra.mxu0 %v748
  %v1132 = vpop.f32.mrf.mxu0
  %v1133 = vadd.f32 0.0, %v1132
  %v1134 = vpop.f32.mrf.mxu0
  %v1135 = vpop.f32.mrf.mxu0
  %v1136 = vadd.f32 0.0, %v1135
  %v1137 = vpop.f32.mrf.mxu0
  %1138 = vmatprep.mubr.bf16.mxu0 0
  %1139 = vmatmul.mubr.bf16.gmra.mxu0 %v751
  %v1140 = vpop.f32.mrf.mxu0
  %v1141 = vadd.f32 0.0, %v1140
  %v1142 = vpop.f32.mrf.mxu0
  %v1143 = vpop.f32.mrf.mxu0
  %v1144 = vadd.f32 0.0, %v1143
  %v1145 = vpop.f32.mrf.mxu0
  %1146 = vmatprep.mubr.bf16.mxu0 0
  %1147 = vmatmul.mubr.bf16.gmra.mxu0 %v754
  %v1148 = vpop.f32.mrf.mxu0
  %v1149 = vadd.f32 0.0, %v1148
  %v1150 = vpop.f32.mrf.mxu0
  %v1151 = vpop.f32.mrf.mxu0
  %v1152 = vadd.f32 0.0, %v1151
  %v1153 = vpop.f32.mrf.mxu0
  %1154 = vmatprep.mubr.bf16.mxu0 0
  %1155 = vmatmul.mubr.bf16.gmra.mxu0 %v757
  %v1156 = vpop.f32.mrf.mxu0
  %v1157 = vadd.f32 0.0, %v1156
  %v1158 = vpop.f32.mrf.mxu0
  %v1159 = vpop.f32.mrf.mxu0
  %v1160 = vadd.f32 0.0, %v1159
  %v1161 = vpop.f32.mrf.mxu0
  %1162 = vmatprep.mubr.bf16.mxu0 0
  %1163 = vmatmul.mubr.bf16.gmra.mxu0 %v760
  %v1164 = vpop.f32.mrf.mxu0
  %v1165 = vadd.f32 0.0, %v1164
  %v1166 = vpop.f32.mrf.mxu0
  %v1167 = vpop.f32.mrf.mxu0
  %v1168 = vadd.f32 0.0, %v1167
  %v1169 = vpop.f32.mrf.mxu0
  %1170 = vmatprep.mubr.bf16.mxu0 0
  %1171 = vmatmul.mubr.bf16.gmra.mxu0 %v763
  %v1172 = vpop.f32.mrf.mxu0
  %v1173 = vadd.f32 0.0, %v1172
  %v1174 = vpop.f32.mrf.mxu0
  %v1175 = vpop.f32.mrf.mxu0
  %v1176 = vadd.f32 0.0, %v1175
  %v1177 = vpop.f32.mrf.mxu0
  %1178 = vmatprep.mubr.bf16.mxu0 0
  %1179 = vmatmul.mubr.bf16.gmra.mxu0 %v766
  %v1180 = vpop.f32.mrf.mxu0
  %v1181 = vadd.f32 0.0, %v1180
  %v1182 = vpop.f32.mrf.mxu0
  %v1183 = vpop.f32.mrf.mxu0
  %v1184 = vadd.f32 0.0, %v1183
  %v1185 = vpop.f32.mrf.mxu0
  %1186 = vmatprep.mubr.bf16.mxu0 0
  %1187 = vmatmul.mubr.bf16.gmra.mxu0 %v769
  %v1188 = vpop.f32.mrf.mxu0
  %v1189 = vadd.f32 0.0, %v1188
  %v1190 = vpop.f32.mrf.mxu0
  %v1191 = vpop.f32.mrf.mxu0
  %v1192 = vadd.f32 0.0, %v1191
  %v1193 = vpop.f32.mrf.mxu0
  %1194 = vmatprep.mubr.bf16.mxu0 0
  %1195 = vmatmul.mubr.bf16.gmra.mxu0 %v772
  %v1196 = vpop.f32.mrf.mxu0
  %v1197 = vadd.f32 0.0, %v1196
  %v1198 = vpop.f32.mrf.mxu0
  %v1199 = vpop.f32.mrf.mxu0
  %v1200 = vadd.f32 0.0, %v1199
  %v1201 = vpop.f32.mrf.mxu0
  %1202 = vmatprep.mubr.bf16.mxu0 0
  %1203 = vmatmul.mubr.bf16.gmra.mxu0 %v775
  %v1204 = vpop.f32.mrf.mxu0
  %v1205 = vadd.f32 0.0, %v1204
  %v1206 = vpop.f32.mrf.mxu0
  %v1207 = vpop.f32.mrf.mxu0
  %v1208 = vadd.f32 0.0, %v1207
  %v1209 = vpop.f32.mrf.mxu0
  %1210 = vmatprep.mubr.bf16.mxu0 0
  %1211 = vmatmul.mubr.bf16.gmra.mxu0 %v778
  %v1212 = vpop.f32.mrf.mxu0
  %v1213 = vadd.f32 0.0, %v1212
  %v1214 = vpop.f32.mrf.mxu0
  %v1215 = vpop.f32.mrf.mxu0
  %v1216 = vadd.f32 0.0, %v1215
  %v1217 = vpop.f32.mrf.mxu0
  %1218 = vmatprep.mubr.bf16.mxu0 0
  %1219 = vmatmul.mubr.bf16.gmra.mxu0 %v781
  %v1220 = vpop.f32.mrf.mxu0
  %v1221 = vadd.f32 0.0, %v1220
  %v1222 = vpop.f32.mrf.mxu0
  %v1223 = vpop.f32.mrf.mxu0
  %v1224 = vadd.f32 0.0, %v1223
  %v1225 = vpop.f32.mrf.mxu0
  %1226 = vmatprep.mubr.bf16.mxu0 0
  %1227 = vmatmul.mubr.bf16.gmra.mxu0 %v784
  %v1228 = vpop.f32.mrf.mxu0
  %v1229 = vadd.f32 0.0, %v1228
  %v1230 = vpop.f32.mrf.mxu0
  %v1231 = vpop.f32.mrf.mxu0
  %v1232 = vadd.f32 0.0, %v1231
  %v1233 = vpop.f32.mrf.mxu0
  %1234 = vmatprep.mubr.bf16.mxu0 0
  %1235 = vmatmul.mubr.bf16.gmra.mxu0 %v787
  %v1236 = vpop.f32.mrf.mxu0
  %v1237 = vadd.f32 0.0, %v1236
  %v1238 = vpop.f32.mrf.mxu0
  %v1239 = vpop.f32.mrf.mxu0
  %v1240 = vadd.f32 0.0, %v1239
  %v1241 = vpop.f32.mrf.mxu0
  %1242 = vmatprep.mubr.bf16.mxu0 0
  %1243 = vmatmul.mubr.bf16.gmra.mxu0 %v790
  %v1244 = vpop.f32.mrf.mxu0
  %v1245 = vadd.f32 0.0, %v1244
  %v1246 = vpop.f32.mrf.mxu0
  %v1247 = vpop.f32.mrf.mxu0
  %v1248 = vadd.f32 0.0, %v1247
  %v1249 = vpop.f32.mrf.mxu0
  %1250 = vmatprep.mubr.bf16.mxu0 0
  %1251 = vmatmul.mubr.bf16.gmra.mxu0 %v793
  %v1252 = vpop.f32.mrf.mxu0
  %v1253 = vadd.f32 0.0, %v1252
  %v1254 = vpop.f32.mrf.mxu0
  %v1255 = vpop.f32.mrf.mxu0
  %v1256 = vadd.f32 0.0, %v1255
  %v1257 = vpop.f32.mrf.mxu0
  %1258 = vmatprep.mubr.bf16.mxu0 0
  %1259 = vmatmul.mubr.bf16.gmra.mxu0 %v796
  %v1260 = vpop.f32.mrf.mxu0
  %v1261 = vadd.f32 0.0, %v1260
  %v1262 = vpop.f32.mrf.mxu0
  %v1263 = vpop.f32.mrf.mxu0
  %v1264 = vadd.f32 0.0, %v1263
  %v1265 = vpop.f32.mrf.mxu0
  %1266 = vmatprep.mubr.bf16.mxu0 0
  %1267 = vmatmul.mubr.bf16.gmra.mxu0 %v799
  %v1268 = vpop.f32.mrf.mxu0
  %v1269 = vadd.f32 0.0, %v1268
  %v1270 = vpop.f32.mrf.mxu0
  %v1271 = vpop.f32.mrf.mxu0
  %v1272 = vadd.f32 0.0, %v1271
  %v1273 = vpop.f32.mrf.mxu0
  %1274 = vmatprep.mubr.bf16.mxu0 0
  %1275 = vmatmul.mubr.bf16.gmra.mxu0 %v802
  %v1276 = vpop.f32.mrf.mxu0
  %v1277 = vadd.f32 0.0, %v1276
  %v1278 = vpop.f32.mrf.mxu0
  %v1279 = vpop.f32.mrf.mxu0
  %v1280 = vadd.f32 0.0, %v1279
  %v1281 = vpop.f32.mrf.mxu0
  %1282 = vmatprep.mubr.bf16.mxu0 0
  %1283 = vmatmul.mubr.bf16.gmra.mxu0 %v805
  %v1284 = vpop.f32.mrf.mxu0
  %v1285 = vadd.f32 0.0, %v1284
  %v1286 = vpop.f32.mrf.mxu0
  %v1287 = vpop.f32.mrf.mxu0
  %v1288 = vadd.f32 0.0, %v1287
  %v1289 = vpop.f32.mrf.mxu0
  %1290 = vmatprep.mubr.bf16.mxu0 0
  %1291 = vmatmul.mubr.bf16.gmra.mxu0 %v808
  %v1292 = vpop.f32.mrf.mxu0
  %v1293 = vadd.f32 0.0, %v1292
  %v1294 = vpop.f32.mrf.mxu0
  %v1295 = vpop.f32.mrf.mxu0
  %v1296 = vadd.f32 0.0, %v1295
  %v1297 = vpop.f32.mrf.mxu0
  %1298 = vmatprep.mubr.bf16.mxu0 0
  %1299 = vmatmul.mubr.bf16.gmra.mxu0 %v811
  %v1300 = vpop.f32.mrf.mxu0
  %v1301 = vadd.f32 0.0, %v1300
  %v1302 = vpop.f32.mrf.mxu0
  %v1303 = vpop.f32.mrf.mxu0
  %v1304 = vadd.f32 0.0, %v1303
  %v1305 = vpop.f32.mrf.mxu0
  %1306 = vmatprep.mubr.bf16.mxu0 0
  %1307 = vmatmul.mubr.bf16.gmra.mxu0 %v814
  %v1308 = vpop.f32.mrf.mxu0
  %v1309 = vadd.f32 0.0, %v1308
  %v1310 = vpop.f32.mrf.mxu0
  %v1311 = vpop.f32.mrf.mxu0
  %v1312 = vadd.f32 0.0, %v1311
  %v1313 = vpop.f32.mrf.mxu0
  %1314 = vmatprep.mubr.bf16.mxu0 0
  %1315 = vmatmul.mubr.bf16.gmra.mxu0 %v817
  %v1316 = vpop.f32.mrf.mxu0
  %v1317 = vadd.f32 0.0, %v1316
  %v1318 = vpop.f32.mrf.mxu0
  %v1319 = vpop.f32.mrf.mxu0
  %v1320 = vadd.f32 0.0, %v1319
  %v1321 = vpop.f32.mrf.mxu0
  %1322 = vmatprep.mubr.bf16.mxu0 0
  %1323 = vmatmul.mubr.bf16.gmra.mxu0 %v820
  %v1324 = vpop.f32.mrf.mxu0
  %v1325 = vadd.f32 0.0, %v1324
  %v1326 = vpop.f32.mrf.mxu0
  %v1327 = vpop.f32.mrf.mxu0
  %v1328 = vadd.f32 0.0, %v1327
  %v1329 = vpop.f32.mrf.mxu0
  %1330 = vmatprep.mubr.bf16.mxu0 0
  %1331 = vmatmul.mubr.bf16.gmra.mxu0 %v823
  %v1332 = vpop.f32.mrf.mxu0
  %v1333 = vadd.f32 0.0, %v1332
  %v1334 = vpop.f32.mrf.mxu0
  %v1335 = vpop.f32.mrf.mxu0
  %v1336 = vadd.f32 0.0, %v1335
  %v1337 = vpop.f32.mrf.mxu0
  %1338 = vmatprep.mubr.bf16.mxu0 0
  %1339 = vmatmul.mubr.bf16.gmra.mxu0 %v826
  %v1340 = vpop.f32.mrf.mxu0
  %v1341 = vadd.f32 0.0, %v1340
  %v1342 = vpop.f32.mrf.mxu0
  %v1343 = vpop.f32.mrf.mxu0
  %v1344 = vadd.f32 0.0, %v1343
  %v1345 = vpop.f32.mrf.mxu0
  %1346 = vmatprep.mubr.bf16.mxu0 0
  %1347 = vmatmul.mubr.bf16.gmra.mxu0 %v829
  %v1348 = vpop.f32.mrf.mxu0
  %v1349 = vadd.f32 0.0, %v1348
  %v1350 = vpop.f32.mrf.mxu0
  %v1351 = vpop.f32.mrf.mxu0
  %v1352 = vadd.f32 0.0, %v1351
  %v1353 = vpop.f32.mrf.mxu0
  %1354 = vmatprep.mubr.bf16.mxu0 0
  %1355 = vmatmul.mubr.bf16.gmra.mxu0 %v832
  %v1356 = vpop.f32.mrf.mxu0
  %v1357 = vadd.f32 0.0, %v1356
  %v1358 = vpop.f32.mrf.mxu0
  %v1359 = vpop.f32.mrf.mxu0
  %v1360 = vadd.f32 0.0, %v1359
  %v1361 = vpop.f32.mrf.mxu0
  %1362 = vmatprep.mubr.bf16.mxu0 0
  %1363 = vmatmul.mubr.bf16.gmra.mxu0 %v835
  %v1364 = vpop.f32.mrf.mxu0
  %v1365 = vadd.f32 0.0, %v1364
  %v1366 = vpop.f32.mrf.mxu0
  %v1367 = vpop.f32.mrf.mxu0
  %v1368 = vadd.f32 0.0, %v1367
  %v1369 = vpop.f32.mrf.mxu0
  %1370 = vmatprep.mubr.bf16.mxu0 0
  %1371 = vmatmul.mubr.bf16.gmra.mxu0 %v838
  %v1372 = vpop.f32.mrf.mxu0
  %v1373 = vadd.f32 0.0, %v1372
  %v1374 = vpop.f32.mrf.mxu0
  %v1375 = vpop.f32.mrf.mxu0
  %v1376 = vadd.f32 0.0, %v1375
  %v1377 = vpop.f32.mrf.mxu0
  %1378 = vmatprep.mubr.bf16.mxu0 0
  %1379 = vmatmul.mubr.bf16.gmra.mxu0 %v841
  %v1380 = vpop.f32.mrf.mxu0
  %v1381 = vadd.f32 0.0, %v1380
  %v1382 = vpop.f32.mrf.mxu0
  %v1383 = vpop.f32.mrf.mxu0
  %v1384 = vadd.f32 0.0, %v1383
  %v1385 = vpop.f32.mrf.mxu0
  %1386 = vmatprep.mubr.bf16.mxu0 0
  %1387 = vmatmul.mubr.bf16.gmra.mxu0 %v844
  %v1388 = vpop.f32.mrf.mxu0
  %v1389 = vadd.f32 0.0, %v1388
  %v1390 = vpop.f32.mrf.mxu0
  %v1391 = vpop.f32.mrf.mxu0
  %v1392 = vadd.f32 0.0, %v1391
  %v1393 = vpop.f32.mrf.mxu0
  %1394 = vmatprep.mubr.bf16.mxu0 0
  %1395 = vmatmul.mubr.bf16.gmra.mxu0 %v847
  %v1396 = vpop.f32.mrf.mxu0
  %v1397 = vadd.f32 0.0, %v1396
  %v1398 = vpop.f32.mrf.mxu0
  %v1399 = vpop.f32.mrf.mxu0
  %v1400 = vadd.f32 0.0, %v1399
  %v1401 = vpop.f32.mrf.mxu0
  %1402 = vmatprep.mubr.bf16.mxu0 0
  %1403 = vmatmul.mubr.bf16.gmra.mxu0 %v850
  %v1404 = vpop.f32.mrf.mxu0
  %v1405 = vadd.f32 0.0, %v1404
  %v1406 = vpop.f32.mrf.mxu0
  %v1407 = vpop.f32.mrf.mxu0
  %v1408 = vadd.f32 0.0, %v1407
  %v1409 = vpop.f32.mrf.mxu0
  %1410 = vmatprep.mubr.bf16.mxu0 0
  %1411 = vmatmul.mubr.bf16.gmra.mxu0 %v853
  %v1412 = vpop.f32.mrf.mxu0
  %v1413 = vadd.f32 0.0, %v1412
  %v1414 = vpop.f32.mrf.mxu0
  %v1415 = vpop.f32.mrf.mxu0
  %v1416 = vadd.f32 0.0, %v1415
  %v1417 = vpop.f32.mrf.mxu0
  %1418 = vmatprep.mubr.bf16.mxu0 0
  %1419 = vmatmul.mubr.bf16.gmra.mxu0 %v856
  %v1420 = vpop.f32.mrf.mxu0
  %v1421 = vadd.f32 0.0, %v1420
  %v1422 = vpop.f32.mrf.mxu0
  %v1423 = vpop.f32.mrf.mxu0
  %v1424 = vadd.f32 0.0, %v1423
  %v1425 = vpop.f32.mrf.mxu0
  %1426 = vmatprep.mubr.bf16.mxu0 0
  %1427 = vmatmul.mubr.bf16.gmra.mxu0 %v859
  %v1428 = vpop.f32.mrf.mxu0
  %v1429 = vadd.f32 0.0, %v1428
  %v1430 = vpop.f32.mrf.mxu0
  %v1431 = vpop.f32.mrf.mxu0
  %v1432 = vadd.f32 0.0, %v1431
  %v1433 = vpop.f32.mrf.mxu0
  %1434 = vmatprep.mubr.bf16.mxu0 0
  %1435 = vmatmul.mubr.bf16.gmra.mxu0 %v862
  %v1436 = vpop.f32.mrf.mxu0
  %v1437 = vadd.f32 0.0, %v1436
  %v1438 = vpop.f32.mrf.mxu0
  %v1439 = vpop.f32.mrf.mxu0
  %v1440 = vadd.f32 0.0, %v1439
  %v1441 = vpop.f32.mrf.mxu0
  %1442 = vmatprep.mubr.bf16.mxu0 0
  %1443 = vmatmul.mubr.bf16.gmra.mxu0 %v865
  %v1444 = vpop.f32.mrf.mxu0
  %v1445 = vadd.f32 0.0, %v1444
  %v1446 = vpop.f32.mrf.mxu0
  %v1447 = vpop.f32.mrf.mxu0
  %v1448 = vadd.f32 0.0, %v1447
  %v1449 = vpop.f32.mrf.mxu0
  %1450 = vmatprep.mubr.bf16.mxu0 0
  %1451 = vmatmul.mubr.bf16.gmra.mxu0 %v868
  %v1452 = vpop.f32.mrf.mxu0
  %v1453 = vadd.f32 0.0, %v1452
  %v1454 = vpop.f32.mrf.mxu0
  %v1455 = vpop.f32.mrf.mxu0
  %v1456 = vadd.f32 0.0, %v1455
  %v1457 = vpop.f32.mrf.mxu0
  %1458 = vmatprep.mubr.bf16.mxu0 0
  %1459 = vmatmul.mubr.bf16.gmra.mxu0 %v871
  %v1460 = vpop.f32.mrf.mxu0
  %v1461 = vadd.f32 0.0, %v1460
  %v1462 = vpop.f32.mrf.mxu0
  %v1463 = vpop.f32.mrf.mxu0
  %v1464 = vadd.f32 0.0, %v1463
  %v1465 = vpop.f32.mrf.mxu0
  %1466 = vmatprep.mubr.bf16.mxu0 0
  %1467 = vmatmul.mubr.bf16.gmra.mxu0 %v874
  %v1468 = vpop.f32.mrf.mxu0
  %v1469 = vadd.f32 0.0, %v1468
  %v1470 = vpop.f32.mrf.mxu0
  %v1471 = vpop.f32.mrf.mxu0
  %v1472 = vadd.f32 0.0, %v1471
  %v1473 = vpop.f32.mrf.mxu0
  %1474 = vmatprep.mubr.bf16.mxu0 0
  %1475 = vmatmul.mubr.bf16.gmra.mxu0 %v877
  %v1476 = vpop.f32.mrf.mxu0
  %v1477 = vadd.f32 0.0, %v1476
  %v1478 = vpop.f32.mrf.mxu0
  %v1479 = vpop.f32.mrf.mxu0
  %v1480 = vadd.f32 0.0, %v1479
  %v1481 = vpop.f32.mrf.mxu0
  %1482 = vmatprep.mubr.bf16.mxu0 0
  %1483 = vmatmul.mubr.bf16.gmra.mxu0 %v880
  %v1484 = vpop.f32.mrf.mxu0
  %v1485 = vadd.f32 0.0, %v1484
  %v1486 = vpop.f32.mrf.mxu0
  %v1487 = vpop.f32.mrf.mxu0
  %v1488 = vadd.f32 0.0, %v1487
  %v1489 = vpop.f32.mrf.mxu0
  %1490 = vmatprep.mubr.bf16.mxu0 0
  %1491 = vmatmul.mubr.bf16.gmra.mxu0 %v883
  %v1492 = vpop.f32.mrf.mxu0
  %v1493 = vadd.f32 0.0, %v1492
  %v1494 = vpop.f32.mrf.mxu0
  %v1495 = vpop.f32.mrf.mxu0
  %v1496 = vadd.f32 0.0, %v1495
  %v1497 = vpop.f32.mrf.mxu0
  %1498 = vmatprep.mubr.bf16.mxu0 0
  %1499 = vmatmul.mubr.bf16.gmra.mxu0 %v886
  %v1500 = vpop.f32.mrf.mxu0
  %v1501 = vadd.f32 0.0, %v1500
  %v1502 = vpop.f32.mrf.mxu0
  %v1503 = vpop.f32.mrf.mxu0
  %v1504 = vadd.f32 0.0, %v1503
  %v1505 = vpop.f32.mrf.mxu0
  %1506 = vmatprep.mubr.bf16.mxu0 0
  %1507 = vmatmul.mubr.bf16.gmra.mxu0 %v889
  %v1508 = vpop.f32.mrf.mxu0
  %v1509 = vadd.f32 0.0, %v1508
  %v1510 = vpop.f32.mrf.mxu0
  %v1511 = vpop.f32.mrf.mxu0
  %v1512 = vadd.f32 0.0, %v1511
  %v1513 = vpop.f32.mrf.mxu0
  %1514 = vmatprep.mubr.bf16.mxu0 0
  %1515 = vmatmul.mubr.bf16.gmra.mxu0 %v892
  %v1516 = vpop.f32.mrf.mxu0
  %v1517 = vadd.f32 0.0, %v1516
  %v1518 = vpop.f32.mrf.mxu0
  %v1519 = vpop.f32.mrf.mxu0
  %v1520 = vadd.f32 0.0, %v1519
  %v1521 = vpop.f32.mrf.mxu0
  %1522 = vmatprep.mubr.bf16.mxu0 0
  %1523 = vmatmul.mubr.bf16.gmra.mxu0 %v895
  %v1524 = vpop.f32.mrf.mxu0
  %v1525 = vadd.f32 0.0, %v1524
  %v1526 = vpop.f32.mrf.mxu0
  %v1527 = vpop.f32.mrf.mxu0
  %v1528 = vadd.f32 0.0, %v1527
  %v1529 = vpop.f32.mrf.mxu0
  %1530 = vmatprep.mubr.bf16.mxu0 0
  %1531 = vmatmul.mubr.bf16.gmra.mxu0 %v898
  %v1532 = vpop.f32.mrf.mxu0
  %v1533 = vadd.f32 0.0, %v1532
  %v1534 = vpop.f32.mrf.mxu0
  %v1535 = vpop.f32.mrf.mxu0
  %v1536 = vadd.f32 0.0, %v1535
  %v1537 = vpop.f32.mrf.mxu0
  %1538 = vmatprep.mubr.bf16.mxu0 0
  %1539 = vmatmul.mubr.bf16.gmra.mxu0 %v901
  %v1540 = vpop.f32.mrf.mxu0
  %v1541 = vadd.f32 0.0, %v1540
  %v1542 = vpop.f32.mrf.mxu0
  %v1543 = vpop.f32.mrf.mxu0
  %v1544 = vadd.f32 0.0, %v1543
  %v1545 = vpop.f32.mrf.mxu0
  %1546 = vmatprep.mubr.bf16.mxu0 0
  %1547 = vmatmul.mubr.bf16.gmra.mxu0 %v904
  %v1548 = vpop.f32.mrf.mxu0
  %v1549 = vadd.f32 0.0, %v1548
  %v1550 = vpop.f32.mrf.mxu0
  %v1551 = vpop.f32.mrf.mxu0
  %v1552 = vadd.f32 0.0, %v1551
  %v1553 = vpop.f32.mrf.mxu0
  %1554 = vmatprep.mubr.bf16.mxu0 0
  %1555 = vmatmul.mubr.bf16.gmra.mxu0 %v907
  %v1556 = vpop.f32.mrf.mxu0
  %v1557 = vadd.f32 0.0, %v1556
  %v1558 = vpop.f32.mrf.mxu0
  %v1559 = vpop.f32.mrf.mxu0
  %v1560 = vadd.f32 0.0, %v1559
  %v1561 = vpop.f32.mrf.mxu0
  %1562 = vmatprep.mubr.bf16.mxu0 0
  %1563 = vmatmul.mubr.bf16.gmra.mxu0 %v910
  %v1564 = vpop.f32.mrf.mxu0
  %v1565 = vadd.f32 0.0, %v1564
  %v1566 = vpop.f32.mrf.mxu0
  %v1567 = vpop.f32.mrf.mxu0
  %v1568 = vadd.f32 0.0, %v1567
  %v1569 = vpop.f32.mrf.mxu0
  %1570 = vmatprep.mubr.bf16.mxu0 0
  %1571 = vmatmul.mubr.bf16.gmra.mxu0 %v913
  %v1572 = vpop.f32.mrf.mxu0
  %v1573 = vadd.f32 0.0, %v1572
  %v1574 = vpop.f32.mrf.mxu0
  %v1575 = vpop.f32.mrf.mxu0
  %v1576 = vadd.f32 0.0, %v1575
  %v1577 = vpop.f32.mrf.mxu0
  %1578 = vmatprep.mubr.bf16.mxu0 0
  %1579 = vmatmul.mubr.bf16.gmra.mxu0 %v916
  %v1580 = vpop.f32.mrf.mxu0
  %v1581 = vadd.f32 0.0, %v1580
  %v1582 = vpop.f32.mrf.mxu0
  %v1583 = vpop.f32.mrf.mxu0
  %v1584 = vadd.f32 0.0, %v1583
  %v1585 = vpop.f32.mrf.mxu0
  %1586 = vmatprep.mubr.bf16.mxu0 0
  %1587 = vmatmul.mubr.bf16.gmra.mxu0 %v919
  %v1588 = vpop.f32.mrf.mxu0
  %v1589 = vadd.f32 0.0, %v1588
  %v1590 = vpop.f32.mrf.mxu0
  %v1591 = vpop.f32.mrf.mxu0
  %v1592 = vadd.f32 0.0, %v1591
  %v1593 = vpop.f32.mrf.mxu0
  %1594 = vmatprep.mubr.bf16.mxu0 0
  %1595 = vmatmul.mubr.bf16.gmra.mxu0 %v922
  %v1596 = vpop.f32.mrf.mxu0
  %v1597 = vadd.f32 0.0, %v1596
  %v1598 = vpop.f32.mrf.mxu0
  %v1599 = vpop.f32.mrf.mxu0
  %v1600 = vadd.f32 0.0, %v1599
  %v1601 = vpop.f32.mrf.mxu0
  %1602 = vmatprep.mubr.bf16.mxu0 0
  %1603 = vmatmul.mubr.bf16.gmra.mxu0 %v925
  %v1604 = vpop.f32.mrf.mxu0
  %v1605 = vadd.f32 0.0, %v1604
  %v1606 = vpop.f32.mrf.mxu0
  %v1607 = vpop.f32.mrf.mxu0
  %v1608 = vadd.f32 0.0, %v1607
  %v1609 = vpop.f32.mrf.mxu0
  %1610 = vmatprep.mubr.bf16.mxu0 0
  %1611 = vmatmul.mubr.bf16.gmra.mxu0 %v928
  %v1612 = vpop.f32.mrf.mxu0
  %v1613 = vadd.f32 0.0, %v1612
  %v1614 = vpop.f32.mrf.mxu0
  %v1615 = vpop.f32.mrf.mxu0
  %v1616 = vadd.f32 0.0, %v1615
  %v1617 = vpop.f32.mrf.mxu0
  %1618 = vmatprep.mubr.bf16.mxu0 0
  %1619 = vmatmul.mubr.bf16.gmra.mxu0 %v931
  %v1620 = vpop.f32.mrf.mxu0
  %v1621 = vadd.f32 0.0, %v1620
  %v1622 = vpop.f32.mrf.mxu0
  %v1623 = vpop.f32.mrf.mxu0
  %v1624 = vadd.f32 0.0, %v1623
  %v1625 = vpop.f32.mrf.mxu0
  %1626 = vmatprep.mubr.bf16.mxu0 0
  %1627 = vmatmul.mubr.bf16.gmra.mxu0 %v934
  %v1628 = vpop.f32.mrf.mxu0
  %v1629 = vadd.f32 0.0, %v1628
  %v1630 = vpop.f32.mrf.mxu0
  %v1631 = vpop.f32.mrf.mxu0
  %v1632 = vadd.f32 0.0, %v1631
  %v1633 = vpop.f32.mrf.mxu0
  %1634 = vmatprep.mubr.bf16.mxu0 0
  %1635 = vmatmul.mubr.bf16.gmra.mxu0 %v937
  %v1636 = vpop.f32.mrf.mxu0
  %v1637 = vadd.f32 0.0, %v1636
  %v1638 = vpop.f32.mrf.mxu0
  %v1639 = vpop.f32.mrf.mxu0
  %v1640 = vadd.f32 0.0, %v1639
  %v1641 = vpop.f32.mrf.mxu0
  %1642 = vmatprep.mubr.bf16.mxu0 0
  %1643 = vmatmul.mubr.bf16.gmra.mxu0 %v940
  %v1644 = vpop.f32.mrf.mxu0
  %v1645 = vadd.f32 0.0, %v1644
  %v1646 = vpop.f32.mrf.mxu0
  %v1647 = vpop.f32.mrf.mxu0
  %v1648 = vadd.f32 0.0, %v1647
  %v1649 = vpop.f32.mrf.mxu0
  %1650 = vmatprep.mubr.bf16.mxu0 0
  %1651 = vmatmul.mubr.bf16.gmra.mxu0 %v943
  %v1652 = vpop.f32.mrf.mxu0
  %v1653 = vadd.f32 0.0, %v1652
  %v1654 = vpop.f32.mrf.mxu0
  %v1655 = vpop.f32.mrf.mxu0
  %v1656 = vadd.f32 0.0, %v1655
  %v1657 = vpop.f32.mrf.mxu0
  %1658 = vmatprep.mubr.bf16.mxu0 0
  %1659 = vmatmul.mubr.bf16.gmra.mxu0 %v946
  %v1660 = vpop.f32.mrf.mxu0
  %v1661 = vadd.f32 0.0, %v1660
  %v1662 = vpop.f32.mrf.mxu0
  %v1663 = vpop.f32.mrf.mxu0
  %v1664 = vadd.f32 0.0, %v1663
  %v1665 = vpop.f32.mrf.mxu0
  %1666 = vmatprep.mubr.bf16.mxu0 0
  %1667 = vmatmul.mubr.bf16.gmra.mxu0 %v949
  %v1668 = vpop.f32.mrf.mxu0
  %v1669 = vadd.f32 0.0, %v1668
  %v1670 = vpop.f32.mrf.mxu0
  %v1671 = vpop.f32.mrf.mxu0
  %v1672 = vadd.f32 0.0, %v1671
  %v1673 = vpop.f32.mrf.mxu0
  %1674 = vmatprep.mubr.bf16.mxu0 0
  %1675 = vmatmul.mubr.bf16.gmra.mxu0 %v952
  %v1676 = vpop.f32.mrf.mxu0
  %v1677 = vadd.f32 0.0, %v1676
  %v1678 = vpop.f32.mrf.mxu0
  %v1679 = vpop.f32.mrf.mxu0
  %v1680 = vadd.f32 0.0, %v1679
  %v1681 = vpop.f32.mrf.mxu0
  %1682 = vmatprep.mubr.bf16.mxu0 0
  %1683 = vmatmul.mubr.bf16.gmra.mxu0 %v955
  %v1684 = vpop.f32.mrf.mxu0
  %v1685 = vadd.f32 0.0, %v1684
  %v1686 = vpop.f32.mrf.mxu0
  %v1687 = vpop.f32.mrf.mxu0
  %v1688 = vadd.f32 0.0, %v1687
  %v1689 = vpop.f32.mrf.mxu0
  %1690 = vmatprep.mubr.bf16.mxu0 0
  %1691 = vmatmul.mubr.bf16.gmra.mxu0 %v958
  %v1692 = vpop.f32.mrf.mxu0
  %v1693 = vadd.f32 0.0, %v1692
  %v1694 = vpop.f32.mrf.mxu0
  %v1695 = vpop.f32.mrf.mxu0
  %v1696 = vadd.f32 0.0, %v1695
  %v1697 = vpop.f32.mrf.mxu0
  %1698 = vmatprep.mubr.bf16.mxu0 0
  %1699 = vmatmul.mubr.bf16.gmra.mxu0 %v961
  %v1700 = vpop.f32.mrf.mxu0
  %v1701 = vadd.f32 0.0, %v1700
  %v1702 = vpop.f32.mrf.mxu0
  %v1703 = vpop.f32.mrf.mxu0
  %v1704 = vadd.f32 0.0, %v1703
  %v1705 = vpop.f32.mrf.mxu0
  %1706 = vmatprep.mubr.bf16.mxu0 0
  %1707 = vmatmul.mubr.bf16.gmra.mxu0 %v964
  %v1708 = vpop.f32.mrf.mxu0
  %v1709 = vadd.f32 0.0, %v1708
  %v1710 = vpop.f32.mrf.mxu0
  %v1711 = vpop.f32.mrf.mxu0
  %v1712 = vadd.f32 0.0, %v1711
  %v1713 = vpop.f32.mrf.mxu0
  %1714 = vmatprep.mubr.bf16.mxu0 0
  %1715 = vmatmul.mubr.bf16.gmra.mxu0 %v967
  %v1716 = vpop.f32.mrf.mxu0
  %v1717 = vadd.f32 0.0, %v1716
  %v1718 = vpop.f32.mrf.mxu0
  %v1719 = vpop.f32.mrf.mxu0
  %v1720 = vadd.f32 0.0, %v1719
  %v1721 = vpop.f32.mrf.mxu0
  %1722 = vmatprep.mubr.bf16.mxu0 0
  %1723 = vmatmul.mubr.bf16.gmra.mxu0 %v970
  %v1724 = vpop.f32.mrf.mxu0
  %v1725 = vadd.f32 0.0, %v1724
  %v1726 = vpop.f32.mrf.mxu0
  %v1727 = vpop.f32.mrf.mxu0
  %v1728 = vadd.f32 0.0, %v1727
  %v1729 = vpop.f32.mrf.mxu0
  %1730 = vmatprep.mubr.bf16.mxu0 0
  %1731 = vmatmul.mubr.bf16.gmra.mxu0 %v973
  %v1732 = vpop.f32.mrf.mxu0
  %v1733 = vadd.f32 0.0, %v1732
  %v1734 = vpop.f32.mrf.mxu0
  %v1735 = vpop.f32.mrf.mxu0
  %v1736 = vadd.f32 0.0, %v1735
  %v1737 = vpop.f32.mrf.mxu0
  %1738 = vmatprep.mubr.bf16.mxu0 0
  %1739 = vmatmul.mubr.bf16.gmra.mxu0 %v976
  %v1740 = vpop.f32.mrf.mxu0
  %v1741 = vadd.f32 0.0, %v1740
  %v1742 = vpop.f32.mrf.mxu0
  %v1743 = vpop.f32.mrf.mxu0
  %v1744 = vadd.f32 0.0, %v1743
  %v1745 = vpop.f32.mrf.mxu0
  %1746 = vmatprep.mubr.bf16.mxu0 0
  %1747 = vmatmul.mubr.bf16.gmra.mxu0 %v979
  %v1748 = vpop.f32.mrf.mxu0
  %v1749 = vadd.f32 0.0, %v1748
  %v1750 = vpop.f32.mrf.mxu0
  %v1751 = vpop.f32.mrf.mxu0
  %v1752 = vadd.f32 0.0, %v1751
  %v1753 = vpop.f32.mrf.mxu0
  %1754 = vmatprep.mubr.bf16.mxu0 0
  %1755 = vmatmul.mubr.bf16.gmra.mxu0 %v982
  %v1756 = vpop.f32.mrf.mxu0
  %v1757 = vadd.f32 0.0, %v1756
  %v1758 = vpop.f32.mrf.mxu0
  %v1759 = vpop.f32.mrf.mxu0
  %v1760 = vadd.f32 0.0, %v1759
  %v1761 = vpop.f32.mrf.mxu0
  %1762 = vmatprep.mubr.bf16.mxu0 0
  %1763 = vmatmul.mubr.bf16.gmra.mxu0 %v985
  %v1764 = vpop.f32.mrf.mxu0
  %v1765 = vadd.f32 0.0, %v1764
  %v1766 = vpop.f32.mrf.mxu0
  %v1767 = vpop.f32.mrf.mxu0
  %v1768 = vadd.f32 0.0, %v1767
  %v1769 = vpop.f32.mrf.mxu0
  %1770 = vmatprep.mubr.bf16.mxu0 0
  %1771 = vmatmul.mubr.bf16.gmra.mxu0 %v988
  %v1772 = vpop.f32.mrf.mxu0
  %v1773 = vadd.f32 0.0, %v1772
  %v1774 = vpop.f32.mrf.mxu0
  %v1775 = vpop.f32.mrf.mxu0
  %v1776 = vadd.f32 0.0, %v1775
  %v1777 = vpop.f32.mrf.mxu0
  %1778 = vmatprep.mubr.bf16.mxu0 0
  %1779 = vmatmul.mubr.bf16.gmra.mxu0 %v991
  %v1780 = vpop.f32.mrf.mxu0
  %v1781 = vadd.f32 0.0, %v1780
  %v1782 = vpop.f32.mrf.mxu0
  %v1783 = vpop.f32.mrf.mxu0
  %v1784 = vadd.f32 0.0, %v1783
  %v1785 = vpop.f32.mrf.mxu0
  %1786 = vmatprep.mubr.bf16.mxu0 0
  %1787 = vmatmul.mubr.bf16.gmra.mxu0 %v994
  %v1788 = vpop.f32.mrf.mxu0
  %v1789 = vadd.f32 0.0, %v1788
  %v1790 = vpop.f32.mrf.mxu0
  %v1791 = vpop.f32.mrf.mxu0
  %v1792 = vadd.f32 0.0, %v1791
  %v1793 = vpop.f32.mrf.mxu0
  %1794 = vmatprep.mubr.bf16.mxu0 0
  %1795 = vmatmul.mubr.bf16.gmra.mxu0 %v997
  %v1796 = vpop.f32.mrf.mxu0
  %v1797 = vadd.f32 0.0, %v1796
  %v1798 = vpop.f32.mrf.mxu0
  %v1799 = vpop.f32.mrf.mxu0
  %v1800 = vadd.f32 0.0, %v1799
  %v1801 = vpop.f32.mrf.mxu0
  %1802 = vmatprep.mubr.bf16.mxu0 0
  %1803 = vmatmul.mubr.bf16.gmra.mxu0 %v1000
  %v1804 = vpop.f32.mrf.mxu0
  %v1805 = vadd.f32 0.0, %v1804
  %v1806 = vpop.f32.mrf.mxu0
  %v1807 = vpop.f32.mrf.mxu0
  %v1808 = vadd.f32 0.0, %v1807
  %v1809 = vpop.f32.mrf.mxu0
  %1810 = vmatprep.mubr.bf16.mxu0 0
  %1811 = vmatmul.mubr.bf16.gmra.mxu0 %v1003
  %v1812 = vpop.f32.mrf.mxu0
  %v1813 = vadd.f32 0.0, %v1812
  %v1814 = vpop.f32.mrf.mxu0
  %v1815 = vpop.f32.mrf.mxu0
  %v1816 = vadd.f32 0.0, %v1815
  %v1817 = vpop.f32.mrf.mxu0
  %1818 = vmatprep.mubr.bf16.mxu0 0
  %1819 = vmatmul.mubr.bf16.gmra.mxu0 %v1006
  %v1820 = vpop.f32.mrf.mxu0
  %v1821 = vadd.f32 0.0, %v1820
  %v1822 = vpop.f32.mrf.mxu0
  %v1823 = vpop.f32.mrf.mxu0
  %v1824 = vadd.f32 0.0, %v1823
  %v1825 = vpop.f32.mrf.mxu0
  %1826 = vmatprep.mubr.bf16.mxu0 0
  %1827 = vmatmul.mubr.bf16.gmra.mxu0 %v1009
  %v1828 = vpop.f32.mrf.mxu0
  %v1829 = vadd.f32 0.0, %v1828
  %v1830 = vpop.f32.mrf.mxu0
  %v1831 = vpop.f32.mrf.mxu0
  %v1832 = vadd.f32 0.0, %v1831
  %v1833 = vpop.f32.mrf.mxu0
  %1834 = vdwg.mxu0
  %v1835 = vmax.f32 %v1053, %v1248
  %v1836 = vmax.f32 %v1056, %v1253
  %v1837 = vmax.f32 %v1061, %v1256
  %v1838 = vmax.f32 %v1064, %v1261
  %v1839 = vmax.f32 %v1069, %v1264
  %v1840 = vmax.f32 %v1072, %v1269
  %v1841 = vmax.f32 %v1077, %v1272
  %v1842 = vmax.f32 %v1080, %v1277
  %v1843 = vmax.f32 %v1085, %v1280
  %v1844 = vmax.f32 %v1088, %v1285
  %v1845 = vmax.f32 %v1093, %v1288
  %v1846 = vmax.f32 %v1096, %v1293
  %v1847 = vmax.f32 %v1101, %v1296
  %v1848 = vmax.f32 %v1104, %v1301
  %v1849 = vmax.f32 %v1109, %v1304
  %v1850 = vmax.f32 %v1112, %v1309
  %v1851 = vmax.f32 %v1117, %v1312
  %v1852 = vmax.f32 %v1120, %v1317
  %v1853 = vmax.f32 %v1125, %v1320
  %v1854 = vmax.f32 %v1128, %v1325
  %v1855 = vmax.f32 %v1133, %v1328
  %v1856 = vmax.f32 %v1136, %v1333
  %v1857 = vmax.f32 %v1141, %v1336
  %v1858 = vmax.f32 %v1144, %v1341
  %v1859 = vmax.f32 %v1149, %v1344
  %v1860 = vmax.f32 %v1152, %v1349
  %v1861 = vmax.f32 %v1157, %v1352
  %v1862 = vmax.f32 %v1160, %v1357
  %v1863 = vmax.f32 %v1165, %v1360
  %v1864 = vmax.f32 %v1168, %v1365
  %v1865 = vmax.f32 %v1173, %v1368
  %v1866 = vmax.f32 %v1176, %v1373
  %v1867 = vmax.f32 %v1181, %v1376
  %v1868 = vmax.f32 %v1184, %v1381
  %v1869 = vmax.f32 %v1189, %v1384
  %v1870 = vmax.f32 %v1192, %v1389
  %v1871 = vmax.f32 %v1197, %v1392
  %v1872 = vmax.f32 %v1200, %v1397
  %v1873 = vmax.f32 %v1205, %v1400
  %v1874 = vmax.f32 %v1208, %v1405
  %v1875 = vmax.f32 %v1213, %v1408
  %v1876 = vmax.f32 %v1216, %v1413
  %v1877 = vmax.f32 %v1221, %v1416
  %v1878 = vmax.f32 %v1224, %v1421
  %v1879 = vmax.f32 %v1229, %v1424
  %v1880 = vmax.f32 %v1232, %v1429
  %v1881 = vmax.f32 %v1237, %v1432
  %v1882 = vmax.f32 %v1240, %v1437
  %v1883 = vmax.f32 %v1245, %v1440
  %v1884 = vmax.f32 %v1445, %v1640
  %v1885 = vmax.f32 %v1448, %v1645
  %v1886 = vmax.f32 %v1453, %v1648
  %v1887 = vmax.f32 %v1456, %v1653
  %v1888 = vmax.f32 %v1461, %v1656
  %v1889 = vmax.f32 %v1464, %v1661
  %v1890 = vmax.f32 %v1469, %v1664
  %v1891 = vmax.f32 %v1472, %v1669
  %v1892 = vmax.f32 %v1477, %v1672
  %v1893 = vmax.f32 %v1480, %v1677
  %v1894 = vmax.f32 %v1485, %v1680
  %v1895 = vmax.f32 %v1488, %v1685
  %v1896 = vmax.f32 %v1493, %v1688
  %v1897 = vmax.f32 %v1496, %v1693
  %v1898 = vmax.f32 %v1501, %v1696
  %v1899 = vmax.f32 %v1504, %v1701
  %v1900 = vmax.f32 %v1509, %v1704
  %v1901 = vmax.f32 %v1512, %v1709
  %v1902 = vmax.f32 %v1517, %v1712
  %v1903 = vmax.f32 %v1520, %v1717
  %v1904 = vmax.f32 %v1525, %v1720
  %v1905 = vmax.f32 %v1528, %v1725
  %v1906 = vmax.f32 %v1533, %v1728
  %v1907 = vmax.f32 %v1536, %v1733
  %v1908 = vmax.f32 %v1541, %v1736
  %v1909 = vmax.f32 %v1544, %v1741
  %v1910 = vmax.f32 %v1549, %v1744
  %v1911 = vmax.f32 %v1552, %v1749
  %v1912 = vmax.f32 %v1557, %v1752
  %v1913 = vmax.f32 %v1560, %v1757
  %v1914 = vmax.f32 %v1565, %v1760
  %v1915 = vmax.f32 %v1568, %v1765
  %v1916 = vmax.f32 %v1573, %v1768
  %v1917 = vmax.f32 %v1576, %v1773
  %v1918 = vmax.f32 %v1581, %v1776
  %v1919 = vmax.f32 %v1584, %v1781
  %v1920 = vmax.f32 %v1589, %v1784
  %v1921 = vmax.f32 %v1592, %v1789
  %v1922 = vmax.f32 %v1597, %v1792
  %v1923 = vmax.f32 %v1600, %v1797
  %v1924 = vmax.f32 %v1605, %v1800
  %v1925 = vmax.f32 %v1608, %v1805
  %v1926 = vmax.f32 %v1613, %v1808
  %v1927 = vmax.f32 %v1616, %v1813
  %v1928 = vmax.f32 %v1621, %v1816
  %v1929 = vmax.f32 %v1624, %v1821
  %v1930 = vmax.f32 %v1629, %v1824
  %v1931 = vmax.f32 %v1632, %v1829
  %v1932 = vmax.f32 %v1637, %v1832
  %v1933 = vmax.f32 %v1835, %v1884
  %v1934 = vmax.f32 %v1836, %v1885
  %v1935 = vmax.f32 %v1837, %v1886
  %v1936 = vmax.f32 %v1838, %v1887
  %v1937 = vmax.f32 %v1839, %v1888
  %v1938 = vmax.f32 %v1840, %v1889
  %v1939 = vmax.f32 %v1841, %v1890
  %v1940 = vmax.f32 %v1842, %v1891
  %v1941 = vmax.f32 %v1843, %v1892
  %v1942 = vmax.f32 %v1844, %v1893
  %v1943 = vmax.f32 %v1845, %v1894
  %v1944 = vmax.f32 %v1846, %v1895
  %v1945 = vmax.f32 %v1847, %v1896
  %v1946 = vmax.f32 %v1848, %v1897
  %v1947 = vmax.f32 %v1849, %v1898
  %v1948 = vmax.f32 %v1850, %v1899
  %v1949 = vmax.f32 %v1851, %v1900
  %v1950 = vmax.f32 %v1852, %v1901
  %v1951 = vmax.f32 %v1853, %v1902
  %v1952 = vmax.f32 %v1854, %v1903
  %v1953 = vmax.f32 %v1855, %v1904
  %v1954 = vmax.f32 %v1856, %v1905
  %v1955 = vmax.f32 %v1857, %v1906
  %v1956 = vmax.f32 %v1858, %v1907
  %v1957 = vmax.f32 %v1859, %v1908
  %v1958 = vmax.f32 %v1860, %v1909
  %v1959 = vmax.f32 %v1861, %v1910
  %v1960 = vmax.f32 %v1862, %v1911
  %v1961 = vmax.f32 %v1863, %v1912
  %v1962 = vmax.f32 %v1864, %v1913
  %v1963 = vmax.f32 %v1865, %v1914
  %v1964 = vmax.f32 %v1866, %v1915
  %v1965 = vmax.f32 %v1867, %v1916
  %v1966 = vmax.f32 %v1868, %v1917
  %v1967 = vmax.f32 %v1869, %v1918
  %v1968 = vmax.f32 %v1870, %v1919
  %v1969 = vmax.f32 %v1871, %v1920
  %v1970 = vmax.f32 %v1872, %v1921
  %v1971 = vmax.f32 %v1873, %v1922
  %v1972 = vmax.f32 %v1874, %v1923
  %v1973 = vmax.f32 %v1875, %v1924
  %v1974 = vmax.f32 %v1876, %v1925
  %v1975 = vmax.f32 %v1877, %v1926
  %v1976 = vmax.f32 %v1878, %v1927
  %v1977 = vmax.f32 %v1879, %v1928
  %v1978 = vmax.f32 %v1880, %v1929
  %v1979 = vmax.f32 %v1881, %v1930
  %v1980 = vmax.f32 %v1882, %v1931
  %v1981 = vmax.f32 %v1883, %v1932
  %v1982 = vld [vmem:[%s2] sm:$0x1]
  %v1984 = vlaneseq
  %v1985 = vshrl.u32 %v1984, 7
  %v1986 = vsub.s32 0, %v1985
  %v1987 = vrot.slane %v1982, %v1986
  %v1989 = vadd.f32 %v1933, %v1987
  %v1990 = vadd.f32 %v1934, %v1987
  %v1991 = vadd.f32 %v1935, %v1987
  %v1992 = vadd.f32 %v1936, %v1987
  %v1993 = vadd.f32 %v1937, %v1987
  %v1994 = vadd.f32 %v1938, %v1987
  %v1995 = vadd.f32 %v1939, %v1987
  %v1996 = vadd.f32 %v1940, %v1987
  %v1997 = vadd.f32 %v1941, %v1987
  %v1998 = vadd.f32 %v1942, %v1987
  %v1999 = vadd.f32 %v1943, %v1987
  %v2000 = vadd.f32 %v1944, %v1987
  %v2001 = vadd.f32 %v1945, %v1987
  %v2002 = vadd.f32 %v1946, %v1987
  %v2003 = vadd.f32 %v1947, %v1987
  %v2004 = vadd.f32 %v1948, %v1987
  %v2005 = vadd.f32 %v1949, %v1987
  %v2006 = vadd.f32 %v1950, %v1987
  %v2007 = vadd.f32 %v1951, %v1987
  %v2008 = vadd.f32 %v1952, %v1987
  %v2009 = vadd.f32 %v1953, %v1987
  %v2010 = vadd.f32 %v1954, %v1987
  %v2011 = vadd.f32 %v1955, %v1987
  %v2012 = vadd.f32 %v1956, %v1987
  %v2013 = vadd.f32 %v1957, %v1987
  %v2014 = vadd.f32 %v1958, %v1987
  %v2015 = vadd.f32 %v1959, %v1987
  %v2016 = vadd.f32 %v1960, %v1987
  %v2017 = vadd.f32 %v1961, %v1987
  %v2018 = vadd.f32 %v1962, %v1987
  %v2019 = vadd.f32 %v1963, %v1987
  %v2020 = vadd.f32 %v1964, %v1987
  %v2021 = vadd.f32 %v1965, %v1987
  %v2022 = vadd.f32 %v1966, %v1987
  %v2023 = vadd.f32 %v1967, %v1987
  %v2024 = vadd.f32 %v1968, %v1987
  %v2025 = vadd.f32 %v1969, %v1987
  %v2026 = vadd.f32 %v1970, %v1987
  %v2027 = vadd.f32 %v1971, %v1987
  %v2028 = vadd.f32 %v1972, %v1987
  %v2029 = vadd.f32 %v1973, %v1987
  %v2030 = vadd.f32 %v1974, %v1987
  %v2031 = vadd.f32 %v1975, %v1987
  %v2032 = vadd.f32 %v1976, %v1987
  %v2033 = vadd.f32 %v1977, %v1987
  %v2034 = vadd.f32 %v1978, %v1987
  %v2035 = vadd.f32 %v1979, %v1987
  %v2036 = vadd.f32 %v1980, %v1987
  %v2037 = vadd.f32 %v1981, %v1987
  %v2038 = vmax.f32 %v1989, 0.0
  %v2039 = vmax.f32 %v1990, 0.0
  %v2040 = vmax.f32 %v1991, 0.0
  %v2041 = vmax.f32 %v1992, 0.0
  %v2042 = vmax.f32 %v1993, 0.0
  %v2043 = vmax.f32 %v1994, 0.0
  %v2044 = vmax.f32 %v1995, 0.0
  %v2045 = vmax.f32 %v1996, 0.0
  %v2046 = vmax.f32 %v1997, 0.0
  %v2047 = vmax.f32 %v1998, 0.0
  %v2048 = vmax.f32 %v1999, 0.0
  %v2049 = vmax.f32 %v2000, 0.0
  %v2050 = vmax.f32 %v2001, 0.0
  %v2051 = vmax.f32 %v2002, 0.0
  %v2052 = vmax.f32 %v2003, 0.0
  %v2053 = vmax.f32 %v2004, 0.0
  %v2054 = vmax.f32 %v2005, 0.0
  %v2055 = vmax.f32 %v2006, 0.0
  %v2056 = vmax.f32 %v2007, 0.0
  %v2057 = vmax.f32 %v2008, 0.0
  %v2058 = vmax.f32 %v2009, 0.0
  %v2059 = vmax.f32 %v2010, 0.0
  %v2060 = vmax.f32 %v2011, 0.0
  %v2061 = vmax.f32 %v2012, 0.0
  %v2062 = vmax.f32 %v2013, 0.0
  %v2063 = vmax.f32 %v2014, 0.0
  %v2064 = vmax.f32 %v2015, 0.0
  %v2065 = vmax.f32 %v2016, 0.0
  %v2066 = vmax.f32 %v2017, 0.0
  %v2067 = vmax.f32 %v2018, 0.0
  %v2068 = vmax.f32 %v2019, 0.0
  %v2069 = vmax.f32 %v2020, 0.0
  %v2070 = vmax.f32 %v2021, 0.0
  %v2071 = vmax.f32 %v2022, 0.0
  %v2072 = vmax.f32 %v2023, 0.0
  %v2073 = vmax.f32 %v2024, 0.0
  %v2074 = vmax.f32 %v2025, 0.0
  %v2075 = vmax.f32 %v2026, 0.0
  %v2076 = vmax.f32 %v2027, 0.0
  %v2077 = vmax.f32 %v2028, 0.0
  %v2078 = vmax.f32 %v2029, 0.0
  %v2079 = vmax.f32 %v2030, 0.0
  %v2080 = vmax.f32 %v2031, 0.0
  %v2081 = vmax.f32 %v2032, 0.0
  %v2082 = vmax.f32 %v2033, 0.0
  %v2083 = vmax.f32 %v2034, 0.0
  %v2084 = vmax.f32 %v2035, 0.0
  %v2085 = vmax.f32 %v2036, 0.0
  %v2086 = vmax.f32 %v2037, 0.0
  %v2087 = vpack.c.bf16 %v2039, %v2038
  %v2088 = vpack.c.bf16 %v2041, %v2040
  %v2089 = vpack.c.bf16 %v2043, %v2042
  %v2090 = vpack.c.bf16 %v2045, %v2044
  %v2091 = vpack.c.bf16 %v2047, %v2046
  %v2092 = vpack.c.bf16 %v2049, %v2048
  %v2093 = vpack.c.bf16 %v2051, %v2050
  %v2094 = vpack.c.bf16 %v2053, %v2052
  %v2095 = vpack.c.bf16 %v2055, %v2054
  %v2096 = vpack.c.bf16 %v2057, %v2056
  %v2097 = vpack.c.bf16 %v2059, %v2058
  %v2098 = vpack.c.bf16 %v2061, %v2060
  %v2099 = vpack.c.bf16 %v2063, %v2062
  %v2100 = vpack.c.bf16 %v2065, %v2064
  %v2101 = vpack.c.bf16 %v2067, %v2066
  %v2102 = vpack.c.bf16 %v2069, %v2068
  %v2103 = vpack.c.bf16 %v2071, %v2070
  %v2104 = vpack.c.bf16 %v2073, %v2072
  %v2105 = vpack.c.bf16 %v2075, %v2074
  %v2106 = vpack.c.bf16 %v2077, %v2076
  %v2107 = vpack.c.bf16 %v2079, %v2078
  %v2108 = vpack.c.bf16 %v2081, %v2080
  %v2109 = vpack.c.bf16 %v2083, %v2082
  %v2110 = vpack.c.bf16 %v2085, %v2084
  %v2111 = vpack.c.bf16 %v2086, %v2086
  %v2137 = vunpack.c.l.b16 %v2087
  %v2138 = vunpack.c.h.b16 %v2087
  %v2139 = vunpack.c.l.b16 %v2088
  %v2140 = vunpack.c.h.b16 %v2088
  %v2141 = vunpack.c.l.b16 %v2089
  %v2142 = vunpack.c.h.b16 %v2089
  %v2143 = vunpack.c.l.b16 %v2090
  %v2144 = vunpack.c.h.b16 %v2090
  %v2145 = vunpack.c.l.b16 %v2091
  %v2146 = vunpack.c.h.b16 %v2091
  %v2147 = vunpack.c.l.b16 %v2092
  %v2148 = vunpack.c.h.b16 %v2092
  %v2149 = vunpack.c.l.b16 %v2093
  %v2150 = vunpack.c.h.b16 %v2093
  %v2151 = vunpack.c.l.b16 %v2094
  %v2152 = vunpack.c.h.b16 %v2094
  %v2153 = vunpack.c.l.b16 %v2095
  %v2154 = vunpack.c.h.b16 %v2095
  %v2155 = vunpack.c.l.b16 %v2096
  %v2156 = vunpack.c.h.b16 %v2096
  %v2157 = vunpack.c.l.b16 %v2097
  %v2158 = vunpack.c.h.b16 %v2097
  %v2159 = vunpack.c.l.b16 %v2098
  %v2160 = vunpack.c.h.b16 %v2098
  %v2161 = vunpack.c.l.b16 %v2099
  %v2162 = vunpack.c.h.b16 %v2099
  %v2163 = vunpack.c.l.b16 %v2100
  %v2164 = vunpack.c.h.b16 %v2100
  %v2165 = vunpack.c.l.b16 %v2101
  %v2166 = vunpack.c.h.b16 %v2101
  %v2167 = vunpack.c.l.b16 %v2102
  %v2168 = vunpack.c.h.b16 %v2102
  %v2169 = vunpack.c.l.b16 %v2103
  %v2170 = vunpack.c.h.b16 %v2103
  %v2171 = vunpack.c.l.b16 %v2104
  %v2172 = vunpack.c.h.b16 %v2104
  %v2173 = vunpack.c.l.b16 %v2105
  %v2174 = vunpack.c.h.b16 %v2105
  %v2175 = vunpack.c.l.b16 %v2106
  %v2176 = vunpack.c.h.b16 %v2106
  %v2177 = vunpack.c.l.b16 %v2107
  %v2178 = vunpack.c.h.b16 %v2107
  %v2179 = vunpack.c.l.b16 %v2108
  %v2180 = vunpack.c.h.b16 %v2108
  %v2181 = vunpack.c.l.b16 %v2109
  %v2182 = vunpack.c.h.b16 %v2109
  %v2183 = vunpack.c.l.b16 %v2110
  %v2184 = vunpack.c.h.b16 %v2110
  %v2185 = vunpack.c.l.b16 %v2111
  %v2186 = vpack.c.b16 %v2137, %v2137
  %v2187 = vpack.c.b16 %v2138, %v2138
  %v2188 = vpack.c.b16 %v2139, %v2139
  %v2189 = vpack.c.b16 %v2140, %v2140
  %v2190 = vpack.c.b16 %v2141, %v2141
  %v2191 = vpack.c.b16 %v2142, %v2142
  %v2192 = vpack.c.b16 %v2143, %v2143
  %v2193 = vpack.c.b16 %v2144, %v2144
  %v2194 = vpack.c.b16 %v2145, %v2145
  %v2195 = vpack.c.b16 %v2146, %v2146
  %v2196 = vpack.c.b16 %v2147, %v2147
  %v2197 = vpack.c.b16 %v2148, %v2148
  %v2198 = vpack.c.b16 %v2149, %v2149
  %v2199 = vpack.c.b16 %v2150, %v2150
  %v2200 = vpack.c.b16 %v2151, %v2151
  %v2201 = vpack.c.b16 %v2152, %v2152
  %v2202 = vpack.c.b16 %v2153, %v2153
  %v2203 = vpack.c.b16 %v2154, %v2154
  %v2204 = vpack.c.b16 %v2155, %v2155
  %v2205 = vpack.c.b16 %v2156, %v2156
  %v2206 = vpack.c.b16 %v2157, %v2157
  %v2207 = vpack.c.b16 %v2158, %v2158
  %v2208 = vpack.c.b16 %v2159, %v2159
  %v2209 = vpack.c.b16 %v2160, %v2160
  %v2210 = vpack.c.b16 %v2161, %v2161
  %v2211 = vpack.c.b16 %v2162, %v2162
  %v2212 = vpack.c.b16 %v2163, %v2163
  %v2213 = vpack.c.b16 %v2164, %v2164
  %v2214 = vpack.c.b16 %v2165, %v2165
  %v2215 = vpack.c.b16 %v2166, %v2166
  %v2216 = vpack.c.b16 %v2167, %v2167
  %v2217 = vpack.c.b16 %v2168, %v2168
  %v2218 = vpack.c.b16 %v2169, %v2169
  %v2219 = vpack.c.b16 %v2170, %v2170
  %v2220 = vpack.c.b16 %v2171, %v2171
  %v2221 = vpack.c.b16 %v2172, %v2172
  %v2222 = vpack.c.b16 %v2173, %v2173
  %v2223 = vpack.c.b16 %v2174, %v2174
  %v2224 = vpack.c.b16 %v2175, %v2175
  %v2225 = vpack.c.b16 %v2176, %v2176
  %v2226 = vpack.c.b16 %v2177, %v2177
  %v2227 = vpack.c.b16 %v2178, %v2178
  %v2228 = vpack.c.b16 %v2179, %v2179
  %v2229 = vpack.c.b16 %v2180, %v2180
  %v2230 = vpack.c.b16 %v2181, %v2181
  %v2231 = vpack.c.b16 %v2182, %v2182
  %v2232 = vpack.c.b16 %v2183, %v2183
  %v2233 = vpack.c.b16 %v2184, %v2184
  %v2234 = vpack.c.b16 %v2185, %v2185
  %vm2284 = vcmask 257024
  %2285 = vst.msk [vmem:[%s3] sm:$0xf] %vm2284, %v2186
  %2286 = vst.msk [vmem:[%s3 + $0x4] sm:$0xf] %vm2284, %v2187
  %2287 = vst.msk [vmem:[%s3 + $0x8] sm:$0xf] %vm2284, %v2188
  %2288 = vst.msk [vmem:[%s3 + $0xc] sm:$0xf] %vm2284, %v2189
  %2289 = vst.msk [vmem:[%s3 + $0x10] sm:$0xf] %vm2284, %v2190
  %2290 = vst.msk [vmem:[%s3 + $0x14] sm:$0xf] %vm2284, %v2191
  %2291 = vst.msk [vmem:[%s3 + $0x18] sm:$0xf] %vm2284, %v2192
  %2292 = vst.msk [vmem:[%s3 + $0x1c] sm:$0xf] %vm2284, %v2193
  %2293 = vst.msk [vmem:[%s3 + $0x20] sm:$0xf] %vm2284, %v2194
  %2294 = vst.msk [vmem:[%s3 + $0x24] sm:$0xf] %vm2284, %v2195
  %2295 = vst.msk [vmem:[%s3 + $0x28] sm:$0xf] %vm2284, %v2196
  %2296 = vst.msk [vmem:[%s3 + $0x2c] sm:$0xf] %vm2284, %v2197
  %2297 = vst.msk [vmem:[%s3 + $0x30] sm:$0xf] %vm2284, %v2198
  %2298 = vst.msk [vmem:[%s3 + $0x34] sm:$0xf] %vm2284, %v2199
  %2299 = vst.msk [vmem:[%s3 + $0x38] sm:$0xf] %vm2284, %v2200
  %2300 = vst.msk [vmem:[%s3 + $0x3c] sm:$0xf] %vm2284, %v2201
  %2301 = vst.msk [vmem:[%s3 + $0x40] sm:$0xf] %vm2284, %v2202
  %2302 = vst.msk [vmem:[%s3 + $0x44] sm:$0xf] %vm2284, %v2203
  %2303 = vst.msk [vmem:[%s3 + $0x48] sm:$0xf] %vm2284, %v2204
  %2304 = vst.msk [vmem:[%s3 + $0x4c] sm:$0xf] %vm2284, %v2205
  %2305 = vst.msk [vmem:[%s3 + $0x50] sm:$0xf] %vm2284, %v2206
  %2306 = vst.msk [vmem:[%s3 + $0x54] sm:$0xf] %vm2284, %v2207
  %2307 = vst.msk [vmem:[%s3 + $0x58] sm:$0xf] %vm2284, %v2208
  %2308 = vst.msk [vmem:[%s3 + $0x5c] sm:$0xf] %vm2284, %v2209
  %2309 = vst.msk [vmem:[%s3 + $0x60] sm:$0xf] %vm2284, %v2210
  %2310 = vst.msk [vmem:[%s3 + $0x64] sm:$0xf] %vm2284, %v2211
  %2311 = vst.msk [vmem:[%s3 + $0x68] sm:$0xf] %vm2284, %v2212
  %2312 = vst.msk [vmem:[%s3 + $0x6c] sm:$0xf] %vm2284, %v2213
  %2313 = vst.msk [vmem:[%s3 + $0x70] sm:$0xf] %vm2284, %v2214
  %2314 = vst.msk [vmem:[%s3 + $0x74] sm:$0xf] %vm2284, %v2215
  %2315 = vst.msk [vmem:[%s3 + $0x78] sm:$0xf] %vm2284, %v2216
  %2316 = vst.msk [vmem:[%s3 + $0x7c] sm:$0xf] %vm2284, %v2217
  %2317 = vst.msk [vmem:[%s3 + $0x80] sm:$0xf] %vm2284, %v2218
  %2318 = vst.msk [vmem:[%s3 + $0x84] sm:$0xf] %vm2284, %v2219
  %2319 = vst.msk [vmem:[%s3 + $0x88] sm:$0xf] %vm2284, %v2220
  %2320 = vst.msk [vmem:[%s3 + $0x8c] sm:$0xf] %vm2284, %v2221
  %2321 = vst.msk [vmem:[%s3 + $0x90] sm:$0xf] %vm2284, %v2222
  %2322 = vst.msk [vmem:[%s3 + $0x94] sm:$0xf] %vm2284, %v2223
  %2323 = vst.msk [vmem:[%s3 + $0x98] sm:$0xf] %vm2284, %v2224
  %2324 = vst.msk [vmem:[%s3 + $0x9c] sm:$0xf] %vm2284, %v2225
  %2325 = vst.msk [vmem:[%s3 + $0xa0] sm:$0xf] %vm2284, %v2226
  %2326 = vst.msk [vmem:[%s3 + $0xa4] sm:$0xf] %vm2284, %v2227
  %2327 = vst.msk [vmem:[%s3 + $0xa8] sm:$0xf] %vm2284, %v2228
  %2328 = vst.msk [vmem:[%s3 + $0xac] sm:$0xf] %vm2284, %v2229
  %2329 = vst.msk [vmem:[%s3 + $0xb0] sm:$0xf] %vm2284, %v2230
  %2330 = vst.msk [vmem:[%s3 + $0xb4] sm:$0xf] %vm2284, %v2231
  %2331 = vst.msk [vmem:[%s3 + $0xb8] sm:$0xf] %vm2284, %v2232
  %2332 = vst.msk [vmem:[%s3 + $0xbc] sm:$0xf] %vm2284, %v2233
  %2333 = vst.msk [vmem:[%s3 + $0xc0] sm:$0xf] %vm2284, %v2234
  // Predicated region
  $region14: #{cnn_forward.3} parent=0 // pred_check
    _
  $region15: #{cnn_forward.3} parent=0 // pred_check_branch
    %2335 = sbr.rel (0) target = $region17
  $region16: #{cnn_forward.3} parent=0 // pred_region
    _
  $region17: #{cnn_forward.3} parent=0 // pred_fallthru
    _
  // Predicated region
  $region18: #{cnn_forward.3} parent=0 // pred_check
    _
  $region19: #{cnn_forward.3} parent=0 // pred_check_branch
    %2337 = sbr.rel (0) target = $region21
  $region20: #{cnn_forward.3} parent=0 // pred_region
    _
  $region21: #{cnn_forward.3} parent=0 // pred_fallthru
    _

// kernel: cnn_forward.4
$region0: #{cnn_forward.4}
  #allocation0 [shape = 'u32[]', space=smem, size = 0x4, offset = 0x4, fixed_abs, tag = 'smem constant byte address 0x4 - core index']
  #allocation1 [shape = 'u32[144,128]{1,0:T(1,128)}', space=vmem, size = 0x12000, scoped, tag = 'internal scratch']
  %s0 = inlined_call_operand.vmem [shape: bf16[416,800], index: 0, kind: input, shape index: {}]
  %s1 = inlined_call_operand.vmem [shape: bf16[800,64], index: 1, kind: input, shape index: {}]
  %s2 = inlined_call_operand.vmem [shape: f32[1,64], index: 2, kind: input, shape index: {}]
  %s3 = inlined_call_operand.vmem [shape: bf16[104,64], index: 3, kind: output, shape index: {}]
  %s4 = sld [smem:[#allocation0]]
  $region22: #{cnn_forward.4} parent=0
    _
  %s6 = ssub.s32 1, %s4
  %s7 = scalar_select 0, %s6, %s4
  // Predicated region
  $region2: #{cnn_forward.4} parent=0 // pred_check
    _
  $region3: #{cnn_forward.4} parent=0 // pred_check_branch
    %9 = sbr.rel (0) target = $region5
  $region4: #{cnn_forward.4} parent=0 // pred_region
    _
  $region5: #{cnn_forward.4} parent=0 // pred_fallthru
    _
  // Predicated region
  $region6: #{cnn_forward.4} parent=0 // pred_check
    _
  $region7: #{cnn_forward.4} parent=0 // pred_check_branch
    %11 = sbr.rel (0) target = $region9
  $region8: #{cnn_forward.4} parent=0 // pred_region
    _
  $region9: #{cnn_forward.4} parent=0 // pred_fallthru
    _
  // Predicated region
  $region10: #{cnn_forward.4} parent=0 // pred_check
    _
  $region11: #{cnn_forward.4} parent=0 // pred_check_branch
    %13 = sbr.rel (0) target = $region13
  $region12: #{cnn_forward.4} parent=0 // pred_region
    _
  $region13: #{cnn_forward.4} parent=0 // pred_fallthru
    _
  %v15 = vld [vmem:[%s0] sm:$0xff]
  %v16 = vld [vmem:[%s0 + $0x8] sm:$0xff]
  %v17 = vld [vmem:[%s0 + $0x10] sm:$0xff]
  %v18 = vld [vmem:[%s0 + $0x18] sm:$0xf]
  %v19 = vld [vmem:[%s0 + $0x1c] sm:$0xff]
  %v20 = vld [vmem:[%s0 + $0x24] sm:$0xff]
  %v21 = vld [vmem:[%s0 + $0x2c] sm:$0xff]
  %v22 = vld [vmem:[%s0 + $0x34] sm:$0xf]
  %v23 = vld [vmem:[%s0 + $0x38] sm:$0xff]
  %v24 = vld [vmem:[%s0 + $0x40] sm:$0xff]
  %v25 = vld [vmem:[%s0 + $0x48] sm:$0xff]
  %v26 = vld [vmem:[%s0 + $0x50] sm:$0xf]
  %v27 = vld [vmem:[%s0 + $0x54] sm:$0xff]
  %v28 = vld [vmem:[%s0 + $0x5c] sm:$0xff]
  %v29 = vld [vmem:[%s0 + $0x64] sm:$0xff]
  %v30 = vld [vmem:[%s0 + $0x6c] sm:$0xf]
  %v31 = vld [vmem:[%s0 + $0x70] sm:$0xff]
  %v32 = vld [vmem:[%s0 + $0x78] sm:$0xff]
  %v33 = vld [vmem:[%s0 + $0x80] sm:$0xff]
  %v34 = vld [vmem:[%s0 + $0x88] sm:$0xf]
  %v35 = vld [vmem:[%s0 + $0x8c] sm:$0xff]
  %v36 = vld [vmem:[%s0 + $0x94] sm:$0xff]
  %v37 = vld [vmem:[%s0 + $0x9c] sm:$0xff]
  %v38 = vld [vmem:[%s0 + $0xa4] sm:$0xf]
  %v39 = vld [vmem:[%s0 + $0xa8] sm:$0xff]
  %v40 = vld [vmem:[%s0 + $0xb0] sm:$0xff]
  %v41 = vld [vmem:[%s0 + $0xb8] sm:$0xff]
  %v42 = vld [vmem:[%s0 + $0xc0] sm:$0xf]
  %v43 = vld [vmem:[%s0 + $0xc4] sm:$0xff]
  %v44 = vld [vmem:[%s0 + $0xcc] sm:$0xff]
  %v45 = vld [vmem:[%s0 + $0xd4] sm:$0xff]
  %v46 = vld [vmem:[%s0 + $0xdc] sm:$0xf]
  %v47 = vld [vmem:[%s0 + $0xe0] sm:$0xff]
  %v48 = vld [vmem:[%s0 + $0xe8] sm:$0xff]
  %v49 = vld [vmem:[%s0 + $0xf0] sm:$0xff]
  %v50 = vld [vmem:[%s0 + $0xf8] sm:$0xf]
  %v51 = vld [vmem:[%s0 + $0xfc] sm:$0xff]
  %v52 = vld [vmem:[%s0 + $0x104] sm:$0xff]
  %v53 = vld [vmem:[%s0 + $0x10c] sm:$0xff]
  %v54 = vld [vmem:[%s0 + $0x114] sm:$0xf]
  %v55 = vld [vmem:[%s0 + $0x118] sm:$0xff]
  %v56 = vld [vmem:[%s0 + $0x120] sm:$0xff]
  %v57 = vld [vmem:[%s0 + $0x128] sm:$0xff]
  %v58 = vld [vmem:[%s0 + $0x130] sm:$0xf]
  %v59 = vld [vmem:[%s0 + $0x134] sm:$0xff]
  %v60 = vld [vmem:[%s0 + $0x13c] sm:$0xff]
  %v61 = vld [vmem:[%s0 + $0x144] sm:$0xff]
  %v62 = vld [vmem:[%s0 + $0x14c] sm:$0xf]
  %v63 = vld [vmem:[%s0 + $0x150] sm:$0xff]
  %v64 = vld [vmem:[%s0 + $0x158] sm:$0xff]
  %v65 = vld [vmem:[%s0 + $0x160] sm:$0xff]
  %v66 = vld [vmem:[%s0 + $0x168] sm:$0xf]
  %v67 = vld [vmem:[%s0 + $0x16c] sm:$0xff]
  %v68 = vld [vmem:[%s0 + $0x174] sm:$0xff]
  %v69 = vld [vmem:[%s0 + $0x17c] sm:$0xff]
  %v70 = vld [vmem:[%s0 + $0x184] sm:$0xf]
  %v71 = vld [vmem:[%s0 + $0x188] sm:$0xff]
  %v72 = vld [vmem:[%s0 + $0x190] sm:$0xff]
  %v73 = vld [vmem:[%s0 + $0x198] sm:$0xff]
  %v74 = vld [vmem:[%s0 + $0x1a0] sm:$0xf]
  %v75 = vld [vmem:[%s0 + $0x1a4] sm:$0xff]
  %v76 = vld [vmem:[%s0 + $0x1ac] sm:$0xff]
  %v77 = vld [vmem:[%s0 + $0x1b4] sm:$0xff]
  %v78 = vld [vmem:[%s0 + $0x1bc] sm:$0xf]
  %v79 = vld [vmem:[%s0 + $0x1c0] sm:$0xff]
  %v80 = vld [vmem:[%s0 + $0x1c8] sm:$0xff]
  %v81 = vld [vmem:[%s0 + $0x1d0] sm:$0xff]
  %v82 = vld [vmem:[%s0 + $0x1d8] sm:$0xf]
  %v83 = vld [vmem:[%s0 + $0x1dc] sm:$0xff]
  %v84 = vld [vmem:[%s0 + $0x1e4] sm:$0xff]
  %v85 = vld [vmem:[%s0 + $0x1ec] sm:$0xff]
  %v86 = vld [vmem:[%s0 + $0x1f4] sm:$0xf]
  %v87 = vld [vmem:[%s0 + $0x1f8] sm:$0xff]
  %v88 = vld [vmem:[%s0 + $0x200] sm:$0xff]
  %v89 = vld [vmem:[%s0 + $0x208] sm:$0xff]
  %v90 = vld [vmem:[%s0 + $0x210] sm:$0xf]
  %v91 = vld [vmem:[%s0 + $0x214] sm:$0xff]
  %v92 = vld [vmem:[%s0 + $0x21c] sm:$0xff]
  %v93 = vld [vmem:[%s0 + $0x224] sm:$0xff]
  %v94 = vld [vmem:[%s0 + $0x22c] sm:$0xf]
  %v95 = vld [vmem:[%s0 + $0x230] sm:$0xff]
  %v96 = vld [vmem:[%s0 + $0x238] sm:$0xff]
  %v97 = vld [vmem:[%s0 + $0x240] sm:$0xff]
  %v98 = vld [vmem:[%s0 + $0x248] sm:$0xf]
  %v99 = vld [vmem:[%s0 + $0x24c] sm:$0xff]
  %v100 = vld [vmem:[%s0 + $0x254] sm:$0xff]
  %v101 = vld [vmem:[%s0 + $0x25c] sm:$0xff]
  %v102 = vld [vmem:[%s0 + $0x264] sm:$0xf]
  %v103 = vld [vmem:[%s0 + $0x268] sm:$0xff]
  %v104 = vld [vmem:[%s0 + $0x270] sm:$0xff]
  %v105 = vld [vmem:[%s0 + $0x278] sm:$0xff]
  %v106 = vld [vmem:[%s0 + $0x280] sm:$0xf]
  %v107 = vld [vmem:[%s0 + $0x284] sm:$0xff]
  %v108 = vld [vmem:[%s0 + $0x28c] sm:$0xff]
  %v109 = vld [vmem:[%s0 + $0x294] sm:$0xff]
  %v110 = vld [vmem:[%s0 + $0x29c] sm:$0xf]
  %v111 = vld [vmem:[%s0 + $0x2a0] sm:$0xff]
  %v112 = vld [vmem:[%s0 + $0x2a8] sm:$0xff]
  %v113 = vld [vmem:[%s0 + $0x2b0] sm:$0xff]
  %v114 = vld [vmem:[%s0 + $0x2b8] sm:$0xf]
  %v115 = vld [vmem:[%s0 + $0x2bc] sm:$0xff]
  %v116 = vld [vmem:[%s0 + $0x2c4] sm:$0xff]
  %v117 = vld [vmem:[%s0 + $0x2cc] sm:$0xff]
  %v118 = vld [vmem:[%s0 + $0x2d4] sm:$0xf]
  %v119 = vld [vmem:[%s0 + $0x2d8] sm:$0xff]
  %v120 = vld [vmem:[%s0 + $0x2e0] sm:$0xff]
  %v121 = vld [vmem:[%s0 + $0x2e8] sm:$0xff]
  %v122 = vld [vmem:[%s0 + $0x2f0] sm:$0xf]
  %v123 = vld [vmem:[%s0 + $0x2f4] sm:$0xff]
  %v124 = vld [vmem:[%s0 + $0x2fc] sm:$0xff]
  %v125 = vld [vmem:[%s0 + $0x304] sm:$0xff]
  %v126 = vld [vmem:[%s0 + $0x30c] sm:$0xf]
  %v127 = vld [vmem:[%s0 + $0x310] sm:$0xff]
  %v128 = vld [vmem:[%s0 + $0x318] sm:$0xff]
  %v129 = vld [vmem:[%s0 + $0x320] sm:$0xff]
  %v130 = vld [vmem:[%s0 + $0x328] sm:$0xf]
  %v131 = vld [vmem:[%s0 + $0x32c] sm:$0xff]
  %v132 = vld [vmem:[%s0 + $0x334] sm:$0xff]
  %v133 = vld [vmem:[%s0 + $0x33c] sm:$0xff]
  %v134 = vld [vmem:[%s0 + $0x344] sm:$0xf]
  %v135 = vld [vmem:[%s0 + $0x348] sm:$0xff]
  %v136 = vld [vmem:[%s0 + $0x350] sm:$0xff]
  %v137 = vld [vmem:[%s0 + $0x358] sm:$0xff]
  %v138 = vld [vmem:[%s0 + $0x360] sm:$0xf]
  %v139 = vld [vmem:[%s0 + $0x364] sm:$0xff]
  %v140 = vld [vmem:[%s0 + $0x36c] sm:$0xff]
  %v141 = vld [vmem:[%s0 + $0x374] sm:$0xff]
  %v142 = vld [vmem:[%s0 + $0x37c] sm:$0xf]
  %v143 = vld [vmem:[%s0 + $0x380] sm:$0xff]
  %v144 = vld [vmem:[%s0 + $0x388] sm:$0xff]
  %v145 = vld [vmem:[%s0 + $0x390] sm:$0xff]
  %v146 = vld [vmem:[%s0 + $0x398] sm:$0xf]
  %v147 = vld [vmem:[%s0 + $0x39c] sm:$0xff]
  %v148 = vld [vmem:[%s0 + $0x3a4] sm:$0xff]
  %v149 = vld [vmem:[%s0 + $0x3ac] sm:$0xff]
  %v150 = vld [vmem:[%s0 + $0x3b4] sm:$0xf]
  %v151 = vld [vmem:[%s0 + $0x3b8] sm:$0xff]
  %v152 = vld [vmem:[%s0 + $0x3c0] sm:$0xff]
  %v153 = vld [vmem:[%s0 + $0x3c8] sm:$0xff]
  %v154 = vld [vmem:[%s0 + $0x3d0] sm:$0xf]
  %v155 = vld [vmem:[%s0 + $0x3d4] sm:$0xff]
  %v156 = vld [vmem:[%s0 + $0x3dc] sm:$0xff]
  %v157 = vld [vmem:[%s0 + $0x3e4] sm:$0xff]
  %v158 = vld [vmem:[%s0 + $0x3ec] sm:$0xf]
  %v159 = vld [vmem:[%s0 + $0x3f0] sm:$0xff]
  %v160 = vld [vmem:[%s0 + $0x3f8] sm:$0xff]
  %v161 = vld [vmem:[%s0 + $0x400] sm:$0xff]
  %v162 = vld [vmem:[%s0 + $0x408] sm:$0xf]
  %v163 = vld [vmem:[%s0 + $0x40c] sm:$0xff]
  %v164 = vld [vmem:[%s0 + $0x414] sm:$0xff]
  %v165 = vld [vmem:[%s0 + $0x41c] sm:$0xff]
  %v166 = vld [vmem:[%s0 + $0x424] sm:$0xf]
  %v167 = vld [vmem:[%s0 + $0x428] sm:$0xff]
  %v168 = vld [vmem:[%s0 + $0x430] sm:$0xff]
  %v169 = vld [vmem:[%s0 + $0x438] sm:$0xff]
  %v170 = vld [vmem:[%s0 + $0x440] sm:$0xf]
  %v171 = vld [vmem:[%s0 + $0x444] sm:$0xff]
  %v172 = vld [vmem:[%s0 + $0x44c] sm:$0xff]
  %v173 = vld [vmem:[%s0 + $0x454] sm:$0xff]
  %v174 = vld [vmem:[%s0 + $0x45c] sm:$0xf]
  %v175 = vld [vmem:[%s0 + $0x460] sm:$0xff]
  %v176 = vld [vmem:[%s0 + $0x468] sm:$0xff]
  %v177 = vld [vmem:[%s0 + $0x470] sm:$0xff]
  %v178 = vld [vmem:[%s0 + $0x478] sm:$0xf]
  %v179 = vld [vmem:[%s0 + $0x47c] sm:$0xff]
  %v180 = vld [vmem:[%s0 + $0x484] sm:$0xff]
  %v181 = vld [vmem:[%s0 + $0x48c] sm:$0xff]
  %v182 = vld [vmem:[%s0 + $0x494] sm:$0xf]
  %v183 = vld [vmem:[%s0 + $0x498] sm:$0xff]
  %v184 = vld [vmem:[%s0 + $0x4a0] sm:$0xff]
  %v185 = vld [vmem:[%s0 + $0x4a8] sm:$0xff]
  %v186 = vld [vmem:[%s0 + $0x4b0] sm:$0xf]
  %v187 = vld [vmem:[%s0 + $0x4b4] sm:$0xff]
  %v188 = vld [vmem:[%s0 + $0x4bc] sm:$0xff]
  %v189 = vld [vmem:[%s0 + $0x4c4] sm:$0xff]
  %v190 = vld [vmem:[%s0 + $0x4cc] sm:$0xf]
  %v191 = vld [vmem:[%s0 + $0x4d0] sm:$0xff]
  %v192 = vld [vmem:[%s0 + $0x4d8] sm:$0xff]
  %v193 = vld [vmem:[%s0 + $0x4e0] sm:$0xff]
  %v194 = vld [vmem:[%s0 + $0x4e8] sm:$0xf]
  %v195 = vld [vmem:[%s0 + $0x4ec] sm:$0xff]
  %v196 = vld [vmem:[%s0 + $0x4f4] sm:$0xff]
  %v197 = vld [vmem:[%s0 + $0x4fc] sm:$0xff]
  %v198 = vld [vmem:[%s0 + $0x504] sm:$0xf]
  %v199 = vld [vmem:[%s0 + $0x508] sm:$0xff]
  %v200 = vld [vmem:[%s0 + $0x510] sm:$0xff]
  %v201 = vld [vmem:[%s0 + $0x518] sm:$0xff]
  %v202 = vld [vmem:[%s0 + $0x520] sm:$0xf]
  %v203 = vld [vmem:[%s0 + $0x524] sm:$0xff]
  %v204 = vld [vmem:[%s0 + $0x52c] sm:$0xff]
  %v205 = vld [vmem:[%s0 + $0x534] sm:$0xff]
  %v206 = vld [vmem:[%s0 + $0x53c] sm:$0xf]
  %v207 = vld [vmem:[%s0 + $0x540] sm:$0xff]
  %v208 = vld [vmem:[%s0 + $0x548] sm:$0xff]
  %v209 = vld [vmem:[%s0 + $0x550] sm:$0xff]
  %v210 = vld [vmem:[%s0 + $0x558] sm:$0xf]
  %v211 = vld [vmem:[%s0 + $0x55c] sm:$0xff]
  %v212 = vld [vmem:[%s0 + $0x564] sm:$0xff]
  %v213 = vld [vmem:[%s0 + $0x56c] sm:$0xff]
  %v214 = vld [vmem:[%s0 + $0x574] sm:$0xf]
  %v215 = vld [vmem:[%s0 + $0x578] sm:$0xff]
  %v216 = vld [vmem:[%s0 + $0x580] sm:$0xff]
  %v217 = vld [vmem:[%s0 + $0x588] sm:$0xff]
  %v218 = vld [vmem:[%s0 + $0x590] sm:$0xf]
  %v219 = vld [vmem:[%s0 + $0x594] sm:$0xff]
  %v220 = vld [vmem:[%s0 + $0x59c] sm:$0xff]
  %v221 = vld [vmem:[%s0 + $0x5a4] sm:$0xff]
  %v222 = vld [vmem:[%s0 + $0x5ac] sm:$0xf]
  %v223 = vld [vmem:[%s1] sm:$0xf]
  %v224 = vld [vmem:[%s1 + $0x4] sm:$0xf]
  %v225 = vld [vmem:[%s1 + $0x8] sm:$0xf]
  %v226 = vld [vmem:[%s1 + $0xc] sm:$0xf]
  %v227 = vld [vmem:[%s1 + $0x10] sm:$0xf]
  %v228 = vld [vmem:[%s1 + $0x14] sm:$0xf]
  %v229 = vld [vmem:[%s1 + $0x18] sm:$0xf]
  %v230 = vld [vmem:[%s1 + $0x1c] sm:$0xf]
  %v231 = vld [vmem:[%s1 + $0x20] sm:$0xf]
  %v232 = vld [vmem:[%s1 + $0x24] sm:$0xf]
  %v233 = vld [vmem:[%s1 + $0x28] sm:$0xf]
  %v234 = vld [vmem:[%s1 + $0x2c] sm:$0xf]
  %v235 = vld [vmem:[%s1 + $0x30] sm:$0xf]
  %v236 = vld [vmem:[%s1 + $0x34] sm:$0xf]
  %v237 = vld [vmem:[%s1 + $0x38] sm:$0xf]
  %v238 = vld [vmem:[%s1 + $0x3c] sm:$0xf]
  %v239 = vld [vmem:[%s1 + $0x40] sm:$0xf]
  %v240 = vld [vmem:[%s1 + $0x44] sm:$0xf]
  %v241 = vld [vmem:[%s1 + $0x48] sm:$0xf]
  %v242 = vld [vmem:[%s1 + $0x4c] sm:$0xf]
  %v243 = vld [vmem:[%s1 + $0x50] sm:$0xf]
  %v244 = vld [vmem:[%s1 + $0x54] sm:$0xf]
  %v245 = vld [vmem:[%s1 + $0x58] sm:$0xf]
  %v246 = vld [vmem:[%s1 + $0x5c] sm:$0xf]
  %v247 = vld [vmem:[%s1 + $0x60] sm:$0xf]
  %v248 = vld [vmem:[%s1 + $0x64] sm:$0xf]
  %v249 = vld [vmem:[%s1 + $0x68] sm:$0xf]
  %v250 = vld [vmem:[%s1 + $0x6c] sm:$0xf]
  %v251 = vld [vmem:[%s1 + $0x70] sm:$0xf]
  %v252 = vld [vmem:[%s1 + $0x74] sm:$0xf]
  %v253 = vld [vmem:[%s1 + $0x78] sm:$0xf]
  %v254 = vld [vmem:[%s1 + $0x7c] sm:$0xf]
  %v255 = vld [vmem:[%s1 + $0x80] sm:$0xf]
  %v256 = vld [vmem:[%s1 + $0x84] sm:$0xf]
  %v257 = vld [vmem:[%s1 + $0x88] sm:$0xf]
  %v258 = vld [vmem:[%s1 + $0x8c] sm:$0xf]
  %v259 = vld [vmem:[%s1 + $0x90] sm:$0xf]
  %v260 = vld [vmem:[%s1 + $0x94] sm:$0xf]
  %v261 = vld [vmem:[%s1 + $0x98] sm:$0xf]
  %v262 = vld [vmem:[%s1 + $0x9c] sm:$0xf]
  %v263 = vld [vmem:[%s1 + $0xa0] sm:$0xf]
  %v264 = vld [vmem:[%s1 + $0xa4] sm:$0xf]
  %v265 = vld [vmem:[%s1 + $0xa8] sm:$0xf]
  %v266 = vld [vmem:[%s1 + $0xac] sm:$0xf]
  %v267 = vld [vmem:[%s1 + $0xb0] sm:$0xf]
  %v268 = vld [vmem:[%s1 + $0xb4] sm:$0xf]
  %v269 = vld [vmem:[%s1 + $0xb8] sm:$0xf]
  %v270 = vld [vmem:[%s1 + $0xbc] sm:$0xf]
  %v271 = vld [vmem:[%s1 + $0xc0] sm:$0xf]
  %v272 = vld [vmem:[%s1 + $0xc4] sm:$0xf]
  %v273 = vld [vmem:[%s1 + $0xc8] sm:$0xf]
  %v274 = vld [vmem:[%s1 + $0xcc] sm:$0xf]
  %v275 = vld [vmem:[%s1 + $0xd0] sm:$0xf]
  %v276 = vld [vmem:[%s1 + $0xd4] sm:$0xf]
  %v277 = vld [vmem:[%s1 + $0xd8] sm:$0xf]
  %v278 = vld [vmem:[%s1 + $0xdc] sm:$0xf]
  %v279 = vld [vmem:[%s1 + $0xe0] sm:$0xf]
  %v280 = vld [vmem:[%s1 + $0xe4] sm:$0xf]
  %v281 = vld [vmem:[%s1 + $0xe8] sm:$0xf]
  %v282 = vld [vmem:[%s1 + $0xec] sm:$0xf]
  %v283 = vld [vmem:[%s1 + $0xf0] sm:$0xf]
  %v284 = vld [vmem:[%s1 + $0xf4] sm:$0xf]
  %v285 = vld [vmem:[%s1 + $0xf8] sm:$0xf]
  %v286 = vld [vmem:[%s1 + $0xfc] sm:$0xf]
  %v287 = vld [vmem:[%s1 + $0x100] sm:$0xf]
  %v288 = vld [vmem:[%s1 + $0x104] sm:$0xf]
  %v289 = vld [vmem:[%s1 + $0x108] sm:$0xf]
  %v290 = vld [vmem:[%s1 + $0x10c] sm:$0xf]
  %v291 = vld [vmem:[%s1 + $0x110] sm:$0xf]
  %v292 = vld [vmem:[%s1 + $0x114] sm:$0xf]
  %v293 = vld [vmem:[%s1 + $0x118] sm:$0xf]
  %v294 = vld [vmem:[%s1 + $0x11c] sm:$0xf]
  %v295 = vld [vmem:[%s1 + $0x120] sm:$0xf]
  %v296 = vld [vmem:[%s1 + $0x124] sm:$0xf]
  %v297 = vld [vmem:[%s1 + $0x128] sm:$0xf]
  %v298 = vld [vmem:[%s1 + $0x12c] sm:$0xf]
  %v299 = vld [vmem:[%s1 + $0x130] sm:$0xf]
  %v300 = vld [vmem:[%s1 + $0x134] sm:$0xf]
  %v301 = vld [vmem:[%s1 + $0x138] sm:$0xf]
  %v302 = vld [vmem:[%s1 + $0x13c] sm:$0xf]
  %v303 = vld [vmem:[%s1 + $0x140] sm:$0xf]
  %v304 = vld [vmem:[%s1 + $0x144] sm:$0xf]
  %v305 = vld [vmem:[%s1 + $0x148] sm:$0xf]
  %v306 = vld [vmem:[%s1 + $0x14c] sm:$0xf]
  %v307 = vld [vmem:[%s1 + $0x150] sm:$0xf]
  %v308 = vld [vmem:[%s1 + $0x154] sm:$0xf]
  %v309 = vld [vmem:[%s1 + $0x158] sm:$0xf]
  %v310 = vld [vmem:[%s1 + $0x15c] sm:$0xf]
  %v311 = vld [vmem:[%s1 + $0x160] sm:$0xf]
  %v312 = vld [vmem:[%s1 + $0x164] sm:$0xf]
  %v313 = vld [vmem:[%s1 + $0x168] sm:$0xf]
  %v314 = vld [vmem:[%s1 + $0x16c] sm:$0xf]
  %v315 = vld [vmem:[%s1 + $0x170] sm:$0xf]
  %v316 = vld [vmem:[%s1 + $0x174] sm:$0xf]
  %v317 = vld [vmem:[%s1 + $0x178] sm:$0xf]
  %v318 = vld [vmem:[%s1 + $0x17c] sm:$0xf]
  %v319 = vld [vmem:[%s1 + $0x180] sm:$0xf]
  %v320 = vld [vmem:[%s1 + $0x184] sm:$0xf]
  %v321 = vld [vmem:[%s1 + $0x188] sm:$0xf]
  %v322 = vld [vmem:[%s1 + $0x18c] sm:$0xf]
  %v531 = vunpack.c.l.b16 %v15
  %v532 = vunpack.c.h.b16 %v15
  %v533 = vunpack.c.l.b16 %v16
  %v534 = vunpack.c.h.b16 %v16
  %v535 = vunpack.c.l.b16 %v17
  %v536 = vunpack.c.h.b16 %v17
  %v537 = vunpack.c.l.b16 %v18
  %v538 = vunpack.c.l.b16 %v19
  %v539 = vunpack.c.h.b16 %v19
  %v540 = vunpack.c.l.b16 %v20
  %v541 = vunpack.c.h.b16 %v20
  %v542 = vunpack.c.l.b16 %v21
  %v543 = vunpack.c.h.b16 %v21
  %v544 = vunpack.c.l.b16 %v22
  %v545 = vunpack.c.l.b16 %v23
  %v546 = vunpack.c.h.b16 %v23
  %v547 = vunpack.c.l.b16 %v24
  %v548 = vunpack.c.h.b16 %v24
  %v549 = vunpack.c.l.b16 %v25
  %v550 = vunpack.c.h.b16 %v25
  %v551 = vunpack.c.l.b16 %v26
  %v552 = vunpack.c.l.b16 %v27
  %v553 = vunpack.c.h.b16 %v27
  %v554 = vunpack.c.l.b16 %v28
  %v555 = vunpack.c.h.b16 %v28
  %v556 = vunpack.c.l.b16 %v29
  %v557 = vunpack.c.h.b16 %v29
  %v558 = vunpack.c.l.b16 %v30
  %v559 = vunpack.c.l.b16 %v31
  %v560 = vunpack.c.h.b16 %v31
  %v561 = vunpack.c.l.b16 %v32
  %v562 = vunpack.c.h.b16 %v32
  %v563 = vunpack.c.l.b16 %v33
  %v564 = vunpack.c.h.b16 %v33
  %v565 = vunpack.c.l.b16 %v34
  %v566 = vunpack.c.l.b16 %v35
  %v567 = vunpack.c.h.b16 %v35
  %v568 = vunpack.c.l.b16 %v36
  %v569 = vunpack.c.h.b16 %v36
  %v570 = vunpack.c.l.b16 %v37
  %v571 = vunpack.c.h.b16 %v37
  %v572 = vunpack.c.l.b16 %v38
  %v573 = vunpack.c.l.b16 %v39
  %v574 = vunpack.c.h.b16 %v39
  %v575 = vunpack.c.l.b16 %v40
  %v576 = vunpack.c.h.b16 %v40
  %v577 = vunpack.c.l.b16 %v41
  %v578 = vunpack.c.h.b16 %v41
  %v579 = vunpack.c.l.b16 %v42
  %v580 = vunpack.c.l.b16 %v43
  %v581 = vunpack.c.h.b16 %v43
  %v582 = vunpack.c.l.b16 %v44
  %v583 = vunpack.c.h.b16 %v44
  %v584 = vunpack.c.l.b16 %v45
  %v585 = vunpack.c.h.b16 %v45
  %v586 = vunpack.c.l.b16 %v46
  %v587 = vunpack.c.l.b16 %v47
  %v588 = vunpack.c.h.b16 %v47
  %v589 = vunpack.c.l.b16 %v48
  %v590 = vunpack.c.h.b16 %v48
  %v591 = vunpack.c.l.b16 %v49
  %v592 = vunpack.c.h.b16 %v49
  %v593 = vunpack.c.l.b16 %v50
  %v594 = vunpack.c.l.b16 %v51
  %v595 = vunpack.c.h.b16 %v51
  %v596 = vunpack.c.l.b16 %v52
  %v597 = vunpack.c.h.b16 %v52
  %v598 = vunpack.c.l.b16 %v53
  %v599 = vunpack.c.h.b16 %v53
  %v600 = vunpack.c.l.b16 %v54
  %v601 = vunpack.c.l.b16 %v55
  %v602 = vunpack.c.h.b16 %v55
  %v603 = vunpack.c.l.b16 %v56
  %v604 = vunpack.c.h.b16 %v56
  %v605 = vunpack.c.l.b16 %v57
  %v606 = vunpack.c.h.b16 %v57
  %v607 = vunpack.c.l.b16 %v58
  %v608 = vunpack.c.l.b16 %v59
  %v609 = vunpack.c.h.b16 %v59
  %v610 = vunpack.c.l.b16 %v60
  %v611 = vunpack.c.h.b16 %v60
  %v612 = vunpack.c.l.b16 %v61
  %v613 = vunpack.c.h.b16 %v61
  %v614 = vunpack.c.l.b16 %v62
  %v615 = vunpack.c.l.b16 %v63
  %v616 = vunpack.c.h.b16 %v63
  %v617 = vunpack.c.l.b16 %v64
  %v618 = vunpack.c.h.b16 %v64
  %v619 = vunpack.c.l.b16 %v65
  %v620 = vunpack.c.h.b16 %v65
  %v621 = vunpack.c.l.b16 %v66
  %v622 = vunpack.c.l.b16 %v67
  %v623 = vunpack.c.h.b16 %v67
  %v624 = vunpack.c.l.b16 %v68
  %v625 = vunpack.c.h.b16 %v68
  %v626 = vunpack.c.l.b16 %v69
  %v627 = vunpack.c.h.b16 %v69
  %v628 = vunpack.c.l.b16 %v70
  %v629 = vunpack.c.l.b16 %v71
  %v630 = vunpack.c.h.b16 %v71
  %v631 = vunpack.c.l.b16 %v72
  %v632 = vunpack.c.h.b16 %v72
  %v633 = vunpack.c.l.b16 %v73
  %v634 = vunpack.c.h.b16 %v73
  %v635 = vunpack.c.l.b16 %v74
  %v636 = vunpack.c.l.b16 %v75
  %v637 = vunpack.c.h.b16 %v75
  %v638 = vunpack.c.l.b16 %v76
  %v639 = vunpack.c.h.b16 %v76
  %v640 = vunpack.c.l.b16 %v77
  %v641 = vunpack.c.h.b16 %v77
  %v642 = vunpack.c.l.b16 %v78
  %v643 = vunpack.c.l.b16 %v79
  %v644 = vunpack.c.h.b16 %v79
  %v645 = vunpack.c.l.b16 %v80
  %v646 = vunpack.c.h.b16 %v80
  %v647 = vunpack.c.l.b16 %v81
  %v648 = vunpack.c.h.b16 %v81
  %v649 = vunpack.c.l.b16 %v82
  %v650 = vunpack.c.l.b16 %v83
  %v651 = vunpack.c.h.b16 %v83
  %v652 = vunpack.c.l.b16 %v84
  %v653 = vunpack.c.h.b16 %v84
  %v654 = vunpack.c.l.b16 %v85
  %v655 = vunpack.c.h.b16 %v85
  %v656 = vunpack.c.l.b16 %v86
  %v657 = vunpack.c.l.b16 %v87
  %v658 = vunpack.c.h.b16 %v87
  %v659 = vunpack.c.l.b16 %v88
  %v660 = vunpack.c.h.b16 %v88
  %v661 = vunpack.c.l.b16 %v89
  %v662 = vunpack.c.h.b16 %v89
  %v663 = vunpack.c.l.b16 %v90
  %v664 = vunpack.c.l.b16 %v91
  %v665 = vunpack.c.h.b16 %v91
  %v666 = vunpack.c.l.b16 %v92
  %v667 = vunpack.c.h.b16 %v92
  %v668 = vunpack.c.l.b16 %v93
  %v669 = vunpack.c.h.b16 %v93
  %v670 = vunpack.c.l.b16 %v94
  %v671 = vunpack.c.l.b16 %v95
  %v672 = vunpack.c.h.b16 %v95
  %v673 = vunpack.c.l.b16 %v96
  %v674 = vunpack.c.h.b16 %v96
  %v675 = vunpack.c.l.b16 %v97
  %v676 = vunpack.c.h.b16 %v97
  %v677 = vunpack.c.l.b16 %v98
  %v678 = vunpack.c.l.b16 %v99
  %v679 = vunpack.c.h.b16 %v99
  %v680 = vunpack.c.l.b16 %v100
  %v681 = vunpack.c.h.b16 %v100
  %v682 = vunpack.c.l.b16 %v101
  %v683 = vunpack.c.h.b16 %v101
  %v684 = vunpack.c.l.b16 %v102
  %v685 = vunpack.c.l.b16 %v103
  %v686 = vunpack.c.h.b16 %v103
  %v687 = vunpack.c.l.b16 %v104
  %v688 = vunpack.c.h.b16 %v104
  %v689 = vunpack.c.l.b16 %v105
  %v690 = vunpack.c.h.b16 %v105
  %v691 = vunpack.c.l.b16 %v106
  %v692 = vunpack.c.l.b16 %v107
  %v693 = vunpack.c.h.b16 %v107
  %v694 = vunpack.c.l.b16 %v108
  %v695 = vunpack.c.h.b16 %v108
  %v696 = vunpack.c.l.b16 %v109
  %v697 = vunpack.c.h.b16 %v109
  %v698 = vunpack.c.l.b16 %v110
  %v699 = vunpack.c.l.b16 %v111
  %v700 = vunpack.c.h.b16 %v111
  %v701 = vunpack.c.l.b16 %v112
  %v702 = vunpack.c.h.b16 %v112
  %v703 = vunpack.c.l.b16 %v113
  %v704 = vunpack.c.h.b16 %v113
  %v705 = vunpack.c.l.b16 %v114
  %v706 = vunpack.c.l.b16 %v115
  %v707 = vunpack.c.h.b16 %v115
  %v708 = vunpack.c.l.b16 %v116
  %v709 = vunpack.c.h.b16 %v116
  %v710 = vunpack.c.l.b16 %v117
  %v711 = vunpack.c.h.b16 %v117
  %v712 = vunpack.c.l.b16 %v118
  %v713 = vunpack.c.l.b16 %v119
  %v714 = vunpack.c.h.b16 %v119
  %v715 = vunpack.c.l.b16 %v120
  %v716 = vunpack.c.h.b16 %v120
  %v717 = vunpack.c.l.b16 %v121
  %v718 = vunpack.c.h.b16 %v121
  %v719 = vunpack.c.l.b16 %v122
  %v720 = vunpack.c.l.b16 %v123
  %v721 = vunpack.c.h.b16 %v123
  %v722 = vunpack.c.l.b16 %v124
  %v723 = vunpack.c.h.b16 %v124
  %v724 = vunpack.c.l.b16 %v125
  %v725 = vunpack.c.h.b16 %v125
  %v726 = vunpack.c.l.b16 %v126
  %v727 = vunpack.c.l.b16 %v127
  %v728 = vunpack.c.h.b16 %v127
  %v729 = vunpack.c.l.b16 %v128
  %v730 = vunpack.c.h.b16 %v128
  %v731 = vunpack.c.l.b16 %v129
  %v732 = vunpack.c.h.b16 %v129
  %v733 = vunpack.c.l.b16 %v130
  %v734 = vunpack.c.l.b16 %v131
  %v735 = vunpack.c.h.b16 %v131
  %v736 = vunpack.c.l.b16 %v132
  %v737 = vunpack.c.h.b16 %v132
  %v738 = vunpack.c.l.b16 %v133
  %v739 = vunpack.c.h.b16 %v133
  %v740 = vunpack.c.l.b16 %v134
  %v741 = vunpack.c.l.b16 %v135
  %v742 = vunpack.c.h.b16 %v135
  %v743 = vunpack.c.l.b16 %v136
  %v744 = vunpack.c.h.b16 %v136
  %v745 = vunpack.c.l.b16 %v137
  %v746 = vunpack.c.h.b16 %v137
  %v747 = vunpack.c.l.b16 %v138
  %v748 = vunpack.c.l.b16 %v139
  %v749 = vunpack.c.h.b16 %v139
  %v750 = vunpack.c.l.b16 %v140
  %v751 = vunpack.c.h.b16 %v140
  %v752 = vunpack.c.l.b16 %v141
  %v753 = vunpack.c.h.b16 %v141
  %v754 = vunpack.c.l.b16 %v142
  %v755 = vunpack.c.l.b16 %v143
  %v756 = vunpack.c.h.b16 %v143
  %v757 = vunpack.c.l.b16 %v144
  %v758 = vunpack.c.h.b16 %v144
  %v759 = vunpack.c.l.b16 %v145
  %v760 = vunpack.c.h.b16 %v145
  %v761 = vunpack.c.l.b16 %v146
  %v762 = vunpack.c.l.b16 %v147
  %v763 = vunpack.c.h.b16 %v147
  %v764 = vunpack.c.l.b16 %v148
  %v765 = vunpack.c.h.b16 %v148
  %v766 = vunpack.c.l.b16 %v149
  %v767 = vunpack.c.h.b16 %v149
  %v768 = vunpack.c.l.b16 %v150
  %v769 = vunpack.c.l.b16 %v151
  %v770 = vunpack.c.h.b16 %v151
  %v771 = vunpack.c.l.b16 %v152
  %v772 = vunpack.c.h.b16 %v152
  %v773 = vunpack.c.l.b16 %v153
  %v774 = vunpack.c.h.b16 %v153
  %v775 = vunpack.c.l.b16 %v154
  %v776 = vunpack.c.l.b16 %v155
  %v777 = vunpack.c.h.b16 %v155
  %v778 = vunpack.c.l.b16 %v156
  %v779 = vunpack.c.h.b16 %v156
  %v780 = vunpack.c.l.b16 %v157
  %v781 = vunpack.c.h.b16 %v157
  %v782 = vunpack.c.l.b16 %v158
  %v783 = vunpack.c.l.b16 %v159
  %v784 = vunpack.c.h.b16 %v159
  %v785 = vunpack.c.l.b16 %v160
  %v786 = vunpack.c.h.b16 %v160
  %v787 = vunpack.c.l.b16 %v161
  %v788 = vunpack.c.h.b16 %v161
  %v789 = vunpack.c.l.b16 %v162
  %v790 = vunpack.c.l.b16 %v163
  %v791 = vunpack.c.h.b16 %v163
  %v792 = vunpack.c.l.b16 %v164
  %v793 = vunpack.c.h.b16 %v164
  %v794 = vunpack.c.l.b16 %v165
  %v795 = vunpack.c.h.b16 %v165
  %v796 = vunpack.c.l.b16 %v166
  %v797 = vunpack.c.l.b16 %v167
  %v798 = vunpack.c.h.b16 %v167
  %v799 = vunpack.c.l.b16 %v168
  %v800 = vunpack.c.h.b16 %v168
  %v801 = vunpack.c.l.b16 %v169
  %v802 = vunpack.c.h.b16 %v169
  %v803 = vunpack.c.l.b16 %v170
  %v804 = vunpack.c.l.b16 %v171
  %v805 = vunpack.c.h.b16 %v171
  %v806 = vunpack.c.l.b16 %v172
  %v807 = vunpack.c.h.b16 %v172
  %v808 = vunpack.c.l.b16 %v173
  %v809 = vunpack.c.h.b16 %v173
  %v810 = vunpack.c.l.b16 %v174
  %v811 = vunpack.c.l.b16 %v175
  %v812 = vunpack.c.h.b16 %v175
  %v813 = vunpack.c.l.b16 %v176
  %v814 = vunpack.c.h.b16 %v176
  %v815 = vunpack.c.l.b16 %v177
  %v816 = vunpack.c.h.b16 %v177
  %v817 = vunpack.c.l.b16 %v178
  %v818 = vunpack.c.l.b16 %v179
  %v819 = vunpack.c.h.b16 %v179
  %v820 = vunpack.c.l.b16 %v180
  %v821 = vunpack.c.h.b16 %v180
  %v822 = vunpack.c.l.b16 %v181
  %v823 = vunpack.c.h.b16 %v181
  %v824 = vunpack.c.l.b16 %v182
  %v825 = vunpack.c.l.b16 %v183
  %v826 = vunpack.c.h.b16 %v183
  %v827 = vunpack.c.l.b16 %v184
  %v828 = vunpack.c.h.b16 %v184
  %v829 = vunpack.c.l.b16 %v185
  %v830 = vunpack.c.h.b16 %v185
  %v831 = vunpack.c.l.b16 %v186
  %v832 = vunpack.c.l.b16 %v187
  %v833 = vunpack.c.h.b16 %v187
  %v834 = vunpack.c.l.b16 %v188
  %v835 = vunpack.c.h.b16 %v188
  %v836 = vunpack.c.l.b16 %v189
  %v837 = vunpack.c.h.b16 %v189
  %v838 = vunpack.c.l.b16 %v190
  %v839 = vunpack.c.l.b16 %v191
  %v840 = vunpack.c.h.b16 %v191
  %v841 = vunpack.c.l.b16 %v192
  %v842 = vunpack.c.h.b16 %v192
  %v843 = vunpack.c.l.b16 %v193
  %v844 = vunpack.c.h.b16 %v193
  %v845 = vunpack.c.l.b16 %v194
  %v846 = vunpack.c.l.b16 %v195
  %v847 = vunpack.c.h.b16 %v195
  %v848 = vunpack.c.l.b16 %v196
  %v849 = vunpack.c.h.b16 %v196
  %v850 = vunpack.c.l.b16 %v197
  %v851 = vunpack.c.h.b16 %v197
  %v852 = vunpack.c.l.b16 %v198
  %v853 = vunpack.c.l.b16 %v199
  %v854 = vunpack.c.h.b16 %v199
  %v855 = vunpack.c.l.b16 %v200
  %v856 = vunpack.c.h.b16 %v200
  %v857 = vunpack.c.l.b16 %v201
  %v858 = vunpack.c.h.b16 %v201
  %v859 = vunpack.c.l.b16 %v202
  %v860 = vunpack.c.l.b16 %v203
  %v861 = vunpack.c.h.b16 %v203
  %v862 = vunpack.c.l.b16 %v204
  %v863 = vunpack.c.h.b16 %v204
  %v864 = vunpack.c.l.b16 %v205
  %v865 = vunpack.c.h.b16 %v205
  %v866 = vunpack.c.l.b16 %v206
  %v867 = vunpack.c.l.b16 %v207
  %v868 = vunpack.c.h.b16 %v207
  %v869 = vunpack.c.l.b16 %v208
  %v870 = vunpack.c.h.b16 %v208
  %v871 = vunpack.c.l.b16 %v209
  %v872 = vunpack.c.h.b16 %v209
  %v873 = vunpack.c.l.b16 %v210
  %v874 = vunpack.c.l.b16 %v211
  %v875 = vunpack.c.h.b16 %v211
  %v876 = vunpack.c.l.b16 %v212
  %v877 = vunpack.c.h.b16 %v212
  %v878 = vunpack.c.l.b16 %v213
  %v879 = vunpack.c.h.b16 %v213
  %v880 = vunpack.c.l.b16 %v214
  %v881 = vunpack.c.l.b16 %v215
  %v882 = vunpack.c.h.b16 %v215
  %v883 = vunpack.c.l.b16 %v216
  %v884 = vunpack.c.h.b16 %v216
  %v885 = vunpack.c.l.b16 %v217
  %v886 = vunpack.c.h.b16 %v217
  %v887 = vunpack.c.l.b16 %v218
  %v888 = vunpack.c.l.b16 %v219
  %v889 = vunpack.c.h.b16 %v219
  %v890 = vunpack.c.l.b16 %v220
  %v891 = vunpack.c.h.b16 %v220
  %v892 = vunpack.c.l.b16 %v221
  %v893 = vunpack.c.h.b16 %v221
  %v894 = vunpack.c.l.b16 %v222
  %v895 = vpack.c.b16 %v538, %v531
  %v896 = vpack.c.b16 %v539, %v532
  %v897 = vpack.c.b16 %v540, %v533
  %v898 = vpack.c.b16 %v541, %v534
  %v899 = vpack.c.b16 %v542, %v535
  %v900 = vpack.c.b16 %v543, %v536
  %v901 = vpack.c.b16 %v544, %v537
  %v902 = vpack.c.b16 %v552, %v545
  %v903 = vpack.c.b16 %v553, %v546
  %v904 = vpack.c.b16 %v554, %v547
  %v905 = vpack.c.b16 %v555, %v548
  %v906 = vpack.c.b16 %v556, %v549
  %v907 = vpack.c.b16 %v557, %v550
  %v908 = vpack.c.b16 %v558, %v551
  %v909 = vpack.c.b16 %v566, %v559
  %v910 = vpack.c.b16 %v567, %v560
  %v911 = vpack.c.b16 %v568, %v561
  %v912 = vpack.c.b16 %v569, %v562
  %v913 = vpack.c.b16 %v570, %v563
  %v914 = vpack.c.b16 %v571, %v564
  %v915 = vpack.c.b16 %v572, %v565
  %v916 = vpack.c.b16 %v580, %v573
  %v917 = vpack.c.b16 %v581, %v574
  %v918 = vpack.c.b16 %v582, %v575
  %v919 = vpack.c.b16 %v583, %v576
  %v920 = vpack.c.b16 %v584, %v577
  %v921 = vpack.c.b16 %v585, %v578
  %v922 = vpack.c.b16 %v586, %v579
  %v923 = vpack.c.b16 %v594, %v587
  %v924 = vpack.c.b16 %v595, %v588
  %v925 = vpack.c.b16 %v596, %v589
  %v926 = vpack.c.b16 %v597, %v590
  %v927 = vpack.c.b16 %v598, %v591
  %v928 = vpack.c.b16 %v599, %v592
  %v929 = vpack.c.b16 %v600, %v593
  %v930 = vpack.c.b16 %v608, %v601
  %v931 = vpack.c.b16 %v609, %v602
  %v932 = vpack.c.b16 %v610, %v603
  %v933 = vpack.c.b16 %v611, %v604
  %v934 = vpack.c.b16 %v612, %v605
  %v935 = vpack.c.b16 %v613, %v606
  %v936 = vpack.c.b16 %v614, %v607
  %v937 = vpack.c.b16 %v622, %v615
  %v938 = vpack.c.b16 %v623, %v616
  %v939 = vpack.c.b16 %v624, %v617
  %v940 = vpack.c.b16 %v625, %v618
  %v941 = vpack.c.b16 %v626, %v619
  %v942 = vpack.c.b16 %v627, %v620
  %v943 = vpack.c.b16 %v628, %v621
  %v944 = vpack.c.b16 %v636, %v629
  %v945 = vpack.c.b16 %v637, %v630
  %v946 = vpack.c.b16 %v638, %v631
  %v947 = vpack.c.b16 %v639, %v632
  %v948 = vpack.c.b16 %v640, %v633
  %v949 = vpack.c.b16 %v641, %v634
  %v950 = vpack.c.b16 %v642, %v635
  %v951 = vpack.c.b16 %v650, %v643
  %v952 = vpack.c.b16 %v651, %v644
  %v953 = vpack.c.b16 %v652, %v645
  %v954 = vpack.c.b16 %v653, %v646
  %v955 = vpack.c.b16 %v654, %v647
  %v956 = vpack.c.b16 %v655, %v648
  %v957 = vpack.c.b16 %v656, %v649
  %v958 = vpack.c.b16 %v664, %v657
  %v959 = vpack.c.b16 %v665, %v658
  %v960 = vpack.c.b16 %v666, %v659
  %v961 = vpack.c.b16 %v667, %v660
  %v962 = vpack.c.b16 %v668, %v661
  %v963 = vpack.c.b16 %v669, %v662
  %v964 = vpack.c.b16 %v670, %v663
  %v965 = vpack.c.b16 %v678, %v671
  %v966 = vpack.c.b16 %v679, %v672
  %v967 = vpack.c.b16 %v680, %v673
  %v968 = vpack.c.b16 %v681, %v674
  %v969 = vpack.c.b16 %v682, %v675
  %v970 = vpack.c.b16 %v683, %v676
  %v971 = vpack.c.b16 %v684, %v677
  %v972 = vpack.c.b16 %v692, %v685
  %v973 = vpack.c.b16 %v693, %v686
  %v974 = vpack.c.b16 %v694, %v687
  %v975 = vpack.c.b16 %v695, %v688
  %v976 = vpack.c.b16 %v696, %v689
  %v977 = vpack.c.b16 %v697, %v690
  %v978 = vpack.c.b16 %v698, %v691
  %v979 = vpack.c.b16 %v706, %v699
  %v980 = vpack.c.b16 %v707, %v700
  %v981 = vpack.c.b16 %v708, %v701
  %v982 = vpack.c.b16 %v709, %v702
  %v983 = vpack.c.b16 %v710, %v703
  %v984 = vpack.c.b16 %v711, %v704
  %v985 = vpack.c.b16 %v712, %v705
  %v986 = vpack.c.b16 %v720, %v713
  %v987 = vpack.c.b16 %v721, %v714
  %v988 = vpack.c.b16 %v722, %v715
  %v989 = vpack.c.b16 %v723, %v716
  %v990 = vpack.c.b16 %v724, %v717
  %v991 = vpack.c.b16 %v725, %v718
  %v992 = vpack.c.b16 %v726, %v719
  %v993 = vpack.c.b16 %v734, %v727
  %v994 = vpack.c.b16 %v735, %v728
  %v995 = vpack.c.b16 %v736, %v729
  %v996 = vpack.c.b16 %v737, %v730
  %v997 = vpack.c.b16 %v738, %v731
  %v998 = vpack.c.b16 %v739, %v732
  %v999 = vpack.c.b16 %v740, %v733
  %v1000 = vpack.c.b16 %v748, %v741
  %v1001 = vpack.c.b16 %v749, %v742
  %v1002 = vpack.c.b16 %v750, %v743
  %v1003 = vpack.c.b16 %v751, %v744
  %v1004 = vpack.c.b16 %v752, %v745
  %v1005 = vpack.c.b16 %v753, %v746
  %v1006 = vpack.c.b16 %v754, %v747
  %v1007 = vpack.c.b16 %v762, %v755
  %v1008 = vpack.c.b16 %v763, %v756
  %v1009 = vpack.c.b16 %v764, %v757
  %v1010 = vpack.c.b16 %v765, %v758
  %v1011 = vpack.c.b16 %v766, %v759
  %v1012 = vpack.c.b16 %v767, %v760
  %v1013 = vpack.c.b16 %v768, %v761
  %v1014 = vpack.c.b16 %v776, %v769
  %v1015 = vpack.c.b16 %v777, %v770
  %v1016 = vpack.c.b16 %v778, %v771
  %v1017 = vpack.c.b16 %v779, %v772
  %v1018 = vpack.c.b16 %v780, %v773
  %v1019 = vpack.c.b16 %v781, %v774
  %v1020 = vpack.c.b16 %v782, %v775
  %v1021 = vpack.c.b16 %v790, %v783
  %v1022 = vpack.c.b16 %v791, %v784
  %v1023 = vpack.c.b16 %v792, %v785
  %v1024 = vpack.c.b16 %v793, %v786
  %v1025 = vpack.c.b16 %v794, %v787
  %v1026 = vpack.c.b16 %v795, %v788
  %v1027 = vpack.c.b16 %v796, %v789
  %v1028 = vpack.c.b16 %v804, %v797
  %v1029 = vpack.c.b16 %v805, %v798
  %v1030 = vpack.c.b16 %v806, %v799
  %v1031 = vpack.c.b16 %v807, %v800
  %v1032 = vpack.c.b16 %v808, %v801
  %v1033 = vpack.c.b16 %v809, %v802
  %v1034 = vpack.c.b16 %v810, %v803
  %v1035 = vpack.c.b16 %v818, %v811
  %v1036 = vpack.c.b16 %v819, %v812
  %v1037 = vpack.c.b16 %v820, %v813
  %v1038 = vpack.c.b16 %v821, %v814
  %v1039 = vpack.c.b16 %v822, %v815
  %v1040 = vpack.c.b16 %v823, %v816
  %v1041 = vpack.c.b16 %v824, %v817
  %v1042 = vpack.c.b16 %v832, %v825
  %v1043 = vpack.c.b16 %v833, %v826
  %v1044 = vpack.c.b16 %v834, %v827
  %v1045 = vpack.c.b16 %v835, %v828
  %v1046 = vpack.c.b16 %v836, %v829
  %v1047 = vpack.c.b16 %v837, %v830
  %v1048 = vpack.c.b16 %v838, %v831
  %v1049 = vpack.c.b16 %v846, %v839
  %v1050 = vpack.c.b16 %v847, %v840
  %v1051 = vpack.c.b16 %v848, %v841
  %v1052 = vpack.c.b16 %v849, %v842
  %v1053 = vpack.c.b16 %v850, %v843
  %v1054 = vpack.c.b16 %v851, %v844
  %v1055 = vpack.c.b16 %v852, %v845
  %v1056 = vpack.c.b16 %v860, %v853
  %v1057 = vpack.c.b16 %v861, %v854
  %v1058 = vpack.c.b16 %v862, %v855
  %v1059 = vpack.c.b16 %v863, %v856
  %v1060 = vpack.c.b16 %v864, %v857
  %v1061 = vpack.c.b16 %v865, %v858
  %v1062 = vpack.c.b16 %v866, %v859
  %v1063 = vpack.c.b16 %v874, %v867
  %v1064 = vpack.c.b16 %v875, %v868
  %v1065 = vpack.c.b16 %v876, %v869
  %v1066 = vpack.c.b16 %v877, %v870
  %v1067 = vpack.c.b16 %v878, %v871
  %v1068 = vpack.c.b16 %v879, %v872
  %v1069 = vpack.c.b16 %v880, %v873
  %v1070 = vpack.c.b16 %v888, %v881
  %v1071 = vpack.c.b16 %v889, %v882
  %v1072 = vpack.c.b16 %v890, %v883
  %v1073 = vpack.c.b16 %v891, %v884
  %v1074 = vpack.c.b16 %v892, %v885
  %v1075 = vpack.c.b16 %v893, %v886
  %v1076 = vpack.c.b16 %v894, %v887
  %v1333 = vunpack.c.l.b16 %v223
  %v1334 = vunpack.c.l.b16 %v224
  %v1335 = vunpack.c.l.b16 %v225
  %v1336 = vunpack.c.l.b16 %v226
  %v1337 = vunpack.c.l.b16 %v227
  %v1338 = vunpack.c.l.b16 %v228
  %v1339 = vunpack.c.l.b16 %v229
  %v1340 = vunpack.c.l.b16 %v230
  %v1341 = vunpack.c.l.b16 %v231
  %v1342 = vunpack.c.l.b16 %v232
  %v1343 = vunpack.c.l.b16 %v233
  %v1344 = vunpack.c.l.b16 %v234
  %v1345 = vunpack.c.l.b16 %v235
  %v1346 = vunpack.c.l.b16 %v236
  %v1347 = vunpack.c.l.b16 %v237
  %v1348 = vunpack.c.l.b16 %v238
  %v1349 = vunpack.c.l.b16 %v239
  %v1350 = vunpack.c.l.b16 %v240
  %v1351 = vunpack.c.l.b16 %v241
  %v1352 = vunpack.c.l.b16 %v242
  %v1353 = vunpack.c.l.b16 %v243
  %v1354 = vunpack.c.l.b16 %v244
  %v1355 = vunpack.c.l.b16 %v245
  %v1356 = vunpack.c.l.b16 %v246
  %v1357 = vunpack.c.l.b16 %v247
  %v1358 = vunpack.c.l.b16 %v248
  %v1359 = vunpack.c.l.b16 %v249
  %v1360 = vunpack.c.l.b16 %v250
  %v1361 = vunpack.c.l.b16 %v251
  %v1362 = vunpack.c.l.b16 %v252
  %v1363 = vunpack.c.l.b16 %v253
  %v1364 = vunpack.c.l.b16 %v254
  %v1365 = vunpack.c.l.b16 %v255
  %v1366 = vunpack.c.l.b16 %v256
  %v1367 = vunpack.c.l.b16 %v257
  %v1368 = vunpack.c.l.b16 %v258
  %v1369 = vunpack.c.l.b16 %v259
  %v1370 = vunpack.c.l.b16 %v260
  %v1371 = vunpack.c.l.b16 %v261
  %v1372 = vunpack.c.l.b16 %v262
  %v1373 = vunpack.c.l.b16 %v263
  %v1374 = vunpack.c.l.b16 %v264
  %v1375 = vunpack.c.l.b16 %v265
  %v1376 = vunpack.c.l.b16 %v266
  %v1377 = vunpack.c.l.b16 %v267
  %v1378 = vunpack.c.l.b16 %v268
  %v1379 = vunpack.c.l.b16 %v269
  %v1380 = vunpack.c.l.b16 %v270
  %v1381 = vunpack.c.l.b16 %v271
  %v1382 = vunpack.c.l.b16 %v272
  %v1383 = vunpack.c.l.b16 %v273
  %v1384 = vunpack.c.l.b16 %v274
  %v1385 = vunpack.c.l.b16 %v275
  %v1386 = vunpack.c.l.b16 %v276
  %v1387 = vunpack.c.l.b16 %v277
  %v1388 = vunpack.c.l.b16 %v278
  %v1389 = vunpack.c.l.b16 %v279
  %v1390 = vunpack.c.l.b16 %v280
  %v1391 = vunpack.c.l.b16 %v281
  %v1392 = vunpack.c.l.b16 %v282
  %v1393 = vunpack.c.l.b16 %v283
  %v1394 = vunpack.c.l.b16 %v284
  %v1395 = vunpack.c.l.b16 %v285
  %v1396 = vunpack.c.l.b16 %v286
  %v1397 = vunpack.c.l.b16 %v287
  %v1398 = vunpack.c.l.b16 %v288
  %v1399 = vunpack.c.l.b16 %v289
  %v1400 = vunpack.c.l.b16 %v290
  %v1401 = vunpack.c.l.b16 %v291
  %v1402 = vunpack.c.l.b16 %v292
  %v1403 = vunpack.c.l.b16 %v293
  %v1404 = vunpack.c.l.b16 %v294
  %v1405 = vunpack.c.l.b16 %v295
  %v1406 = vunpack.c.l.b16 %v296
  %v1407 = vunpack.c.l.b16 %v297
  %v1408 = vunpack.c.l.b16 %v298
  %v1409 = vunpack.c.l.b16 %v299
  %v1410 = vunpack.c.l.b16 %v300
  %v1411 = vunpack.c.l.b16 %v301
  %v1412 = vunpack.c.l.b16 %v302
  %v1413 = vunpack.c.l.b16 %v303
  %v1414 = vunpack.c.l.b16 %v304
  %v1415 = vunpack.c.l.b16 %v305
  %v1416 = vunpack.c.l.b16 %v306
  %v1417 = vunpack.c.l.b16 %v307
  %v1418 = vunpack.c.l.b16 %v308
  %v1419 = vunpack.c.l.b16 %v309
  %v1420 = vunpack.c.l.b16 %v310
  %v1421 = vunpack.c.l.b16 %v311
  %v1422 = vunpack.c.l.b16 %v312
  %v1423 = vunpack.c.l.b16 %v313
  %v1424 = vunpack.c.l.b16 %v314
  %v1425 = vunpack.c.l.b16 %v315
  %v1426 = vunpack.c.l.b16 %v316
  %v1427 = vunpack.c.l.b16 %v317
  %v1428 = vunpack.c.l.b16 %v318
  %v1429 = vunpack.c.l.b16 %v319
  %v1430 = vunpack.c.l.b16 %v320
  %v1431 = vunpack.c.l.b16 %v321
  %v1432 = vunpack.c.l.b16 %v322
  %v1433 = vpack.c.b16 %v1334, %v1333
  %v1434 = vpack.c.b16 %v1336, %v1335
  %v1435 = vpack.c.b16 %v1338, %v1337
  %v1436 = vpack.c.b16 %v1340, %v1339
  %v1437 = vpack.c.b16 %v1342, %v1341
  %v1438 = vpack.c.b16 %v1344, %v1343
  %v1439 = vpack.c.b16 %v1346, %v1345
  %v1440 = vpack.c.b16 %v1348, %v1347
  %v1441 = vpack.c.b16 %v1350, %v1349
  %v1442 = vpack.c.b16 %v1352, %v1351
  %v1443 = vpack.c.b16 %v1354, %v1353
  %v1444 = vpack.c.b16 %v1356, %v1355
  %v1445 = vpack.c.b16 %v1358, %v1357
  %v1446 = vpack.c.b16 %v1360, %v1359
  %v1447 = vpack.c.b16 %v1362, %v1361
  %v1448 = vpack.c.b16 %v1364, %v1363
  %v1449 = vpack.c.b16 %v1366, %v1365
  %v1450 = vpack.c.b16 %v1368, %v1367
  %v1451 = vpack.c.b16 %v1370, %v1369
  %v1452 = vpack.c.b16 %v1372, %v1371
  %v1453 = vpack.c.b16 %v1374, %v1373
  %v1454 = vpack.c.b16 %v1376, %v1375
  %v1455 = vpack.c.b16 %v1378, %v1377
  %v1456 = vpack.c.b16 %v1380, %v1379
  %v1457 = vpack.c.b16 %v1382, %v1381
  %v1458 = vpack.c.b16 %v1384, %v1383
  %v1459 = vpack.c.b16 %v1386, %v1385
  %v1460 = vpack.c.b16 %v1388, %v1387
  %v1461 = vpack.c.b16 %v1390, %v1389
  %v1462 = vpack.c.b16 %v1392, %v1391
  %v1463 = vpack.c.b16 %v1394, %v1393
  %v1464 = vpack.c.b16 %v1396, %v1395
  %v1465 = vpack.c.b16 %v1398, %v1397
  %v1466 = vpack.c.b16 %v1400, %v1399
  %v1467 = vpack.c.b16 %v1402, %v1401
  %v1468 = vpack.c.b16 %v1404, %v1403
  %v1469 = vpack.c.b16 %v1406, %v1405
  %v1470 = vpack.c.b16 %v1408, %v1407
  %v1471 = vpack.c.b16 %v1410, %v1409
  %v1472 = vpack.c.b16 %v1412, %v1411
  %v1473 = vpack.c.b16 %v1414, %v1413
  %v1474 = vpack.c.b16 %v1416, %v1415
  %v1475 = vpack.c.b16 %v1418, %v1417
  %v1476 = vpack.c.b16 %v1420, %v1419
  %v1477 = vpack.c.b16 %v1422, %v1421
  %v1478 = vpack.c.b16 %v1424, %v1423
  %v1479 = vpack.c.b16 %v1426, %v1425
  %v1480 = vpack.c.b16 %v1428, %v1427
  %v1481 = vpack.c.b16 %v1430, %v1429
  %v1482 = vpack.c.b16 %v1432, %v1431
  %vm1533 = vcmask 261120
  %v1535 = vsel %vm1533, %v901, 0
  %v1538 = vsel %vm1533, %v908, 0
  %v1541 = vsel %vm1533, %v915, 0
  %v1544 = vsel %vm1533, %v922, 0
  %v1547 = vsel %vm1533, %v929, 0
  %v1550 = vsel %vm1533, %v936, 0
  %v1553 = vsel %vm1533, %v943, 0
  %v1556 = vsel %vm1533, %v950, 0
  %v1559 = vsel %vm1533, %v957, 0
  %v1562 = vsel %vm1533, %v964, 0
  %v1565 = vsel %vm1533, %v971, 0
  %v1568 = vsel %vm1533, %v978, 0
  %v1571 = vsel %vm1533, %v985, 0
  %v1574 = vsel %vm1533, %v992, 0
  %v1577 = vsel %vm1533, %v999, 0
  %v1580 = vsel %vm1533, %v1006, 0
  %v1583 = vsel %vm1533, %v1013, 0
  %v1586 = vsel %vm1533, %v1020, 0
  %v1589 = vsel %vm1533, %v1027, 0
  %v1592 = vsel %vm1533, %v1034, 0
  %v1595 = vsel %vm1533, %v1041, 0
  %v1598 = vsel %vm1533, %v1048, 0
  %v1601 = vsel %vm1533, %v1055, 0
  %v1604 = vsel %vm1533, %v1062, 0
  %v1607 = vsel %vm1533, %v1069, 0
  %v1610 = vsel %vm1533, %v1076, 0
  %1612 = vmatprep.subr.bf16.mxu0 0
  %1613 = vmatpush1.bf16.msra.mxu0 %v1440
  %1614 = vmatprep.subr.bf16.mxu0 0
  %1615 = vmatpush1.bf16.msra.mxu0 %v1439
  %1616 = vmatprep.subr.bf16.mxu0 0
  %1617 = vmatpush1.bf16.msra.mxu0 %v1438
  %1618 = vmatprep.subr.bf16.mxu0 0
  %1619 = vmatpush1.bf16.msra.mxu0 %v1437
  %1620 = vmatprep.subr.bf16.mxu0 0
  %1621 = vmatpush1.bf16.msra.mxu0 %v1436
  %1622 = vmatprep.subr.bf16.mxu0 0
  %1623 = vmatpush1.bf16.msra.mxu0 %v1435
  %1624 = vmatprep.subr.bf16.mxu0 0
  %1625 = vmatpush1.bf16.msra.mxu0 %v1434
  %1626 = vmatprep.subr.bf16.mxu0 0
  %1627 = vmatpush1.bf16.msra.mxu0 %v1433
  %1628 = vmatprep.subr.bf16.mxu0 0
  %1629 = vmatpush2.bf16.msra.mxu0 %v1448
  %1630 = vmatprep.subr.bf16.mxu0 0
  %1631 = vmatpush2.bf16.msra.mxu0 %v1447
  %1632 = vmatprep.subr.bf16.mxu0 0
  %1633 = vmatpush2.bf16.msra.mxu0 %v1446
  %1634 = vmatprep.subr.bf16.mxu0 0
  %1635 = vmatpush2.bf16.msra.mxu0 %v1445
  %1636 = vmatprep.subr.bf16.mxu0 0
  %1637 = vmatpush2.bf16.msra.mxu0 %v1444
  %1638 = vmatprep.subr.bf16.mxu0 0
  %1639 = vmatpush2.bf16.msra.mxu0 %v1443
  %1640 = vmatprep.subr.bf16.mxu0 0
  %1641 = vmatpush2.bf16.msra.mxu0 %v1442
  %1642 = vmatprep.subr.bf16.mxu0 0
  %1643 = vmatpush2.bf16.msra.mxu0 %v1441
  %1644 = vmatprep.mubr.bf16.mxu0 %v896
  %1645 = vmatmul.mubr.bf16.gmra.mxu0 %v895
  %v1646 = vpop.f32.mrf.mxu0
  %v1647 = vadd.f32 0.0, %v1646
  %v1648 = vpop.f32.mrf.mxu0
  %v1649 = vpop.f32.mrf.mxu0
  %v1650 = vadd.f32 0.0, %v1649
  %v1651 = vpop.f32.mrf.mxu0
  %1652 = vmatprep.mubr.bf16.mxu0 %v903
  %1653 = vmatmul.mubr.bf16.gmra.mxu0 %v902
  %v1654 = vpop.f32.mrf.mxu0
  %v1655 = vadd.f32 0.0, %v1654
  %v1656 = vpop.f32.mrf.mxu0
  %v1657 = vpop.f32.mrf.mxu0
  %v1658 = vadd.f32 0.0, %v1657
  %v1659 = vpop.f32.mrf.mxu0
  %1660 = vmatprep.mubr.bf16.mxu0 %v910
  %1661 = vmatmul.mubr.bf16.gmra.mxu0 %v909
  %v1662 = vpop.f32.mrf.mxu0
  %v1663 = vadd.f32 0.0, %v1662
  %v1664 = vpop.f32.mrf.mxu0
  %v1665 = vpop.f32.mrf.mxu0
  %v1666 = vadd.f32 0.0, %v1665
  %v1667 = vpop.f32.mrf.mxu0
  %1668 = vmatprep.mubr.bf16.mxu0 %v917
  %1669 = vmatmul.mubr.bf16.gmra.mxu0 %v916
  %v1670 = vpop.f32.mrf.mxu0
  %v1671 = vadd.f32 0.0, %v1670
  %v1672 = vpop.f32.mrf.mxu0
  %v1673 = vpop.f32.mrf.mxu0
  %v1674 = vadd.f32 0.0, %v1673
  %v1675 = vpop.f32.mrf.mxu0
  %1676 = vmatprep.mubr.bf16.mxu0 %v924
  %1677 = vmatmul.mubr.bf16.gmra.mxu0 %v923
  %v1678 = vpop.f32.mrf.mxu0
  %v1679 = vadd.f32 0.0, %v1678
  %v1680 = vpop.f32.mrf.mxu0
  %v1681 = vpop.f32.mrf.mxu0
  %v1682 = vadd.f32 0.0, %v1681
  %v1683 = vpop.f32.mrf.mxu0
  %1684 = vmatprep.mubr.bf16.mxu0 %v931
  %1685 = vmatmul.mubr.bf16.gmra.mxu0 %v930
  %v1686 = vpop.f32.mrf.mxu0
  %v1687 = vadd.f32 0.0, %v1686
  %v1688 = vpop.f32.mrf.mxu0
  %v1689 = vpop.f32.mrf.mxu0
  %v1690 = vadd.f32 0.0, %v1689
  %v1691 = vpop.f32.mrf.mxu0
  %1692 = vmatprep.mubr.bf16.mxu0 %v938
  %1693 = vmatmul.mubr.bf16.gmra.mxu0 %v937
  %v1694 = vpop.f32.mrf.mxu0
  %v1695 = vadd.f32 0.0, %v1694
  %v1696 = vpop.f32.mrf.mxu0
  %v1697 = vpop.f32.mrf.mxu0
  %v1698 = vadd.f32 0.0, %v1697
  %v1699 = vpop.f32.mrf.mxu0
  %1700 = vmatprep.mubr.bf16.mxu0 %v945
  %1701 = vmatmul.mubr.bf16.gmra.mxu0 %v944
  %v1702 = vpop.f32.mrf.mxu0
  %v1703 = vadd.f32 0.0, %v1702
  %v1704 = vpop.f32.mrf.mxu0
  %v1705 = vpop.f32.mrf.mxu0
  %v1706 = vadd.f32 0.0, %v1705
  %v1707 = vpop.f32.mrf.mxu0
  %1708 = vmatprep.mubr.bf16.mxu0 %v952
  %1709 = vmatmul.mubr.bf16.gmra.mxu0 %v951
  %v1710 = vpop.f32.mrf.mxu0
  %v1711 = vadd.f32 0.0, %v1710
  %v1712 = vpop.f32.mrf.mxu0
  %v1713 = vpop.f32.mrf.mxu0
  %v1714 = vadd.f32 0.0, %v1713
  %v1715 = vpop.f32.mrf.mxu0
  %1716 = vmatprep.mubr.bf16.mxu0 %v959
  %1717 = vmatmul.mubr.bf16.gmra.mxu0 %v958
  %v1718 = vpop.f32.mrf.mxu0
  %v1719 = vadd.f32 0.0, %v1718
  %v1720 = vpop.f32.mrf.mxu0
  %v1721 = vpop.f32.mrf.mxu0
  %v1722 = vadd.f32 0.0, %v1721
  %v1723 = vpop.f32.mrf.mxu0
  %1724 = vmatprep.mubr.bf16.mxu0 %v966
  %1725 = vmatmul.mubr.bf16.gmra.mxu0 %v965
  %v1726 = vpop.f32.mrf.mxu0
  %v1727 = vadd.f32 0.0, %v1726
  %v1728 = vpop.f32.mrf.mxu0
  %v1729 = vpop.f32.mrf.mxu0
  %v1730 = vadd.f32 0.0, %v1729
  %v1731 = vpop.f32.mrf.mxu0
  %1732 = vmatprep.mubr.bf16.mxu0 %v973
  %1733 = vmatmul.mubr.bf16.gmra.mxu0 %v972
  %v1734 = vpop.f32.mrf.mxu0
  %v1735 = vadd.f32 0.0, %v1734
  %v1736 = vpop.f32.mrf.mxu0
  %v1737 = vpop.f32.mrf.mxu0
  %v1738 = vadd.f32 0.0, %v1737
  %v1739 = vpop.f32.mrf.mxu0
  %1740 = vmatprep.mubr.bf16.mxu0 %v980
  %1741 = vmatmul.mubr.bf16.gmra.mxu0 %v979
  %v1742 = vpop.f32.mrf.mxu0
  %v1743 = vadd.f32 0.0, %v1742
  %v1744 = vpop.f32.mrf.mxu0
  %v1745 = vpop.f32.mrf.mxu0
  %v1746 = vadd.f32 0.0, %v1745
  %v1747 = vpop.f32.mrf.mxu0
  %1748 = vmatprep.mubr.bf16.mxu0 %v987
  %1749 = vmatmul.mubr.bf16.gmra.mxu0 %v986
  %v1750 = vpop.f32.mrf.mxu0
  %v1751 = vadd.f32 0.0, %v1750
  %v1752 = vpop.f32.mrf.mxu0
  %v1753 = vpop.f32.mrf.mxu0
  %v1754 = vadd.f32 0.0, %v1753
  %v1755 = vpop.f32.mrf.mxu0
  %1756 = vmatprep.mubr.bf16.mxu0 %v994
  %1757 = vmatmul.mubr.bf16.gmra.mxu0 %v993
  %v1758 = vpop.f32.mrf.mxu0
  %v1759 = vadd.f32 0.0, %v1758
  %v1760 = vpop.f32.mrf.mxu0
  %v1761 = vpop.f32.mrf.mxu0
  %v1762 = vadd.f32 0.0, %v1761
  %v1763 = vpop.f32.mrf.mxu0
  %1764 = vmatprep.mubr.bf16.mxu0 %v1001
  %1765 = vmatmul.mubr.bf16.gmra.mxu0 %v1000
  %v1766 = vpop.f32.mrf.mxu0
  %v1767 = vadd.f32 0.0, %v1766
  %v1768 = vpop.f32.mrf.mxu0
  %v1769 = vpop.f32.mrf.mxu0
  %v1770 = vadd.f32 0.0, %v1769
  %v1771 = vpop.f32.mrf.mxu0
  %1772 = vmatprep.mubr.bf16.mxu0 %v1008
  %1773 = vmatmul.mubr.bf16.gmra.mxu0 %v1007
  %v1774 = vpop.f32.mrf.mxu0
  %v1775 = vadd.f32 0.0, %v1774
  %v1776 = vpop.f32.mrf.mxu0
  %v1777 = vpop.f32.mrf.mxu0
  %v1778 = vadd.f32 0.0, %v1777
  %v1779 = vpop.f32.mrf.mxu0
  %1780 = vmatprep.mubr.bf16.mxu0 %v1015
  %1781 = vmatmul.mubr.bf16.gmra.mxu0 %v1014
  %v1782 = vpop.f32.mrf.mxu0
  %v1783 = vadd.f32 0.0, %v1782
  %v1784 = vpop.f32.mrf.mxu0
  %v1785 = vpop.f32.mrf.mxu0
  %v1786 = vadd.f32 0.0, %v1785
  %v1787 = vpop.f32.mrf.mxu0
  %1788 = vmatprep.mubr.bf16.mxu0 %v1022
  %1789 = vmatmul.mubr.bf16.gmra.mxu0 %v1021
  %v1790 = vpop.f32.mrf.mxu0
  %v1791 = vadd.f32 0.0, %v1790
  %v1792 = vpop.f32.mrf.mxu0
  %v1793 = vpop.f32.mrf.mxu0
  %v1794 = vadd.f32 0.0, %v1793
  %v1795 = vpop.f32.mrf.mxu0
  %1796 = vmatprep.mubr.bf16.mxu0 %v1029
  %1797 = vmatmul.mubr.bf16.gmra.mxu0 %v1028
  %v1798 = vpop.f32.mrf.mxu0
  %v1799 = vadd.f32 0.0, %v1798
  %v1800 = vpop.f32.mrf.mxu0
  %v1801 = vpop.f32.mrf.mxu0
  %v1802 = vadd.f32 0.0, %v1801
  %v1803 = vpop.f32.mrf.mxu0
  %1804 = vmatprep.mubr.bf16.mxu0 %v1036
  %1805 = vmatmul.mubr.bf16.gmra.mxu0 %v1035
  %v1806 = vpop.f32.mrf.mxu0
  %v1807 = vadd.f32 0.0, %v1806
  %v1808 = vpop.f32.mrf.mxu0
  %v1809 = vpop.f32.mrf.mxu0
  %v1810 = vadd.f32 0.0, %v1809
  %v1811 = vpop.f32.mrf.mxu0
  %1812 = vmatprep.mubr.bf16.mxu0 %v1043
  %1813 = vmatmul.mubr.bf16.gmra.mxu0 %v1042
  %v1814 = vpop.f32.mrf.mxu0
  %v1815 = vadd.f32 0.0, %v1814
  %v1816 = vpop.f32.mrf.mxu0
  %v1817 = vpop.f32.mrf.mxu0
  %v1818 = vadd.f32 0.0, %v1817
  %v1819 = vpop.f32.mrf.mxu0
  %1820 = vmatprep.mubr.bf16.mxu0 %v1050
  %1821 = vmatmul.mubr.bf16.gmra.mxu0 %v1049
  %v1822 = vpop.f32.mrf.mxu0
  %v1823 = vadd.f32 0.0, %v1822
  %v1824 = vpop.f32.mrf.mxu0
  %v1825 = vpop.f32.mrf.mxu0
  %v1826 = vadd.f32 0.0, %v1825
  %v1827 = vpop.f32.mrf.mxu0
  %1828 = vmatprep.mubr.bf16.mxu0 %v1057
  %1829 = vmatmul.mubr.bf16.gmra.mxu0 %v1056
  %v1830 = vpop.f32.mrf.mxu0
  %v1831 = vadd.f32 0.0, %v1830
  %v1832 = vpop.f32.mrf.mxu0
  %v1833 = vpop.f32.mrf.mxu0
  %v1834 = vadd.f32 0.0, %v1833
  %v1835 = vpop.f32.mrf.mxu0
  %1836 = vmatprep.mubr.bf16.mxu0 %v1064
  %1837 = vmatmul.mubr.bf16.gmra.mxu0 %v1063
  %v1838 = vpop.f32.mrf.mxu0
  %v1839 = vadd.f32 0.0, %v1838
  %v1840 = vpop.f32.mrf.mxu0
  %v1841 = vpop.f32.mrf.mxu0
  %v1842 = vadd.f32 0.0, %v1841
  %v1843 = vpop.f32.mrf.mxu0
  %1844 = vmatprep.mubr.bf16.mxu0 %v1071
  %1845 = vmatmul.mubr.bf16.gmra.mxu0 %v1070
  %v1846 = vpop.f32.mrf.mxu0
  %v1847 = vadd.f32 0.0, %v1846
  %v1848 = vpop.f32.mrf.mxu0
  %v1849 = vpop.f32.mrf.mxu0
  %v1850 = vadd.f32 0.0, %v1849
  %v1851 = vpop.f32.mrf.mxu0
  %1852 = vdwg.mxu0
  %1853 = vmatprep.subr.bf16.mxu0 0
  %1854 = vmatpush1.bf16.msra.mxu0 %v1456
  %1855 = vmatprep.subr.bf16.mxu0 0
  %1856 = vmatpush1.bf16.msra.mxu0 %v1455
  %1857 = vmatprep.subr.bf16.mxu0 0
  %1858 = vmatpush1.bf16.msra.mxu0 %v1454
  %1859 = vmatprep.subr.bf16.mxu0 0
  %1860 = vmatpush1.bf16.msra.mxu0 %v1453
  %1861 = vmatprep.subr.bf16.mxu0 0
  %1862 = vmatpush1.bf16.msra.mxu0 %v1452
  %1863 = vmatprep.subr.bf16.mxu0 0
  %1864 = vmatpush1.bf16.msra.mxu0 %v1451
  %1865 = vmatprep.subr.bf16.mxu0 0
  %1866 = vmatpush1.bf16.msra.mxu0 %v1450
  %1867 = vmatprep.subr.bf16.mxu0 0
  %1868 = vmatpush1.bf16.msra.mxu0 %v1449
  %1869 = vmatprep.subr.bf16.mxu0 0
  %1870 = vmatpush2.bf16.msra.mxu0 %v1464
  %1871 = vmatprep.subr.bf16.mxu0 0
  %1872 = vmatpush2.bf16.msra.mxu0 %v1463
  %1873 = vmatprep.subr.bf16.mxu0 0
  %1874 = vmatpush2.bf16.msra.mxu0 %v1462
  %1875 = vmatprep.subr.bf16.mxu0 0
  %1876 = vmatpush2.bf16.msra.mxu0 %v1461
  %1877 = vmatprep.subr.bf16.mxu0 0
  %1878 = vmatpush2.bf16.msra.mxu0 %v1460
  %1879 = vmatprep.subr.bf16.mxu0 0
  %1880 = vmatpush2.bf16.msra.mxu0 %v1459
  %1881 = vmatprep.subr.bf16.mxu0 0
  %1882 = vmatpush2.bf16.msra.mxu0 %v1458
  %1883 = vmatprep.subr.bf16.mxu0 0
  %1884 = vmatpush2.bf16.msra.mxu0 %v1457
  %1885 = vmatprep.mubr.bf16.mxu0 %v898
  %1886 = vmatmul.mubr.bf16.gmra.mxu0 %v897
  %v1887 = vpop.f32.mrf.mxu0
  %v1888 = vadd.f32 %v1647, %v1887
  %v1889 = vpop.f32.mrf.mxu0
  %v1890 = vpop.f32.mrf.mxu0
  %v1891 = vadd.f32 %v1650, %v1890
  %v1892 = vpop.f32.mrf.mxu0
  %1893 = vmatprep.mubr.bf16.mxu0 %v905
  %1894 = vmatmul.mubr.bf16.gmra.mxu0 %v904
  %v1895 = vpop.f32.mrf.mxu0
  %v1896 = vadd.f32 %v1655, %v1895
  %v1897 = vpop.f32.mrf.mxu0
  %v1898 = vpop.f32.mrf.mxu0
  %v1899 = vadd.f32 %v1658, %v1898
  %v1900 = vpop.f32.mrf.mxu0
  %1901 = vmatprep.mubr.bf16.mxu0 %v912
  %1902 = vmatmul.mubr.bf16.gmra.mxu0 %v911
  %v1903 = vpop.f32.mrf.mxu0
  %v1904 = vadd.f32 %v1663, %v1903
  %v1905 = vpop.f32.mrf.mxu0
  %v1906 = vpop.f32.mrf.mxu0
  %v1907 = vadd.f32 %v1666, %v1906
  %v1908 = vpop.f32.mrf.mxu0
  %1909 = vmatprep.mubr.bf16.mxu0 %v919
  %1910 = vmatmul.mubr.bf16.gmra.mxu0 %v918
  %v1911 = vpop.f32.mrf.mxu0
  %v1912 = vadd.f32 %v1671, %v1911
  %v1913 = vpop.f32.mrf.mxu0
  %v1914 = vpop.f32.mrf.mxu0
  %v1915 = vadd.f32 %v1674, %v1914
  %v1916 = vpop.f32.mrf.mxu0
  %1917 = vmatprep.mubr.bf16.mxu0 %v926
  %1918 = vmatmul.mubr.bf16.gmra.mxu0 %v925
  %v1919 = vpop.f32.mrf.mxu0
  %v1920 = vadd.f32 %v1679, %v1919
  %v1921 = vpop.f32.mrf.mxu0
  %v1922 = vpop.f32.mrf.mxu0
  %v1923 = vadd.f32 %v1682, %v1922
  %v1924 = vpop.f32.mrf.mxu0
  %1925 = vmatprep.mubr.bf16.mxu0 %v933
  %1926 = vmatmul.mubr.bf16.gmra.mxu0 %v932
  %v1927 = vpop.f32.mrf.mxu0
  %v1928 = vadd.f32 %v1687, %v1927
  %v1929 = vpop.f32.mrf.mxu0
  %v1930 = vpop.f32.mrf.mxu0
  %v1931 = vadd.f32 %v1690, %v1930
  %v1932 = vpop.f32.mrf.mxu0
  %1933 = vmatprep.mubr.bf16.mxu0 %v940
  %1934 = vmatmul.mubr.bf16.gmra.mxu0 %v939
  %v1935 = vpop.f32.mrf.mxu0
  %v1936 = vadd.f32 %v1695, %v1935
  %v1937 = vpop.f32.mrf.mxu0
  %v1938 = vpop.f32.mrf.mxu0
  %v1939 = vadd.f32 %v1698, %v1938
  %v1940 = vpop.f32.mrf.mxu0
  %1941 = vmatprep.mubr.bf16.mxu0 %v947
  %1942 = vmatmul.mubr.bf16.gmra.mxu0 %v946
  %v1943 = vpop.f32.mrf.mxu0
  %v1944 = vadd.f32 %v1703, %v1943
  %v1945 = vpop.f32.mrf.mxu0
  %v1946 = vpop.f32.mrf.mxu0
  %v1947 = vadd.f32 %v1706, %v1946
  %v1948 = vpop.f32.mrf.mxu0
  %1949 = vmatprep.mubr.bf16.mxu0 %v954
  %1950 = vmatmul.mubr.bf16.gmra.mxu0 %v953
  %v1951 = vpop.f32.mrf.mxu0
  %v1952 = vadd.f32 %v1711, %v1951
  %v1953 = vpop.f32.mrf.mxu0
  %v1954 = vpop.f32.mrf.mxu0
  %v1955 = vadd.f32 %v1714, %v1954
  %v1956 = vpop.f32.mrf.mxu0
  %1957 = vmatprep.mubr.bf16.mxu0 %v961
  %1958 = vmatmul.mubr.bf16.gmra.mxu0 %v960
  %v1959 = vpop.f32.mrf.mxu0
  %v1960 = vadd.f32 %v1719, %v1959
  %v1961 = vpop.f32.mrf.mxu0
  %v1962 = vpop.f32.mrf.mxu0
  %v1963 = vadd.f32 %v1722, %v1962
  %v1964 = vpop.f32.mrf.mxu0
  %1965 = vmatprep.mubr.bf16.mxu0 %v968
  %1966 = vmatmul.mubr.bf16.gmra.mxu0 %v967
  %v1967 = vpop.f32.mrf.mxu0
  %v1968 = vadd.f32 %v1727, %v1967
  %v1969 = vpop.f32.mrf.mxu0
  %v1970 = vpop.f32.mrf.mxu0
  %v1971 = vadd.f32 %v1730, %v1970
  %v1972 = vpop.f32.mrf.mxu0
  %1973 = vmatprep.mubr.bf16.mxu0 %v975
  %1974 = vmatmul.mubr.bf16.gmra.mxu0 %v974
  %v1975 = vpop.f32.mrf.mxu0
  %v1976 = vadd.f32 %v1735, %v1975
  %v1977 = vpop.f32.mrf.mxu0
  %v1978 = vpop.f32.mrf.mxu0
  %v1979 = vadd.f32 %v1738, %v1978
  %v1980 = vpop.f32.mrf.mxu0
  %1981 = vmatprep.mubr.bf16.mxu0 %v982
  %1982 = vmatmul.mubr.bf16.gmra.mxu0 %v981
  %v1983 = vpop.f32.mrf.mxu0
  %v1984 = vadd.f32 %v1743, %v1983
  %v1985 = vpop.f32.mrf.mxu0
  %v1986 = vpop.f32.mrf.mxu0
  %v1987 = vadd.f32 %v1746, %v1986
  %v1988 = vpop.f32.mrf.mxu0
  %1989 = vmatprep.mubr.bf16.mxu0 %v989
  %1990 = vmatmul.mubr.bf16.gmra.mxu0 %v988
  %v1991 = vpop.f32.mrf.mxu0
  %v1992 = vadd.f32 %v1751, %v1991
  %v1993 = vpop.f32.mrf.mxu0
  %v1994 = vpop.f32.mrf.mxu0
  %v1995 = vadd.f32 %v1754, %v1994
  %v1996 = vpop.f32.mrf.mxu0
  %1997 = vmatprep.mubr.bf16.mxu0 %v996
  %1998 = vmatmul.mubr.bf16.gmra.mxu0 %v995
  %v1999 = vpop.f32.mrf.mxu0
  %v2000 = vadd.f32 %v1759, %v1999
  %v2001 = vpop.f32.mrf.mxu0
  %v2002 = vpop.f32.mrf.mxu0
  %v2003 = vadd.f32 %v1762, %v2002
  %v2004 = vpop.f32.mrf.mxu0
  %2005 = vmatprep.mubr.bf16.mxu0 %v1003
  %2006 = vmatmul.mubr.bf16.gmra.mxu0 %v1002
  %v2007 = vpop.f32.mrf.mxu0
  %v2008 = vadd.f32 %v1767, %v2007
  %v2009 = vpop.f32.mrf.mxu0
  %v2010 = vpop.f32.mrf.mxu0
  %v2011 = vadd.f32 %v1770, %v2010
  %v2012 = vpop.f32.mrf.mxu0
  %2013 = vmatprep.mubr.bf16.mxu0 %v1010
  %2014 = vmatmul.mubr.bf16.gmra.mxu0 %v1009
  %v2015 = vpop.f32.mrf.mxu0
  %v2016 = vadd.f32 %v1775, %v2015
  %v2017 = vpop.f32.mrf.mxu0
  %v2018 = vpop.f32.mrf.mxu0
  %v2019 = vadd.f32 %v1778, %v2018
  %v2020 = vpop.f32.mrf.mxu0
  %2021 = vmatprep.mubr.bf16.mxu0 %v1017
  %2022 = vmatmul.mubr.bf16.gmra.mxu0 %v1016
  %v2023 = vpop.f32.mrf.mxu0
  %v2024 = vadd.f32 %v1783, %v2023
  %v2025 = vpop.f32.mrf.mxu0
  %v2026 = vpop.f32.mrf.mxu0
  %v2027 = vadd.f32 %v1786, %v2026
  %v2028 = vpop.f32.mrf.mxu0
  %2029 = vmatprep.mubr.bf16.mxu0 %v1024
  %2030 = vmatmul.mubr.bf16.gmra.mxu0 %v1023
  %v2031 = vpop.f32.mrf.mxu0
  %v2032 = vadd.f32 %v1791, %v2031
  %v2033 = vpop.f32.mrf.mxu0
  %v2034 = vpop.f32.mrf.mxu0
  %v2035 = vadd.f32 %v1794, %v2034
  %v2036 = vpop.f32.mrf.mxu0
  %2037 = vmatprep.mubr.bf16.mxu0 %v1031
  %2038 = vmatmul.mubr.bf16.gmra.mxu0 %v1030
  %v2039 = vpop.f32.mrf.mxu0
  %v2040 = vadd.f32 %v1799, %v2039
  %v2041 = vpop.f32.mrf.mxu0
  %v2042 = vpop.f32.mrf.mxu0
  %v2043 = vadd.f32 %v1802, %v2042
  %v2044 = vpop.f32.mrf.mxu0
  %2045 = vmatprep.mubr.bf16.mxu0 %v1038
  %2046 = vmatmul.mubr.bf16.gmra.mxu0 %v1037
  %v2047 = vpop.f32.mrf.mxu0
  %v2048 = vadd.f32 %v1807, %v2047
  %v2049 = vpop.f32.mrf.mxu0
  %v2050 = vpop.f32.mrf.mxu0
  %v2051 = vadd.f32 %v1810, %v2050
  %v2052 = vpop.f32.mrf.mxu0
  %2053 = vmatprep.mubr.bf16.mxu0 %v1045
  %2054 = vmatmul.mubr.bf16.gmra.mxu0 %v1044
  %v2055 = vpop.f32.mrf.mxu0
  %v2056 = vadd.f32 %v1815, %v2055
  %v2057 = vpop.f32.mrf.mxu0
  %v2058 = vpop.f32.mrf.mxu0
  %v2059 = vadd.f32 %v1818, %v2058
  %v2060 = vpop.f32.mrf.mxu0
  %2061 = vmatprep.mubr.bf16.mxu0 %v1052
  %2062 = vmatmul.mubr.bf16.gmra.mxu0 %v1051
  %v2063 = vpop.f32.mrf.mxu0
  %v2064 = vadd.f32 %v1823, %v2063
  %v2065 = vpop.f32.mrf.mxu0
  %v2066 = vpop.f32.mrf.mxu0
  %v2067 = vadd.f32 %v1826, %v2066
  %v2068 = vpop.f32.mrf.mxu0
  %2069 = vmatprep.mubr.bf16.mxu0 %v1059
  %2070 = vmatmul.mubr.bf16.gmra.mxu0 %v1058
  %v2071 = vpop.f32.mrf.mxu0
  %v2072 = vadd.f32 %v1831, %v2071
  %v2073 = vpop.f32.mrf.mxu0
  %v2074 = vpop.f32.mrf.mxu0
  %v2075 = vadd.f32 %v1834, %v2074
  %v2076 = vpop.f32.mrf.mxu0
  %2077 = vmatprep.mubr.bf16.mxu0 %v1066
  %2078 = vmatmul.mubr.bf16.gmra.mxu0 %v1065
  %v2079 = vpop.f32.mrf.mxu0
  %v2080 = vadd.f32 %v1839, %v2079
  %v2081 = vpop.f32.mrf.mxu0
  %v2082 = vpop.f32.mrf.mxu0
  %v2083 = vadd.f32 %v1842, %v2082
  %v2084 = vpop.f32.mrf.mxu0
  %2085 = vmatprep.mubr.bf16.mxu0 %v1073
  %2086 = vmatmul.mubr.bf16.gmra.mxu0 %v1072
  %v2087 = vpop.f32.mrf.mxu0
  %v2088 = vadd.f32 %v1847, %v2087
  %v2089 = vpop.f32.mrf.mxu0
  %v2090 = vpop.f32.mrf.mxu0
  %v2091 = vadd.f32 %v1850, %v2090
  %v2092 = vpop.f32.mrf.mxu0
  %2093 = vdwg.mxu0
  %2094 = vmatprep.subr.bf16.mxu0 0
  %2095 = vmatpush1.bf16.msra.mxu0 %v1472
  %2096 = vmatprep.subr.bf16.mxu0 0
  %2097 = vmatpush1.bf16.msra.mxu0 %v1471
  %2098 = vmatprep.subr.bf16.mxu0 0
  %2099 = vmatpush1.bf16.msra.mxu0 %v1470
  %2100 = vmatprep.subr.bf16.mxu0 0
  %2101 = vmatpush1.bf16.msra.mxu0 %v1469
  %2102 = vmatprep.subr.bf16.mxu0 0
  %2103 = vmatpush1.bf16.msra.mxu0 %v1468
  %2104 = vmatprep.subr.bf16.mxu0 0
  %2105 = vmatpush1.bf16.msra.mxu0 %v1467
  %2106 = vmatprep.subr.bf16.mxu0 0
  %2107 = vmatpush1.bf16.msra.mxu0 %v1466
  %2108 = vmatprep.subr.bf16.mxu0 0
  %2109 = vmatpush1.bf16.msra.mxu0 %v1465
  %2110 = vmatprep.subr.bf16.mxu0 0
  %2111 = vmatpush2.bf16.msra.mxu0 %v1480
  %2112 = vmatprep.subr.bf16.mxu0 0
  %2113 = vmatpush2.bf16.msra.mxu0 %v1479
  %2114 = vmatprep.subr.bf16.mxu0 0
  %2115 = vmatpush2.bf16.msra.mxu0 %v1478
  %2116 = vmatprep.subr.bf16.mxu0 0
  %2117 = vmatpush2.bf16.msra.mxu0 %v1477
  %2118 = vmatprep.subr.bf16.mxu0 0
  %2119 = vmatpush2.bf16.msra.mxu0 %v1476
  %2120 = vmatprep.subr.bf16.mxu0 0
  %2121 = vmatpush2.bf16.msra.mxu0 %v1475
  %2122 = vmatprep.subr.bf16.mxu0 0
  %2123 = vmatpush2.bf16.msra.mxu0 %v1474
  %2124 = vmatprep.subr.bf16.mxu0 0
  %2125 = vmatpush2.bf16.msra.mxu0 %v1473
  %2126 = vmatprep.mubr.bf16.mxu0 %v900
  %2127 = vmatmul.mubr.bf16.gmra.mxu0 %v899
  %v2128 = vpop.f32.mrf.mxu0
  %v2129 = vadd.f32 %v1888, %v2128
  %v2130 = vpop.f32.mrf.mxu0
  %v2131 = vpop.f32.mrf.mxu0
  %v2132 = vadd.f32 %v1891, %v2131
  %v2133 = vpop.f32.mrf.mxu0
  %2134 = vmatprep.mubr.bf16.mxu0 %v907
  %2135 = vmatmul.mubr.bf16.gmra.mxu0 %v906
  %v2136 = vpop.f32.mrf.mxu0
  %v2137 = vadd.f32 %v1896, %v2136
  %v2138 = vpop.f32.mrf.mxu0
  %v2139 = vpop.f32.mrf.mxu0
  %v2140 = vadd.f32 %v1899, %v2139
  %v2141 = vpop.f32.mrf.mxu0
  %2142 = vmatprep.mubr.bf16.mxu0 %v914
  %2143 = vmatmul.mubr.bf16.gmra.mxu0 %v913
  %v2144 = vpop.f32.mrf.mxu0
  %v2145 = vadd.f32 %v1904, %v2144
  %v2146 = vpop.f32.mrf.mxu0
  %v2147 = vpop.f32.mrf.mxu0
  %v2148 = vadd.f32 %v1907, %v2147
  %v2149 = vpop.f32.mrf.mxu0
  %2150 = vmatprep.mubr.bf16.mxu0 %v921
  %2151 = vmatmul.mubr.bf16.gmra.mxu0 %v920
  %v2152 = vpop.f32.mrf.mxu0
  %v2153 = vadd.f32 %v1912, %v2152
  %v2154 = vpop.f32.mrf.mxu0
  %v2155 = vpop.f32.mrf.mxu0
  %v2156 = vadd.f32 %v1915, %v2155
  %v2157 = vpop.f32.mrf.mxu0
  %2158 = vmatprep.mubr.bf16.mxu0 %v928
  %2159 = vmatmul.mubr.bf16.gmra.mxu0 %v927
  %v2160 = vpop.f32.mrf.mxu0
  %v2161 = vadd.f32 %v1920, %v2160
  %v2162 = vpop.f32.mrf.mxu0
  %v2163 = vpop.f32.mrf.mxu0
  %v2164 = vadd.f32 %v1923, %v2163
  %v2165 = vpop.f32.mrf.mxu0
  %2166 = vmatprep.mubr.bf16.mxu0 %v935
  %2167 = vmatmul.mubr.bf16.gmra.mxu0 %v934
  %v2168 = vpop.f32.mrf.mxu0
  %v2169 = vadd.f32 %v1928, %v2168
  %v2170 = vpop.f32.mrf.mxu0
  %v2171 = vpop.f32.mrf.mxu0
  %v2172 = vadd.f32 %v1931, %v2171
  %v2173 = vpop.f32.mrf.mxu0
  %2174 = vmatprep.mubr.bf16.mxu0 %v942
  %2175 = vmatmul.mubr.bf16.gmra.mxu0 %v941
  %v2176 = vpop.f32.mrf.mxu0
  %v2177 = vadd.f32 %v1936, %v2176
  %v2178 = vpop.f32.mrf.mxu0
  %v2179 = vpop.f32.mrf.mxu0
  %v2180 = vadd.f32 %v1939, %v2179
  %v2181 = vpop.f32.mrf.mxu0
  %2182 = vmatprep.mubr.bf16.mxu0 %v949
  %2183 = vmatmul.mubr.bf16.gmra.mxu0 %v948
  %v2184 = vpop.f32.mrf.mxu0
  %v2185 = vadd.f32 %v1944, %v2184
  %v2186 = vpop.f32.mrf.mxu0
  %v2187 = vpop.f32.mrf.mxu0
  %v2188 = vadd.f32 %v1947, %v2187
  %v2189 = vpop.f32.mrf.mxu0
  %2190 = vmatprep.mubr.bf16.mxu0 %v956
  %2191 = vmatmul.mubr.bf16.gmra.mxu0 %v955
  %v2192 = vpop.f32.mrf.mxu0
  %v2193 = vadd.f32 %v1952, %v2192
  %v2194 = vpop.f32.mrf.mxu0
  %v2195 = vpop.f32.mrf.mxu0
  %v2196 = vadd.f32 %v1955, %v2195
  %v2197 = vpop.f32.mrf.mxu0
  %2198 = vmatprep.mubr.bf16.mxu0 %v963
  %2199 = vmatmul.mubr.bf16.gmra.mxu0 %v962
  %v2200 = vpop.f32.mrf.mxu0
  %v2201 = vadd.f32 %v1960, %v2200
  %v2202 = vpop.f32.mrf.mxu0
  %v2203 = vpop.f32.mrf.mxu0
  %v2204 = vadd.f32 %v1963, %v2203
  %v2205 = vpop.f32.mrf.mxu0
  %2206 = vmatprep.mubr.bf16.mxu0 %v970
  %2207 = vmatmul.mubr.bf16.gmra.mxu0 %v969
  %v2208 = vpop.f32.mrf.mxu0
  %v2209 = vadd.f32 %v1968, %v2208
  %v2210 = vpop.f32.mrf.mxu0
  %v2211 = vpop.f32.mrf.mxu0
  %v2212 = vadd.f32 %v1971, %v2211
  %v2213 = vpop.f32.mrf.mxu0
  %2214 = vmatprep.mubr.bf16.mxu0 %v977
  %2215 = vmatmul.mubr.bf16.gmra.mxu0 %v976
  %v2216 = vpop.f32.mrf.mxu0
  %v2217 = vadd.f32 %v1976, %v2216
  %v2218 = vpop.f32.mrf.mxu0
  %v2219 = vpop.f32.mrf.mxu0
  %v2220 = vadd.f32 %v1979, %v2219
  %v2221 = vpop.f32.mrf.mxu0
  %2222 = vmatprep.mubr.bf16.mxu0 %v984
  %2223 = vmatmul.mubr.bf16.gmra.mxu0 %v983
  %v2224 = vpop.f32.mrf.mxu0
  %v2225 = vadd.f32 %v1984, %v2224
  %v2226 = vpop.f32.mrf.mxu0
  %v2227 = vpop.f32.mrf.mxu0
  %v2228 = vadd.f32 %v1987, %v2227
  %v2229 = vpop.f32.mrf.mxu0
  %2230 = vmatprep.mubr.bf16.mxu0 %v991
  %2231 = vmatmul.mubr.bf16.gmra.mxu0 %v990
  %v2232 = vpop.f32.mrf.mxu0
  %v2233 = vadd.f32 %v1992, %v2232
  %v2234 = vpop.f32.mrf.mxu0
  %v2235 = vpop.f32.mrf.mxu0
  %v2236 = vadd.f32 %v1995, %v2235
  %v2237 = vpop.f32.mrf.mxu0
  %2238 = vmatprep.mubr.bf16.mxu0 %v998
  %2239 = vmatmul.mubr.bf16.gmra.mxu0 %v997
  %v2240 = vpop.f32.mrf.mxu0
  %v2241 = vadd.f32 %v2000, %v2240
  %v2242 = vpop.f32.mrf.mxu0
  %v2243 = vpop.f32.mrf.mxu0
  %v2244 = vadd.f32 %v2003, %v2243
  %v2245 = vpop.f32.mrf.mxu0
  %2246 = vmatprep.mubr.bf16.mxu0 %v1005
  %2247 = vmatmul.mubr.bf16.gmra.mxu0 %v1004
  %v2248 = vpop.f32.mrf.mxu0
  %v2249 = vadd.f32 %v2008, %v2248
  %v2250 = vpop.f32.mrf.mxu0
  %v2251 = vpop.f32.mrf.mxu0
  %v2252 = vadd.f32 %v2011, %v2251
  %v2253 = vpop.f32.mrf.mxu0
  %2254 = vmatprep.mubr.bf16.mxu0 %v1012
  %2255 = vmatmul.mubr.bf16.gmra.mxu0 %v1011
  %v2256 = vpop.f32.mrf.mxu0
  %v2257 = vadd.f32 %v2016, %v2256
  %v2258 = vpop.f32.mrf.mxu0
  %v2259 = vpop.f32.mrf.mxu0
  %v2260 = vadd.f32 %v2019, %v2259
  %v2261 = vpop.f32.mrf.mxu0
  %2262 = vmatprep.mubr.bf16.mxu0 %v1019
  %2263 = vmatmul.mubr.bf16.gmra.mxu0 %v1018
  %v2264 = vpop.f32.mrf.mxu0
  %v2265 = vadd.f32 %v2024, %v2264
  %v2266 = vpop.f32.mrf.mxu0
  %v2267 = vpop.f32.mrf.mxu0
  %v2268 = vadd.f32 %v2027, %v2267
  %v2269 = vpop.f32.mrf.mxu0
  %2270 = vmatprep.mubr.bf16.mxu0 %v1026
  %2271 = vmatmul.mubr.bf16.gmra.mxu0 %v1025
  %v2272 = vpop.f32.mrf.mxu0
  %v2273 = vadd.f32 %v2032, %v2272
  %v2274 = vpop.f32.mrf.mxu0
  %v2275 = vpop.f32.mrf.mxu0
  %v2276 = vadd.f32 %v2035, %v2275
  %v2277 = vpop.f32.mrf.mxu0
  %2278 = vmatprep.mubr.bf16.mxu0 %v1033
  %2279 = vmatmul.mubr.bf16.gmra.mxu0 %v1032
  %v2280 = vpop.f32.mrf.mxu0
  %v2281 = vadd.f32 %v2040, %v2280
  %v2282 = vpop.f32.mrf.mxu0
  %v2283 = vpop.f32.mrf.mxu0
  %v2284 = vadd.f32 %v2043, %v2283
  %v2285 = vpop.f32.mrf.mxu0
  %2286 = vmatprep.mubr.bf16.mxu0 %v1040
  %2287 = vmatmul.mubr.bf16.gmra.mxu0 %v1039
  %v2288 = vpop.f32.mrf.mxu0
  %v2289 = vadd.f32 %v2048, %v2288
  %v2290 = vpop.f32.mrf.mxu0
  %v2291 = vpop.f32.mrf.mxu0
  %v2292 = vadd.f32 %v2051, %v2291
  %v2293 = vpop.f32.mrf.mxu0
  %2294 = vmatprep.mubr.bf16.mxu0 %v1047
  %2295 = vmatmul.mubr.bf16.gmra.mxu0 %v1046
  %v2296 = vpop.f32.mrf.mxu0
  %v2297 = vadd.f32 %v2056, %v2296
  %v2298 = vpop.f32.mrf.mxu0
  %v2299 = vpop.f32.mrf.mxu0
  %v2300 = vadd.f32 %v2059, %v2299
  %v2301 = vpop.f32.mrf.mxu0
  %2302 = vmatprep.mubr.bf16.mxu0 %v1054
  %2303 = vmatmul.mubr.bf16.gmra.mxu0 %v1053
  %v2304 = vpop.f32.mrf.mxu0
  %v2305 = vadd.f32 %v2064, %v2304
  %v2306 = vpop.f32.mrf.mxu0
  %v2307 = vpop.f32.mrf.mxu0
  %v2308 = vadd.f32 %v2067, %v2307
  %v2309 = vpop.f32.mrf.mxu0
  %2310 = vmatprep.mubr.bf16.mxu0 %v1061
  %2311 = vmatmul.mubr.bf16.gmra.mxu0 %v1060
  %v2312 = vpop.f32.mrf.mxu0
  %v2313 = vadd.f32 %v2072, %v2312
  %v2314 = vpop.f32.mrf.mxu0
  %v2315 = vpop.f32.mrf.mxu0
  %v2316 = vadd.f32 %v2075, %v2315
  %v2317 = vpop.f32.mrf.mxu0
  %2318 = vmatprep.mubr.bf16.mxu0 %v1068
  %2319 = vmatmul.mubr.bf16.gmra.mxu0 %v1067
  %v2320 = vpop.f32.mrf.mxu0
  %v2321 = vadd.f32 %v2080, %v2320
  %v2322 = vpop.f32.mrf.mxu0
  %v2323 = vpop.f32.mrf.mxu0
  %v2324 = vadd.f32 %v2083, %v2323
  %v2325 = vpop.f32.mrf.mxu0
  %2326 = vmatprep.mubr.bf16.mxu0 %v1075
  %2327 = vmatmul.mubr.bf16.gmra.mxu0 %v1074
  %v2328 = vpop.f32.mrf.mxu0
  %v2329 = vadd.f32 %v2088, %v2328
  %v2330 = vpop.f32.mrf.mxu0
  %v2331 = vpop.f32.mrf.mxu0
  %v2332 = vadd.f32 %v2091, %v2331
  %v2333 = vpop.f32.mrf.mxu0
  %2334 = vdwg.mxu0
  %2335 = vmatprep.subr.bf16.mxu0 0
  %2336 = vmatpush1.bf16.msra.mxu0 0
  %2337 = vmatprep.subr.bf16.mxu0 0
  %2338 = vmatpush1.bf16.msra.mxu0 0
  %2339 = vmatprep.subr.bf16.mxu0 0
  %2340 = vmatpush1.bf16.msra.mxu0 0
  %2341 = vmatprep.subr.bf16.mxu0 0
  %2342 = vmatpush1.bf16.msra.mxu0 0
  %2343 = vmatprep.subr.bf16.mxu0 0
  %2344 = vmatpush1.bf16.msra.mxu0 0
  %2345 = vmatprep.subr.bf16.mxu0 0
  %2346 = vmatpush1.bf16.msra.mxu0 0
  %2347 = vmatprep.subr.bf16.mxu0 0
  %2348 = vmatpush1.bf16.msra.mxu0 %v1482
  %2349 = vmatprep.subr.bf16.mxu0 0
  %2350 = vmatpush1.bf16.msra.mxu0 %v1481
  %2351 = vmatprep.subr.bf16.mxu0 0
  %2352 = vmatpush2.bf16.msra.mxu0 0
  %2353 = vmatprep.subr.bf16.mxu0 0
  %2354 = vmatpush2.bf16.msra.mxu0 0
  %2355 = vmatprep.subr.bf16.mxu0 0
  %2356 = vmatpush2.bf16.msra.mxu0 0
  %2357 = vmatprep.subr.bf16.mxu0 0
  %2358 = vmatpush2.bf16.msra.mxu0 0
  %2359 = vmatprep.subr.bf16.mxu0 0
  %2360 = vmatpush2.bf16.msra.mxu0 0
  %2361 = vmatprep.subr.bf16.mxu0 0
  %2362 = vmatpush2.bf16.msra.mxu0 0
  %2363 = vmatprep.subr.bf16.mxu0 0
  %2364 = vmatpush2.bf16.msra.mxu0 0
  %2365 = vmatprep.subr.bf16.mxu0 0
  %2366 = vmatpush2.bf16.msra.mxu0 0
  %2367 = vmatprep.mubr.bf16.mxu0 0
  %2368 = vmatmul.mubr.bf16.gmra.mxu0 %v1535
  %v2369 = vpop.f32.mrf.mxu0
  %v2370 = vadd.f32 %v2129, %v2369
  %v2371 = vpop.f32.mrf.mxu0
  %v2372 = vpop.f32.mrf.mxu0
  %v2373 = vadd.f32 %v2132, %v2372
  %v2374 = vpop.f32.mrf.mxu0
  %2375 = vmatprep.mubr.bf16.mxu0 0
  %2376 = vmatmul.mubr.bf16.gmra.mxu0 %v1538
  %v2377 = vpop.f32.mrf.mxu0
  %v2378 = vadd.f32 %v2137, %v2377
  %v2379 = vpop.f32.mrf.mxu0
  %v2380 = vpop.f32.mrf.mxu0
  %v2381 = vadd.f32 %v2140, %v2380
  %v2382 = vpop.f32.mrf.mxu0
  %2383 = vmatprep.mubr.bf16.mxu0 0
  %2384 = vmatmul.mubr.bf16.gmra.mxu0 %v1541
  %v2385 = vpop.f32.mrf.mxu0
  %v2386 = vadd.f32 %v2145, %v2385
  %v2387 = vpop.f32.mrf.mxu0
  %v2388 = vpop.f32.mrf.mxu0
  %v2389 = vadd.f32 %v2148, %v2388
  %v2390 = vpop.f32.mrf.mxu0
  %2391 = vmatprep.mubr.bf16.mxu0 0
  %2392 = vmatmul.mubr.bf16.gmra.mxu0 %v1544
  %v2393 = vpop.f32.mrf.mxu0
  %v2394 = vadd.f32 %v2153, %v2393
  %v2395 = vpop.f32.mrf.mxu0
  %v2396 = vpop.f32.mrf.mxu0
  %v2397 = vadd.f32 %v2156, %v2396
  %v2398 = vpop.f32.mrf.mxu0
  %2399 = vmatprep.mubr.bf16.mxu0 0
  %2400 = vmatmul.mubr.bf16.gmra.mxu0 %v1547
  %v2401 = vpop.f32.mrf.mxu0
  %v2402 = vadd.f32 %v2161, %v2401
  %v2403 = vpop.f32.mrf.mxu0
  %v2404 = vpop.f32.mrf.mxu0
  %v2405 = vadd.f32 %v2164, %v2404
  %v2406 = vpop.f32.mrf.mxu0
  %2407 = vmatprep.mubr.bf16.mxu0 0
  %2408 = vmatmul.mubr.bf16.gmra.mxu0 %v1550
  %v2409 = vpop.f32.mrf.mxu0
  %v2410 = vadd.f32 %v2169, %v2409
  %v2411 = vpop.f32.mrf.mxu0
  %v2412 = vpop.f32.mrf.mxu0
  %v2413 = vadd.f32 %v2172, %v2412
  %v2414 = vpop.f32.mrf.mxu0
  %2415 = vmatprep.mubr.bf16.mxu0 0
  %2416 = vmatmul.mubr.bf16.gmra.mxu0 %v1553
  %v2417 = vpop.f32.mrf.mxu0
  %v2418 = vadd.f32 %v2177, %v2417
  %v2419 = vpop.f32.mrf.mxu0
  %v2420 = vpop.f32.mrf.mxu0
  %v2421 = vadd.f32 %v2180, %v2420
  %v2422 = vpop.f32.mrf.mxu0
  %2423 = vmatprep.mubr.bf16.mxu0 0
  %2424 = vmatmul.mubr.bf16.gmra.mxu0 %v1556
  %v2425 = vpop.f32.mrf.mxu0
  %v2426 = vadd.f32 %v2185, %v2425
  %v2427 = vpop.f32.mrf.mxu0
  %v2428 = vpop.f32.mrf.mxu0
  %v2429 = vadd.f32 %v2188, %v2428
  %v2430 = vpop.f32.mrf.mxu0
  %2431 = vmatprep.mubr.bf16.mxu0 0
  %2432 = vmatmul.mubr.bf16.gmra.mxu0 %v1559
  %v2433 = vpop.f32.mrf.mxu0
  %v2434 = vadd.f32 %v2193, %v2433
  %v2435 = vpop.f32.mrf.mxu0
  %v2436 = vpop.f32.mrf.mxu0
  %v2437 = vadd.f32 %v2196, %v2436
  %v2438 = vpop.f32.mrf.mxu0
  %2439 = vmatprep.mubr.bf16.mxu0 0
  %2440 = vmatmul.mubr.bf16.gmra.mxu0 %v1562
  %v2441 = vpop.f32.mrf.mxu0
  %v2442 = vadd.f32 %v2201, %v2441
  %v2443 = vpop.f32.mrf.mxu0
  %v2444 = vpop.f32.mrf.mxu0
  %v2445 = vadd.f32 %v2204, %v2444
  %v2446 = vpop.f32.mrf.mxu0
  %2447 = vmatprep.mubr.bf16.mxu0 0
  %2448 = vmatmul.mubr.bf16.gmra.mxu0 %v1565
  %v2449 = vpop.f32.mrf.mxu0
  %v2450 = vadd.f32 %v2209, %v2449
  %v2451 = vpop.f32.mrf.mxu0
  %v2452 = vpop.f32.mrf.mxu0
  %v2453 = vadd.f32 %v2212, %v2452
  %v2454 = vpop.f32.mrf.mxu0
  %2455 = vmatprep.mubr.bf16.mxu0 0
  %2456 = vmatmul.mubr.bf16.gmra.mxu0 %v1568
  %v2457 = vpop.f32.mrf.mxu0
  %v2458 = vadd.f32 %v2217, %v2457
  %v2459 = vpop.f32.mrf.mxu0
  %v2460 = vpop.f32.mrf.mxu0
  %v2461 = vadd.f32 %v2220, %v2460
  %v2462 = vpop.f32.mrf.mxu0
  %2463 = vmatprep.mubr.bf16.mxu0 0
  %2464 = vmatmul.mubr.bf16.gmra.mxu0 %v1571
  %v2465 = vpop.f32.mrf.mxu0
  %v2466 = vadd.f32 %v2225, %v2465
  %v2467 = vpop.f32.mrf.mxu0
  %v2468 = vpop.f32.mrf.mxu0
  %v2469 = vadd.f32 %v2228, %v2468
  %v2470 = vpop.f32.mrf.mxu0
  %2471 = vmatprep.mubr.bf16.mxu0 0
  %2472 = vmatmul.mubr.bf16.gmra.mxu0 %v1574
  %v2473 = vpop.f32.mrf.mxu0
  %v2474 = vadd.f32 %v2233, %v2473
  %v2475 = vpop.f32.mrf.mxu0
  %v2476 = vpop.f32.mrf.mxu0
  %v2477 = vadd.f32 %v2236, %v2476
  %v2478 = vpop.f32.mrf.mxu0
  %2479 = vmatprep.mubr.bf16.mxu0 0
  %2480 = vmatmul.mubr.bf16.gmra.mxu0 %v1577
  %v2481 = vpop.f32.mrf.mxu0
  %v2482 = vadd.f32 %v2241, %v2481
  %v2483 = vpop.f32.mrf.mxu0
  %v2484 = vpop.f32.mrf.mxu0
  %v2485 = vadd.f32 %v2244, %v2484
  %v2486 = vpop.f32.mrf.mxu0
  %2487 = vmatprep.mubr.bf16.mxu0 0
  %2488 = vmatmul.mubr.bf16.gmra.mxu0 %v1580
  %v2489 = vpop.f32.mrf.mxu0
  %v2490 = vadd.f32 %v2249, %v2489
  %v2491 = vpop.f32.mrf.mxu0
  %v2492 = vpop.f32.mrf.mxu0
  %v2493 = vadd.f32 %v2252, %v2492
  %v2494 = vpop.f32.mrf.mxu0
  %2495 = vmatprep.mubr.bf16.mxu0 0
  %2496 = vmatmul.mubr.bf16.gmra.mxu0 %v1583
  %v2497 = vpop.f32.mrf.mxu0
  %v2498 = vadd.f32 %v2257, %v2497
  %v2499 = vpop.f32.mrf.mxu0
  %v2500 = vpop.f32.mrf.mxu0
  %v2501 = vadd.f32 %v2260, %v2500
  %v2502 = vpop.f32.mrf.mxu0
  %2503 = vmatprep.mubr.bf16.mxu0 0
  %2504 = vmatmul.mubr.bf16.gmra.mxu0 %v1586
  %v2505 = vpop.f32.mrf.mxu0
  %v2506 = vadd.f32 %v2265, %v2505
  %v2507 = vpop.f32.mrf.mxu0
  %v2508 = vpop.f32.mrf.mxu0
  %v2509 = vadd.f32 %v2268, %v2508
  %v2510 = vpop.f32.mrf.mxu0
  %2511 = vmatprep.mubr.bf16.mxu0 0
  %2512 = vmatmul.mubr.bf16.gmra.mxu0 %v1589
  %v2513 = vpop.f32.mrf.mxu0
  %v2514 = vadd.f32 %v2273, %v2513
  %v2515 = vpop.f32.mrf.mxu0
  %v2516 = vpop.f32.mrf.mxu0
  %v2517 = vadd.f32 %v2276, %v2516
  %v2518 = vpop.f32.mrf.mxu0
  %2519 = vmatprep.mubr.bf16.mxu0 0
  %2520 = vmatmul.mubr.bf16.gmra.mxu0 %v1592
  %v2521 = vpop.f32.mrf.mxu0
  %v2522 = vadd.f32 %v2281, %v2521
  %v2523 = vpop.f32.mrf.mxu0
  %v2524 = vpop.f32.mrf.mxu0
  %v2525 = vadd.f32 %v2284, %v2524
  %v2526 = vpop.f32.mrf.mxu0
  %2527 = vmatprep.mubr.bf16.mxu0 0
  %2528 = vmatmul.mubr.bf16.gmra.mxu0 %v1595
  %v2529 = vpop.f32.mrf.mxu0
  %v2530 = vadd.f32 %v2289, %v2529
  %v2531 = vpop.f32.mrf.mxu0
  %v2532 = vpop.f32.mrf.mxu0
  %v2533 = vadd.f32 %v2292, %v2532
  %v2534 = vpop.f32.mrf.mxu0
  %2535 = vmatprep.mubr.bf16.mxu0 0
  %2536 = vmatmul.mubr.bf16.gmra.mxu0 %v1598
  %v2537 = vpop.f32.mrf.mxu0
  %v2538 = vadd.f32 %v2297, %v2537
  %v2539 = vpop.f32.mrf.mxu0
  %v2540 = vpop.f32.mrf.mxu0
  %v2541 = vadd.f32 %v2300, %v2540
  %v2542 = vpop.f32.mrf.mxu0
  %2543 = vmatprep.mubr.bf16.mxu0 0
  %2544 = vmatmul.mubr.bf16.gmra.mxu0 %v1601
  %v2545 = vpop.f32.mrf.mxu0
  %v2546 = vadd.f32 %v2305, %v2545
  %v2547 = vpop.f32.mrf.mxu0
  %v2548 = vpop.f32.mrf.mxu0
  %v2549 = vadd.f32 %v2308, %v2548
  %v2550 = vpop.f32.mrf.mxu0
  %2551 = vmatprep.mubr.bf16.mxu0 0
  %2552 = vmatmul.mubr.bf16.gmra.mxu0 %v1604
  %v2553 = vpop.f32.mrf.mxu0
  %v2554 = vadd.f32 %v2313, %v2553
  %v2555 = vpop.f32.mrf.mxu0
  %v2556 = vpop.f32.mrf.mxu0
  %v2557 = vadd.f32 %v2316, %v2556
  %v2558 = vpop.f32.mrf.mxu0
  %2559 = vmatprep.mubr.bf16.mxu0 0
  %2560 = vmatmul.mubr.bf16.gmra.mxu0 %v1607
  %v2561 = vpop.f32.mrf.mxu0
  %v2562 = vadd.f32 %v2321, %v2561
  %v2563 = vpop.f32.mrf.mxu0
  %v2564 = vpop.f32.mrf.mxu0
  %v2565 = vadd.f32 %v2324, %v2564
  %v2566 = vpop.f32.mrf.mxu0
  %2567 = vmatprep.mubr.bf16.mxu0 0
  %2568 = vmatmul.mubr.bf16.gmra.mxu0 %v1610
  %v2569 = vpop.f32.mrf.mxu0
  %v2570 = vadd.f32 %v2329, %v2569
  %v2571 = vpop.f32.mrf.mxu0
  %v2572 = vpop.f32.mrf.mxu0
  %v2573 = vadd.f32 %v2332, %v2572
  %v2574 = vpop.f32.mrf.mxu0
  %2575 = vdwg.mxu0
  %v2576 = vmax.f32 %v2370, %v2421
  %v2577 = vmax.f32 %v2373, %v2426
  %v2578 = vmax.f32 %v2378, %v2429
  %v2579 = vmax.f32 %v2381, %v2434
  %v2580 = vmax.f32 %v2386, %v2437
  %v2581 = vmax.f32 %v2389, %v2442
  %v2582 = vmax.f32 %v2394, %v2445
  %v2583 = vmax.f32 %v2397, %v2450
  %v2584 = vmax.f32 %v2402, %v2453
  %v2585 = vmax.f32 %v2405, %v2458
  %v2586 = vmax.f32 %v2410, %v2461
  %v2587 = vmax.f32 %v2413, %v2466
  %v2588 = vmax.f32 %v2418, %v2469
  %v2589 = vmax.f32 %v2474, %v2525
  %v2590 = vmax.f32 %v2477, %v2530
  %v2591 = vmax.f32 %v2482, %v2533
  %v2592 = vmax.f32 %v2485, %v2538
  %v2593 = vmax.f32 %v2490, %v2541
  %v2594 = vmax.f32 %v2493, %v2546
  %v2595 = vmax.f32 %v2498, %v2549
  %v2596 = vmax.f32 %v2501, %v2554
  %v2597 = vmax.f32 %v2506, %v2557
  %v2598 = vmax.f32 %v2509, %v2562
  %v2599 = vmax.f32 %v2514, %v2565
  %v2600 = vmax.f32 %v2517, %v2570
  %v2601 = vmax.f32 %v2522, %v2573
  %v2602 = vmax.f32 %v2576, %v2589
  %v2603 = vmax.f32 %v2577, %v2590
  %v2604 = vmax.f32 %v2578, %v2591
  %v2605 = vmax.f32 %v2579, %v2592
  %v2606 = vmax.f32 %v2580, %v2593
  %v2607 = vmax.f32 %v2581, %v2594
  %v2608 = vmax.f32 %v2582, %v2595
  %v2609 = vmax.f32 %v2583, %v2596
  %v2610 = vmax.f32 %v2584, %v2597
  %v2611 = vmax.f32 %v2585, %v2598
  %v2612 = vmax.f32 %v2586, %v2599
  %v2613 = vmax.f32 %v2587, %v2600
  %v2614 = vmax.f32 %v2588, %v2601
  %v2615 = vld [vmem:[%s2] sm:$0x1]
  %v2617 = vlaneseq
  %v2618 = vshrl.u32 %v2617, 7
  %v2619 = vsub.s32 0, %v2618
  %v2620 = vrot.slane %v2615, %v2619
  %v2622 = vadd.f32 %v2602, %v2620
  %v2623 = vadd.f32 %v2603, %v2620
  %v2624 = vadd.f32 %v2604, %v2620
  %v2625 = vadd.f32 %v2605, %v2620
  %v2626 = vadd.f32 %v2606, %v2620
  %v2627 = vadd.f32 %v2607, %v2620
  %v2628 = vadd.f32 %v2608, %v2620
  %v2629 = vadd.f32 %v2609, %v2620
  %v2630 = vadd.f32 %v2610, %v2620
  %v2631 = vadd.f32 %v2611, %v2620
  %v2632 = vadd.f32 %v2612, %v2620
  %v2633 = vadd.f32 %v2613, %v2620
  %v2634 = vadd.f32 %v2614, %v2620
  %v2635 = vmax.f32 %v2622, 0.0
  %v2636 = vmax.f32 %v2623, 0.0
  %v2637 = vmax.f32 %v2624, 0.0
  %v2638 = vmax.f32 %v2625, 0.0
  %v2639 = vmax.f32 %v2626, 0.0
  %v2640 = vmax.f32 %v2627, 0.0
  %v2641 = vmax.f32 %v2628, 0.0
  %v2642 = vmax.f32 %v2629, 0.0
  %v2643 = vmax.f32 %v2630, 0.0
  %v2644 = vmax.f32 %v2631, 0.0
  %v2645 = vmax.f32 %v2632, 0.0
  %v2646 = vmax.f32 %v2633, 0.0
  %v2647 = vmax.f32 %v2634, 0.0
  %v2648 = vpack.c.bf16 %v2636, %v2635
  %v2649 = vpack.c.bf16 %v2638, %v2637
  %v2650 = vpack.c.bf16 %v2640, %v2639
  %v2651 = vpack.c.bf16 %v2642, %v2641
  %v2652 = vpack.c.bf16 %v2644, %v2643
  %v2653 = vpack.c.bf16 %v2646, %v2645
  %v2654 = vpack.c.bf16 %v2647, %v2647
  %v2662 = vunpack.c.l.b16 %v2648
  %v2663 = vunpack.c.h.b16 %v2648
  %v2664 = vunpack.c.l.b16 %v2649
  %v2665 = vunpack.c.h.b16 %v2649
  %v2666 = vunpack.c.l.b16 %v2650
  %v2667 = vunpack.c.h.b16 %v2650
  %v2668 = vunpack.c.l.b16 %v2651
  %v2669 = vunpack.c.h.b16 %v2651
  %v2670 = vunpack.c.l.b16 %v2652
  %v2671 = vunpack.c.h.b16 %v2652
  %v2672 = vunpack.c.l.b16 %v2653
  %v2673 = vunpack.c.h.b16 %v2653
  %v2674 = vunpack.c.l.b16 %v2654
  %v2675 = vpack.c.b16 %v2662, %v2662
  %v2676 = vpack.c.b16 %v2663, %v2663
  %v2677 = vpack.c.b16 %v2664, %v2664
  %v2678 = vpack.c.b16 %v2665, %v2665
  %v2679 = vpack.c.b16 %v2666, %v2666
  %v2680 = vpack.c.b16 %v2667, %v2667
  %v2681 = vpack.c.b16 %v2668, %v2668
  %v2682 = vpack.c.b16 %v2669, %v2669
  %v2683 = vpack.c.b16 %v2670, %v2670
  %v2684 = vpack.c.b16 %v2671, %v2671
  %v2685 = vpack.c.b16 %v2672, %v2672
  %v2686 = vpack.c.b16 %v2673, %v2673
  %v2687 = vpack.c.b16 %v2674, %v2674
  %vm2701 = vcmask 519168
  %2702 = vst.msk [vmem:[%s3] sm:$0xf] %vm2701, %v2675
  %2703 = vst.msk [vmem:[%s3 + $0x4] sm:$0xf] %vm2701, %v2676
  %2704 = vst.msk [vmem:[%s3 + $0x8] sm:$0xf] %vm2701, %v2677
  %2705 = vst.msk [vmem:[%s3 + $0xc] sm:$0xf] %vm2701, %v2678
  %2706 = vst.msk [vmem:[%s3 + $0x10] sm:$0xf] %vm2701, %v2679
  %2707 = vst.msk [vmem:[%s3 + $0x14] sm:$0xf] %vm2701, %v2680
  %2708 = vst.msk [vmem:[%s3 + $0x18] sm:$0xf] %vm2701, %v2681
  %2709 = vst.msk [vmem:[%s3 + $0x1c] sm:$0xf] %vm2701, %v2682
  %2710 = vst.msk [vmem:[%s3 + $0x20] sm:$0xf] %vm2701, %v2683
  %2711 = vst.msk [vmem:[%s3 + $0x24] sm:$0xf] %vm2701, %v2684
  %2712 = vst.msk [vmem:[%s3 + $0x28] sm:$0xf] %vm2701, %v2685
  %2713 = vst.msk [vmem:[%s3 + $0x2c] sm:$0xf] %vm2701, %v2686
  %2714 = vst.msk [vmem:[%s3 + $0x30] sm:$0xf] %vm2701, %v2687
  // Predicated region
  $region14: #{cnn_forward.4} parent=0 // pred_check
    _
  $region15: #{cnn_forward.4} parent=0 // pred_check_branch
    %2716 = sbr.rel (0) target = $region17
  $region16: #{cnn_forward.4} parent=0 // pred_region
    _
  $region17: #{cnn_forward.4} parent=0 // pred_fallthru
    _
  // Predicated region
  $region18: #{cnn_forward.4} parent=0 // pred_check
    _
  $region19: #{cnn_forward.4} parent=0 // pred_check_branch
    %2718 = sbr.rel (0) target = $region21
  $region20: #{cnn_forward.4} parent=0 // pred_region
    _
  $region21: #{cnn_forward.4} parent=0 // pred_fallthru
    _

// kernel: cnn_forward.5
$region0: #{cnn_forward.5}
  #allocation0 [shape = 'u32[]', space=smem, size = 0x4, offset = 0x4, fixed_abs, tag = 'smem constant byte address 0x4 - core index']
  #allocation1 [shape = 'u32[144,128]{1,0:T(1,128)}', space=vmem, size = 0x12000, scoped, tag = 'internal scratch']
  %s0 = inlined_call_operand.vmem [shape: bf16[2,3136], index: 0, kind: input, shape index: {}]
  %s1 = inlined_call_operand.vmem [shape: bf16[3136,1024], index: 1, kind: input, shape index: {}]
  %s2 = inlined_call_operand.vmem [shape: f32[1,1024], index: 2, kind: input, shape index: {}]
  %s3 = inlined_call_operand.vmem [shape: f32[1024,10], index: 3, kind: input, shape index: {}]
  %s4 = inlined_call_operand.vmem [shape: f32[1,10], index: 4, kind: input, shape index: {}]
  %s5 = inlined_call_operand.hbm [shape: f32[2,10], index: 5, kind: output, shape index: {}]
  %s6 = sld [smem:[#allocation0]]
  $region80: #{cnn_forward.5} parent=0
    _
  %s8 = ssub.s32 1, %s6
  %s9 = scalar_select 0, %s8, %s6
  $region1: #{cnn_forward.5} parent=0
    #allocation2 [shape = 'u8[6422528]{0}', space=vmem, size = 0x620000, scoped, tag = 'input window, operand 1']
    #allocation3 [shape = 'u8[1024]{0}', space=vmem, size = 0x400, scoped, tag = 'output window, operand 0, single buffered']
    #allocation4 [shape = 's32[2]{0}', space=sflag, size = 0x8, scoped, tag = 'scoped memory for cnn_forward.5']
    %10 = vsyncpa [#allocation4], 0
    loop: start=0, step=1, limit=4
    $region2: #{cnn_forward.5} parent=1 // loop_pre_header
      _
    $region3: #{cnn_forward.5} parent=1 // loop_header
      %s12 = sphi 0, %s16
      %p13 = scmp.ge.s32.totalorder %s12, 4
      %s20 = sphi 0, %s20
      %s22 = sphi 0, %s20
      %s23 = sphi 0, %s22
      %s37 = sphi 0, %s23
      %s43 = sphi 0, %s45
      %s46 = sphi 0, %s43
      %s47 = sphi 0, %s46
      %s63 = sphi 0, %s47
      %s69 = sphi 0, %s71
      %s72 = sphi 0, %s69
      %s73 = sphi 0, %s72
      %s89 = sphi 0, %s73
      %s95 = sphi 0, %s97
      %s98 = sphi 0, %s95
      %s99 = sphi 0, %s98
      %s115 = sphi 0, %s99
      %s119 = sphi 0, %s119
      %s121 = sphi 0, %s119
      %s122 = sphi 0, %s121
      %s136 = sphi 0, %s122
      %s140 = sphi 0, %s140
      %s142 = sphi 0, %s140
      %s143 = sphi 0, %s142
      %s157 = sphi 0, %s143
    $region4: #{cnn_forward.5} parent=1 // loop_header_branch
      %15 = sbr.rel (%p13) target = $region8
    $region5: #{cnn_forward.5} parent=1 // loop_body
      %s17 = ssub.s32 %s12, 1
      %s18 = ssub.s32 %s12, 2
      %s19 = sadd.s32 %s12, 1
      %s21 = sadd.s32 %s20, 1
      %p24 = scmp.eq.s32.totalorder %s12, 1
      %p25 = scmp.ne.s32.totalorder %s20, %s22
      %p26 = scmp.eq.s32.totalorder %s12, 0
      %p27 = por %p25, %p26
      %p28 = scmp.ne.s32.totalorder %s20, %s22
      %p29 = scmp.eq.s32.totalorder %s17, 1
      %p30 = por %p28, %p29
      %p31 = scmp.ne.s32.totalorder %s22, %s23
      %p32 = scmp.eq.s32.totalorder %s17, 0
      %p33 = por %p31, %p32
      %p34 = scmp.ne.s32.totalorder %s22, %s23
      %p35 = scmp.eq.s32.totalorder %s18, 1
      %p36 = por %p34, %p35
      %p38 = scmp.ne.s32.totalorder %s23, %s37
      %p39 = scmp.eq.s32.totalorder %s18, 0
      %p40 = por %p38, %p39
      %s41 = ssub.s32 %s12, %s19
      %p42 = scmp.eq.s32.totalorder %s41, 0
      %s44 = sadd.s32 %s43, 1
      %s45 = scalar_select %p42, %s43, %s44
      %p48 = pneg %p42
      %p49 = scmp.eq.s32.totalorder %s12, 1
      %p50 = por %p48, %p49
      %p51 = scmp.ne.s32.totalorder %s43, %s46
      %p52 = scmp.eq.s32.totalorder %s12, 0
      %p53 = por %p51, %p52
      %p54 = scmp.ne.s32.totalorder %s43, %s46
      %p55 = scmp.eq.s32.totalorder %s17, 1
      %p56 = por %p54, %p55
      %p57 = scmp.ne.s32.totalorder %s46, %s47
      %p58 = scmp.eq.s32.totalorder %s17, 0
      %p59 = por %p57, %p58
      %p60 = scmp.ne.s32.totalorder %s46, %s47
      %p61 = scmp.eq.s32.totalorder %s18, 1
      %p62 = por %p60, %p61
      %p64 = scmp.ne.s32.totalorder %s47, %s63
      %p65 = scmp.eq.s32.totalorder %s18, 0
      %p66 = por %p64, %p65
      %s67 = ssub.s32 %s12, %s19
      %p68 = scmp.eq.s32.totalorder %s67, 0
      %s70 = sadd.s32 %s69, 1
      %s71 = scalar_select %p68, %s69, %s70
      %p74 = pneg %p68
      %p75 = scmp.eq.s32.totalorder %s12, 1
      %p76 = por %p74, %p75
      %p77 = scmp.ne.s32.totalorder %s69, %s72
      %p78 = scmp.eq.s32.totalorder %s12, 0
      %p79 = por %p77, %p78
      %p80 = scmp.ne.s32.totalorder %s69, %s72
      %p81 = scmp.eq.s32.totalorder %s17, 1
      %p82 = por %p80, %p81
      %p83 = scmp.ne.s32.totalorder %s72, %s73
      %p84 = scmp.eq.s32.totalorder %s17, 0
      %p85 = por %p83, %p84
      %p86 = scmp.ne.s32.totalorder %s72, %s73
      %p87 = scmp.eq.s32.totalorder %s18, 1
      %p88 = por %p86, %p87
      %p90 = scmp.ne.s32.totalorder %s73, %s89
      %p91 = scmp.eq.s32.totalorder %s18, 0
      %p92 = por %p90, %p91
      %s93 = ssub.s32 %s12, %s19
      %p94 = scmp.eq.s32.totalorder %s93, 0
      %s96 = sadd.s32 %s95, 1
      %s97 = scalar_select %p94, %s95, %s96
      %p100 = pneg %p94
      %p101 = scmp.eq.s32.totalorder %s12, 1
      %p102 = por %p100, %p101
      %p103 = scmp.ne.s32.totalorder %s95, %s98
      %p104 = scmp.eq.s32.totalorder %s12, 0
      %p105 = por %p103, %p104
      %p106 = scmp.ne.s32.totalorder %s95, %s98
      %p107 = scmp.eq.s32.totalorder %s17, 1
      %p108 = por %p106, %p107
      %p109 = scmp.ne.s32.totalorder %s98, %s99
      %p110 = scmp.eq.s32.totalorder %s17, 0
      %p111 = por %p109, %p110
      %p112 = scmp.ne.s32.totalorder %s98, %s99
      %p113 = scmp.eq.s32.totalorder %s18, 1
      %p114 = por %p112, %p113
      %p116 = scmp.ne.s32.totalorder %s99, %s115
      %p117 = scmp.eq.s32.totalorder %s18, 0
      %p118 = por %p116, %p117
      %s120 = sadd.s32 %s119, 1
      %p123 = scmp.eq.s32.totalorder %s12, 1
      %p124 = scmp.ne.s32.totalorder %s119, %s121
      %p125 = scmp.eq.s32.totalorder %s12, 0
      %p126 = por %p124, %p125
      %p127 = scmp.ne.s32.totalorder %s119, %s121
      %p128 = scmp.eq.s32.totalorder %s17, 1
      %p129 = por %p127, %p128
      %p130 = scmp.ne.s32.totalorder %s121, %s122
      %p131 = scmp.eq.s32.totalorder %s17, 0
      %p132 = por %p130, %p131
      %p133 = scmp.ne.s32.totalorder %s121, %s122
      %p134 = scmp.eq.s32.totalorder %s18, 1
      %p135 = por %p133, %p134
      %p137 = scmp.ne.s32.totalorder %s122, %s136
      %p138 = scmp.eq.s32.totalorder %s18, 0
      %p139 = por %p137, %p138
      %s141 = sadd.s32 %s140, 1
      %p144 = scmp.eq.s32.totalorder %s12, 1
      %p145 = scmp.ne.s32.totalorder %s140, %s142
      %p146 = scmp.eq.s32.totalorder %s12, 0
      %p147 = por %p145, %p146
      %p148 = scmp.ne.s32.totalorder %s140, %s142
      %p149 = scmp.eq.s32.totalorder %s17, 1
      %p150 = por %p148, %p149
      %p151 = scmp.ne.s32.totalorder %s142, %s143
      %p152 = scmp.eq.s32.totalorder %s17, 0
      %p153 = por %p151, %p152
      %p154 = scmp.ne.s32.totalorder %s142, %s143
      %p155 = scmp.eq.s32.totalorder %s18, 1
      %p156 = por %p154, %p155
      %p158 = scmp.ne.s32.totalorder %s143, %s157
      %p159 = scmp.eq.s32.totalorder %s18, 0
      %p160 = por %p158, %p159
      %p161 = scmp.le.s32.totalorder 1, %s12
      %p162 = scmp.lt.s32.totalorder %s12, 3
      %p163 = pnand %p161, %p162
      %p164 = pneg %p163
      // Predicated region
      $region9: #{cnn_forward.5} parent=5 // pred_check
        _
      $region10: #{cnn_forward.5} parent=5 // pred_check_branch
        %166 = sbr.rel (%p163) target = $region12
      $region11: #{cnn_forward.5} parent=5 // pred_region
        %s167 = ssub.s32 %s12, 1
        // Predicated region
        $region13: #{cnn_forward.5} parent=11 // pred_check
          %p168 = pneg %p33
        $region14: #{cnn_forward.5} parent=11 // pred_check_branch
          %170 = sbr.rel (%p168) target = $region16
        $region15: #{cnn_forward.5} parent=11 // pred_region
          _
        $region16: #{cnn_forward.5} parent=11 // pred_fallthru
          _
        // Predicated region
        $region17: #{cnn_forward.5} parent=11 // pred_check
          %p171 = pneg %p132
        $region18: #{cnn_forward.5} parent=11 // pred_check_branch
          %173 = sbr.rel (%p171) target = $region20
        $region19: #{cnn_forward.5} parent=11 // pred_region
          _
        $region20: #{cnn_forward.5} parent=11 // pred_fallthru
          _
      $region12: #{cnn_forward.5} parent=5 // pred_fallthru
        _
      %p174 = scmp.lt.s32.totalorder %s12, 2
      // Predicated region
      $region21: #{cnn_forward.5} parent=5 // pred_check
        %p175 = pneg %p174
      $region22: #{cnn_forward.5} parent=5 // pred_check_branch
        %177 = sbr.rel (%p175) target = $region24
      $region23: #{cnn_forward.5} parent=5 // pred_region
        // Predicated region
        $region25: #{cnn_forward.5} parent=23 // pred_check
          %p178 = pneg %p53
        $region26: #{cnn_forward.5} parent=23 // pred_check_branch
          %180 = sbr.rel (%p178) target = $region28
        $region27: #{cnn_forward.5} parent=23 // pred_region
          %s181 = sand.u32 %s43, 1
          %s182 = sand.u32 %s43, 1
          %s183 = smul.addr %s182, 6272
          %s184 = scalar_lea.vmem [#allocation2], %s183
          %s185 = smul.u32 4, %s12
          %s186 = smul.addr %s185, 4
          %s187 = scalar_lea.vmem %s1, %s186
          // Predicated region
          $region29: #{cnn_forward.5} parent=27 // pred_check
            _
          $region30: #{cnn_forward.5} parent=27 // pred_check_branch
            %189 = sbr.rel (0) target = $region32
          $region31: #{cnn_forward.5} parent=27 // pred_region
            // Predicated region
            $region33: #{cnn_forward.5} parent=31 // pred_check
              _
            $region34: #{cnn_forward.5} parent=31 // pred_check_branch
              %191 = sbr.rel (0) target = $region36
            $region35: #{cnn_forward.5} parent=31 // pred_region
              loop: start=0, step=1, limit=1
              $region37: #{cnn_forward.5} parent=35 // loop_pre_header
                _
              $region38: #{cnn_forward.5} parent=35 // loop_header
                %s193 = sphi 0, %s197
                %p194 = scmp.ge.s32.totalorder %s193, 1
                %s198 = sphi %s187, %s187
                %s199 = sphi %s184, %s184
              $region39: #{cnn_forward.5} parent=35 // loop_header_branch
                %196 = sbr.rel (%p194) target = $region43
              $region40: #{cnn_forward.5} parent=35 // loop_body
                %v200 = vld [vmem:[%s198] sm:$0xff]
                %201 = vst [vmem:[%s199] sm:$0xff] %v200
                %v202 = vld [vmem:[%s198 + $0x8] sm:$0xff]
                %203 = vst [vmem:[%s199 + $0x8] sm:$0xff] %v202
                %v204 = vld [vmem:[%s198 + $0x20] sm:$0xff]
                %205 = vst [vmem:[%s199 + $0x10] sm:$0xff] %v204
                %v206 = vld [vmem:[%s198 + $0x28] sm:$0xff]
                %207 = vst [vmem:[%s199 + $0x18] sm:$0xff] %v206
                %v208 = vld [vmem:[%s198 + $0x40] sm:$0xff]
                %209 = vst [vmem:[%s199 + $0x20] sm:$0xff] %v208
                %v210 = vld [vmem:[%s198 + $0x48] sm:$0xff]
                %211 = vst [vmem:[%s199 + $0x28] sm:$0xff] %v210
                %v212 = vld [vmem:[%s198 + $0x60] sm:$0xff]
                %213 = vst [vmem:[%s199 + $0x30] sm:$0xff] %v212
                %v214 = vld [vmem:[%s198 + $0x68] sm:$0xff]
                %215 = vst [vmem:[%s199 + $0x38] sm:$0xff] %v214
                %v216 = vld [vmem:[%s198 + $0x80] sm:$0xff]
                %217 = vst [vmem:[%s199 + $0x40] sm:$0xff] %v216
                %v218 = vld [vmem:[%s198 + $0x88] sm:$0xff]
                %219 = vst [vmem:[%s199 + $0x48] sm:$0xff] %v218
                %v220 = vld [vmem:[%s198 + $0xa0] sm:$0xff]
                %221 = vst [vmem:[%s199 + $0x50] sm:$0xff] %v220
                %v222 = vld [vmem:[%s198 + $0xa8] sm:$0xff]
                %223 = vst [vmem:[%s199 + $0x58] sm:$0xff] %v222
                %v224 = vld [vmem:[%s198 + $0xc0] sm:$0xff]
                %225 = vst [vmem:[%s199 + $0x60] sm:$0xff] %v224
                %v226 = vld [vmem:[%s198 + $0xc8] sm:$0xff]
                %227 = vst [vmem:[%s199 + $0x68] sm:$0xff] %v226
                %v228 = vld [vmem:[%s198 + $0xe0] sm:$0xff]
                %229 = vst [vmem:[%s199 + $0x70] sm:$0xff] %v228
                %v230 = vld [vmem:[%s198 + $0xe8] sm:$0xff]
                %231 = vst [vmem:[%s199 + $0x78] sm:$0xff] %v230
                %v232 = vld [vmem:[%s198 + $0x100] sm:$0xff]
                %233 = vst [vmem:[%s199 + $0x80] sm:$0xff] %v232
                %v234 = vld [vmem:[%s198 + $0x108] sm:$0xff]
                %235 = vst [vmem:[%s199 + $0x88] sm:$0xff] %v234
                %v236 = vld [vmem:[%s198 + $0x120] sm:$0xff]
                %237 = vst [vmem:[%s199 + $0x90] sm:$0xff] %v236
                %v238 = vld [vmem:[%s198 + $0x128] sm:$0xff]
                %239 = vst [vmem:[%s199 + $0x98] sm:$0xff] %v238
                %v240 = vld [vmem:[%s198 + $0x140] sm:$0xff]
                %241 = vst [vmem:[%s199 + $0xa0] sm:$0xff] %v240
                %v242 = vld [vmem:[%s198 + $0x148] sm:$0xff]
                %243 = vst [vmem:[%s199 + $0xa8] sm:$0xff] %v242
                %v244 = vld [vmem:[%s198 + $0x160] sm:$0xff]
                %245 = vst [vmem:[%s199 + $0xb0] sm:$0xff] %v244
                %v246 = vld [vmem:[%s198 + $0x168] sm:$0xff]
                %247 = vst [vmem:[%s199 + $0xb8] sm:$0xff] %v246
                %v248 = vld [vmem:[%s198 + $0x180] sm:$0xff]
                %249 = vst [vmem:[%s199 + $0xc0] sm:$0xff] %v248
                %v250 = vld [vmem:[%s198 + $0x188] sm:$0xff]
                %251 = vst [vmem:[%s199 + $0xc8] sm:$0xff] %v250
                %v252 = vld [vmem:[%s198 + $0x1a0] sm:$0xff]
                %253 = vst [vmem:[%s199 + $0xd0] sm:$0xff] %v252
                %v254 = vld [vmem:[%s198 + $0x1a8] sm:$0xff]
                %255 = vst [vmem:[%s199 + $0xd8] sm:$0xff] %v254
                %v256 = vld [vmem:[%s198 + $0x1c0] sm:$0xff]
                %257 = vst [vmem:[%s199 + $0xe0] sm:$0xff] %v256
                %v258 = vld [vmem:[%s198 + $0x1c8] sm:$0xff]
                %259 = vst [vmem:[%s199 + $0xe8] sm:$0xff] %v258
                %v260 = vld [vmem:[%s198 + $0x1e0] sm:$0xff]
                %261 = vst [vmem:[%s199 + $0xf0] sm:$0xff] %v260
                %v262 = vld [vmem:[%s198 + $0x1e8] sm:$0xff]
                %263 = vst [vmem:[%s199 + $0xf8] sm:$0xff] %v262
                %v264 = vld [vmem:[%s198 + $0x200] sm:$0xff]
                %265 = vst [vmem:[%s199 + $0x100] sm:$0xff] %v264
                %v266 = vld [vmem:[%s198 + $0x208] sm:$0xff]
                %267 = vst [vmem:[%s199 + $0x108] sm:$0xff] %v266
                %v268 = vld [vmem:[%s198 + $0x220] sm:$0xff]
                %269 = vst [vmem:[%s199 + $0x110] sm:$0xff] %v268
                %v270 = vld [vmem:[%s198 + $0x228] sm:$0xff]
                %271 = vst [vmem:[%s199 + $0x118] sm:$0xff] %v270
                %v272 = vld [vmem:[%s198 + $0x240] sm:$0xff]
                %273 = vst [vmem:[%s199 + $0x120] sm:$0xff] %v272
                %v274 = vld [vmem:[%s198 + $0x248] sm:$0xff]
                %275 = vst [vmem:[%s199 + $0x128] sm:$0xff] %v274
                %v276 = vld [vmem:[%s198 + $0x260] sm:$0xff]
                %277 = vst [vmem:[%s199 + $0x130] sm:$0xff] %v276
                %v278 = vld [vmem:[%s198 + $0x268] sm:$0xff]
                %279 = vst [vmem:[%s199 + $0x138] sm:$0xff] %v278
                %v280 = vld [vmem:[%s198 + $0x280] sm:$0xff]
                %281 = vst [vmem:[%s199 + $0x140] sm:$0xff] %v280
                %v282 = vld [vmem:[%s198 + $0x288] sm:$0xff]
                %283 = vst [vmem:[%s199 + $0x148] sm:$0xff] %v282
                %v284 = vld [vmem:[%s198 + $0x2a0] sm:$0xff]
                %285 = vst [vmem:[%s199 + $0x150] sm:$0xff] %v284
                %v286 = vld [vmem:[%s198 + $0x2a8] sm:$0xff]
                %287 = vst [vmem:[%s199 + $0x158] sm:$0xff] %v286
                %v288 = vld [vmem:[%s198 + $0x2c0] sm:$0xff]
                %289 = vst [vmem:[%s199 + $0x160] sm:$0xff] %v288
                %v290 = vld [vmem:[%s198 + $0x2c8] sm:$0xff]
                %291 = vst [vmem:[%s199 + $0x168] sm:$0xff] %v290
                %v292 = vld [vmem:[%s198 + $0x2e0] sm:$0xff]
                %293 = vst [vmem:[%s199 + $0x170] sm:$0xff] %v292
                %v294 = vld [vmem:[%s198 + $0x2e8] sm:$0xff]
                %295 = vst [vmem:[%s199 + $0x178] sm:$0xff] %v294
                %v296 = vld [vmem:[%s198 + $0x300] sm:$0xff]
                %297 = vst [vmem:[%s199 + $0x180] sm:$0xff] %v296
                %v298 = vld [vmem:[%s198 + $0x308] sm:$0xff]
                %299 = vst [vmem:[%s199 + $0x188] sm:$0xff] %v298
                %v300 = vld [vmem:[%s198 + $0x320] sm:$0xff]
                %301 = vst [vmem:[%s199 + $0x190] sm:$0xff] %v300
                %v302 = vld [vmem:[%s198 + $0x328] sm:$0xff]
                %303 = vst [vmem:[%s199 + $0x198] sm:$0xff] %v302
                %v304 = vld [vmem:[%s198 + $0x340] sm:$0xff]
                %305 = vst [vmem:[%s199 + $0x1a0] sm:$0xff] %v304
                %v306 = vld [vmem:[%s198 + $0x348] sm:$0xff]
                %307 = vst [vmem:[%s199 + $0x1a8] sm:$0xff] %v306
                %v308 = vld [vmem:[%s198 + $0x360] sm:$0xff]
                %309 = vst [vmem:[%s199 + $0x1b0] sm:$0xff] %v308
                %v310 = vld [vmem:[%s198 + $0x368] sm:$0xff]
                %311 = vst [vmem:[%s199 + $0x1b8] sm:$0xff] %v310
                %v312 = vld [vmem:[%s198 + $0x380] sm:$0xff]
                %313 = vst [vmem:[%s199 + $0x1c0] sm:$0xff] %v312
                %v314 = vld [vmem:[%s198 + $0x388] sm:$0xff]
                %315 = vst [vmem:[%s199 + $0x1c8] sm:$0xff] %v314
                %v316 = vld [vmem:[%s198 + $0x3a0] sm:$0xff]
                %317 = vst [vmem:[%s199 + $0x1d0] sm:$0xff] %v316
                %v318 = vld [vmem:[%s198 + $0x3a8] sm:$0xff]
                %319 = vst [vmem:[%s199 + $0x1d8] sm:$0xff] %v318
                %v320 = vld [vmem:[%s198 + $0x3c0] sm:$0xff]
                %321 = vst [vmem:[%s199 + $0x1e0] sm:$0xff] %v320
                %v322 = vld [vmem:[%s198 + $0x3c8] sm:$0xff]
                %323 = vst [vmem:[%s199 + $0x1e8] sm:$0xff] %v322
                %v324 = vld [vmem:[%s198 + $0x3e0] sm:$0xff]
                %325 = vst [vmem:[%s199 + $0x1f0] sm:$0xff] %v324
                %v326 = vld [vmem:[%s198 + $0x3e8] sm:$0xff]
                %327 = vst [vmem:[%s199 + $0x1f8] sm:$0xff] %v326
                %v328 = vld [vmem:[%s198 + $0x400] sm:$0xff]
                %329 = vst [vmem:[%s199 + $0x200] sm:$0xff] %v328
                %v330 = vld [vmem:[%s198 + $0x408] sm:$0xff]
                %331 = vst [vmem:[%s199 + $0x208] sm:$0xff] %v330
                %v332 = vld [vmem:[%s198 + $0x420] sm:$0xff]
                %333 = vst [vmem:[%s199 + $0x210] sm:$0xff] %v332
                %v334 = vld [vmem:[%s198 + $0x428] sm:$0xff]
                %335 = vst [vmem:[%s199 + $0x218] sm:$0xff] %v334
                %v336 = vld [vmem:[%s198 + $0x440] sm:$0xff]
                %337 = vst [vmem:[%s199 + $0x220] sm:$0xff] %v336
                %v338 = vld [vmem:[%s198 + $0x448] sm:$0xff]
                %339 = vst [vmem:[%s199 + $0x228] sm:$0xff] %v338
                %v340 = vld [vmem:[%s198 + $0x460] sm:$0xff]
                %341 = vst [vmem:[%s199 + $0x230] sm:$0xff] %v340
                %v342 = vld [vmem:[%s198 + $0x468] sm:$0xff]
                %343 = vst [vmem:[%s199 + $0x238] sm:$0xff] %v342
                %v344 = vld [vmem:[%s198 + $0x480] sm:$0xff]
                %345 = vst [vmem:[%s199 + $0x240] sm:$0xff] %v344
                %v346 = vld [vmem:[%s198 + $0x488] sm:$0xff]
                %347 = vst [vmem:[%s199 + $0x248] sm:$0xff] %v346
                %v348 = vld [vmem:[%s198 + $0x4a0] sm:$0xff]
                %349 = vst [vmem:[%s199 + $0x250] sm:$0xff] %v348
                %v350 = vld [vmem:[%s198 + $0x4a8] sm:$0xff]
                %351 = vst [vmem:[%s199 + $0x258] sm:$0xff] %v350
                %v352 = vld [vmem:[%s198 + $0x4c0] sm:$0xff]
                %353 = vst [vmem:[%s199 + $0x260] sm:$0xff] %v352
                %v354 = vld [vmem:[%s198 + $0x4c8] sm:$0xff]
                %355 = vst [vmem:[%s199 + $0x268] sm:$0xff] %v354
                %v356 = vld [vmem:[%s198 + $0x4e0] sm:$0xff]
                %357 = vst [vmem:[%s199 + $0x270] sm:$0xff] %v356
                %v358 = vld [vmem:[%s198 + $0x4e8] sm:$0xff]
                %359 = vst [vmem:[%s199 + $0x278] sm:$0xff] %v358
                %v360 = vld [vmem:[%s198 + $0x500] sm:$0xff]
                %361 = vst [vmem:[%s199 + $0x280] sm:$0xff] %v360
                %v362 = vld [vmem:[%s198 + $0x508] sm:$0xff]
                %363 = vst [vmem:[%s199 + $0x288] sm:$0xff] %v362
                %v364 = vld [vmem:[%s198 + $0x520] sm:$0xff]
                %365 = vst [vmem:[%s199 + $0x290] sm:$0xff] %v364
                %v366 = vld [vmem:[%s198 + $0x528] sm:$0xff]
                %367 = vst [vmem:[%s199 + $0x298] sm:$0xff] %v366
                %v368 = vld [vmem:[%s198 + $0x540] sm:$0xff]
                %369 = vst [vmem:[%s199 + $0x2a0] sm:$0xff] %v368
                %v370 = vld [vmem:[%s198 + $0x548] sm:$0xff]
                %371 = vst [vmem:[%s199 + $0x2a8] sm:$0xff] %v370
                %v372 = vld [vmem:[%s198 + $0x560] sm:$0xff]
                %373 = vst [vmem:[%s199 + $0x2b0] sm:$0xff] %v372
                %v374 = vld [vmem:[%s198 + $0x568] sm:$0xff]
                %375 = vst [vmem:[%s199 + $0x2b8] sm:$0xff] %v374
                %v376 = vld [vmem:[%s198 + $0x580] sm:$0xff]
                %377 = vst [vmem:[%s199 + $0x2c0] sm:$0xff] %v376
                %v378 = vld [vmem:[%s198 + $0x588] sm:$0xff]
                %379 = vst [vmem:[%s199 + $0x2c8] sm:$0xff] %v378
                %v380 = vld [vmem:[%s198 + $0x5a0] sm:$0xff]
                %381 = vst [vmem:[%s199 + $0x2d0] sm:$0xff] %v380
                %v382 = vld [vmem:[%s198 + $0x5a8] sm:$0xff]
                %383 = vst [vmem:[%s199 + $0x2d8] sm:$0xff] %v382
                %v384 = vld [vmem:[%s198 + $0x5c0] sm:$0xff]
                %385 = vst [vmem:[%s199 + $0x2e0] sm:$0xff] %v384
                %v386 = vld [vmem:[%s198 + $0x5c8] sm:$0xff]
                %387 = vst [vmem:[%s199 + $0x2e8] sm:$0xff] %v386
                %v388 = vld [vmem:[%s198 + $0x5e0] sm:$0xff]
                %389 = vst [vmem:[%s199 + $0x2f0] sm:$0xff] %v388
                %v390 = vld [vmem:[%s198 + $0x5e8] sm:$0xff]
                %391 = vst [vmem:[%s199 + $0x2f8] sm:$0xff] %v390
                %v392 = vld [vmem:[%s198 + $0x600] sm:$0xff]
                %393 = vst [vmem:[%s199 + $0x300] sm:$0xff] %v392
                %v394 = vld [vmem:[%s198 + $0x608] sm:$0xff]
                %395 = vst [vmem:[%s199 + $0x308] sm:$0xff] %v394
                %v396 = vld [vmem:[%s198 + $0x620] sm:$0xff]
                %397 = vst [vmem:[%s199 + $0x310] sm:$0xff] %v396
                %v398 = vld [vmem:[%s198 + $0x628] sm:$0xff]
                %399 = vst [vmem:[%s199 + $0x318] sm:$0xff] %v398
                %v400 = vld [vmem:[%s198 + $0x640] sm:$0xff]
                %401 = vst [vmem:[%s199 + $0x320] sm:$0xff] %v400
                %v402 = vld [vmem:[%s198 + $0x648] sm:$0xff]
                %403 = vst [vmem:[%s199 + $0x328] sm:$0xff] %v402
                %v404 = vld [vmem:[%s198 + $0x660] sm:$0xff]
                %405 = vst [vmem:[%s199 + $0x330] sm:$0xff] %v404
                %v406 = vld [vmem:[%s198 + $0x668] sm:$0xff]
                %407 = vst [vmem:[%s199 + $0x338] sm:$0xff] %v406
                %v408 = vld [vmem:[%s198 + $0x680] sm:$0xff]
                %409 = vst [vmem:[%s199 + $0x340] sm:$0xff] %v408
                %v410 = vld [vmem:[%s198 + $0x688] sm:$0xff]
                %411 = vst [vmem:[%s199 + $0x348] sm:$0xff] %v410
                %v412 = vld [vmem:[%s198 + $0x6a0] sm:$0xff]
                %413 = vst [vmem:[%s199 + $0x350] sm:$0xff] %v412
                %v414 = vld [vmem:[%s198 + $0x6a8] sm:$0xff]
                %415 = vst [vmem:[%s199 + $0x358] sm:$0xff] %v414
                %v416 = vld [vmem:[%s198 + $0x6c0] sm:$0xff]
                %417 = vst [vmem:[%s199 + $0x360] sm:$0xff] %v416
                %v418 = vld [vmem:[%s198 + $0x6c8] sm:$0xff]
                %419 = vst [vmem:[%s199 + $0x368] sm:$0xff] %v418
                %v420 = vld [vmem:[%s198 + $0x6e0] sm:$0xff]
                %421 = vst [vmem:[%s199 + $0x370] sm:$0xff] %v420
                %v422 = vld [vmem:[%s198 + $0x6e8] sm:$0xff]
                %423 = vst [vmem:[%s199 + $0x378] sm:$0xff] %v422
                %v424 = vld [vmem:[%s198 + $0x700] sm:$0xff]
                %425 = vst [vmem:[%s199 + $0x380] sm:$0xff] %v424
                %v426 = vld [vmem:[%s198 + $0x708] sm:$0xff]
                %427 = vst [vmem:[%s199 + $0x388] sm:$0xff] %v426
                %v428 = vld [vmem:[%s198 + $0x720] sm:$0xff]
                %429 = vst [vmem:[%s199 + $0x390] sm:$0xff] %v428
                %v430 = vld [vmem:[%s198 + $0x728] sm:$0xff]
                %431 = vst [vmem:[%s199 + $0x398] sm:$0xff] %v430
                %v432 = vld [vmem:[%s198 + $0x740] sm:$0xff]
                %433 = vst [vmem:[%s199 + $0x3a0] sm:$0xff] %v432
                %v434 = vld [vmem:[%s198 + $0x748] sm:$0xff]
                %435 = vst [vmem:[%s199 + $0x3a8] sm:$0xff] %v434
                %v436 = vld [vmem:[%s198 + $0x760] sm:$0xff]
                %437 = vst [vmem:[%s199 + $0x3b0] sm:$0xff] %v436
                %v438 = vld [vmem:[%s198 + $0x768] sm:$0xff]
                %439 = vst [vmem:[%s199 + $0x3b8] sm:$0xff] %v438
                %v440 = vld [vmem:[%s198 + $0x780] sm:$0xff]
                %441 = vst [vmem:[%s199 + $0x3c0] sm:$0xff] %v440
                %v442 = vld [vmem:[%s198 + $0x788] sm:$0xff]
                %443 = vst [vmem:[%s199 + $0x3c8] sm:$0xff] %v442
                %v444 = vld [vmem:[%s198 + $0x7a0] sm:$0xff]
                %445 = vst [vmem:[%s199 + $0x3d0] sm:$0xff] %v444
                %v446 = vld [vmem:[%s198 + $0x7a8] sm:$0xff]
                %447 = vst [vmem:[%s199 + $0x3d8] sm:$0xff] %v446
                %v448 = vld [vmem:[%s198 + $0x7c0] sm:$0xff]
                %449 = vst [vmem:[%s199 + $0x3e0] sm:$0xff] %v448
                %v450 = vld [vmem:[%s198 + $0x7c8] sm:$0xff]
                %451 = vst [vmem:[%s199 + $0x3e8] sm:$0xff] %v450
                %v452 = vld [vmem:[%s198 + $0x7e0] sm:$0xff]
                %453 = vst [vmem:[%s199 + $0x3f0] sm:$0xff] %v452
                %v454 = vld [vmem:[%s198 + $0x7e8] sm:$0xff]
                %455 = vst [vmem:[%s199 + $0x3f8] sm:$0xff] %v454
                %v456 = vld [vmem:[%s198 + $0x800] sm:$0xff]
                %457 = vst [vmem:[%s199 + $0x400] sm:$0xff] %v456
                %v458 = vld [vmem:[%s198 + $0x808] sm:$0xff]
                %459 = vst [vmem:[%s199 + $0x408] sm:$0xff] %v458
                %v460 = vld [vmem:[%s198 + $0x820] sm:$0xff]
                %461 = vst [vmem:[%s199 + $0x410] sm:$0xff] %v460
                %v462 = vld [vmem:[%s198 + $0x828] sm:$0xff]
                %463 = vst [vmem:[%s199 + $0x418] sm:$0xff] %v462
                %v464 = vld [vmem:[%s198 + $0x840] sm:$0xff]
                %465 = vst [vmem:[%s199 + $0x420] sm:$0xff] %v464
                %v466 = vld [vmem:[%s198 + $0x848] sm:$0xff]
                %467 = vst [vmem:[%s199 + $0x428] sm:$0xff] %v466
                %v468 = vld [vmem:[%s198 + $0x860] sm:$0xff]
                %469 = vst [vmem:[%s199 + $0x430] sm:$0xff] %v468
                %v470 = vld [vmem:[%s198 + $0x868] sm:$0xff]
                %471 = vst [vmem:[%s199 + $0x438] sm:$0xff] %v470
                %v472 = vld [vmem:[%s198 + $0x880] sm:$0xff]
                %473 = vst [vmem:[%s199 + $0x440] sm:$0xff] %v472
                %v474 = vld [vmem:[%s198 + $0x888] sm:$0xff]
                %475 = vst [vmem:[%s199 + $0x448] sm:$0xff] %v474
                %v476 = vld [vmem:[%s198 + $0x8a0] sm:$0xff]
                %477 = vst [vmem:[%s199 + $0x450] sm:$0xff] %v476
                %v478 = vld [vmem:[%s198 + $0x8a8] sm:$0xff]
                %479 = vst [vmem:[%s199 + $0x458] sm:$0xff] %v478
                %v480 = vld [vmem:[%s198 + $0x8c0] sm:$0xff]
                %481 = vst [vmem:[%s199 + $0x460] sm:$0xff] %v480
                %v482 = vld [vmem:[%s198 + $0x8c8] sm:$0xff]
                %483 = vst [vmem:[%s199 + $0x468] sm:$0xff] %v482
                %v484 = vld [vmem:[%s198 + $0x8e0] sm:$0xff]
                %485 = vst [vmem:[%s199 + $0x470] sm:$0xff] %v484
                %v486 = vld [vmem:[%s198 + $0x8e8] sm:$0xff]
                %487 = vst [vmem:[%s199 + $0x478] sm:$0xff] %v486
                %v488 = vld [vmem:[%s198 + $0x900] sm:$0xff]
                %489 = vst [vmem:[%s199 + $0x480] sm:$0xff] %v488
                %v490 = vld [vmem:[%s198 + $0x908] sm:$0xff]
                %491 = vst [vmem:[%s199 + $0x488] sm:$0xff] %v490
                %v492 = vld [vmem:[%s198 + $0x920] sm:$0xff]
                %493 = vst [vmem:[%s199 + $0x490] sm:$0xff] %v492
                %v494 = vld [vmem:[%s198 + $0x928] sm:$0xff]
                %495 = vst [vmem:[%s199 + $0x498] sm:$0xff] %v494
                %v496 = vld [vmem:[%s198 + $0x940] sm:$0xff]
                %497 = vst [vmem:[%s199 + $0x4a0] sm:$0xff] %v496
                %v498 = vld [vmem:[%s198 + $0x948] sm:$0xff]
                %499 = vst [vmem:[%s199 + $0x4a8] sm:$0xff] %v498
                %v500 = vld [vmem:[%s198 + $0x960] sm:$0xff]
                %501 = vst [vmem:[%s199 + $0x4b0] sm:$0xff] %v500
                %v502 = vld [vmem:[%s198 + $0x968] sm:$0xff]
                %503 = vst [vmem:[%s199 + $0x4b8] sm:$0xff] %v502
                %v504 = vld [vmem:[%s198 + $0x980] sm:$0xff]
                %505 = vst [vmem:[%s199 + $0x4c0] sm:$0xff] %v504
                %v506 = vld [vmem:[%s198 + $0x988] sm:$0xff]
                %507 = vst [vmem:[%s199 + $0x4c8] sm:$0xff] %v506
                %v508 = vld [vmem:[%s198 + $0x9a0] sm:$0xff]
                %509 = vst [vmem:[%s199 + $0x4d0] sm:$0xff] %v508
                %v510 = vld [vmem:[%s198 + $0x9a8] sm:$0xff]
                %511 = vst [vmem:[%s199 + $0x4d8] sm:$0xff] %v510
                %v512 = vld [vmem:[%s198 + $0x9c0] sm:$0xff]
                %513 = vst [vmem:[%s199 + $0x4e0] sm:$0xff] %v512
                %v514 = vld [vmem:[%s198 + $0x9c8] sm:$0xff]
                %515 = vst [vmem:[%s199 + $0x4e8] sm:$0xff] %v514
                %v516 = vld [vmem:[%s198 + $0x9e0] sm:$0xff]
                %517 = vst [vmem:[%s199 + $0x4f0] sm:$0xff] %v516
                %v518 = vld [vmem:[%s198 + $0x9e8] sm:$0xff]
                %519 = vst [vmem:[%s199 + $0x4f8] sm:$0xff] %v518
                %v520 = vld [vmem:[%s198 + $0xa00] sm:$0xff]
                %521 = vst [vmem:[%s199 + $0x500] sm:$0xff] %v520
                %v522 = vld [vmem:[%s198 + $0xa08] sm:$0xff]
                %523 = vst [vmem:[%s199 + $0x508] sm:$0xff] %v522
                %v524 = vld [vmem:[%s198 + $0xa20] sm:$0xff]
                %525 = vst [vmem:[%s199 + $0x510] sm:$0xff] %v524
                %v526 = vld [vmem:[%s198 + $0xa28] sm:$0xff]
                %527 = vst [vmem:[%s199 + $0x518] sm:$0xff] %v526
                %v528 = vld [vmem:[%s198 + $0xa40] sm:$0xff]
                %529 = vst [vmem:[%s199 + $0x520] sm:$0xff] %v528
                %v530 = vld [vmem:[%s198 + $0xa48] sm:$0xff]
                %531 = vst [vmem:[%s199 + $0x528] sm:$0xff] %v530
                %v532 = vld [vmem:[%s198 + $0xa60] sm:$0xff]
                %533 = vst [vmem:[%s199 + $0x530] sm:$0xff] %v532
                %v534 = vld [vmem:[%s198 + $0xa68] sm:$0xff]
                %535 = vst [vmem:[%s199 + $0x538] sm:$0xff] %v534
                %v536 = vld [vmem:[%s198 + $0xa80] sm:$0xff]
                %537 = vst [vmem:[%s199 + $0x540] sm:$0xff] %v536
                %v538 = vld [vmem:[%s198 + $0xa88] sm:$0xff]
                %539 = vst [vmem:[%s199 + $0x548] sm:$0xff] %v538
                %v540 = vld [vmem:[%s198 + $0xaa0] sm:$0xff]
                %541 = vst [vmem:[%s199 + $0x550] sm:$0xff] %v540
                %v542 = vld [vmem:[%s198 + $0xaa8] sm:$0xff]
                %543 = vst [vmem:[%s199 + $0x558] sm:$0xff] %v542
                %v544 = vld [vmem:[%s198 + $0xac0] sm:$0xff]
                %545 = vst [vmem:[%s199 + $0x560] sm:$0xff] %v544
                %v546 = vld [vmem:[%s198 + $0xac8] sm:$0xff]
                %547 = vst [vmem:[%s199 + $0x568] sm:$0xff] %v546
                %v548 = vld [vmem:[%s198 + $0xae0] sm:$0xff]
                %549 = vst [vmem:[%s199 + $0x570] sm:$0xff] %v548
                %v550 = vld [vmem:[%s198 + $0xae8] sm:$0xff]
                %551 = vst [vmem:[%s199 + $0x578] sm:$0xff] %v550
                %v552 = vld [vmem:[%s198 + $0xb00] sm:$0xff]
                %553 = vst [vmem:[%s199 + $0x580] sm:$0xff] %v552
                %v554 = vld [vmem:[%s198 + $0xb08] sm:$0xff]
                %555 = vst [vmem:[%s199 + $0x588] sm:$0xff] %v554
                %v556 = vld [vmem:[%s198 + $0xb20] sm:$0xff]
                %557 = vst [vmem:[%s199 + $0x590] sm:$0xff] %v556
                %v558 = vld [vmem:[%s198 + $0xb28] sm:$0xff]
                %559 = vst [vmem:[%s199 + $0x598] sm:$0xff] %v558
                %v560 = vld [vmem:[%s198 + $0xb40] sm:$0xff]
                %561 = vst [vmem:[%s199 + $0x5a0] sm:$0xff] %v560
                %v562 = vld [vmem:[%s198 + $0xb48] sm:$0xff]
                %563 = vst [vmem:[%s199 + $0x5a8] sm:$0xff] %v562
                %v564 = vld [vmem:[%s198 + $0xb60] sm:$0xff]
                %565 = vst [vmem:[%s199 + $0x5b0] sm:$0xff] %v564
                %v566 = vld [vmem:[%s198 + $0xb68] sm:$0xff]
                %567 = vst [vmem:[%s199 + $0x5b8] sm:$0xff] %v566
                %v568 = vld [vmem:[%s198 + $0xb80] sm:$0xff]
                %569 = vst [vmem:[%s199 + $0x5c0] sm:$0xff] %v568
                %v570 = vld [vmem:[%s198 + $0xb88] sm:$0xff]
                %571 = vst [vmem:[%s199 + $0x5c8] sm:$0xff] %v570
                %v572 = vld [vmem:[%s198 + $0xba0] sm:$0xff]
                %573 = vst [vmem:[%s199 + $0x5d0] sm:$0xff] %v572
                %v574 = vld [vmem:[%s198 + $0xba8] sm:$0xff]
                %575 = vst [vmem:[%s199 + $0x5d8] sm:$0xff] %v574
                %v576 = vld [vmem:[%s198 + $0xbc0] sm:$0xff]
                %577 = vst [vmem:[%s199 + $0x5e0] sm:$0xff] %v576
                %v578 = vld [vmem:[%s198 + $0xbc8] sm:$0xff]
                %579 = vst [vmem:[%s199 + $0x5e8] sm:$0xff] %v578
                %v580 = vld [vmem:[%s198 + $0xbe0] sm:$0xff]
                %581 = vst [vmem:[%s199 + $0x5f0] sm:$0xff] %v580
                %v582 = vld [vmem:[%s198 + $0xbe8] sm:$0xff]
                %583 = vst [vmem:[%s199 + $0x5f8] sm:$0xff] %v582
                %v584 = vld [vmem:[%s198 + $0xc00] sm:$0xff]
                %585 = vst [vmem:[%s199 + $0x600] sm:$0xff] %v584
                %v586 = vld [vmem:[%s198 + $0xc08] sm:$0xff]
                %587 = vst [vmem:[%s199 + $0x608] sm:$0xff] %v586
                %v588 = vld [vmem:[%s198 + $0xc20] sm:$0xff]
                %589 = vst [vmem:[%s199 + $0x610] sm:$0xff] %v588
                %v590 = vld [vmem:[%s198 + $0xc28] sm:$0xff]
                %591 = vst [vmem:[%s199 + $0x618] sm:$0xff] %v590
                %v592 = vld [vmem:[%s198 + $0xc40] sm:$0xff]
                %593 = vst [vmem:[%s199 + $0x620] sm:$0xff] %v592
                %v594 = vld [vmem:[%s198 + $0xc48] sm:$0xff]
                %595 = vst [vmem:[%s199 + $0x628] sm:$0xff] %v594
                %v596 = vld [vmem:[%s198 + $0xc60] sm:$0xff]
                %597 = vst [vmem:[%s199 + $0x630] sm:$0xff] %v596
                %v598 = vld [vmem:[%s198 + $0xc68] sm:$0xff]
                %599 = vst [vmem:[%s199 + $0x638] sm:$0xff] %v598
                %v600 = vld [vmem:[%s198 + $0xc80] sm:$0xff]
                %601 = vst [vmem:[%s199 + $0x640] sm:$0xff] %v600
                %v602 = vld [vmem:[%s198 + $0xc88] sm:$0xff]
                %603 = vst [vmem:[%s199 + $0x648] sm:$0xff] %v602
                %v604 = vld [vmem:[%s198 + $0xca0] sm:$0xff]
                %605 = vst [vmem:[%s199 + $0x650] sm:$0xff] %v604
                %v606 = vld [vmem:[%s198 + $0xca8] sm:$0xff]
                %607 = vst [vmem:[%s199 + $0x658] sm:$0xff] %v606
                %v608 = vld [vmem:[%s198 + $0xcc0] sm:$0xff]
                %609 = vst [vmem:[%s199 + $0x660] sm:$0xff] %v608
                %v610 = vld [vmem:[%s198 + $0xcc8] sm:$0xff]
                %611 = vst [vmem:[%s199 + $0x668] sm:$0xff] %v610
                %v612 = vld [vmem:[%s198 + $0xce0] sm:$0xff]
                %613 = vst [vmem:[%s199 + $0x670] sm:$0xff] %v612
                %v614 = vld [vmem:[%s198 + $0xce8] sm:$0xff]
                %615 = vst [vmem:[%s199 + $0x678] sm:$0xff] %v614
                %v616 = vld [vmem:[%s198 + $0xd00] sm:$0xff]
                %617 = vst [vmem:[%s199 + $0x680] sm:$0xff] %v616
                %v618 = vld [vmem:[%s198 + $0xd08] sm:$0xff]
                %619 = vst [vmem:[%s199 + $0x688] sm:$0xff] %v618
                %v620 = vld [vmem:[%s198 + $0xd20] sm:$0xff]
                %621 = vst [vmem:[%s199 + $0x690] sm:$0xff] %v620
                %v622 = vld [vmem:[%s198 + $0xd28] sm:$0xff]
                %623 = vst [vmem:[%s199 + $0x698] sm:$0xff] %v622
                %v624 = vld [vmem:[%s198 + $0xd40] sm:$0xff]
                %625 = vst [vmem:[%s199 + $0x6a0] sm:$0xff] %v624
                %v626 = vld [vmem:[%s198 + $0xd48] sm:$0xff]
                %627 = vst [vmem:[%s199 + $0x6a8] sm:$0xff] %v626
                %v628 = vld [vmem:[%s198 + $0xd60] sm:$0xff]
                %629 = vst [vmem:[%s199 + $0x6b0] sm:$0xff] %v628
                %v630 = vld [vmem:[%s198 + $0xd68] sm:$0xff]
                %631 = vst [vmem:[%s199 + $0x6b8] sm:$0xff] %v630
                %v632 = vld [vmem:[%s198 + $0xd80] sm:$0xff]
                %633 = vst [vmem:[%s199 + $0x6c0] sm:$0xff] %v632
                %v634 = vld [vmem:[%s198 + $0xd88] sm:$0xff]
                %635 = vst [vmem:[%s199 + $0x6c8] sm:$0xff] %v634
                %v636 = vld [vmem:[%s198 + $0xda0] sm:$0xff]
                %637 = vst [vmem:[%s199 + $0x6d0] sm:$0xff] %v636
                %v638 = vld [vmem:[%s198 + $0xda8] sm:$0xff]
                %639 = vst [vmem:[%s199 + $0x6d8] sm:$0xff] %v638
                %v640 = vld [vmem:[%s198 + $0xdc0] sm:$0xff]
                %641 = vst [vmem:[%s199 + $0x6e0] sm:$0xff] %v640
                %v642 = vld [vmem:[%s198 + $0xdc8] sm:$0xff]
                %643 = vst [vmem:[%s199 + $0x6e8] sm:$0xff] %v642
                %v644 = vld [vmem:[%s198 + $0xde0] sm:$0xff]
                %645 = vst [vmem:[%s199 + $0x6f0] sm:$0xff] %v644
                %v646 = vld [vmem:[%s198 + $0xde8] sm:$0xff]
                %647 = vst [vmem:[%s199 + $0x6f8] sm:$0xff] %v646
                %v648 = vld [vmem:[%s198 + $0xe00] sm:$0xff]
                %649 = vst [vmem:[%s199 + $0x700] sm:$0xff] %v648
                %v650 = vld [vmem:[%s198 + $0xe08] sm:$0xff]
                %651 = vst [vmem:[%s199 + $0x708] sm:$0xff] %v650
                %v652 = vld [vmem:[%s198 + $0xe20] sm:$0xff]
                %653 = vst [vmem:[%s199 + $0x710] sm:$0xff] %v652
                %v654 = vld [vmem:[%s198 + $0xe28] sm:$0xff]
                %655 = vst [vmem:[%s199 + $0x718] sm:$0xff] %v654
                %v656 = vld [vmem:[%s198 + $0xe40] sm:$0xff]
                %657 = vst [vmem:[%s199 + $0x720] sm:$0xff] %v656
                %v658 = vld [vmem:[%s198 + $0xe48] sm:$0xff]
                %659 = vst [vmem:[%s199 + $0x728] sm:$0xff] %v658
                %v660 = vld [vmem:[%s198 + $0xe60] sm:$0xff]
                %661 = vst [vmem:[%s199 + $0x730] sm:$0xff] %v660
                %v662 = vld [vmem:[%s198 + $0xe68] sm:$0xff]
                %663 = vst [vmem:[%s199 + $0x738] sm:$0xff] %v662
                %v664 = vld [vmem:[%s198 + $0xe80] sm:$0xff]
                %665 = vst [vmem:[%s199 + $0x740] sm:$0xff] %v664
                %v666 = vld [vmem:[%s198 + $0xe88] sm:$0xff]
                %667 = vst [vmem:[%s199 + $0x748] sm:$0xff] %v666
                %v668 = vld [vmem:[%s198 + $0xea0] sm:$0xff]
                %669 = vst [vmem:[%s199 + $0x750] sm:$0xff] %v668
                %v670 = vld [vmem:[%s198 + $0xea8] sm:$0xff]
                %671 = vst [vmem:[%s199 + $0x758] sm:$0xff] %v670
                %v672 = vld [vmem:[%s198 + $0xec0] sm:$0xff]
                %673 = vst [vmem:[%s199 + $0x760] sm:$0xff] %v672
                %v674 = vld [vmem:[%s198 + $0xec8] sm:$0xff]
                %675 = vst [vmem:[%s199 + $0x768] sm:$0xff] %v674
                %v676 = vld [vmem:[%s198 + $0xee0] sm:$0xff]
                %677 = vst [vmem:[%s199 + $0x770] sm:$0xff] %v676
                %v678 = vld [vmem:[%s198 + $0xee8] sm:$0xff]
                %679 = vst [vmem:[%s199 + $0x778] sm:$0xff] %v678
                %v680 = vld [vmem:[%s198 + $0xf00] sm:$0xff]
                %681 = vst [vmem:[%s199 + $0x780] sm:$0xff] %v680
                %v682 = vld [vmem:[%s198 + $0xf08] sm:$0xff]
                %683 = vst [vmem:[%s199 + $0x788] sm:$0xff] %v682
                %v684 = vld [vmem:[%s198 + $0xf20] sm:$0xff]
                %685 = vst [vmem:[%s199 + $0x790] sm:$0xff] %v684
                %v686 = vld [vmem:[%s198 + $0xf28] sm:$0xff]
                %687 = vst [vmem:[%s199 + $0x798] sm:$0xff] %v686
                %v688 = vld [vmem:[%s198 + $0xf40] sm:$0xff]
                %689 = vst [vmem:[%s199 + $0x7a0] sm:$0xff] %v688
                %v690 = vld [vmem:[%s198 + $0xf48] sm:$0xff]
                %691 = vst [vmem:[%s199 + $0x7a8] sm:$0xff] %v690
                %v692 = vld [vmem:[%s198 + $0xf60] sm:$0xff]
                %693 = vst [vmem:[%s199 + $0x7b0] sm:$0xff] %v692
                %v694 = vld [vmem:[%s198 + $0xf68] sm:$0xff]
                %695 = vst [vmem:[%s199 + $0x7b8] sm:$0xff] %v694
                %v696 = vld [vmem:[%s198 + $0xf80] sm:$0xff]
                %697 = vst [vmem:[%s199 + $0x7c0] sm:$0xff] %v696
                %v698 = vld [vmem:[%s198 + $0xf88] sm:$0xff]
                %699 = vst [vmem:[%s199 + $0x7c8] sm:$0xff] %v698
                %v700 = vld [vmem:[%s198 + $0xfa0] sm:$0xff]
                %701 = vst [vmem:[%s199 + $0x7d0] sm:$0xff] %v700
                %v702 = vld [vmem:[%s198 + $0xfa8] sm:$0xff]
                %703 = vst [vmem:[%s199 + $0x7d8] sm:$0xff] %v702
                %v704 = vld [vmem:[%s198 + $0xfc0] sm:$0xff]
                %705 = vst [vmem:[%s199 + $0x7e0] sm:$0xff] %v704
                %v706 = vld [vmem:[%s198 + $0xfc8] sm:$0xff]
                %707 = vst [vmem:[%s199 + $0x7e8] sm:$0xff] %v706
                %v708 = vld [vmem:[%s198 + $0xfe0] sm:$0xff]
                %709 = vst [vmem:[%s199 + $0x7f0] sm:$0xff] %v708
                %v710 = vld [vmem:[%s198 + $0xfe8] sm:$0xff]
                %711 = vst [vmem:[%s199 + $0x7f8] sm:$0xff] %v710
                %v712 = vld [vmem:[%s198 + $0x1000] sm:$0xff]
                %713 = vst [vmem:[%s199 + $0x800] sm:$0xff] %v712
                %v714 = vld [vmem:[%s198 + $0x1008] sm:$0xff]
                %715 = vst [vmem:[%s199 + $0x808] sm:$0xff] %v714
                %v716 = vld [vmem:[%s198 + $0x1020] sm:$0xff]
                %717 = vst [vmem:[%s199 + $0x810] sm:$0xff] %v716
                %v718 = vld [vmem:[%s198 + $0x1028] sm:$0xff]
                %719 = vst [vmem:[%s199 + $0x818] sm:$0xff] %v718
                %v720 = vld [vmem:[%s198 + $0x1040] sm:$0xff]
                %721 = vst [vmem:[%s199 + $0x820] sm:$0xff] %v720
                %v722 = vld [vmem:[%s198 + $0x1048] sm:$0xff]
                %723 = vst [vmem:[%s199 + $0x828] sm:$0xff] %v722
                %v724 = vld [vmem:[%s198 + $0x1060] sm:$0xff]
                %725 = vst [vmem:[%s199 + $0x830] sm:$0xff] %v724
                %v726 = vld [vmem:[%s198 + $0x1068] sm:$0xff]
                %727 = vst [vmem:[%s199 + $0x838] sm:$0xff] %v726
                %v728 = vld [vmem:[%s198 + $0x1080] sm:$0xff]
                %729 = vst [vmem:[%s199 + $0x840] sm:$0xff] %v728
                %v730 = vld [vmem:[%s198 + $0x1088] sm:$0xff]
                %731 = vst [vmem:[%s199 + $0x848] sm:$0xff] %v730
                %v732 = vld [vmem:[%s198 + $0x10a0] sm:$0xff]
                %733 = vst [vmem:[%s199 + $0x850] sm:$0xff] %v732
                %v734 = vld [vmem:[%s198 + $0x10a8] sm:$0xff]
                %735 = vst [vmem:[%s199 + $0x858] sm:$0xff] %v734
                %v736 = vld [vmem:[%s198 + $0x10c0] sm:$0xff]
                %737 = vst [vmem:[%s199 + $0x860] sm:$0xff] %v736
                %v738 = vld [vmem:[%s198 + $0x10c8] sm:$0xff]
                %739 = vst [vmem:[%s199 + $0x868] sm:$0xff] %v738
                %v740 = vld [vmem:[%s198 + $0x10e0] sm:$0xff]
                %741 = vst [vmem:[%s199 + $0x870] sm:$0xff] %v740
                %v742 = vld [vmem:[%s198 + $0x10e8] sm:$0xff]
                %743 = vst [vmem:[%s199 + $0x878] sm:$0xff] %v742
                %v744 = vld [vmem:[%s198 + $0x1100] sm:$0xff]
                %745 = vst [vmem:[%s199 + $0x880] sm:$0xff] %v744
                %v746 = vld [vmem:[%s198 + $0x1108] sm:$0xff]
                %747 = vst [vmem:[%s199 + $0x888] sm:$0xff] %v746
                %v748 = vld [vmem:[%s198 + $0x1120] sm:$0xff]
                %749 = vst [vmem:[%s199 + $0x890] sm:$0xff] %v748
                %v750 = vld [vmem:[%s198 + $0x1128] sm:$0xff]
                %751 = vst [vmem:[%s199 + $0x898] sm:$0xff] %v750
                %v752 = vld [vmem:[%s198 + $0x1140] sm:$0xff]
                %753 = vst [vmem:[%s199 + $0x8a0] sm:$0xff] %v752
                %v754 = vld [vmem:[%s198 + $0x1148] sm:$0xff]
                %755 = vst [vmem:[%s199 + $0x8a8] sm:$0xff] %v754
                %v756 = vld [vmem:[%s198 + $0x1160] sm:$0xff]
                %757 = vst [vmem:[%s199 + $0x8b0] sm:$0xff] %v756
                %v758 = vld [vmem:[%s198 + $0x1168] sm:$0xff]
                %759 = vst [vmem:[%s199 + $0x8b8] sm:$0xff] %v758
                %v760 = vld [vmem:[%s198 + $0x1180] sm:$0xff]
                %761 = vst [vmem:[%s199 + $0x8c0] sm:$0xff] %v760
                %v762 = vld [vmem:[%s198 + $0x1188] sm:$0xff]
                %763 = vst [vmem:[%s199 + $0x8c8] sm:$0xff] %v762
                %v764 = vld [vmem:[%s198 + $0x11a0] sm:$0xff]
                %765 = vst [vmem:[%s199 + $0x8d0] sm:$0xff] %v764
                %v766 = vld [vmem:[%s198 + $0x11a8] sm:$0xff]
                %767 = vst [vmem:[%s199 + $0x8d8] sm:$0xff] %v766
                %v768 = vld [vmem:[%s198 + $0x11c0] sm:$0xff]
                %769 = vst [vmem:[%s199 + $0x8e0] sm:$0xff] %v768
                %v770 = vld [vmem:[%s198 + $0x11c8] sm:$0xff]
                %771 = vst [vmem:[%s199 + $0x8e8] sm:$0xff] %v770
                %v772 = vld [vmem:[%s198 + $0x11e0] sm:$0xff]
                %773 = vst [vmem:[%s199 + $0x8f0] sm:$0xff] %v772
                %v774 = vld [vmem:[%s198 + $0x11e8] sm:$0xff]
                %775 = vst [vmem:[%s199 + $0x8f8] sm:$0xff] %v774
                %v776 = vld [vmem:[%s198 + $0x1200] sm:$0xff]
                %777 = vst [vmem:[%s199 + $0x900] sm:$0xff] %v776
                %v778 = vld [vmem:[%s198 + $0x1208] sm:$0xff]
                %779 = vst [vmem:[%s199 + $0x908] sm:$0xff] %v778
                %v780 = vld [vmem:[%s198 + $0x1220] sm:$0xff]
                %781 = vst [vmem:[%s199 + $0x910] sm:$0xff] %v780
                %v782 = vld [vmem:[%s198 + $0x1228] sm:$0xff]
                %783 = vst [vmem:[%s199 + $0x918] sm:$0xff] %v782
                %v784 = vld [vmem:[%s198 + $0x1240] sm:$0xff]
                %785 = vst [vmem:[%s199 + $0x920] sm:$0xff] %v784
                %v786 = vld [vmem:[%s198 + $0x1248] sm:$0xff]
                %787 = vst [vmem:[%s199 + $0x928] sm:$0xff] %v786
                %v788 = vld [vmem:[%s198 + $0x1260] sm:$0xff]
                %789 = vst [vmem:[%s199 + $0x930] sm:$0xff] %v788
                %v790 = vld [vmem:[%s198 + $0x1268] sm:$0xff]
                %791 = vst [vmem:[%s199 + $0x938] sm:$0xff] %v790
                %v792 = vld [vmem:[%s198 + $0x1280] sm:$0xff]
                %793 = vst [vmem:[%s199 + $0x940] sm:$0xff] %v792
                %v794 = vld [vmem:[%s198 + $0x1288] sm:$0xff]
                %795 = vst [vmem:[%s199 + $0x948] sm:$0xff] %v794
                %v796 = vld [vmem:[%s198 + $0x12a0] sm:$0xff]
                %797 = vst [vmem:[%s199 + $0x950] sm:$0xff] %v796
                %v798 = vld [vmem:[%s198 + $0x12a8] sm:$0xff]
                %799 = vst [vmem:[%s199 + $0x958] sm:$0xff] %v798
                %v800 = vld [vmem:[%s198 + $0x12c0] sm:$0xff]
                %801 = vst [vmem:[%s199 + $0x960] sm:$0xff] %v800
                %v802 = vld [vmem:[%s198 + $0x12c8] sm:$0xff]
                %803 = vst [vmem:[%s199 + $0x968] sm:$0xff] %v802
                %v804 = vld [vmem:[%s198 + $0x12e0] sm:$0xff]
                %805 = vst [vmem:[%s199 + $0x970] sm:$0xff] %v804
                %v806 = vld [vmem:[%s198 + $0x12e8] sm:$0xff]
                %807 = vst [vmem:[%s199 + $0x978] sm:$0xff] %v806
                %v808 = vld [vmem:[%s198 + $0x1300] sm:$0xff]
                %809 = vst [vmem:[%s199 + $0x980] sm:$0xff] %v808
                %v810 = vld [vmem:[%s198 + $0x1308] sm:$0xff]
                %811 = vst [vmem:[%s199 + $0x988] sm:$0xff] %v810
                %v812 = vld [vmem:[%s198 + $0x1320] sm:$0xff]
                %813 = vst [vmem:[%s199 + $0x990] sm:$0xff] %v812
                %v814 = vld [vmem:[%s198 + $0x1328] sm:$0xff]
                %815 = vst [vmem:[%s199 + $0x998] sm:$0xff] %v814
                %v816 = vld [vmem:[%s198 + $0x1340] sm:$0xff]
                %817 = vst [vmem:[%s199 + $0x9a0] sm:$0xff] %v816
                %v818 = vld [vmem:[%s198 + $0x1348] sm:$0xff]
                %819 = vst [vmem:[%s199 + $0x9a8] sm:$0xff] %v818
                %v820 = vld [vmem:[%s198 + $0x1360] sm:$0xff]
                %821 = vst [vmem:[%s199 + $0x9b0] sm:$0xff] %v820
                %v822 = vld [vmem:[%s198 + $0x1368] sm:$0xff]
                %823 = vst [vmem:[%s199 + $0x9b8] sm:$0xff] %v822
                %v824 = vld [vmem:[%s198 + $0x1380] sm:$0xff]
                %825 = vst [vmem:[%s199 + $0x9c0] sm:$0xff] %v824
                %v826 = vld [vmem:[%s198 + $0x1388] sm:$0xff]
                %827 = vst [vmem:[%s199 + $0x9c8] sm:$0xff] %v826
                %v828 = vld [vmem:[%s198 + $0x13a0] sm:$0xff]
                %829 = vst [vmem:[%s199 + $0x9d0] sm:$0xff] %v828
                %v830 = vld [vmem:[%s198 + $0x13a8] sm:$0xff]
                %831 = vst [vmem:[%s199 + $0x9d8] sm:$0xff] %v830
                %v832 = vld [vmem:[%s198 + $0x13c0] sm:$0xff]
                %833 = vst [vmem:[%s199 + $0x9e0] sm:$0xff] %v832
                %v834 = vld [vmem:[%s198 + $0x13c8] sm:$0xff]
                %835 = vst [vmem:[%s199 + $0x9e8] sm:$0xff] %v834
                %v836 = vld [vmem:[%s198 + $0x13e0] sm:$0xff]
                %837 = vst [vmem:[%s199 + $0x9f0] sm:$0xff] %v836
                %v838 = vld [vmem:[%s198 + $0x13e8] sm:$0xff]
                %839 = vst [vmem:[%s199 + $0x9f8] sm:$0xff] %v838
                %v840 = vld [vmem:[%s198 + $0x1400] sm:$0xff]
                %841 = vst [vmem:[%s199 + $0xa00] sm:$0xff] %v840
                %v842 = vld [vmem:[%s198 + $0x1408] sm:$0xff]
                %843 = vst [vmem:[%s199 + $0xa08] sm:$0xff] %v842
                %v844 = vld [vmem:[%s198 + $0x1420] sm:$0xff]
                %845 = vst [vmem:[%s199 + $0xa10] sm:$0xff] %v844
                %v846 = vld [vmem:[%s198 + $0x1428] sm:$0xff]
                %847 = vst [vmem:[%s199 + $0xa18] sm:$0xff] %v846
                %v848 = vld [vmem:[%s198 + $0x1440] sm:$0xff]
                %849 = vst [vmem:[%s199 + $0xa20] sm:$0xff] %v848
                %v850 = vld [vmem:[%s198 + $0x1448] sm:$0xff]
                %851 = vst [vmem:[%s199 + $0xa28] sm:$0xff] %v850
                %v852 = vld [vmem:[%s198 + $0x1460] sm:$0xff]
                %853 = vst [vmem:[%s199 + $0xa30] sm:$0xff] %v852
                %v854 = vld [vmem:[%s198 + $0x1468] sm:$0xff]
                %855 = vst [vmem:[%s199 + $0xa38] sm:$0xff] %v854
                %v856 = vld [vmem:[%s198 + $0x1480] sm:$0xff]
                %857 = vst [vmem:[%s199 + $0xa40] sm:$0xff] %v856
                %v858 = vld [vmem:[%s198 + $0x1488] sm:$0xff]
                %859 = vst [vmem:[%s199 + $0xa48] sm:$0xff] %v858
                %v860 = vld [vmem:[%s198 + $0x14a0] sm:$0xff]
                %861 = vst [vmem:[%s199 + $0xa50] sm:$0xff] %v860
                %v862 = vld [vmem:[%s198 + $0x14a8] sm:$0xff]
                %863 = vst [vmem:[%s199 + $0xa58] sm:$0xff] %v862
                %v864 = vld [vmem:[%s198 + $0x14c0] sm:$0xff]
                %865 = vst [vmem:[%s199 + $0xa60] sm:$0xff] %v864
                %v866 = vld [vmem:[%s198 + $0x14c8] sm:$0xff]
                %867 = vst [vmem:[%s199 + $0xa68] sm:$0xff] %v866
                %v868 = vld [vmem:[%s198 + $0x14e0] sm:$0xff]
                %869 = vst [vmem:[%s199 + $0xa70] sm:$0xff] %v868
                %v870 = vld [vmem:[%s198 + $0x14e8] sm:$0xff]
                %871 = vst [vmem:[%s199 + $0xa78] sm:$0xff] %v870
                %v872 = vld [vmem:[%s198 + $0x1500] sm:$0xff]
                %873 = vst [vmem:[%s199 + $0xa80] sm:$0xff] %v872
                %v874 = vld [vmem:[%s198 + $0x1508] sm:$0xff]
                %875 = vst [vmem:[%s199 + $0xa88] sm:$0xff] %v874
                %v876 = vld [vmem:[%s198 + $0x1520] sm:$0xff]
                %877 = vst [vmem:[%s199 + $0xa90] sm:$0xff] %v876
                %v878 = vld [vmem:[%s198 + $0x1528] sm:$0xff]
                %879 = vst [vmem:[%s199 + $0xa98] sm:$0xff] %v878
                %v880 = vld [vmem:[%s198 + $0x1540] sm:$0xff]
                %881 = vst [vmem:[%s199 + $0xaa0] sm:$0xff] %v880
                %v882 = vld [vmem:[%s198 + $0x1548] sm:$0xff]
                %883 = vst [vmem:[%s199 + $0xaa8] sm:$0xff] %v882
                %v884 = vld [vmem:[%s198 + $0x1560] sm:$0xff]
                %885 = vst [vmem:[%s199 + $0xab0] sm:$0xff] %v884
                %v886 = vld [vmem:[%s198 + $0x1568] sm:$0xff]
                %887 = vst [vmem:[%s199 + $0xab8] sm:$0xff] %v886
                %v888 = vld [vmem:[%s198 + $0x1580] sm:$0xff]
                %889 = vst [vmem:[%s199 + $0xac0] sm:$0xff] %v888
                %v890 = vld [vmem:[%s198 + $0x1588] sm:$0xff]
                %891 = vst [vmem:[%s199 + $0xac8] sm:$0xff] %v890
                %v892 = vld [vmem:[%s198 + $0x15a0] sm:$0xff]
                %893 = vst [vmem:[%s199 + $0xad0] sm:$0xff] %v892
                %v894 = vld [vmem:[%s198 + $0x15a8] sm:$0xff]
                %895 = vst [vmem:[%s199 + $0xad8] sm:$0xff] %v894
                %v896 = vld [vmem:[%s198 + $0x15c0] sm:$0xff]
                %897 = vst [vmem:[%s199 + $0xae0] sm:$0xff] %v896
                %v898 = vld [vmem:[%s198 + $0x15c8] sm:$0xff]
                %899 = vst [vmem:[%s199 + $0xae8] sm:$0xff] %v898
                %v900 = vld [vmem:[%s198 + $0x15e0] sm:$0xff]
                %901 = vst [vmem:[%s199 + $0xaf0] sm:$0xff] %v900
                %v902 = vld [vmem:[%s198 + $0x15e8] sm:$0xff]
                %903 = vst [vmem:[%s199 + $0xaf8] sm:$0xff] %v902
                %v904 = vld [vmem:[%s198 + $0x1600] sm:$0xff]
                %905 = vst [vmem:[%s199 + $0xb00] sm:$0xff] %v904
                %v906 = vld [vmem:[%s198 + $0x1608] sm:$0xff]
                %907 = vst [vmem:[%s199 + $0xb08] sm:$0xff] %v906
                %v908 = vld [vmem:[%s198 + $0x1620] sm:$0xff]
                %909 = vst [vmem:[%s199 + $0xb10] sm:$0xff] %v908
                %v910 = vld [vmem:[%s198 + $0x1628] sm:$0xff]
                %911 = vst [vmem:[%s199 + $0xb18] sm:$0xff] %v910
                %v912 = vld [vmem:[%s198 + $0x1640] sm:$0xff]
                %913 = vst [vmem:[%s199 + $0xb20] sm:$0xff] %v912
                %v914 = vld [vmem:[%s198 + $0x1648] sm:$0xff]
                %915 = vst [vmem:[%s199 + $0xb28] sm:$0xff] %v914
                %v916 = vld [vmem:[%s198 + $0x1660] sm:$0xff]
                %917 = vst [vmem:[%s199 + $0xb30] sm:$0xff] %v916
                %v918 = vld [vmem:[%s198 + $0x1668] sm:$0xff]
                %919 = vst [vmem:[%s199 + $0xb38] sm:$0xff] %v918
                %v920 = vld [vmem:[%s198 + $0x1680] sm:$0xff]
                %921 = vst [vmem:[%s199 + $0xb40] sm:$0xff] %v920
                %v922 = vld [vmem:[%s198 + $0x1688] sm:$0xff]
                %923 = vst [vmem:[%s199 + $0xb48] sm:$0xff] %v922
                %v924 = vld [vmem:[%s198 + $0x16a0] sm:$0xff]
                %925 = vst [vmem:[%s199 + $0xb50] sm:$0xff] %v924
                %v926 = vld [vmem:[%s198 + $0x16a8] sm:$0xff]
                %927 = vst [vmem:[%s199 + $0xb58] sm:$0xff] %v926
                %v928 = vld [vmem:[%s198 + $0x16c0] sm:$0xff]
                %929 = vst [vmem:[%s199 + $0xb60] sm:$0xff] %v928
                %v930 = vld [vmem:[%s198 + $0x16c8] sm:$0xff]
                %931 = vst [vmem:[%s199 + $0xb68] sm:$0xff] %v930
                %v932 = vld [vmem:[%s198 + $0x16e0] sm:$0xff]
                %933 = vst [vmem:[%s199 + $0xb70] sm:$0xff] %v932
                %v934 = vld [vmem:[%s198 + $0x16e8] sm:$0xff]
                %935 = vst [vmem:[%s199 + $0xb78] sm:$0xff] %v934
                %v936 = vld [vmem:[%s198 + $0x1700] sm:$0xff]
                %937 = vst [vmem:[%s199 + $0xb80] sm:$0xff] %v936
                %v938 = vld [vmem:[%s198 + $0x1708] sm:$0xff]
                %939 = vst [vmem:[%s199 + $0xb88] sm:$0xff] %v938
                %v940 = vld [vmem:[%s198 + $0x1720] sm:$0xff]
                %941 = vst [vmem:[%s199 + $0xb90] sm:$0xff] %v940
                %v942 = vld [vmem:[%s198 + $0x1728] sm:$0xff]
                %943 = vst [vmem:[%s199 + $0xb98] sm:$0xff] %v942
                %v944 = vld [vmem:[%s198 + $0x1740] sm:$0xff]
                %945 = vst [vmem:[%s199 + $0xba0] sm:$0xff] %v944
                %v946 = vld [vmem:[%s198 + $0x1748] sm:$0xff]
                %947 = vst [vmem:[%s199 + $0xba8] sm:$0xff] %v946
                %v948 = vld [vmem:[%s198 + $0x1760] sm:$0xff]
                %949 = vst [vmem:[%s199 + $0xbb0] sm:$0xff] %v948
                %v950 = vld [vmem:[%s198 + $0x1768] sm:$0xff]
                %951 = vst [vmem:[%s199 + $0xbb8] sm:$0xff] %v950
                %v952 = vld [vmem:[%s198 + $0x1780] sm:$0xff]
                %953 = vst [vmem:[%s199 + $0xbc0] sm:$0xff] %v952
                %v954 = vld [vmem:[%s198 + $0x1788] sm:$0xff]
                %955 = vst [vmem:[%s199 + $0xbc8] sm:$0xff] %v954
                %v956 = vld [vmem:[%s198 + $0x17a0] sm:$0xff]
                %957 = vst [vmem:[%s199 + $0xbd0] sm:$0xff] %v956
                %v958 = vld [vmem:[%s198 + $0x17a8] sm:$0xff]
                %959 = vst [vmem:[%s199 + $0xbd8] sm:$0xff] %v958
                %v960 = vld [vmem:[%s198 + $0x17c0] sm:$0xff]
                %961 = vst [vmem:[%s199 + $0xbe0] sm:$0xff] %v960
                %v962 = vld [vmem:[%s198 + $0x17c8] sm:$0xff]
                %963 = vst [vmem:[%s199 + $0xbe8] sm:$0xff] %v962
                %v964 = vld [vmem:[%s198 + $0x17e0] sm:$0xff]
                %965 = vst [vmem:[%s199 + $0xbf0] sm:$0xff] %v964
                %v966 = vld [vmem:[%s198 + $0x17e8] sm:$0xff]
                %967 = vst [vmem:[%s199 + $0xbf8] sm:$0xff] %v966
                %v968 = vld [vmem:[%s198 + $0x1800] sm:$0xff]
                %969 = vst [vmem:[%s199 + $0xc00] sm:$0xff] %v968
                %v970 = vld [vmem:[%s198 + $0x1808] sm:$0xff]
                %971 = vst [vmem:[%s199 + $0xc08] sm:$0xff] %v970
                %v972 = vld [vmem:[%s198 + $0x1820] sm:$0xff]
                %973 = vst [vmem:[%s199 + $0xc10] sm:$0xff] %v972
                %v974 = vld [vmem:[%s198 + $0x1828] sm:$0xff]
                %975 = vst [vmem:[%s199 + $0xc18] sm:$0xff] %v974
                %v976 = vld [vmem:[%s198 + $0x1840] sm:$0xff]
                %977 = vst [vmem:[%s199 + $0xc20] sm:$0xff] %v976
                %v978 = vld [vmem:[%s198 + $0x1848] sm:$0xff]
                %979 = vst [vmem:[%s199 + $0xc28] sm:$0xff] %v978
                %v980 = vld [vmem:[%s198 + $0x1860] sm:$0xff]
                %981 = vst [vmem:[%s199 + $0xc30] sm:$0xff] %v980
                %v982 = vld [vmem:[%s198 + $0x1868] sm:$0xff]
                %983 = vst [vmem:[%s199 + $0xc38] sm:$0xff] %v982
                %v984 = vld [vmem:[%s198 + $0x1880] sm:$0xff]
                %985 = vst [vmem:[%s199 + $0xc40] sm:$0xff] %v984
                %v986 = vld [vmem:[%s198 + $0x1888] sm:$0xff]
                %987 = vst [vmem:[%s199 + $0xc48] sm:$0xff] %v986
                %v988 = vld [vmem:[%s198 + $0x18a0] sm:$0xff]
                %989 = vst [vmem:[%s199 + $0xc50] sm:$0xff] %v988
                %v990 = vld [vmem:[%s198 + $0x18a8] sm:$0xff]
                %991 = vst [vmem:[%s199 + $0xc58] sm:$0xff] %v990
                %v992 = vld [vmem:[%s198 + $0x18c0] sm:$0xff]
                %993 = vst [vmem:[%s199 + $0xc60] sm:$0xff] %v992
                %v994 = vld [vmem:[%s198 + $0x18c8] sm:$0xff]
                %995 = vst [vmem:[%s199 + $0xc68] sm:$0xff] %v994
                %v996 = vld [vmem:[%s198 + $0x18e0] sm:$0xff]
                %997 = vst [vmem:[%s199 + $0xc70] sm:$0xff] %v996
                %v998 = vld [vmem:[%s198 + $0x18e8] sm:$0xff]
                %999 = vst [vmem:[%s199 + $0xc78] sm:$0xff] %v998
                %v1000 = vld [vmem:[%s198 + $0x1900] sm:$0xff]
                %1001 = vst [vmem:[%s199 + $0xc80] sm:$0xff] %v1000
                %v1002 = vld [vmem:[%s198 + $0x1908] sm:$0xff]
                %1003 = vst [vmem:[%s199 + $0xc88] sm:$0xff] %v1002
                %v1004 = vld [vmem:[%s198 + $0x1920] sm:$0xff]
                %1005 = vst [vmem:[%s199 + $0xc90] sm:$0xff] %v1004
                %v1006 = vld [vmem:[%s198 + $0x1928] sm:$0xff]
                %1007 = vst [vmem:[%s199 + $0xc98] sm:$0xff] %v1006
                %v1008 = vld [vmem:[%s198 + $0x1940] sm:$0xff]
                %1009 = vst [vmem:[%s199 + $0xca0] sm:$0xff] %v1008
                %v1010 = vld [vmem:[%s198 + $0x1948] sm:$0xff]
                %1011 = vst [vmem:[%s199 + $0xca8] sm:$0xff] %v1010
                %v1012 = vld [vmem:[%s198 + $0x1960] sm:$0xff]
                %1013 = vst [vmem:[%s199 + $0xcb0] sm:$0xff] %v1012
                %v1014 = vld [vmem:[%s198 + $0x1968] sm:$0xff]
                %1015 = vst [vmem:[%s199 + $0xcb8] sm:$0xff] %v1014
                %v1016 = vld [vmem:[%s198 + $0x1980] sm:$0xff]
                %1017 = vst [vmem:[%s199 + $0xcc0] sm:$0xff] %v1016
                %v1018 = vld [vmem:[%s198 + $0x1988] sm:$0xff]
                %1019 = vst [vmem:[%s199 + $0xcc8] sm:$0xff] %v1018
                %v1020 = vld [vmem:[%s198 + $0x19a0] sm:$0xff]
                %1021 = vst [vmem:[%s199 + $0xcd0] sm:$0xff] %v1020
                %v1022 = vld [vmem:[%s198 + $0x19a8] sm:$0xff]
                %1023 = vst [vmem:[%s199 + $0xcd8] sm:$0xff] %v1022
                %v1024 = vld [vmem:[%s198 + $0x19c0] sm:$0xff]
                %1025 = vst [vmem:[%s199 + $0xce0] sm:$0xff] %v1024
                %v1026 = vld [vmem:[%s198 + $0x19c8] sm:$0xff]
                %1027 = vst [vmem:[%s199 + $0xce8] sm:$0xff] %v1026
                %v1028 = vld [vmem:[%s198 + $0x19e0] sm:$0xff]
                %1029 = vst [vmem:[%s199 + $0xcf0] sm:$0xff] %v1028
                %v1030 = vld [vmem:[%s198 + $0x19e8] sm:$0xff]
                %1031 = vst [vmem:[%s199 + $0xcf8] sm:$0xff] %v1030
                %v1032 = vld [vmem:[%s198 + $0x1a00] sm:$0xff]
                %1033 = vst [vmem:[%s199 + $0xd00] sm:$0xff] %v1032
                %v1034 = vld [vmem:[%s198 + $0x1a08] sm:$0xff]
                %1035 = vst [vmem:[%s199 + $0xd08] sm:$0xff] %v1034
                %v1036 = vld [vmem:[%s198 + $0x1a20] sm:$0xff]
                %1037 = vst [vmem:[%s199 + $0xd10] sm:$0xff] %v1036
                %v1038 = vld [vmem:[%s198 + $0x1a28] sm:$0xff]
                %1039 = vst [vmem:[%s199 + $0xd18] sm:$0xff] %v1038
                %v1040 = vld [vmem:[%s198 + $0x1a40] sm:$0xff]
                %1041 = vst [vmem:[%s199 + $0xd20] sm:$0xff] %v1040
                %v1042 = vld [vmem:[%s198 + $0x1a48] sm:$0xff]
                %1043 = vst [vmem:[%s199 + $0xd28] sm:$0xff] %v1042
                %v1044 = vld [vmem:[%s198 + $0x1a60] sm:$0xff]
                %1045 = vst [vmem:[%s199 + $0xd30] sm:$0xff] %v1044
                %v1046 = vld [vmem:[%s198 + $0x1a68] sm:$0xff]
                %1047 = vst [vmem:[%s199 + $0xd38] sm:$0xff] %v1046
                %v1048 = vld [vmem:[%s198 + $0x1a80] sm:$0xff]
                %1049 = vst [vmem:[%s199 + $0xd40] sm:$0xff] %v1048
                %v1050 = vld [vmem:[%s198 + $0x1a88] sm:$0xff]
                %1051 = vst [vmem:[%s199 + $0xd48] sm:$0xff] %v1050
                %v1052 = vld [vmem:[%s198 + $0x1aa0] sm:$0xff]
                %1053 = vst [vmem:[%s199 + $0xd50] sm:$0xff] %v1052
                %v1054 = vld [vmem:[%s198 + $0x1aa8] sm:$0xff]
                %1055 = vst [vmem:[%s199 + $0xd58] sm:$0xff] %v1054
                %v1056 = vld [vmem:[%s198 + $0x1ac0] sm:$0xff]
                %1057 = vst [vmem:[%s199 + $0xd60] sm:$0xff] %v1056
                %v1058 = vld [vmem:[%s198 + $0x1ac8] sm:$0xff]
                %1059 = vst [vmem:[%s199 + $0xd68] sm:$0xff] %v1058
                %v1060 = vld [vmem:[%s198 + $0x1ae0] sm:$0xff]
                %1061 = vst [vmem:[%s199 + $0xd70] sm:$0xff] %v1060
                %v1062 = vld [vmem:[%s198 + $0x1ae8] sm:$0xff]
                %1063 = vst [vmem:[%s199 + $0xd78] sm:$0xff] %v1062
                %v1064 = vld [vmem:[%s198 + $0x1b00] sm:$0xff]
                %1065 = vst [vmem:[%s199 + $0xd80] sm:$0xff] %v1064
                %v1066 = vld [vmem:[%s198 + $0x1b08] sm:$0xff]
                %1067 = vst [vmem:[%s199 + $0xd88] sm:$0xff] %v1066
                %v1068 = vld [vmem:[%s198 + $0x1b20] sm:$0xff]
                %1069 = vst [vmem:[%s199 + $0xd90] sm:$0xff] %v1068
                %v1070 = vld [vmem:[%s198 + $0x1b28] sm:$0xff]
                %1071 = vst [vmem:[%s199 + $0xd98] sm:$0xff] %v1070
                %v1072 = vld [vmem:[%s198 + $0x1b40] sm:$0xff]
                %1073 = vst [vmem:[%s199 + $0xda0] sm:$0xff] %v1072
                %v1074 = vld [vmem:[%s198 + $0x1b48] sm:$0xff]
                %1075 = vst [vmem:[%s199 + $0xda8] sm:$0xff] %v1074
                %v1076 = vld [vmem:[%s198 + $0x1b60] sm:$0xff]
                %1077 = vst [vmem:[%s199 + $0xdb0] sm:$0xff] %v1076
                %v1078 = vld [vmem:[%s198 + $0x1b68] sm:$0xff]
                %1079 = vst [vmem:[%s199 + $0xdb8] sm:$0xff] %v1078
                %v1080 = vld [vmem:[%s198 + $0x1b80] sm:$0xff]
                %1081 = vst [vmem:[%s199 + $0xdc0] sm:$0xff] %v1080
                %v1082 = vld [vmem:[%s198 + $0x1b88] sm:$0xff]
                %1083 = vst [vmem:[%s199 + $0xdc8] sm:$0xff] %v1082
                %v1084 = vld [vmem:[%s198 + $0x1ba0] sm:$0xff]
                %1085 = vst [vmem:[%s199 + $0xdd0] sm:$0xff] %v1084
                %v1086 = vld [vmem:[%s198 + $0x1ba8] sm:$0xff]
                %1087 = vst [vmem:[%s199 + $0xdd8] sm:$0xff] %v1086
                %v1088 = vld [vmem:[%s198 + $0x1bc0] sm:$0xff]
                %1089 = vst [vmem:[%s199 + $0xde0] sm:$0xff] %v1088
                %v1090 = vld [vmem:[%s198 + $0x1bc8] sm:$0xff]
                %1091 = vst [vmem:[%s199 + $0xde8] sm:$0xff] %v1090
                %v1092 = vld [vmem:[%s198 + $0x1be0] sm:$0xff]
                %1093 = vst [vmem:[%s199 + $0xdf0] sm:$0xff] %v1092
                %v1094 = vld [vmem:[%s198 + $0x1be8] sm:$0xff]
                %1095 = vst [vmem:[%s199 + $0xdf8] sm:$0xff] %v1094
                %v1096 = vld [vmem:[%s198 + $0x1c00] sm:$0xff]
                %1097 = vst [vmem:[%s199 + $0xe00] sm:$0xff] %v1096
                %v1098 = vld [vmem:[%s198 + $0x1c08] sm:$0xff]
                %1099 = vst [vmem:[%s199 + $0xe08] sm:$0xff] %v1098
                %v1100 = vld [vmem:[%s198 + $0x1c20] sm:$0xff]
                %1101 = vst [vmem:[%s199 + $0xe10] sm:$0xff] %v1100
                %v1102 = vld [vmem:[%s198 + $0x1c28] sm:$0xff]
                %1103 = vst [vmem:[%s199 + $0xe18] sm:$0xff] %v1102
                %v1104 = vld [vmem:[%s198 + $0x1c40] sm:$0xff]
                %1105 = vst [vmem:[%s199 + $0xe20] sm:$0xff] %v1104
                %v1106 = vld [vmem:[%s198 + $0x1c48] sm:$0xff]
                %1107 = vst [vmem:[%s199 + $0xe28] sm:$0xff] %v1106
                %v1108 = vld [vmem:[%s198 + $0x1c60] sm:$0xff]
                %1109 = vst [vmem:[%s199 + $0xe30] sm:$0xff] %v1108
                %v1110 = vld [vmem:[%s198 + $0x1c68] sm:$0xff]
                %1111 = vst [vmem:[%s199 + $0xe38] sm:$0xff] %v1110
                %v1112 = vld [vmem:[%s198 + $0x1c80] sm:$0xff]
                %1113 = vst [vmem:[%s199 + $0xe40] sm:$0xff] %v1112
                %v1114 = vld [vmem:[%s198 + $0x1c88] sm:$0xff]
                %1115 = vst [vmem:[%s199 + $0xe48] sm:$0xff] %v1114
                %v1116 = vld [vmem:[%s198 + $0x1ca0] sm:$0xff]
                %1117 = vst [vmem:[%s199 + $0xe50] sm:$0xff] %v1116
                %v1118 = vld [vmem:[%s198 + $0x1ca8] sm:$0xff]
                %1119 = vst [vmem:[%s199 + $0xe58] sm:$0xff] %v1118
                %v1120 = vld [vmem:[%s198 + $0x1cc0] sm:$0xff]
                %1121 = vst [vmem:[%s199 + $0xe60] sm:$0xff] %v1120
                %v1122 = vld [vmem:[%s198 + $0x1cc8] sm:$0xff]
                %1123 = vst [vmem:[%s199 + $0xe68] sm:$0xff] %v1122
                %v1124 = vld [vmem:[%s198 + $0x1ce0] sm:$0xff]
                %1125 = vst [vmem:[%s199 + $0xe70] sm:$0xff] %v1124
                %v1126 = vld [vmem:[%s198 + $0x1ce8] sm:$0xff]
                %1127 = vst [vmem:[%s199 + $0xe78] sm:$0xff] %v1126
                %v1128 = vld [vmem:[%s198 + $0x1d00] sm:$0xff]
                %1129 = vst [vmem:[%s199 + $0xe80] sm:$0xff] %v1128
                %v1130 = vld [vmem:[%s198 + $0x1d08] sm:$0xff]
                %1131 = vst [vmem:[%s199 + $0xe88] sm:$0xff] %v1130
                %v1132 = vld [vmem:[%s198 + $0x1d20] sm:$0xff]
                %1133 = vst [vmem:[%s199 + $0xe90] sm:$0xff] %v1132
                %v1134 = vld [vmem:[%s198 + $0x1d28] sm:$0xff]
                %1135 = vst [vmem:[%s199 + $0xe98] sm:$0xff] %v1134
                %v1136 = vld [vmem:[%s198 + $0x1d40] sm:$0xff]
                %1137 = vst [vmem:[%s199 + $0xea0] sm:$0xff] %v1136
                %v1138 = vld [vmem:[%s198 + $0x1d48] sm:$0xff]
                %1139 = vst [vmem:[%s199 + $0xea8] sm:$0xff] %v1138
                %v1140 = vld [vmem:[%s198 + $0x1d60] sm:$0xff]
                %1141 = vst [vmem:[%s199 + $0xeb0] sm:$0xff] %v1140
                %v1142 = vld [vmem:[%s198 + $0x1d68] sm:$0xff]
                %1143 = vst [vmem:[%s199 + $0xeb8] sm:$0xff] %v1142
                %v1144 = vld [vmem:[%s198 + $0x1d80] sm:$0xff]
                %1145 = vst [vmem:[%s199 + $0xec0] sm:$0xff] %v1144
                %v1146 = vld [vmem:[%s198 + $0x1d88] sm:$0xff]
                %1147 = vst [vmem:[%s199 + $0xec8] sm:$0xff] %v1146
                %v1148 = vld [vmem:[%s198 + $0x1da0] sm:$0xff]
                %1149 = vst [vmem:[%s199 + $0xed0] sm:$0xff] %v1148
                %v1150 = vld [vmem:[%s198 + $0x1da8] sm:$0xff]
                %1151 = vst [vmem:[%s199 + $0xed8] sm:$0xff] %v1150
                %v1152 = vld [vmem:[%s198 + $0x1dc0] sm:$0xff]
                %1153 = vst [vmem:[%s199 + $0xee0] sm:$0xff] %v1152
                %v1154 = vld [vmem:[%s198 + $0x1dc8] sm:$0xff]
                %1155 = vst [vmem:[%s199 + $0xee8] sm:$0xff] %v1154
                %v1156 = vld [vmem:[%s198 + $0x1de0] sm:$0xff]
                %1157 = vst [vmem:[%s199 + $0xef0] sm:$0xff] %v1156
                %v1158 = vld [vmem:[%s198 + $0x1de8] sm:$0xff]
                %1159 = vst [vmem:[%s199 + $0xef8] sm:$0xff] %v1158
                %v1160 = vld [vmem:[%s198 + $0x1e00] sm:$0xff]
                %1161 = vst [vmem:[%s199 + $0xf00] sm:$0xff] %v1160
                %v1162 = vld [vmem:[%s198 + $0x1e08] sm:$0xff]
                %1163 = vst [vmem:[%s199 + $0xf08] sm:$0xff] %v1162
                %v1164 = vld [vmem:[%s198 + $0x1e20] sm:$0xff]
                %1165 = vst [vmem:[%s199 + $0xf10] sm:$0xff] %v1164
                %v1166 = vld [vmem:[%s198 + $0x1e28] sm:$0xff]
                %1167 = vst [vmem:[%s199 + $0xf18] sm:$0xff] %v1166
                %v1168 = vld [vmem:[%s198 + $0x1e40] sm:$0xff]
                %1169 = vst [vmem:[%s199 + $0xf20] sm:$0xff] %v1168
                %v1170 = vld [vmem:[%s198 + $0x1e48] sm:$0xff]
                %1171 = vst [vmem:[%s199 + $0xf28] sm:$0xff] %v1170
                %v1172 = vld [vmem:[%s198 + $0x1e60] sm:$0xff]
                %1173 = vst [vmem:[%s199 + $0xf30] sm:$0xff] %v1172
                %v1174 = vld [vmem:[%s198 + $0x1e68] sm:$0xff]
                %1175 = vst [vmem:[%s199 + $0xf38] sm:$0xff] %v1174
                %v1176 = vld [vmem:[%s198 + $0x1e80] sm:$0xff]
                %1177 = vst [vmem:[%s199 + $0xf40] sm:$0xff] %v1176
                %v1178 = vld [vmem:[%s198 + $0x1e88] sm:$0xff]
                %1179 = vst [vmem:[%s199 + $0xf48] sm:$0xff] %v1178
                %v1180 = vld [vmem:[%s198 + $0x1ea0] sm:$0xff]
                %1181 = vst [vmem:[%s199 + $0xf50] sm:$0xff] %v1180
                %v1182 = vld [vmem:[%s198 + $0x1ea8] sm:$0xff]
                %1183 = vst [vmem:[%s199 + $0xf58] sm:$0xff] %v1182
                %v1184 = vld [vmem:[%s198 + $0x1ec0] sm:$0xff]
                %1185 = vst [vmem:[%s199 + $0xf60] sm:$0xff] %v1184
                %v1186 = vld [vmem:[%s198 + $0x1ec8] sm:$0xff]
                %1187 = vst [vmem:[%s199 + $0xf68] sm:$0xff] %v1186
                %v1188 = vld [vmem:[%s198 + $0x1ee0] sm:$0xff]
                %1189 = vst [vmem:[%s199 + $0xf70] sm:$0xff] %v1188
                %v1190 = vld [vmem:[%s198 + $0x1ee8] sm:$0xff]
                %1191 = vst [vmem:[%s199 + $0xf78] sm:$0xff] %v1190
                %v1192 = vld [vmem:[%s198 + $0x1f00] sm:$0xff]
                %1193 = vst [vmem:[%s199 + $0xf80] sm:$0xff] %v1192
                %v1194 = vld [vmem:[%s198 + $0x1f08] sm:$0xff]
                %1195 = vst [vmem:[%s199 + $0xf88] sm:$0xff] %v1194
                %v1196 = vld [vmem:[%s198 + $0x1f20] sm:$0xff]
                %1197 = vst [vmem:[%s199 + $0xf90] sm:$0xff] %v1196
                %v1198 = vld [vmem:[%s198 + $0x1f28] sm:$0xff]
                %1199 = vst [vmem:[%s199 + $0xf98] sm:$0xff] %v1198
                %v1200 = vld [vmem:[%s198 + $0x1f40] sm:$0xff]
                %1201 = vst [vmem:[%s199 + $0xfa0] sm:$0xff] %v1200
                %v1202 = vld [vmem:[%s198 + $0x1f48] sm:$0xff]
                %1203 = vst [vmem:[%s199 + $0xfa8] sm:$0xff] %v1202
                %v1204 = vld [vmem:[%s198 + $0x1f60] sm:$0xff]
                %1205 = vst [vmem:[%s199 + $0xfb0] sm:$0xff] %v1204
                %v1206 = vld [vmem:[%s198 + $0x1f68] sm:$0xff]
                %1207 = vst [vmem:[%s199 + $0xfb8] sm:$0xff] %v1206
                %v1208 = vld [vmem:[%s198 + $0x1f80] sm:$0xff]
                %1209 = vst [vmem:[%s199 + $0xfc0] sm:$0xff] %v1208
                %v1210 = vld [vmem:[%s198 + $0x1f88] sm:$0xff]
                %1211 = vst [vmem:[%s199 + $0xfc8] sm:$0xff] %v1210
                %v1212 = vld [vmem:[%s198 + $0x1fa0] sm:$0xff]
                %1213 = vst [vmem:[%s199 + $0xfd0] sm:$0xff] %v1212
                %v1214 = vld [vmem:[%s198 + $0x1fa8] sm:$0xff]
                %1215 = vst [vmem:[%s199 + $0xfd8] sm:$0xff] %v1214
                %v1216 = vld [vmem:[%s198 + $0x1fc0] sm:$0xff]
                %1217 = vst [vmem:[%s199 + $0xfe0] sm:$0xff] %v1216
                %v1218 = vld [vmem:[%s198 + $0x1fc8] sm:$0xff]
                %1219 = vst [vmem:[%s199 + $0xfe8] sm:$0xff] %v1218
                %v1220 = vld [vmem:[%s198 + $0x1fe0] sm:$0xff]
                %1221 = vst [vmem:[%s199 + $0xff0] sm:$0xff] %v1220
                %v1222 = vld [vmem:[%s198 + $0x1fe8] sm:$0xff]
                %1223 = vst [vmem:[%s199 + $0xff8] sm:$0xff] %v1222
                %v1224 = vld [vmem:[%s198 + $0x2000] sm:$0xff]
                %1225 = vst [vmem:[%s199 + $0x1000] sm:$0xff] %v1224
                %v1226 = vld [vmem:[%s198 + $0x2008] sm:$0xff]
                %1227 = vst [vmem:[%s199 + $0x1008] sm:$0xff] %v1226
                %v1228 = vld [vmem:[%s198 + $0x2020] sm:$0xff]
                %1229 = vst [vmem:[%s199 + $0x1010] sm:$0xff] %v1228
                %v1230 = vld [vmem:[%s198 + $0x2028] sm:$0xff]
                %1231 = vst [vmem:[%s199 + $0x1018] sm:$0xff] %v1230
                %v1232 = vld [vmem:[%s198 + $0x2040] sm:$0xff]
                %1233 = vst [vmem:[%s199 + $0x1020] sm:$0xff] %v1232
                %v1234 = vld [vmem:[%s198 + $0x2048] sm:$0xff]
                %1235 = vst [vmem:[%s199 + $0x1028] sm:$0xff] %v1234
                %v1236 = vld [vmem:[%s198 + $0x2060] sm:$0xff]
                %1237 = vst [vmem:[%s199 + $0x1030] sm:$0xff] %v1236
                %v1238 = vld [vmem:[%s198 + $0x2068] sm:$0xff]
                %1239 = vst [vmem:[%s199 + $0x1038] sm:$0xff] %v1238
                %v1240 = vld [vmem:[%s198 + $0x2080] sm:$0xff]
                %1241 = vst [vmem:[%s199 + $0x1040] sm:$0xff] %v1240
                %v1242 = vld [vmem:[%s198 + $0x2088] sm:$0xff]
                %1243 = vst [vmem:[%s199 + $0x1048] sm:$0xff] %v1242
                %v1244 = vld [vmem:[%s198 + $0x20a0] sm:$0xff]
                %1245 = vst [vmem:[%s199 + $0x1050] sm:$0xff] %v1244
                %v1246 = vld [vmem:[%s198 + $0x20a8] sm:$0xff]
                %1247 = vst [vmem:[%s199 + $0x1058] sm:$0xff] %v1246
                %v1248 = vld [vmem:[%s198 + $0x20c0] sm:$0xff]
                %1249 = vst [vmem:[%s199 + $0x1060] sm:$0xff] %v1248
                %v1250 = vld [vmem:[%s198 + $0x20c8] sm:$0xff]
                %1251 = vst [vmem:[%s199 + $0x1068] sm:$0xff] %v1250
                %v1252 = vld [vmem:[%s198 + $0x20e0] sm:$0xff]
                %1253 = vst [vmem:[%s199 + $0x1070] sm:$0xff] %v1252
                %v1254 = vld [vmem:[%s198 + $0x20e8] sm:$0xff]
                %1255 = vst [vmem:[%s199 + $0x1078] sm:$0xff] %v1254
                %v1256 = vld [vmem:[%s198 + $0x2100] sm:$0xff]
                %1257 = vst [vmem:[%s199 + $0x1080] sm:$0xff] %v1256
                %v1258 = vld [vmem:[%s198 + $0x2108] sm:$0xff]
                %1259 = vst [vmem:[%s199 + $0x1088] sm:$0xff] %v1258
                %v1260 = vld [vmem:[%s198 + $0x2120] sm:$0xff]
                %1261 = vst [vmem:[%s199 + $0x1090] sm:$0xff] %v1260
                %v1262 = vld [vmem:[%s198 + $0x2128] sm:$0xff]
                %1263 = vst [vmem:[%s199 + $0x1098] sm:$0xff] %v1262
                %v1264 = vld [vmem:[%s198 + $0x2140] sm:$0xff]
                %1265 = vst [vmem:[%s199 + $0x10a0] sm:$0xff] %v1264
                %v1266 = vld [vmem:[%s198 + $0x2148] sm:$0xff]
                %1267 = vst [vmem:[%s199 + $0x10a8] sm:$0xff] %v1266
                %v1268 = vld [vmem:[%s198 + $0x2160] sm:$0xff]
                %1269 = vst [vmem:[%s199 + $0x10b0] sm:$0xff] %v1268
                %v1270 = vld [vmem:[%s198 + $0x2168] sm:$0xff]
                %1271 = vst [vmem:[%s199 + $0x10b8] sm:$0xff] %v1270
                %v1272 = vld [vmem:[%s198 + $0x2180] sm:$0xff]
                %1273 = vst [vmem:[%s199 + $0x10c0] sm:$0xff] %v1272
                %v1274 = vld [vmem:[%s198 + $0x2188] sm:$0xff]
                %1275 = vst [vmem:[%s199 + $0x10c8] sm:$0xff] %v1274
                %v1276 = vld [vmem:[%s198 + $0x21a0] sm:$0xff]
                %1277 = vst [vmem:[%s199 + $0x10d0] sm:$0xff] %v1276
                %v1278 = vld [vmem:[%s198 + $0x21a8] sm:$0xff]
                %1279 = vst [vmem:[%s199 + $0x10d8] sm:$0xff] %v1278
                %v1280 = vld [vmem:[%s198 + $0x21c0] sm:$0xff]
                %1281 = vst [vmem:[%s199 + $0x10e0] sm:$0xff] %v1280
                %v1282 = vld [vmem:[%s198 + $0x21c8] sm:$0xff]
                %1283 = vst [vmem:[%s199 + $0x10e8] sm:$0xff] %v1282
                %v1284 = vld [vmem:[%s198 + $0x21e0] sm:$0xff]
                %1285 = vst [vmem:[%s199 + $0x10f0] sm:$0xff] %v1284
                %v1286 = vld [vmem:[%s198 + $0x21e8] sm:$0xff]
                %1287 = vst [vmem:[%s199 + $0x10f8] sm:$0xff] %v1286
                %v1288 = vld [vmem:[%s198 + $0x2200] sm:$0xff]
                %1289 = vst [vmem:[%s199 + $0x1100] sm:$0xff] %v1288
                %v1290 = vld [vmem:[%s198 + $0x2208] sm:$0xff]
                %1291 = vst [vmem:[%s199 + $0x1108] sm:$0xff] %v1290
                %v1292 = vld [vmem:[%s198 + $0x2220] sm:$0xff]
                %1293 = vst [vmem:[%s199 + $0x1110] sm:$0xff] %v1292
                %v1294 = vld [vmem:[%s198 + $0x2228] sm:$0xff]
                %1295 = vst [vmem:[%s199 + $0x1118] sm:$0xff] %v1294
                %v1296 = vld [vmem:[%s198 + $0x2240] sm:$0xff]
                %1297 = vst [vmem:[%s199 + $0x1120] sm:$0xff] %v1296
                %v1298 = vld [vmem:[%s198 + $0x2248] sm:$0xff]
                %1299 = vst [vmem:[%s199 + $0x1128] sm:$0xff] %v1298
                %v1300 = vld [vmem:[%s198 + $0x2260] sm:$0xff]
                %1301 = vst [vmem:[%s199 + $0x1130] sm:$0xff] %v1300
                %v1302 = vld [vmem:[%s198 + $0x2268] sm:$0xff]
                %1303 = vst [vmem:[%s199 + $0x1138] sm:$0xff] %v1302
                %v1304 = vld [vmem:[%s198 + $0x2280] sm:$0xff]
                %1305 = vst [vmem:[%s199 + $0x1140] sm:$0xff] %v1304
                %v1306 = vld [vmem:[%s198 + $0x2288] sm:$0xff]
                %1307 = vst [vmem:[%s199 + $0x1148] sm:$0xff] %v1306
                %v1308 = vld [vmem:[%s198 + $0x22a0] sm:$0xff]
                %1309 = vst [vmem:[%s199 + $0x1150] sm:$0xff] %v1308
                %v1310 = vld [vmem:[%s198 + $0x22a8] sm:$0xff]
                %1311 = vst [vmem:[%s199 + $0x1158] sm:$0xff] %v1310
                %v1312 = vld [vmem:[%s198 + $0x22c0] sm:$0xff]
                %1313 = vst [vmem:[%s199 + $0x1160] sm:$0xff] %v1312
                %v1314 = vld [vmem:[%s198 + $0x22c8] sm:$0xff]
                %1315 = vst [vmem:[%s199 + $0x1168] sm:$0xff] %v1314
                %v1316 = vld [vmem:[%s198 + $0x22e0] sm:$0xff]
                %1317 = vst [vmem:[%s199 + $0x1170] sm:$0xff] %v1316
                %v1318 = vld [vmem:[%s198 + $0x22e8] sm:$0xff]
                %1319 = vst [vmem:[%s199 + $0x1178] sm:$0xff] %v1318
                %v1320 = vld [vmem:[%s198 + $0x2300] sm:$0xff]
                %1321 = vst [vmem:[%s199 + $0x1180] sm:$0xff] %v1320
                %v1322 = vld [vmem:[%s198 + $0x2308] sm:$0xff]
                %1323 = vst [vmem:[%s199 + $0x1188] sm:$0xff] %v1322
                %v1324 = vld [vmem:[%s198 + $0x2320] sm:$0xff]
                %1325 = vst [vmem:[%s199 + $0x1190] sm:$0xff] %v1324
                %v1326 = vld [vmem:[%s198 + $0x2328] sm:$0xff]
                %1327 = vst [vmem:[%s199 + $0x1198] sm:$0xff] %v1326
                %v1328 = vld [vmem:[%s198 + $0x2340] sm:$0xff]
                %1329 = vst [vmem:[%s199 + $0x11a0] sm:$0xff] %v1328
                %v1330 = vld [vmem:[%s198 + $0x2348] sm:$0xff]
                %1331 = vst [vmem:[%s199 + $0x11a8] sm:$0xff] %v1330
                %v1332 = vld [vmem:[%s198 + $0x2360] sm:$0xff]
                %1333 = vst [vmem:[%s199 + $0x11b0] sm:$0xff] %v1332
                %v1334 = vld [vmem:[%s198 + $0x2368] sm:$0xff]
                %1335 = vst [vmem:[%s199 + $0x11b8] sm:$0xff] %v1334
                %v1336 = vld [vmem:[%s198 + $0x2380] sm:$0xff]
                %1337 = vst [vmem:[%s199 + $0x11c0] sm:$0xff] %v1336
                %v1338 = vld [vmem:[%s198 + $0x2388] sm:$0xff]
                %1339 = vst [vmem:[%s199 + $0x11c8] sm:$0xff] %v1338
                %v1340 = vld [vmem:[%s198 + $0x23a0] sm:$0xff]
                %1341 = vst [vmem:[%s199 + $0x11d0] sm:$0xff] %v1340
                %v1342 = vld [vmem:[%s198 + $0x23a8] sm:$0xff]
                %1343 = vst [vmem:[%s199 + $0x11d8] sm:$0xff] %v1342
                %v1344 = vld [vmem:[%s198 + $0x23c0] sm:$0xff]
                %1345 = vst [vmem:[%s199 + $0x11e0] sm:$0xff] %v1344
                %v1346 = vld [vmem:[%s198 + $0x23c8] sm:$0xff]
                %1347 = vst [vmem:[%s199 + $0x11e8] sm:$0xff] %v1346
                %v1348 = vld [vmem:[%s198 + $0x23e0] sm:$0xff]
                %1349 = vst [vmem:[%s199 + $0x11f0] sm:$0xff] %v1348
                %v1350 = vld [vmem:[%s198 + $0x23e8] sm:$0xff]
                %1351 = vst [vmem:[%s199 + $0x11f8] sm:$0xff] %v1350
                %v1352 = vld [vmem:[%s198 + $0x2400] sm:$0xff]
                %1353 = vst [vmem:[%s199 + $0x1200] sm:$0xff] %v1352
                %v1354 = vld [vmem:[%s198 + $0x2408] sm:$0xff]
                %1355 = vst [vmem:[%s199 + $0x1208] sm:$0xff] %v1354
                %v1356 = vld [vmem:[%s198 + $0x2420] sm:$0xff]
                %1357 = vst [vmem:[%s199 + $0x1210] sm:$0xff] %v1356
                %v1358 = vld [vmem:[%s198 + $0x2428] sm:$0xff]
                %1359 = vst [vmem:[%s199 + $0x1218] sm:$0xff] %v1358
                %v1360 = vld [vmem:[%s198 + $0x2440] sm:$0xff]
                %1361 = vst [vmem:[%s199 + $0x1220] sm:$0xff] %v1360
                %v1362 = vld [vmem:[%s198 + $0x2448] sm:$0xff]
                %1363 = vst [vmem:[%s199 + $0x1228] sm:$0xff] %v1362
                %v1364 = vld [vmem:[%s198 + $0x2460] sm:$0xff]
                %1365 = vst [vmem:[%s199 + $0x1230] sm:$0xff] %v1364
                %v1366 = vld [vmem:[%s198 + $0x2468] sm:$0xff]
                %1367 = vst [vmem:[%s199 + $0x1238] sm:$0xff] %v1366
                %v1368 = vld [vmem:[%s198 + $0x2480] sm:$0xff]
                %1369 = vst [vmem:[%s199 + $0x1240] sm:$0xff] %v1368
                %v1370 = vld [vmem:[%s198 + $0x2488] sm:$0xff]
                %1371 = vst [vmem:[%s199 + $0x1248] sm:$0xff] %v1370
                %v1372 = vld [vmem:[%s198 + $0x24a0] sm:$0xff]
                %1373 = vst [vmem:[%s199 + $0x1250] sm:$0xff] %v1372
                %v1374 = vld [vmem:[%s198 + $0x24a8] sm:$0xff]
                %1375 = vst [vmem:[%s199 + $0x1258] sm:$0xff] %v1374
                %v1376 = vld [vmem:[%s198 + $0x24c0] sm:$0xff]
                %1377 = vst [vmem:[%s199 + $0x1260] sm:$0xff] %v1376
                %v1378 = vld [vmem:[%s198 + $0x24c8] sm:$0xff]
                %1379 = vst [vmem:[%s199 + $0x1268] sm:$0xff] %v1378
                %v1380 = vld [vmem:[%s198 + $0x24e0] sm:$0xff]
                %1381 = vst [vmem:[%s199 + $0x1270] sm:$0xff] %v1380
                %v1382 = vld [vmem:[%s198 + $0x24e8] sm:$0xff]
                %1383 = vst [vmem:[%s199 + $0x1278] sm:$0xff] %v1382
                %v1384 = vld [vmem:[%s198 + $0x2500] sm:$0xff]
                %1385 = vst [vmem:[%s199 + $0x1280] sm:$0xff] %v1384
                %v1386 = vld [vmem:[%s198 + $0x2508] sm:$0xff]
                %1387 = vst [vmem:[%s199 + $0x1288] sm:$0xff] %v1386
                %v1388 = vld [vmem:[%s198 + $0x2520] sm:$0xff]
                %1389 = vst [vmem:[%s199 + $0x1290] sm:$0xff] %v1388
                %v1390 = vld [vmem:[%s198 + $0x2528] sm:$0xff]
                %1391 = vst [vmem:[%s199 + $0x1298] sm:$0xff] %v1390
                %v1392 = vld [vmem:[%s198 + $0x2540] sm:$0xff]
                %1393 = vst [vmem:[%s199 + $0x12a0] sm:$0xff] %v1392
                %v1394 = vld [vmem:[%s198 + $0x2548] sm:$0xff]
                %1395 = vst [vmem:[%s199 + $0x12a8] sm:$0xff] %v1394
                %v1396 = vld [vmem:[%s198 + $0x2560] sm:$0xff]
                %1397 = vst [vmem:[%s199 + $0x12b0] sm:$0xff] %v1396
                %v1398 = vld [vmem:[%s198 + $0x2568] sm:$0xff]
                %1399 = vst [vmem:[%s199 + $0x12b8] sm:$0xff] %v1398
                %v1400 = vld [vmem:[%s198 + $0x2580] sm:$0xff]
                %1401 = vst [vmem:[%s199 + $0x12c0] sm:$0xff] %v1400
                %v1402 = vld [vmem:[%s198 + $0x2588] sm:$0xff]
                %1403 = vst [vmem:[%s199 + $0x12c8] sm:$0xff] %v1402
                %v1404 = vld [vmem:[%s198 + $0x25a0] sm:$0xff]
                %1405 = vst [vmem:[%s199 + $0x12d0] sm:$0xff] %v1404
                %v1406 = vld [vmem:[%s198 + $0x25a8] sm:$0xff]
                %1407 = vst [vmem:[%s199 + $0x12d8] sm:$0xff] %v1406
                %v1408 = vld [vmem:[%s198 + $0x25c0] sm:$0xff]
                %1409 = vst [vmem:[%s199 + $0x12e0] sm:$0xff] %v1408
                %v1410 = vld [vmem:[%s198 + $0x25c8] sm:$0xff]
                %1411 = vst [vmem:[%s199 + $0x12e8] sm:$0xff] %v1410
                %v1412 = vld [vmem:[%s198 + $0x25e0] sm:$0xff]
                %1413 = vst [vmem:[%s199 + $0x12f0] sm:$0xff] %v1412
                %v1414 = vld [vmem:[%s198 + $0x25e8] sm:$0xff]
                %1415 = vst [vmem:[%s199 + $0x12f8] sm:$0xff] %v1414
                %v1416 = vld [vmem:[%s198 + $0x2600] sm:$0xff]
                %1417 = vst [vmem:[%s199 + $0x1300] sm:$0xff] %v1416
                %v1418 = vld [vmem:[%s198 + $0x2608] sm:$0xff]
                %1419 = vst [vmem:[%s199 + $0x1308] sm:$0xff] %v1418
                %v1420 = vld [vmem:[%s198 + $0x2620] sm:$0xff]
                %1421 = vst [vmem:[%s199 + $0x1310] sm:$0xff] %v1420
                %v1422 = vld [vmem:[%s198 + $0x2628] sm:$0xff]
                %1423 = vst [vmem:[%s199 + $0x1318] sm:$0xff] %v1422
                %v1424 = vld [vmem:[%s198 + $0x2640] sm:$0xff]
                %1425 = vst [vmem:[%s199 + $0x1320] sm:$0xff] %v1424
                %v1426 = vld [vmem:[%s198 + $0x2648] sm:$0xff]
                %1427 = vst [vmem:[%s199 + $0x1328] sm:$0xff] %v1426
                %v1428 = vld [vmem:[%s198 + $0x2660] sm:$0xff]
                %1429 = vst [vmem:[%s199 + $0x1330] sm:$0xff] %v1428
                %v1430 = vld [vmem:[%s198 + $0x2668] sm:$0xff]
                %1431 = vst [vmem:[%s199 + $0x1338] sm:$0xff] %v1430
                %v1432 = vld [vmem:[%s198 + $0x2680] sm:$0xff]
                %1433 = vst [vmem:[%s199 + $0x1340] sm:$0xff] %v1432
                %v1434 = vld [vmem:[%s198 + $0x2688] sm:$0xff]
                %1435 = vst [vmem:[%s199 + $0x1348] sm:$0xff] %v1434
                %v1436 = vld [vmem:[%s198 + $0x26a0] sm:$0xff]
                %1437 = vst [vmem:[%s199 + $0x1350] sm:$0xff] %v1436
                %v1438 = vld [vmem:[%s198 + $0x26a8] sm:$0xff]
                %1439 = vst [vmem:[%s199 + $0x1358] sm:$0xff] %v1438
                %v1440 = vld [vmem:[%s198 + $0x26c0] sm:$0xff]
                %1441 = vst [vmem:[%s199 + $0x1360] sm:$0xff] %v1440
                %v1442 = vld [vmem:[%s198 + $0x26c8] sm:$0xff]
                %1443 = vst [vmem:[%s199 + $0x1368] sm:$0xff] %v1442
                %v1444 = vld [vmem:[%s198 + $0x26e0] sm:$0xff]
                %1445 = vst [vmem:[%s199 + $0x1370] sm:$0xff] %v1444
                %v1446 = vld [vmem:[%s198 + $0x26e8] sm:$0xff]
                %1447 = vst [vmem:[%s199 + $0x1378] sm:$0xff] %v1446
                %v1448 = vld [vmem:[%s198 + $0x2700] sm:$0xff]
                %1449 = vst [vmem:[%s199 + $0x1380] sm:$0xff] %v1448
                %v1450 = vld [vmem:[%s198 + $0x2708] sm:$0xff]
                %1451 = vst [vmem:[%s199 + $0x1388] sm:$0xff] %v1450
                %v1452 = vld [vmem:[%s198 + $0x2720] sm:$0xff]
                %1453 = vst [vmem:[%s199 + $0x1390] sm:$0xff] %v1452
                %v1454 = vld [vmem:[%s198 + $0x2728] sm:$0xff]
                %1455 = vst [vmem:[%s199 + $0x1398] sm:$0xff] %v1454
                %v1456 = vld [vmem:[%s198 + $0x2740] sm:$0xff]
                %1457 = vst [vmem:[%s199 + $0x13a0] sm:$0xff] %v1456
                %v1458 = vld [vmem:[%s198 + $0x2748] sm:$0xff]
                %1459 = vst [vmem:[%s199 + $0x13a8] sm:$0xff] %v1458
                %v1460 = vld [vmem:[%s198 + $0x2760] sm:$0xff]
                %1461 = vst [vmem:[%s199 + $0x13b0] sm:$0xff] %v1460
                %v1462 = vld [vmem:[%s198 + $0x2768] sm:$0xff]
                %1463 = vst [vmem:[%s199 + $0x13b8] sm:$0xff] %v1462
                %v1464 = vld [vmem:[%s198 + $0x2780] sm:$0xff]
                %1465 = vst [vmem:[%s199 + $0x13c0] sm:$0xff] %v1464
                %v1466 = vld [vmem:[%s198 + $0x2788] sm:$0xff]
                %1467 = vst [vmem:[%s199 + $0x13c8] sm:$0xff] %v1466
                %v1468 = vld [vmem:[%s198 + $0x27a0] sm:$0xff]
                %1469 = vst [vmem:[%s199 + $0x13d0] sm:$0xff] %v1468
                %v1470 = vld [vmem:[%s198 + $0x27a8] sm:$0xff]
                %1471 = vst [vmem:[%s199 + $0x13d8] sm:$0xff] %v1470
                %v1472 = vld [vmem:[%s198 + $0x27c0] sm:$0xff]
                %1473 = vst [vmem:[%s199 + $0x13e0] sm:$0xff] %v1472
                %v1474 = vld [vmem:[%s198 + $0x27c8] sm:$0xff]
                %1475 = vst [vmem:[%s199 + $0x13e8] sm:$0xff] %v1474
                %v1476 = vld [vmem:[%s198 + $0x27e0] sm:$0xff]
                %1477 = vst [vmem:[%s199 + $0x13f0] sm:$0xff] %v1476
                %v1478 = vld [vmem:[%s198 + $0x27e8] sm:$0xff]
                %1479 = vst [vmem:[%s199 + $0x13f8] sm:$0xff] %v1478
                %v1480 = vld [vmem:[%s198 + $0x2800] sm:$0xff]
                %1481 = vst [vmem:[%s199 + $0x1400] sm:$0xff] %v1480
                %v1482 = vld [vmem:[%s198 + $0x2808] sm:$0xff]
                %1483 = vst [vmem:[%s199 + $0x1408] sm:$0xff] %v1482
                %v1484 = vld [vmem:[%s198 + $0x2820] sm:$0xff]
                %1485 = vst [vmem:[%s199 + $0x1410] sm:$0xff] %v1484
                %v1486 = vld [vmem:[%s198 + $0x2828] sm:$0xff]
                %1487 = vst [vmem:[%s199 + $0x1418] sm:$0xff] %v1486
                %v1488 = vld [vmem:[%s198 + $0x2840] sm:$0xff]
                %1489 = vst [vmem:[%s199 + $0x1420] sm:$0xff] %v1488
                %v1490 = vld [vmem:[%s198 + $0x2848] sm:$0xff]
                %1491 = vst [vmem:[%s199 + $0x1428] sm:$0xff] %v1490
                %v1492 = vld [vmem:[%s198 + $0x2860] sm:$0xff]
                %1493 = vst [vmem:[%s199 + $0x1430] sm:$0xff] %v1492
                %v1494 = vld [vmem:[%s198 + $0x2868] sm:$0xff]
                %1495 = vst [vmem:[%s199 + $0x1438] sm:$0xff] %v1494
                %v1496 = vld [vmem:[%s198 + $0x2880] sm:$0xff]
                %1497 = vst [vmem:[%s199 + $0x1440] sm:$0xff] %v1496
                %v1498 = vld [vmem:[%s198 + $0x2888] sm:$0xff]
                %1499 = vst [vmem:[%s199 + $0x1448] sm:$0xff] %v1498
                %v1500 = vld [vmem:[%s198 + $0x28a0] sm:$0xff]
                %1501 = vst [vmem:[%s199 + $0x1450] sm:$0xff] %v1500
                %v1502 = vld [vmem:[%s198 + $0x28a8] sm:$0xff]
                %1503 = vst [vmem:[%s199 + $0x1458] sm:$0xff] %v1502
                %v1504 = vld [vmem:[%s198 + $0x28c0] sm:$0xff]
                %1505 = vst [vmem:[%s199 + $0x1460] sm:$0xff] %v1504
                %v1506 = vld [vmem:[%s198 + $0x28c8] sm:$0xff]
                %1507 = vst [vmem:[%s199 + $0x1468] sm:$0xff] %v1506
                %v1508 = vld [vmem:[%s198 + $0x28e0] sm:$0xff]
                %1509 = vst [vmem:[%s199 + $0x1470] sm:$0xff] %v1508
                %v1510 = vld [vmem:[%s198 + $0x28e8] sm:$0xff]
                %1511 = vst [vmem:[%s199 + $0x1478] sm:$0xff] %v1510
                %v1512 = vld [vmem:[%s198 + $0x2900] sm:$0xff]
                %1513 = vst [vmem:[%s199 + $0x1480] sm:$0xff] %v1512
                %v1514 = vld [vmem:[%s198 + $0x2908] sm:$0xff]
                %1515 = vst [vmem:[%s199 + $0x1488] sm:$0xff] %v1514
                %v1516 = vld [vmem:[%s198 + $0x2920] sm:$0xff]
                %1517 = vst [vmem:[%s199 + $0x1490] sm:$0xff] %v1516
                %v1518 = vld [vmem:[%s198 + $0x2928] sm:$0xff]
                %1519 = vst [vmem:[%s199 + $0x1498] sm:$0xff] %v1518
                %v1520 = vld [vmem:[%s198 + $0x2940] sm:$0xff]
                %1521 = vst [vmem:[%s199 + $0x14a0] sm:$0xff] %v1520
                %v1522 = vld [vmem:[%s198 + $0x2948] sm:$0xff]
                %1523 = vst [vmem:[%s199 + $0x14a8] sm:$0xff] %v1522
                %v1524 = vld [vmem:[%s198 + $0x2960] sm:$0xff]
                %1525 = vst [vmem:[%s199 + $0x14b0] sm:$0xff] %v1524
                %v1526 = vld [vmem:[%s198 + $0x2968] sm:$0xff]
                %1527 = vst [vmem:[%s199 + $0x14b8] sm:$0xff] %v1526
                %v1528 = vld [vmem:[%s198 + $0x2980] sm:$0xff]
                %1529 = vst [vmem:[%s199 + $0x14c0] sm:$0xff] %v1528
                %v1530 = vld [vmem:[%s198 + $0x2988] sm:$0xff]
                %1531 = vst [vmem:[%s199 + $0x14c8] sm:$0xff] %v1530
                %v1532 = vld [vmem:[%s198 + $0x29a0] sm:$0xff]
                %1533 = vst [vmem:[%s199 + $0x14d0] sm:$0xff] %v1532
                %v1534 = vld [vmem:[%s198 + $0x29a8] sm:$0xff]
                %1535 = vst [vmem:[%s199 + $0x14d8] sm:$0xff] %v1534
                %v1536 = vld [vmem:[%s198 + $0x29c0] sm:$0xff]
                %1537 = vst [vmem:[%s199 + $0x14e0] sm:$0xff] %v1536
                %v1538 = vld [vmem:[%s198 + $0x29c8] sm:$0xff]
                %1539 = vst [vmem:[%s199 + $0x14e8] sm:$0xff] %v1538
                %v1540 = vld [vmem:[%s198 + $0x29e0] sm:$0xff]
                %1541 = vst [vmem:[%s199 + $0x14f0] sm:$0xff] %v1540
                %v1542 = vld [vmem:[%s198 + $0x29e8] sm:$0xff]
                %1543 = vst [vmem:[%s199 + $0x14f8] sm:$0xff] %v1542
                %v1544 = vld [vmem:[%s198 + $0x2a00] sm:$0xff]
                %1545 = vst [vmem:[%s199 + $0x1500] sm:$0xff] %v1544
                %v1546 = vld [vmem:[%s198 + $0x2a08] sm:$0xff]
                %1547 = vst [vmem:[%s199 + $0x1508] sm:$0xff] %v1546
                %v1548 = vld [vmem:[%s198 + $0x2a20] sm:$0xff]
                %1549 = vst [vmem:[%s199 + $0x1510] sm:$0xff] %v1548
                %v1550 = vld [vmem:[%s198 + $0x2a28] sm:$0xff]
                %1551 = vst [vmem:[%s199 + $0x1518] sm:$0xff] %v1550
                %v1552 = vld [vmem:[%s198 + $0x2a40] sm:$0xff]
                %1553 = vst [vmem:[%s199 + $0x1520] sm:$0xff] %v1552
                %v1554 = vld [vmem:[%s198 + $0x2a48] sm:$0xff]
                %1555 = vst [vmem:[%s199 + $0x1528] sm:$0xff] %v1554
                %v1556 = vld [vmem:[%s198 + $0x2a60] sm:$0xff]
                %1557 = vst [vmem:[%s199 + $0x1530] sm:$0xff] %v1556
                %v1558 = vld [vmem:[%s198 + $0x2a68] sm:$0xff]
                %1559 = vst [vmem:[%s199 + $0x1538] sm:$0xff] %v1558
                %v1560 = vld [vmem:[%s198 + $0x2a80] sm:$0xff]
                %1561 = vst [vmem:[%s199 + $0x1540] sm:$0xff] %v1560
                %v1562 = vld [vmem:[%s198 + $0x2a88] sm:$0xff]
                %1563 = vst [vmem:[%s199 + $0x1548] sm:$0xff] %v1562
                %v1564 = vld [vmem:[%s198 + $0x2aa0] sm:$0xff]
                %1565 = vst [vmem:[%s199 + $0x1550] sm:$0xff] %v1564
                %v1566 = vld [vmem:[%s198 + $0x2aa8] sm:$0xff]
                %1567 = vst [vmem:[%s199 + $0x1558] sm:$0xff] %v1566
                %v1568 = vld [vmem:[%s198 + $0x2ac0] sm:$0xff]
                %1569 = vst [vmem:[%s199 + $0x1560] sm:$0xff] %v1568
                %v1570 = vld [vmem:[%s198 + $0x2ac8] sm:$0xff]
                %1571 = vst [vmem:[%s199 + $0x1568] sm:$0xff] %v1570
                %v1572 = vld [vmem:[%s198 + $0x2ae0] sm:$0xff]
                %1573 = vst [vmem:[%s199 + $0x1570] sm:$0xff] %v1572
                %v1574 = vld [vmem:[%s198 + $0x2ae8] sm:$0xff]
                %1575 = vst [vmem:[%s199 + $0x1578] sm:$0xff] %v1574
                %v1576 = vld [vmem:[%s198 + $0x2b00] sm:$0xff]
                %1577 = vst [vmem:[%s199 + $0x1580] sm:$0xff] %v1576
                %v1578 = vld [vmem:[%s198 + $0x2b08] sm:$0xff]
                %1579 = vst [vmem:[%s199 + $0x1588] sm:$0xff] %v1578
                %v1580 = vld [vmem:[%s198 + $0x2b20] sm:$0xff]
                %1581 = vst [vmem:[%s199 + $0x1590] sm:$0xff] %v1580
                %v1582 = vld [vmem:[%s198 + $0x2b28] sm:$0xff]
                %1583 = vst [vmem:[%s199 + $0x1598] sm:$0xff] %v1582
                %v1584 = vld [vmem:[%s198 + $0x2b40] sm:$0xff]
                %1585 = vst [vmem:[%s199 + $0x15a0] sm:$0xff] %v1584
                %v1586 = vld [vmem:[%s198 + $0x2b48] sm:$0xff]
                %1587 = vst [vmem:[%s199 + $0x15a8] sm:$0xff] %v1586
                %v1588 = vld [vmem:[%s198 + $0x2b60] sm:$0xff]
                %1589 = vst [vmem:[%s199 + $0x15b0] sm:$0xff] %v1588
                %v1590 = vld [vmem:[%s198 + $0x2b68] sm:$0xff]
                %1591 = vst [vmem:[%s199 + $0x15b8] sm:$0xff] %v1590
                %v1592 = vld [vmem:[%s198 + $0x2b80] sm:$0xff]
                %1593 = vst [vmem:[%s199 + $0x15c0] sm:$0xff] %v1592
                %v1594 = vld [vmem:[%s198 + $0x2b88] sm:$0xff]
                %1595 = vst [vmem:[%s199 + $0x15c8] sm:$0xff] %v1594
                %v1596 = vld [vmem:[%s198 + $0x2ba0] sm:$0xff]
                %1597 = vst [vmem:[%s199 + $0x15d0] sm:$0xff] %v1596
                %v1598 = vld [vmem:[%s198 + $0x2ba8] sm:$0xff]
                %1599 = vst [vmem:[%s199 + $0x15d8] sm:$0xff] %v1598
                %v1600 = vld [vmem:[%s198 + $0x2bc0] sm:$0xff]
                %1601 = vst [vmem:[%s199 + $0x15e0] sm:$0xff] %v1600
                %v1602 = vld [vmem:[%s198 + $0x2bc8] sm:$0xff]
                %1603 = vst [vmem:[%s199 + $0x15e8] sm:$0xff] %v1602
                %v1604 = vld [vmem:[%s198 + $0x2be0] sm:$0xff]
                %1605 = vst [vmem:[%s199 + $0x15f0] sm:$0xff] %v1604
                %v1606 = vld [vmem:[%s198 + $0x2be8] sm:$0xff]
                %1607 = vst [vmem:[%s199 + $0x15f8] sm:$0xff] %v1606
                %v1608 = vld [vmem:[%s198 + $0x2c00] sm:$0xff]
                %1609 = vst [vmem:[%s199 + $0x1600] sm:$0xff] %v1608
                %v1610 = vld [vmem:[%s198 + $0x2c08] sm:$0xff]
                %1611 = vst [vmem:[%s199 + $0x1608] sm:$0xff] %v1610
                %v1612 = vld [vmem:[%s198 + $0x2c20] sm:$0xff]
                %1613 = vst [vmem:[%s199 + $0x1610] sm:$0xff] %v1612
                %v1614 = vld [vmem:[%s198 + $0x2c28] sm:$0xff]
                %1615 = vst [vmem:[%s199 + $0x1618] sm:$0xff] %v1614
                %v1616 = vld [vmem:[%s198 + $0x2c40] sm:$0xff]
                %1617 = vst [vmem:[%s199 + $0x1620] sm:$0xff] %v1616
                %v1618 = vld [vmem:[%s198 + $0x2c48] sm:$0xff]
                %1619 = vst [vmem:[%s199 + $0x1628] sm:$0xff] %v1618
                %v1620 = vld [vmem:[%s198 + $0x2c60] sm:$0xff]
                %1621 = vst [vmem:[%s199 + $0x1630] sm:$0xff] %v1620
                %v1622 = vld [vmem:[%s198 + $0x2c68] sm:$0xff]
                %1623 = vst [vmem:[%s199 + $0x1638] sm:$0xff] %v1622
                %v1624 = vld [vmem:[%s198 + $0x2c80] sm:$0xff]
                %1625 = vst [vmem:[%s199 + $0x1640] sm:$0xff] %v1624
                %v1626 = vld [vmem:[%s198 + $0x2c88] sm:$0xff]
                %1627 = vst [vmem:[%s199 + $0x1648] sm:$0xff] %v1626
                %v1628 = vld [vmem:[%s198 + $0x2ca0] sm:$0xff]
                %1629 = vst [vmem:[%s199 + $0x1650] sm:$0xff] %v1628
                %v1630 = vld [vmem:[%s198 + $0x2ca8] sm:$0xff]
                %1631 = vst [vmem:[%s199 + $0x1658] sm:$0xff] %v1630
                %v1632 = vld [vmem:[%s198 + $0x2cc0] sm:$0xff]
                %1633 = vst [vmem:[%s199 + $0x1660] sm:$0xff] %v1632
                %v1634 = vld [vmem:[%s198 + $0x2cc8] sm:$0xff]
                %1635 = vst [vmem:[%s199 + $0x1668] sm:$0xff] %v1634
                %v1636 = vld [vmem:[%s198 + $0x2ce0] sm:$0xff]
                %1637 = vst [vmem:[%s199 + $0x1670] sm:$0xff] %v1636
                %v1638 = vld [vmem:[%s198 + $0x2ce8] sm:$0xff]
                %1639 = vst [vmem:[%s199 + $0x1678] sm:$0xff] %v1638
                %v1640 = vld [vmem:[%s198 + $0x2d00] sm:$0xff]
                %1641 = vst [vmem:[%s199 + $0x1680] sm:$0xff] %v1640
                %v1642 = vld [vmem:[%s198 + $0x2d08] sm:$0xff]
                %1643 = vst [vmem:[%s199 + $0x1688] sm:$0xff] %v1642
                %v1644 = vld [vmem:[%s198 + $0x2d20] sm:$0xff]
                %1645 = vst [vmem:[%s199 + $0x1690] sm:$0xff] %v1644
                %v1646 = vld [vmem:[%s198 + $0x2d28] sm:$0xff]
                %1647 = vst [vmem:[%s199 + $0x1698] sm:$0xff] %v1646
                %v1648 = vld [vmem:[%s198 + $0x2d40] sm:$0xff]
                %1649 = vst [vmem:[%s199 + $0x16a0] sm:$0xff] %v1648
                %v1650 = vld [vmem:[%s198 + $0x2d48] sm:$0xff]
                %1651 = vst [vmem:[%s199 + $0x16a8] sm:$0xff] %v1650
                %v1652 = vld [vmem:[%s198 + $0x2d60] sm:$0xff]
                %1653 = vst [vmem:[%s199 + $0x16b0] sm:$0xff] %v1652
                %v1654 = vld [vmem:[%s198 + $0x2d68] sm:$0xff]
                %1655 = vst [vmem:[%s199 + $0x16b8] sm:$0xff] %v1654
                %v1656 = vld [vmem:[%s198 + $0x2d80] sm:$0xff]
                %1657 = vst [vmem:[%s199 + $0x16c0] sm:$0xff] %v1656
                %v1658 = vld [vmem:[%s198 + $0x2d88] sm:$0xff]
                %1659 = vst [vmem:[%s199 + $0x16c8] sm:$0xff] %v1658
                %v1660 = vld [vmem:[%s198 + $0x2da0] sm:$0xff]
                %1661 = vst [vmem:[%s199 + $0x16d0] sm:$0xff] %v1660
                %v1662 = vld [vmem:[%s198 + $0x2da8] sm:$0xff]
                %1663 = vst [vmem:[%s199 + $0x16d8] sm:$0xff] %v1662
                %v1664 = vld [vmem:[%s198 + $0x2dc0] sm:$0xff]
                %1665 = vst [vmem:[%s199 + $0x16e0] sm:$0xff] %v1664
                %v1666 = vld [vmem:[%s198 + $0x2dc8] sm:$0xff]
                %1667 = vst [vmem:[%s199 + $0x16e8] sm:$0xff] %v1666
                %v1668 = vld [vmem:[%s198 + $0x2de0] sm:$0xff]
                %1669 = vst [vmem:[%s199 + $0x16f0] sm:$0xff] %v1668
                %v1670 = vld [vmem:[%s198 + $0x2de8] sm:$0xff]
                %1671 = vst [vmem:[%s199 + $0x16f8] sm:$0xff] %v1670
                %v1672 = vld [vmem:[%s198 + $0x2e00] sm:$0xff]
                %1673 = vst [vmem:[%s199 + $0x1700] sm:$0xff] %v1672
                %v1674 = vld [vmem:[%s198 + $0x2e08] sm:$0xff]
                %1675 = vst [vmem:[%s199 + $0x1708] sm:$0xff] %v1674
                %v1676 = vld [vmem:[%s198 + $0x2e20] sm:$0xff]
                %1677 = vst [vmem:[%s199 + $0x1710] sm:$0xff] %v1676
                %v1678 = vld [vmem:[%s198 + $0x2e28] sm:$0xff]
                %1679 = vst [vmem:[%s199 + $0x1718] sm:$0xff] %v1678
                %v1680 = vld [vmem:[%s198 + $0x2e40] sm:$0xff]
                %1681 = vst [vmem:[%s199 + $0x1720] sm:$0xff] %v1680
                %v1682 = vld [vmem:[%s198 + $0x2e48] sm:$0xff]
                %1683 = vst [vmem:[%s199 + $0x1728] sm:$0xff] %v1682
                %v1684 = vld [vmem:[%s198 + $0x2e60] sm:$0xff]
                %1685 = vst [vmem:[%s199 + $0x1730] sm:$0xff] %v1684
                %v1686 = vld [vmem:[%s198 + $0x2e68] sm:$0xff]
                %1687 = vst [vmem:[%s199 + $0x1738] sm:$0xff] %v1686
                %v1688 = vld [vmem:[%s198 + $0x2e80] sm:$0xff]
                %1689 = vst [vmem:[%s199 + $0x1740] sm:$0xff] %v1688
                %v1690 = vld [vmem:[%s198 + $0x2e88] sm:$0xff]
                %1691 = vst [vmem:[%s199 + $0x1748] sm:$0xff] %v1690
                %v1692 = vld [vmem:[%s198 + $0x2ea0] sm:$0xff]
                %1693 = vst [vmem:[%s199 + $0x1750] sm:$0xff] %v1692
                %v1694 = vld [vmem:[%s198 + $0x2ea8] sm:$0xff]
                %1695 = vst [vmem:[%s199 + $0x1758] sm:$0xff] %v1694
                %v1696 = vld [vmem:[%s198 + $0x2ec0] sm:$0xff]
                %1697 = vst [vmem:[%s199 + $0x1760] sm:$0xff] %v1696
                %v1698 = vld [vmem:[%s198 + $0x2ec8] sm:$0xff]
                %1699 = vst [vmem:[%s199 + $0x1768] sm:$0xff] %v1698
                %v1700 = vld [vmem:[%s198 + $0x2ee0] sm:$0xff]
                %1701 = vst [vmem:[%s199 + $0x1770] sm:$0xff] %v1700
                %v1702 = vld [vmem:[%s198 + $0x2ee8] sm:$0xff]
                %1703 = vst [vmem:[%s199 + $0x1778] sm:$0xff] %v1702
                %v1704 = vld [vmem:[%s198 + $0x2f00] sm:$0xff]
                %1705 = vst [vmem:[%s199 + $0x1780] sm:$0xff] %v1704
                %v1706 = vld [vmem:[%s198 + $0x2f08] sm:$0xff]
                %1707 = vst [vmem:[%s199 + $0x1788] sm:$0xff] %v1706
                %v1708 = vld [vmem:[%s198 + $0x2f20] sm:$0xff]
                %1709 = vst [vmem:[%s199 + $0x1790] sm:$0xff] %v1708
                %v1710 = vld [vmem:[%s198 + $0x2f28] sm:$0xff]
                %1711 = vst [vmem:[%s199 + $0x1798] sm:$0xff] %v1710
                %v1712 = vld [vmem:[%s198 + $0x2f40] sm:$0xff]
                %1713 = vst [vmem:[%s199 + $0x17a0] sm:$0xff] %v1712
                %v1714 = vld [vmem:[%s198 + $0x2f48] sm:$0xff]
                %1715 = vst [vmem:[%s199 + $0x17a8] sm:$0xff] %v1714
                %v1716 = vld [vmem:[%s198 + $0x2f60] sm:$0xff]
                %1717 = vst [vmem:[%s199 + $0x17b0] sm:$0xff] %v1716
                %v1718 = vld [vmem:[%s198 + $0x2f68] sm:$0xff]
                %1719 = vst [vmem:[%s199 + $0x17b8] sm:$0xff] %v1718
                %v1720 = vld [vmem:[%s198 + $0x2f80] sm:$0xff]
                %1721 = vst [vmem:[%s199 + $0x17c0] sm:$0xff] %v1720
                %v1722 = vld [vmem:[%s198 + $0x2f88] sm:$0xff]
                %1723 = vst [vmem:[%s199 + $0x17c8] sm:$0xff] %v1722
                %v1724 = vld [vmem:[%s198 + $0x2fa0] sm:$0xff]
                %1725 = vst [vmem:[%s199 + $0x17d0] sm:$0xff] %v1724
                %v1726 = vld [vmem:[%s198 + $0x2fa8] sm:$0xff]
                %1727 = vst [vmem:[%s199 + $0x17d8] sm:$0xff] %v1726
                %v1728 = vld [vmem:[%s198 + $0x2fc0] sm:$0xff]
                %1729 = vst [vmem:[%s199 + $0x17e0] sm:$0xff] %v1728
                %v1730 = vld [vmem:[%s198 + $0x2fc8] sm:$0xff]
                %1731 = vst [vmem:[%s199 + $0x17e8] sm:$0xff] %v1730
                %v1732 = vld [vmem:[%s198 + $0x2fe0] sm:$0xff]
                %1733 = vst [vmem:[%s199 + $0x17f0] sm:$0xff] %v1732
                %v1734 = vld [vmem:[%s198 + $0x2fe8] sm:$0xff]
                %1735 = vst [vmem:[%s199 + $0x17f8] sm:$0xff] %v1734
                %v1736 = vld [vmem:[%s198 + $0x3000] sm:$0xff]
                %1737 = vst [vmem:[%s199 + $0x1800] sm:$0xff] %v1736
                %v1738 = vld [vmem:[%s198 + $0x3008] sm:$0xff]
                %1739 = vst [vmem:[%s199 + $0x1808] sm:$0xff] %v1738
                %v1740 = vld [vmem:[%s198 + $0x3020] sm:$0xff]
                %1741 = vst [vmem:[%s199 + $0x1810] sm:$0xff] %v1740
                %v1742 = vld [vmem:[%s198 + $0x3028] sm:$0xff]
                %1743 = vst [vmem:[%s199 + $0x1818] sm:$0xff] %v1742
                %v1744 = vld [vmem:[%s198 + $0x3040] sm:$0xff]
                %1745 = vst [vmem:[%s199 + $0x1820] sm:$0xff] %v1744
                %v1746 = vld [vmem:[%s198 + $0x3048] sm:$0xff]
                %1747 = vst [vmem:[%s199 + $0x1828] sm:$0xff] %v1746
                %v1748 = vld [vmem:[%s198 + $0x3060] sm:$0xff]
                %1749 = vst [vmem:[%s199 + $0x1830] sm:$0xff] %v1748
                %v1750 = vld [vmem:[%s198 + $0x3068] sm:$0xff]
                %1751 = vst [vmem:[%s199 + $0x1838] sm:$0xff] %v1750
                %v1752 = vld [vmem:[%s198 + $0x3080] sm:$0xff]
                %1753 = vst [vmem:[%s199 + $0x1840] sm:$0xff] %v1752
                %v1754 = vld [vmem:[%s198 + $0x3088] sm:$0xff]
                %1755 = vst [vmem:[%s199 + $0x1848] sm:$0xff] %v1754
                %v1756 = vld [vmem:[%s198 + $0x30a0] sm:$0xff]
                %1757 = vst [vmem:[%s199 + $0x1850] sm:$0xff] %v1756
                %v1758 = vld [vmem:[%s198 + $0x30a8] sm:$0xff]
                %1759 = vst [vmem:[%s199 + $0x1858] sm:$0xff] %v1758
                %v1760 = vld [vmem:[%s198 + $0x30c0] sm:$0xff]
                %1761 = vst [vmem:[%s199 + $0x1860] sm:$0xff] %v1760
                %v1762 = vld [vmem:[%s198 + $0x30c8] sm:$0xff]
                %1763 = vst [vmem:[%s199 + $0x1868] sm:$0xff] %v1762
                %v1764 = vld [vmem:[%s198 + $0x30e0] sm:$0xff]
                %1765 = vst [vmem:[%s199 + $0x1870] sm:$0xff] %v1764
                %v1766 = vld [vmem:[%s198 + $0x30e8] sm:$0xff]
                %1767 = vst [vmem:[%s199 + $0x1878] sm:$0xff] %v1766
              $region41: #{cnn_forward.5} parent=35 // loop_footer
                %s197 = sadd.s32 1, %s193
              $region42: #{cnn_forward.5} parent=35 // loop_footer_branch
                %192 = sbr.rel target = $region38
              $region43: #{cnn_forward.5} parent=35 // loop_exit
                _
            $region36: #{cnn_forward.5} parent=31 // pred_fallthru
              _
            // Predicated region
            $region44: #{cnn_forward.5} parent=31 // pred_check
              _
            $region45: #{cnn_forward.5} parent=31 // pred_check_branch
              %1769 = sbr.rel target = $region47
            $region46: #{cnn_forward.5} parent=31 // pred_region
              _
            $region47: #{cnn_forward.5} parent=31 // pred_fallthru
              _
          $region32: #{cnn_forward.5} parent=27 // pred_fallthru
            _
          %1770 = vnop
        $region28: #{cnn_forward.5} parent=23 // pred_fallthru
          _
        // Predicated region
        $region48: #{cnn_forward.5} parent=23 // pred_check
          %p1771 = pneg %p79
        $region49: #{cnn_forward.5} parent=23 // pred_check_branch
          %1773 = sbr.rel (%p1771) target = $region51
        $region50: #{cnn_forward.5} parent=23 // pred_region
          %s1774 = smul.u32 4, %s12
          %p1775 = scmp.lt.s32.totalorder %s1774, 7
          %s1776 = scalar_select %p1775, %s1774, 7
          %s1777 = scalar_lea.vmem %s2, %s1776
          %s1778 = smul.u32 4, %s12
        $region51: #{cnn_forward.5} parent=23 // pred_fallthru
          _
        // Predicated region
        $region52: #{cnn_forward.5} parent=23 // pred_check
          %p1779 = pneg %p105
        $region53: #{cnn_forward.5} parent=23 // pred_check_branch
          %1781 = sbr.rel (%p1779) target = $region55
        $region54: #{cnn_forward.5} parent=23 // pred_region
          %s1782 = smul.u32 64, %s12
          %p1783 = scmp.lt.s32.totalorder %s1782, 127
          %s1784 = scalar_select %p1783, %s1782, 127
          %s1785 = smul.addr %s1784, 8
          %s1786 = scalar_lea.vmem %s3, %s1785
          %s1787 = smul.u32 64, %s12
        $region55: #{cnn_forward.5} parent=23 // pred_fallthru
          _
      $region24: #{cnn_forward.5} parent=5 // pred_fallthru
        _
      %p1788 = scmp.le.s32.totalorder 1, %s12
      %p1789 = scmp.lt.s32.totalorder %s12, 3
      %p1790 = pnand %p1788, %p1789
      %p1791 = pneg %p1790
      // Predicated region
      $region56: #{cnn_forward.5} parent=5 // pred_check
        _
      $region57: #{cnn_forward.5} parent=5 // pred_check_branch
        %1793 = sbr.rel (%p1790) target = $region59
      $region58: #{cnn_forward.5} parent=5 // pred_region
        %s1794 = ssub.s32 %s12, 1
        %s1795 = sand.u32 %s46, 1
        %s1796 = sand.u32 %s46, 1
        %s1797 = smul.addr %s1796, 6272
        %s1798 = scalar_lea.vmem [#allocation2], %s1797
        // Predicated region
        $region60: #{cnn_forward.5} parent=58 // pred_check
          %p1799 = pneg %p59
        $region61: #{cnn_forward.5} parent=58 // pred_check_branch
          %1801 = sbr.rel (%p1799) target = $region63
        $region62: #{cnn_forward.5} parent=58 // pred_region
          _
        $region63: #{cnn_forward.5} parent=58 // pred_fallthru
          _
        %p1802 = pneg %p33
        %p1803 = pneg %p30
        %s1804 = sand.u32 %s46, 1
        %s1805 = sand.u32 %s46, 1
        %s1806 = smul.addr %s1805, 6272
        %s1807 = scalar_lea.vmem [#allocation2], %s1806
        %p1808 = pneg %p59
        %p1809 = pneg %p56
        %s1810 = smul.u32 4, %s17
        %p1811 = scmp.lt.s32.totalorder %s1810, 7
        %s1812 = scalar_select %p1811, %s1810, 7
        %s1813 = scalar_lea.vmem %s2, %s1812
        %p1814 = pneg %p85
        %p1815 = pneg %p82
        %s1816 = smul.u32 64, %s17
        %p1817 = scmp.lt.s32.totalorder %s1816, 127
        %s1818 = scalar_select %p1817, %s1816, 127
        %s1819 = smul.addr %s1818, 8
        %s1820 = scalar_lea.vmem %s3, %s1819
        %p1821 = pneg %p111
        %p1822 = pneg %p108
        %p1823 = pneg %p132
        %p1824 = pneg %p129
        %p1825 = pneg %p153
        %p1826 = pneg %p150
        %s1827 = smul.u32 4, %s17
        %s1828 = smul.u32 4, %s17
        %p1829 = scmp.lt.s32.totalorder %s1828, 7
        %s1830 = scalar_select %p1829, %s1828, 7
        %s1831 = scalar_lea.vmem %s2, %s1830
        %s1832 = smul.u32 4, %s17
        %s1833 = smul.u32 64, %s17
        %p1834 = scmp.lt.s32.totalorder %s1833, 127
        %s1835 = scalar_select %p1834, %s1833, 127
        %s1836 = smul.addr %s1835, 8
        %s1837 = scalar_lea.vmem %s3, %s1836
        %s1838 = smul.u32 64, %s17
        %p1840 = scmp.eq.s32.totalorder %s17, 0
        // Predicated region
        $region64: #{cnn_forward.5} parent=58 // pred_check
          %p1841 = pneg %p1840
        $region65: #{cnn_forward.5} parent=58 // pred_check_branch
          %1843 = sbr.rel (%p1841) target = $region67
        $region66: #{cnn_forward.5} parent=58 // pred_region
          %v1844 = vld [vmem:[%s4] sm:$0x1]
          %v1846 = vlaneseq
          %v1847 = vshrl.u32 %v1846, 7
          %v1848 = vsub.s32 0, %v1847
          %v1849 = vrot.slane %v1844, %v1848
          %vm1851 = vcmask 74752
          %1852 = vst.msk [vmem:[#allocation3] sm:$0x3] %vm1851, %v1849
        $region67: #{cnn_forward.5} parent=58 // pred_fallthru
          _
        %v1853 = vld [vmem:[%s0] sm:$0xff]
        %v1854 = vld [vmem:[%s0 + $0x8] sm:$0xff]
        %v1855 = vld [vmem:[%s0 + $0x10] sm:$0xff]
        %v1856 = vld [vmem:[%s0 + $0x18] sm:$0x1]
        %v1857 = vld [vmem:[%s1798] sm:$0xff]
        %v1858 = vld [vmem:[%s1798 + $0x8] sm:$0xff]
        %v1859 = vld [vmem:[%s1798 + $0x10] sm:$0xff]
        %v1860 = vld [vmem:[%s1798 + $0x18] sm:$0xff]
        %v1861 = vld [vmem:[%s1798 + $0x20] sm:$0xff]
        %v1862 = vld [vmem:[%s1798 + $0x28] sm:$0xff]
        %v1863 = vld [vmem:[%s1798 + $0x30] sm:$0xff]
        %v1864 = vld [vmem:[%s1798 + $0x38] sm:$0xff]
        %v1865 = vld [vmem:[%s1798 + $0x40] sm:$0xff]
        %v1866 = vld [vmem:[%s1798 + $0x48] sm:$0xff]
        %v1867 = vld [vmem:[%s1798 + $0x50] sm:$0xff]
        %v1868 = vld [vmem:[%s1798 + $0x58] sm:$0xff]
        %v1869 = vld [vmem:[%s1798 + $0x60] sm:$0xff]
        %v1870 = vld [vmem:[%s1798 + $0x68] sm:$0xff]
        %v1871 = vld [vmem:[%s1798 + $0x70] sm:$0xff]
        %v1872 = vld [vmem:[%s1798 + $0x78] sm:$0xff]
        %v1873 = vld [vmem:[%s1798 + $0x80] sm:$0xff]
        %v1874 = vld [vmem:[%s1798 + $0x88] sm:$0xff]
        %v1875 = vld [vmem:[%s1798 + $0x90] sm:$0xff]
        %v1876 = vld [vmem:[%s1798 + $0x98] sm:$0xff]
        %v1877 = vld [vmem:[%s1798 + $0xa0] sm:$0xff]
        %v1878 = vld [vmem:[%s1798 + $0xa8] sm:$0xff]
        %v1879 = vld [vmem:[%s1798 + $0xb0] sm:$0xff]
        %v1880 = vld [vmem:[%s1798 + $0xb8] sm:$0xff]
        %v1881 = vld [vmem:[%s1798 + $0xc0] sm:$0xff]
        %v1882 = vld [vmem:[%s1798 + $0xc8] sm:$0xff]
        %v1883 = vld [vmem:[%s1798 + $0xd0] sm:$0xff]
        %v1884 = vld [vmem:[%s1798 + $0xd8] sm:$0xff]
        %v1885 = vld [vmem:[%s1798 + $0xe0] sm:$0xff]
        %v1886 = vld [vmem:[%s1798 + $0xe8] sm:$0xff]
        %v1887 = vld [vmem:[%s1798 + $0xf0] sm:$0xff]
        %v1888 = vld [vmem:[%s1798 + $0xf8] sm:$0xff]
        %v1889 = vld [vmem:[%s1798 + $0x100] sm:$0xff]
        %v1890 = vld [vmem:[%s1798 + $0x108] sm:$0xff]
        %v1891 = vld [vmem:[%s1798 + $0x110] sm:$0xff]
        %v1892 = vld [vmem:[%s1798 + $0x118] sm:$0xff]
        %v1893 = vld [vmem:[%s1798 + $0x120] sm:$0xff]
        %v1894 = vld [vmem:[%s1798 + $0x128] sm:$0xff]
        %v1895 = vld [vmem:[%s1798 + $0x130] sm:$0xff]
        %v1896 = vld [vmem:[%s1798 + $0x138] sm:$0xff]
        %v1897 = vld [vmem:[%s1798 + $0x140] sm:$0xff]
        %v1898 = vld [vmem:[%s1798 + $0x148] sm:$0xff]
        %v1899 = vld [vmem:[%s1798 + $0x150] sm:$0xff]
        %v1900 = vld [vmem:[%s1798 + $0x158] sm:$0xff]
        %v1901 = vld [vmem:[%s1798 + $0x160] sm:$0xff]
        %v1902 = vld [vmem:[%s1798 + $0x168] sm:$0xff]
        %v1903 = vld [vmem:[%s1798 + $0x170] sm:$0xff]
        %v1904 = vld [vmem:[%s1798 + $0x178] sm:$0xff]
        %v1905 = vld [vmem:[%s1798 + $0x180] sm:$0xff]
        %v1906 = vld [vmem:[%s1798 + $0x188] sm:$0xff]
        %v1907 = vld [vmem:[%s1798 + $0x190] sm:$0xff]
        %v1908 = vld [vmem:[%s1798 + $0x198] sm:$0xff]
        %v1909 = vld [vmem:[%s1798 + $0x1a0] sm:$0xff]
        %v1910 = vld [vmem:[%s1798 + $0x1a8] sm:$0xff]
        %v1911 = vld [vmem:[%s1798 + $0x1b0] sm:$0xff]
        %v1912 = vld [vmem:[%s1798 + $0x1b8] sm:$0xff]
        %v1913 = vld [vmem:[%s1798 + $0x1c0] sm:$0xff]
        %v1914 = vld [vmem:[%s1798 + $0x1c8] sm:$0xff]
        %v1915 = vld [vmem:[%s1798 + $0x1d0] sm:$0xff]
        %v1916 = vld [vmem:[%s1798 + $0x1d8] sm:$0xff]
        %v1917 = vld [vmem:[%s1798 + $0x1e0] sm:$0xff]
        %v1918 = vld [vmem:[%s1798 + $0x1e8] sm:$0xff]
        %v1919 = vld [vmem:[%s1798 + $0x1f0] sm:$0xff]
        %v1920 = vld [vmem:[%s1798 + $0x1f8] sm:$0xff]
        %v1921 = vld [vmem:[%s1798 + $0x200] sm:$0xff]
        %v1922 = vld [vmem:[%s1798 + $0x208] sm:$0xff]
        %v1923 = vld [vmem:[%s1798 + $0x210] sm:$0xff]
        %v1924 = vld [vmem:[%s1798 + $0x218] sm:$0xff]
        %v1925 = vld [vmem:[%s1798 + $0x220] sm:$0xff]
        %v1926 = vld [vmem:[%s1798 + $0x228] sm:$0xff]
        %v1927 = vld [vmem:[%s1798 + $0x230] sm:$0xff]
        %v1928 = vld [vmem:[%s1798 + $0x238] sm:$0xff]
        %v1929 = vld [vmem:[%s1798 + $0x240] sm:$0xff]
        %v1930 = vld [vmem:[%s1798 + $0x248] sm:$0xff]
        %v1931 = vld [vmem:[%s1798 + $0x250] sm:$0xff]
        %v1932 = vld [vmem:[%s1798 + $0x258] sm:$0xff]
        %v1933 = vld [vmem:[%s1798 + $0x260] sm:$0xff]
        %v1934 = vld [vmem:[%s1798 + $0x268] sm:$0xff]
        %v1935 = vld [vmem:[%s1798 + $0x270] sm:$0xff]
        %v1936 = vld [vmem:[%s1798 + $0x278] sm:$0xff]
        %v1937 = vld [vmem:[%s1798 + $0x280] sm:$0xff]
        %v1938 = vld [vmem:[%s1798 + $0x288] sm:$0xff]
        %v1939 = vld [vmem:[%s1798 + $0x290] sm:$0xff]
        %v1940 = vld [vmem:[%s1798 + $0x298] sm:$0xff]
        %v1941 = vld [vmem:[%s1798 + $0x2a0] sm:$0xff]
        %v1942 = vld [vmem:[%s1798 + $0x2a8] sm:$0xff]
        %v1943 = vld [vmem:[%s1798 + $0x2b0] sm:$0xff]
        %v1944 = vld [vmem:[%s1798 + $0x2b8] sm:$0xff]
        %v1945 = vld [vmem:[%s1798 + $0x2c0] sm:$0xff]
        %v1946 = vld [vmem:[%s1798 + $0x2c8] sm:$0xff]
        %v1947 = vld [vmem:[%s1798 + $0x2d0] sm:$0xff]
        %v1948 = vld [vmem:[%s1798 + $0x2d8] sm:$0xff]
        %v1949 = vld [vmem:[%s1798 + $0x2e0] sm:$0xff]
        %v1950 = vld [vmem:[%s1798 + $0x2e8] sm:$0xff]
        %v1951 = vld [vmem:[%s1798 + $0x2f0] sm:$0xff]
        %v1952 = vld [vmem:[%s1798 + $0x2f8] sm:$0xff]
        %v1953 = vld [vmem:[%s1798 + $0x300] sm:$0xff]
        %v1954 = vld [vmem:[%s1798 + $0x308] sm:$0xff]
        %v1955 = vld [vmem:[%s1798 + $0x310] sm:$0xff]
        %v1956 = vld [vmem:[%s1798 + $0x318] sm:$0xff]
        %v1957 = vld [vmem:[%s1798 + $0x320] sm:$0xff]
        %v1958 = vld [vmem:[%s1798 + $0x328] sm:$0xff]
        %v1959 = vld [vmem:[%s1798 + $0x330] sm:$0xff]
        %v1960 = vld [vmem:[%s1798 + $0x338] sm:$0xff]
        %v1961 = vld [vmem:[%s1798 + $0x340] sm:$0xff]
        %v1962 = vld [vmem:[%s1798 + $0x348] sm:$0xff]
        %v1963 = vld [vmem:[%s1798 + $0x350] sm:$0xff]
        %v1964 = vld [vmem:[%s1798 + $0x358] sm:$0xff]
        %v1965 = vld [vmem:[%s1798 + $0x360] sm:$0xff]
        %v1966 = vld [vmem:[%s1798 + $0x368] sm:$0xff]
        %v1967 = vld [vmem:[%s1798 + $0x370] sm:$0xff]
        %v1968 = vld [vmem:[%s1798 + $0x378] sm:$0xff]
        %v1969 = vld [vmem:[%s1798 + $0x380] sm:$0xff]
        %v1970 = vld [vmem:[%s1798 + $0x388] sm:$0xff]
        %v1971 = vld [vmem:[%s1798 + $0x390] sm:$0xff]
        %v1972 = vld [vmem:[%s1798 + $0x398] sm:$0xff]
        %v1973 = vld [vmem:[%s1798 + $0x3a0] sm:$0xff]
        %v1974 = vld [vmem:[%s1798 + $0x3a8] sm:$0xff]
        %v1975 = vld [vmem:[%s1798 + $0x3b0] sm:$0xff]
        %v1976 = vld [vmem:[%s1798 + $0x3b8] sm:$0xff]
        %v1977 = vld [vmem:[%s1798 + $0x3c0] sm:$0xff]
        %v1978 = vld [vmem:[%s1798 + $0x3c8] sm:$0xff]
        %v1979 = vld [vmem:[%s1798 + $0x3d0] sm:$0xff]
        %v1980 = vld [vmem:[%s1798 + $0x3d8] sm:$0xff]
        %v1981 = vld [vmem:[%s1798 + $0x3e0] sm:$0xff]
        %v1982 = vld [vmem:[%s1798 + $0x3e8] sm:$0xff]
        %v1983 = vld [vmem:[%s1798 + $0x3f0] sm:$0xff]
        %v1984 = vld [vmem:[%s1798 + $0x3f8] sm:$0xff]
        %v1985 = vld [vmem:[%s1798 + $0x400] sm:$0xff]
        %v1986 = vld [vmem:[%s1798 + $0x408] sm:$0xff]
        %v1987 = vld [vmem:[%s1798 + $0x410] sm:$0xff]
        %v1988 = vld [vmem:[%s1798 + $0x418] sm:$0xff]
        %v1989 = vld [vmem:[%s1798 + $0x420] sm:$0xff]
        %v1990 = vld [vmem:[%s1798 + $0x428] sm:$0xff]
        %v1991 = vld [vmem:[%s1798 + $0x430] sm:$0xff]
        %v1992 = vld [vmem:[%s1798 + $0x438] sm:$0xff]
        %v1993 = vld [vmem:[%s1798 + $0x440] sm:$0xff]
        %v1994 = vld [vmem:[%s1798 + $0x448] sm:$0xff]
        %v1995 = vld [vmem:[%s1798 + $0x450] sm:$0xff]
        %v1996 = vld [vmem:[%s1798 + $0x458] sm:$0xff]
        %v1997 = vld [vmem:[%s1798 + $0x460] sm:$0xff]
        %v1998 = vld [vmem:[%s1798 + $0x468] sm:$0xff]
        %v1999 = vld [vmem:[%s1798 + $0x470] sm:$0xff]
        %v2000 = vld [vmem:[%s1798 + $0x478] sm:$0xff]
        %v2001 = vld [vmem:[%s1798 + $0x480] sm:$0xff]
        %v2002 = vld [vmem:[%s1798 + $0x488] sm:$0xff]
        %v2003 = vld [vmem:[%s1798 + $0x490] sm:$0xff]
        %v2004 = vld [vmem:[%s1798 + $0x498] sm:$0xff]
        %v2005 = vld [vmem:[%s1798 + $0x4a0] sm:$0xff]
        %v2006 = vld [vmem:[%s1798 + $0x4a8] sm:$0xff]
        %v2007 = vld [vmem:[%s1798 + $0x4b0] sm:$0xff]
        %v2008 = vld [vmem:[%s1798 + $0x4b8] sm:$0xff]
        %v2009 = vld [vmem:[%s1798 + $0x4c0] sm:$0xff]
        %v2010 = vld [vmem:[%s1798 + $0x4c8] sm:$0xff]
        %v2011 = vld [vmem:[%s1798 + $0x4d0] sm:$0xff]
        %v2012 = vld [vmem:[%s1798 + $0x4d8] sm:$0xff]
        %v2013 = vld [vmem:[%s1798 + $0x4e0] sm:$0xff]
        %v2014 = vld [vmem:[%s1798 + $0x4e8] sm:$0xff]
        %v2015 = vld [vmem:[%s1798 + $0x4f0] sm:$0xff]
        %v2016 = vld [vmem:[%s1798 + $0x4f8] sm:$0xff]
        %v2017 = vld [vmem:[%s1798 + $0x500] sm:$0xff]
        %v2018 = vld [vmem:[%s1798 + $0x508] sm:$0xff]
        %v2019 = vld [vmem:[%s1798 + $0x510] sm:$0xff]
        %v2020 = vld [vmem:[%s1798 + $0x518] sm:$0xff]
        %v2021 = vld [vmem:[%s1798 + $0x520] sm:$0xff]
        %v2022 = vld [vmem:[%s1798 + $0x528] sm:$0xff]
        %v2023 = vld [vmem:[%s1798 + $0x530] sm:$0xff]
        %v2024 = vld [vmem:[%s1798 + $0x538] sm:$0xff]
        %v2025 = vld [vmem:[%s1798 + $0x540] sm:$0xff]
        %v2026 = vld [vmem:[%s1798 + $0x548] sm:$0xff]
        %v2027 = vld [vmem:[%s1798 + $0x550] sm:$0xff]
        %v2028 = vld [vmem:[%s1798 + $0x558] sm:$0xff]
        %v2029 = vld [vmem:[%s1798 + $0x560] sm:$0xff]
        %v2030 = vld [vmem:[%s1798 + $0x568] sm:$0xff]
        %v2031 = vld [vmem:[%s1798 + $0x570] sm:$0xff]
        %v2032 = vld [vmem:[%s1798 + $0x578] sm:$0xff]
        %v2033 = vld [vmem:[%s1798 + $0x580] sm:$0xff]
        %v2034 = vld [vmem:[%s1798 + $0x588] sm:$0xff]
        %v2035 = vld [vmem:[%s1798 + $0x590] sm:$0xff]
        %v2036 = vld [vmem:[%s1798 + $0x598] sm:$0xff]
        %v2037 = vld [vmem:[%s1798 + $0x5a0] sm:$0xff]
        %v2038 = vld [vmem:[%s1798 + $0x5a8] sm:$0xff]
        %v2039 = vld [vmem:[%s1798 + $0x5b0] sm:$0xff]
        %v2040 = vld [vmem:[%s1798 + $0x5b8] sm:$0xff]
        %v2041 = vld [vmem:[%s1798 + $0x5c0] sm:$0xff]
        %v2042 = vld [vmem:[%s1798 + $0x5c8] sm:$0xff]
        %v2043 = vld [vmem:[%s1798 + $0x5d0] sm:$0xff]
        %v2044 = vld [vmem:[%s1798 + $0x5d8] sm:$0xff]
        %v2045 = vld [vmem:[%s1798 + $0x5e0] sm:$0xff]
        %v2046 = vld [vmem:[%s1798 + $0x5e8] sm:$0xff]
        %v2047 = vld [vmem:[%s1798 + $0x5f0] sm:$0xff]
        %v2048 = vld [vmem:[%s1798 + $0x5f8] sm:$0xff]
        %v2049 = vld [vmem:[%s1798 + $0x600] sm:$0xff]
        %v2050 = vld [vmem:[%s1798 + $0x608] sm:$0xff]
        %v2051 = vld [vmem:[%s1798 + $0x610] sm:$0xff]
        %v2052 = vld [vmem:[%s1798 + $0x618] sm:$0xff]
        %v2053 = vld [vmem:[%s1798 + $0x620] sm:$0xff]
        %v2054 = vld [vmem:[%s1798 + $0x628] sm:$0xff]
        %v2055 = vld [vmem:[%s1798 + $0x630] sm:$0xff]
        %v2056 = vld [vmem:[%s1798 + $0x638] sm:$0xff]
        %v2057 = vld [vmem:[%s1798 + $0x640] sm:$0xff]
        %v2058 = vld [vmem:[%s1798 + $0x648] sm:$0xff]
        %v2059 = vld [vmem:[%s1798 + $0x650] sm:$0xff]
        %v2060 = vld [vmem:[%s1798 + $0x658] sm:$0xff]
        %v2061 = vld [vmem:[%s1798 + $0x660] sm:$0xff]
        %v2062 = vld [vmem:[%s1798 + $0x668] sm:$0xff]
        %v2063 = vld [vmem:[%s1798 + $0x670] sm:$0xff]
        %v2064 = vld [vmem:[%s1798 + $0x678] sm:$0xff]
        %v2065 = vld [vmem:[%s1798 + $0x680] sm:$0xff]
        %v2066 = vld [vmem:[%s1798 + $0x688] sm:$0xff]
        %v2067 = vld [vmem:[%s1798 + $0x690] sm:$0xff]
        %v2068 = vld [vmem:[%s1798 + $0x698] sm:$0xff]
        %v2069 = vld [vmem:[%s1798 + $0x6a0] sm:$0xff]
        %v2070 = vld [vmem:[%s1798 + $0x6a8] sm:$0xff]
        %v2071 = vld [vmem:[%s1798 + $0x6b0] sm:$0xff]
        %v2072 = vld [vmem:[%s1798 + $0x6b8] sm:$0xff]
        %v2073 = vld [vmem:[%s1798 + $0x6c0] sm:$0xff]
        %v2074 = vld [vmem:[%s1798 + $0x6c8] sm:$0xff]
        %v2075 = vld [vmem:[%s1798 + $0x6d0] sm:$0xff]
        %v2076 = vld [vmem:[%s1798 + $0x6d8] sm:$0xff]
        %v2077 = vld [vmem:[%s1798 + $0x6e0] sm:$0xff]
        %v2078 = vld [vmem:[%s1798 + $0x6e8] sm:$0xff]
        %v2079 = vld [vmem:[%s1798 + $0x6f0] sm:$0xff]
        %v2080 = vld [vmem:[%s1798 + $0x6f8] sm:$0xff]
        %v2081 = vld [vmem:[%s1798 + $0x700] sm:$0xff]
        %v2082 = vld [vmem:[%s1798 + $0x708] sm:$0xff]
        %v2083 = vld [vmem:[%s1798 + $0x710] sm:$0xff]
        %v2084 = vld [vmem:[%s1798 + $0x718] sm:$0xff]
        %v2085 = vld [vmem:[%s1798 + $0x720] sm:$0xff]
        %v2086 = vld [vmem:[%s1798 + $0x728] sm:$0xff]
        %v2087 = vld [vmem:[%s1798 + $0x730] sm:$0xff]
        %v2088 = vld [vmem:[%s1798 + $0x738] sm:$0xff]
        %v2089 = vld [vmem:[%s1798 + $0x740] sm:$0xff]
        %v2090 = vld [vmem:[%s1798 + $0x748] sm:$0xff]
        %v2091 = vld [vmem:[%s1798 + $0x750] sm:$0xff]
        %v2092 = vld [vmem:[%s1798 + $0x758] sm:$0xff]
        %v2093 = vld [vmem:[%s1798 + $0x760] sm:$0xff]
        %v2094 = vld [vmem:[%s1798 + $0x768] sm:$0xff]
        %v2095 = vld [vmem:[%s1798 + $0x770] sm:$0xff]
        %v2096 = vld [vmem:[%s1798 + $0x778] sm:$0xff]
        %v2097 = vld [vmem:[%s1798 + $0x780] sm:$0xff]
        %v2098 = vld [vmem:[%s1798 + $0x788] sm:$0xff]
        %v2099 = vld [vmem:[%s1798 + $0x790] sm:$0xff]
        %v2100 = vld [vmem:[%s1798 + $0x798] sm:$0xff]
        %v2101 = vld [vmem:[%s1798 + $0x7a0] sm:$0xff]
        %v2102 = vld [vmem:[%s1798 + $0x7a8] sm:$0xff]
        %v2103 = vld [vmem:[%s1798 + $0x7b0] sm:$0xff]
        %v2104 = vld [vmem:[%s1798 + $0x7b8] sm:$0xff]
        %v2105 = vld [vmem:[%s1798 + $0x7c0] sm:$0xff]
        %v2106 = vld [vmem:[%s1798 + $0x7c8] sm:$0xff]
        %v2107 = vld [vmem:[%s1798 + $0x7d0] sm:$0xff]
        %v2108 = vld [vmem:[%s1798 + $0x7d8] sm:$0xff]
        %v2109 = vld [vmem:[%s1798 + $0x7e0] sm:$0xff]
        %v2110 = vld [vmem:[%s1798 + $0x7e8] sm:$0xff]
        %v2111 = vld [vmem:[%s1798 + $0x7f0] sm:$0xff]
        %v2112 = vld [vmem:[%s1798 + $0x7f8] sm:$0xff]
        %v2113 = vld [vmem:[%s1798 + $0x800] sm:$0xff]
        %v2114 = vld [vmem:[%s1798 + $0x808] sm:$0xff]
        %v2115 = vld [vmem:[%s1798 + $0x810] sm:$0xff]
        %v2116 = vld [vmem:[%s1798 + $0x818] sm:$0xff]
        %v2117 = vld [vmem:[%s1798 + $0x820] sm:$0xff]
        %v2118 = vld [vmem:[%s1798 + $0x828] sm:$0xff]
        %v2119 = vld [vmem:[%s1798 + $0x830] sm:$0xff]
        %v2120 = vld [vmem:[%s1798 + $0x838] sm:$0xff]
        %v2121 = vld [vmem:[%s1798 + $0x840] sm:$0xff]
        %v2122 = vld [vmem:[%s1798 + $0x848] sm:$0xff]
        %v2123 = vld [vmem:[%s1798 + $0x850] sm:$0xff]
        %v2124 = vld [vmem:[%s1798 + $0x858] sm:$0xff]
        %v2125 = vld [vmem:[%s1798 + $0x860] sm:$0xff]
        %v2126 = vld [vmem:[%s1798 + $0x868] sm:$0xff]
        %v2127 = vld [vmem:[%s1798 + $0x870] sm:$0xff]
        %v2128 = vld [vmem:[%s1798 + $0x878] sm:$0xff]
        %v2129 = vld [vmem:[%s1798 + $0x880] sm:$0xff]
        %v2130 = vld [vmem:[%s1798 + $0x888] sm:$0xff]
        %v2131 = vld [vmem:[%s1798 + $0x890] sm:$0xff]
        %v2132 = vld [vmem:[%s1798 + $0x898] sm:$0xff]
        %v2133 = vld [vmem:[%s1798 + $0x8a0] sm:$0xff]
        %v2134 = vld [vmem:[%s1798 + $0x8a8] sm:$0xff]
        %v2135 = vld [vmem:[%s1798 + $0x8b0] sm:$0xff]
        %v2136 = vld [vmem:[%s1798 + $0x8b8] sm:$0xff]
        %v2137 = vld [vmem:[%s1798 + $0x8c0] sm:$0xff]
        %v2138 = vld [vmem:[%s1798 + $0x8c8] sm:$0xff]
        %v2139 = vld [vmem:[%s1798 + $0x8d0] sm:$0xff]
        %v2140 = vld [vmem:[%s1798 + $0x8d8] sm:$0xff]
        %v2141 = vld [vmem:[%s1798 + $0x8e0] sm:$0xff]
        %v2142 = vld [vmem:[%s1798 + $0x8e8] sm:$0xff]
        %v2143 = vld [vmem:[%s1798 + $0x8f0] sm:$0xff]
        %v2144 = vld [vmem:[%s1798 + $0x8f8] sm:$0xff]
        %v2145 = vld [vmem:[%s1798 + $0x900] sm:$0xff]
        %v2146 = vld [vmem:[%s1798 + $0x908] sm:$0xff]
        %v2147 = vld [vmem:[%s1798 + $0x910] sm:$0xff]
        %v2148 = vld [vmem:[%s1798 + $0x918] sm:$0xff]
        %v2149 = vld [vmem:[%s1798 + $0x920] sm:$0xff]
        %v2150 = vld [vmem:[%s1798 + $0x928] sm:$0xff]
        %v2151 = vld [vmem:[%s1798 + $0x930] sm:$0xff]
        %v2152 = vld [vmem:[%s1798 + $0x938] sm:$0xff]
        %v2153 = vld [vmem:[%s1798 + $0x940] sm:$0xff]
        %v2154 = vld [vmem:[%s1798 + $0x948] sm:$0xff]
        %v2155 = vld [vmem:[%s1798 + $0x950] sm:$0xff]
        %v2156 = vld [vmem:[%s1798 + $0x958] sm:$0xff]
        %v2157 = vld [vmem:[%s1798 + $0x960] sm:$0xff]
        %v2158 = vld [vmem:[%s1798 + $0x968] sm:$0xff]
        %v2159 = vld [vmem:[%s1798 + $0x970] sm:$0xff]
        %v2160 = vld [vmem:[%s1798 + $0x978] sm:$0xff]
        %v2161 = vld [vmem:[%s1798 + $0x980] sm:$0xff]
        %v2162 = vld [vmem:[%s1798 + $0x988] sm:$0xff]
        %v2163 = vld [vmem:[%s1798 + $0x990] sm:$0xff]
        %v2164 = vld [vmem:[%s1798 + $0x998] sm:$0xff]
        %v2165 = vld [vmem:[%s1798 + $0x9a0] sm:$0xff]
        %v2166 = vld [vmem:[%s1798 + $0x9a8] sm:$0xff]
        %v2167 = vld [vmem:[%s1798 + $0x9b0] sm:$0xff]
        %v2168 = vld [vmem:[%s1798 + $0x9b8] sm:$0xff]
        %v2169 = vld [vmem:[%s1798 + $0x9c0] sm:$0xff]
        %v2170 = vld [vmem:[%s1798 + $0x9c8] sm:$0xff]
        %v2171 = vld [vmem:[%s1798 + $0x9d0] sm:$0xff]
        %v2172 = vld [vmem:[%s1798 + $0x9d8] sm:$0xff]
        %v2173 = vld [vmem:[%s1798 + $0x9e0] sm:$0xff]
        %v2174 = vld [vmem:[%s1798 + $0x9e8] sm:$0xff]
        %v2175 = vld [vmem:[%s1798 + $0x9f0] sm:$0xff]
        %v2176 = vld [vmem:[%s1798 + $0x9f8] sm:$0xff]
        %v2177 = vld [vmem:[%s1798 + $0xa00] sm:$0xff]
        %v2178 = vld [vmem:[%s1798 + $0xa08] sm:$0xff]
        %v2179 = vld [vmem:[%s1798 + $0xa10] sm:$0xff]
        %v2180 = vld [vmem:[%s1798 + $0xa18] sm:$0xff]
        %v2181 = vld [vmem:[%s1798 + $0xa20] sm:$0xff]
        %v2182 = vld [vmem:[%s1798 + $0xa28] sm:$0xff]
        %v2183 = vld [vmem:[%s1798 + $0xa30] sm:$0xff]
        %v2184 = vld [vmem:[%s1798 + $0xa38] sm:$0xff]
        %v2185 = vld [vmem:[%s1798 + $0xa40] sm:$0xff]
        %v2186 = vld [vmem:[%s1798 + $0xa48] sm:$0xff]
        %v2187 = vld [vmem:[%s1798 + $0xa50] sm:$0xff]
        %v2188 = vld [vmem:[%s1798 + $0xa58] sm:$0xff]
        %v2189 = vld [vmem:[%s1798 + $0xa60] sm:$0xff]
        %v2190 = vld [vmem:[%s1798 + $0xa68] sm:$0xff]
        %v2191 = vld [vmem:[%s1798 + $0xa70] sm:$0xff]
        %v2192 = vld [vmem:[%s1798 + $0xa78] sm:$0xff]
        %v2193 = vld [vmem:[%s1798 + $0xa80] sm:$0xff]
        %v2194 = vld [vmem:[%s1798 + $0xa88] sm:$0xff]
        %v2195 = vld [vmem:[%s1798 + $0xa90] sm:$0xff]
        %v2196 = vld [vmem:[%s1798 + $0xa98] sm:$0xff]
        %v2197 = vld [vmem:[%s1798 + $0xaa0] sm:$0xff]
        %v2198 = vld [vmem:[%s1798 + $0xaa8] sm:$0xff]
        %v2199 = vld [vmem:[%s1798 + $0xab0] sm:$0xff]
        %v2200 = vld [vmem:[%s1798 + $0xab8] sm:$0xff]
        %v2201 = vld [vmem:[%s1798 + $0xac0] sm:$0xff]
        %v2202 = vld [vmem:[%s1798 + $0xac8] sm:$0xff]
        %v2203 = vld [vmem:[%s1798 + $0xad0] sm:$0xff]
        %v2204 = vld [vmem:[%s1798 + $0xad8] sm:$0xff]
        %v2205 = vld [vmem:[%s1798 + $0xae0] sm:$0xff]
        %v2206 = vld [vmem:[%s1798 + $0xae8] sm:$0xff]
        %v2207 = vld [vmem:[%s1798 + $0xaf0] sm:$0xff]
        %v2208 = vld [vmem:[%s1798 + $0xaf8] sm:$0xff]
        %v2209 = vld [vmem:[%s1798 + $0xb00] sm:$0xff]
        %v2210 = vld [vmem:[%s1798 + $0xb08] sm:$0xff]
        %v2211 = vld [vmem:[%s1798 + $0xb10] sm:$0xff]
        %v2212 = vld [vmem:[%s1798 + $0xb18] sm:$0xff]
        %v2213 = vld [vmem:[%s1798 + $0xb20] sm:$0xff]
        %v2214 = vld [vmem:[%s1798 + $0xb28] sm:$0xff]
        %v2215 = vld [vmem:[%s1798 + $0xb30] sm:$0xff]
        %v2216 = vld [vmem:[%s1798 + $0xb38] sm:$0xff]
        %v2217 = vld [vmem:[%s1798 + $0xb40] sm:$0xff]
        %v2218 = vld [vmem:[%s1798 + $0xb48] sm:$0xff]
        %v2219 = vld [vmem:[%s1798 + $0xb50] sm:$0xff]
        %v2220 = vld [vmem:[%s1798 + $0xb58] sm:$0xff]
        %v2221 = vld [vmem:[%s1798 + $0xb60] sm:$0xff]
        %v2222 = vld [vmem:[%s1798 + $0xb68] sm:$0xff]
        %v2223 = vld [vmem:[%s1798 + $0xb70] sm:$0xff]
        %v2224 = vld [vmem:[%s1798 + $0xb78] sm:$0xff]
        %v2225 = vld [vmem:[%s1798 + $0xb80] sm:$0xff]
        %v2226 = vld [vmem:[%s1798 + $0xb88] sm:$0xff]
        %v2227 = vld [vmem:[%s1798 + $0xb90] sm:$0xff]
        %v2228 = vld [vmem:[%s1798 + $0xb98] sm:$0xff]
        %v2229 = vld [vmem:[%s1798 + $0xba0] sm:$0xff]
        %v2230 = vld [vmem:[%s1798 + $0xba8] sm:$0xff]
        %v2231 = vld [vmem:[%s1798 + $0xbb0] sm:$0xff]
        %v2232 = vld [vmem:[%s1798 + $0xbb8] sm:$0xff]
        %v2233 = vld [vmem:[%s1798 + $0xbc0] sm:$0xff]
        %v2234 = vld [vmem:[%s1798 + $0xbc8] sm:$0xff]
        %v2235 = vld [vmem:[%s1798 + $0xbd0] sm:$0xff]
        %v2236 = vld [vmem:[%s1798 + $0xbd8] sm:$0xff]
        %v2237 = vld [vmem:[%s1798 + $0xbe0] sm:$0xff]
        %v2238 = vld [vmem:[%s1798 + $0xbe8] sm:$0xff]
        %v2239 = vld [vmem:[%s1798 + $0xbf0] sm:$0xff]
        %v2240 = vld [vmem:[%s1798 + $0xbf8] sm:$0xff]
        %v2241 = vld [vmem:[%s1798 + $0xc00] sm:$0xff]
        %v2242 = vld [vmem:[%s1798 + $0xc08] sm:$0xff]
        %v2243 = vld [vmem:[%s1798 + $0xc10] sm:$0xff]
        %v2244 = vld [vmem:[%s1798 + $0xc18] sm:$0xff]
        %v2245 = vld [vmem:[%s1798 + $0xc20] sm:$0xff]
        %v2246 = vld [vmem:[%s1798 + $0xc28] sm:$0xff]
        %v2247 = vld [vmem:[%s1798 + $0xc30] sm:$0xff]
        %v2248 = vld [vmem:[%s1798 + $0xc38] sm:$0xff]
        %v2249 = vld [vmem:[%s1798 + $0xc40] sm:$0xff]
        %v2250 = vld [vmem:[%s1798 + $0xc48] sm:$0xff]
        %v2251 = vld [vmem:[%s1798 + $0xc50] sm:$0xff]
        %v2252 = vld [vmem:[%s1798 + $0xc58] sm:$0xff]
        %v2253 = vld [vmem:[%s1798 + $0xc60] sm:$0xff]
        %v2254 = vld [vmem:[%s1798 + $0xc68] sm:$0xff]
        %v2255 = vld [vmem:[%s1798 + $0xc70] sm:$0xff]
        %v2256 = vld [vmem:[%s1798 + $0xc78] sm:$0xff]
        %v2257 = vld [vmem:[%s1798 + $0xc80] sm:$0xff]
        %v2258 = vld [vmem:[%s1798 + $0xc88] sm:$0xff]
        %v2259 = vld [vmem:[%s1798 + $0xc90] sm:$0xff]
        %v2260 = vld [vmem:[%s1798 + $0xc98] sm:$0xff]
        %v2261 = vld [vmem:[%s1798 + $0xca0] sm:$0xff]
        %v2262 = vld [vmem:[%s1798 + $0xca8] sm:$0xff]
        %v2263 = vld [vmem:[%s1798 + $0xcb0] sm:$0xff]
        %v2264 = vld [vmem:[%s1798 + $0xcb8] sm:$0xff]
        %v2265 = vld [vmem:[%s1798 + $0xcc0] sm:$0xff]
        %v2266 = vld [vmem:[%s1798 + $0xcc8] sm:$0xff]
        %v2267 = vld [vmem:[%s1798 + $0xcd0] sm:$0xff]
        %v2268 = vld [vmem:[%s1798 + $0xcd8] sm:$0xff]
        %v2269 = vld [vmem:[%s1798 + $0xce0] sm:$0xff]
        %v2270 = vld [vmem:[%s1798 + $0xce8] sm:$0xff]
        %v2271 = vld [vmem:[%s1798 + $0xcf0] sm:$0xff]
        %v2272 = vld [vmem:[%s1798 + $0xcf8] sm:$0xff]
        %v2273 = vld [vmem:[%s1798 + $0xd00] sm:$0xff]
        %v2274 = vld [vmem:[%s1798 + $0xd08] sm:$0xff]
        %v2275 = vld [vmem:[%s1798 + $0xd10] sm:$0xff]
        %v2276 = vld [vmem:[%s1798 + $0xd18] sm:$0xff]
        %v2277 = vld [vmem:[%s1798 + $0xd20] sm:$0xff]
        %v2278 = vld [vmem:[%s1798 + $0xd28] sm:$0xff]
        %v2279 = vld [vmem:[%s1798 + $0xd30] sm:$0xff]
        %v2280 = vld [vmem:[%s1798 + $0xd38] sm:$0xff]
        %v2281 = vld [vmem:[%s1798 + $0xd40] sm:$0xff]
        %v2282 = vld [vmem:[%s1798 + $0xd48] sm:$0xff]
        %v2283 = vld [vmem:[%s1798 + $0xd50] sm:$0xff]
        %v2284 = vld [vmem:[%s1798 + $0xd58] sm:$0xff]
        %v2285 = vld [vmem:[%s1798 + $0xd60] sm:$0xff]
        %v2286 = vld [vmem:[%s1798 + $0xd68] sm:$0xff]
        %v2287 = vld [vmem:[%s1798 + $0xd70] sm:$0xff]
        %v2288 = vld [vmem:[%s1798 + $0xd78] sm:$0xff]
        %v2289 = vld [vmem:[%s1798 + $0xd80] sm:$0xff]
        %v2290 = vld [vmem:[%s1798 + $0xd88] sm:$0xff]
        %v2291 = vld [vmem:[%s1798 + $0xd90] sm:$0xff]
        %v2292 = vld [vmem:[%s1798 + $0xd98] sm:$0xff]
        %v2293 = vld [vmem:[%s1798 + $0xda0] sm:$0xff]
        %v2294 = vld [vmem:[%s1798 + $0xda8] sm:$0xff]
        %v2295 = vld [vmem:[%s1798 + $0xdb0] sm:$0xff]
        %v2296 = vld [vmem:[%s1798 + $0xdb8] sm:$0xff]
        %v2297 = vld [vmem:[%s1798 + $0xdc0] sm:$0xff]
        %v2298 = vld [vmem:[%s1798 + $0xdc8] sm:$0xff]
        %v2299 = vld [vmem:[%s1798 + $0xdd0] sm:$0xff]
        %v2300 = vld [vmem:[%s1798 + $0xdd8] sm:$0xff]
        %v2301 = vld [vmem:[%s1798 + $0xde0] sm:$0xff]
        %v2302 = vld [vmem:[%s1798 + $0xde8] sm:$0xff]
        %v2303 = vld [vmem:[%s1798 + $0xdf0] sm:$0xff]
        %v2304 = vld [vmem:[%s1798 + $0xdf8] sm:$0xff]
        %v2305 = vld [vmem:[%s1798 + $0xe00] sm:$0xff]
        %v2306 = vld [vmem:[%s1798 + $0xe08] sm:$0xff]
        %v2307 = vld [vmem:[%s1798 + $0xe10] sm:$0xff]
        %v2308 = vld [vmem:[%s1798 + $0xe18] sm:$0xff]
        %v2309 = vld [vmem:[%s1798 + $0xe20] sm:$0xff]
        %v2310 = vld [vmem:[%s1798 + $0xe28] sm:$0xff]
        %v2311 = vld [vmem:[%s1798 + $0xe30] sm:$0xff]
        %v2312 = vld [vmem:[%s1798 + $0xe38] sm:$0xff]
        %v2313 = vld [vmem:[%s1798 + $0xe40] sm:$0xff]
        %v2314 = vld [vmem:[%s1798 + $0xe48] sm:$0xff]
        %v2315 = vld [vmem:[%s1798 + $0xe50] sm:$0xff]
        %v2316 = vld [vmem:[%s1798 + $0xe58] sm:$0xff]
        %v2317 = vld [vmem:[%s1798 + $0xe60] sm:$0xff]
        %v2318 = vld [vmem:[%s1798 + $0xe68] sm:$0xff]
        %v2319 = vld [vmem:[%s1798 + $0xe70] sm:$0xff]
        %v2320 = vld [vmem:[%s1798 + $0xe78] sm:$0xff]
        %v2321 = vld [vmem:[%s1798 + $0xe80] sm:$0xff]
        %v2322 = vld [vmem:[%s1798 + $0xe88] sm:$0xff]
        %v2323 = vld [vmem:[%s1798 + $0xe90] sm:$0xff]
        %v2324 = vld [vmem:[%s1798 + $0xe98] sm:$0xff]
        %v2325 = vld [vmem:[%s1798 + $0xea0] sm:$0xff]
        %v2326 = vld [vmem:[%s1798 + $0xea8] sm:$0xff]
        %v2327 = vld [vmem:[%s1798 + $0xeb0] sm:$0xff]
        %v2328 = vld [vmem:[%s1798 + $0xeb8] sm:$0xff]
        %v2329 = vld [vmem:[%s1798 + $0xec0] sm:$0xff]
        %v2330 = vld [vmem:[%s1798 + $0xec8] sm:$0xff]
        %v2331 = vld [vmem:[%s1798 + $0xed0] sm:$0xff]
        %v2332 = vld [vmem:[%s1798 + $0xed8] sm:$0xff]
        %v2333 = vld [vmem:[%s1798 + $0xee0] sm:$0xff]
        %v2334 = vld [vmem:[%s1798 + $0xee8] sm:$0xff]
        %v2335 = vld [vmem:[%s1798 + $0xef0] sm:$0xff]
        %v2336 = vld [vmem:[%s1798 + $0xef8] sm:$0xff]
        %v2337 = vld [vmem:[%s1798 + $0xf00] sm:$0xff]
        %v2338 = vld [vmem:[%s1798 + $0xf08] sm:$0xff]
        %v2339 = vld [vmem:[%s1798 + $0xf10] sm:$0xff]
        %v2340 = vld [vmem:[%s1798 + $0xf18] sm:$0xff]
        %v2341 = vld [vmem:[%s1798 + $0xf20] sm:$0xff]
        %v2342 = vld [vmem:[%s1798 + $0xf28] sm:$0xff]
        %v2343 = vld [vmem:[%s1798 + $0xf30] sm:$0xff]
        %v2344 = vld [vmem:[%s1798 + $0xf38] sm:$0xff]
        %v2345 = vld [vmem:[%s1798 + $0xf40] sm:$0xff]
        %v2346 = vld [vmem:[%s1798 + $0xf48] sm:$0xff]
        %v2347 = vld [vmem:[%s1798 + $0xf50] sm:$0xff]
        %v2348 = vld [vmem:[%s1798 + $0xf58] sm:$0xff]
        %v2349 = vld [vmem:[%s1798 + $0xf60] sm:$0xff]
        %v2350 = vld [vmem:[%s1798 + $0xf68] sm:$0xff]
        %v2351 = vld [vmem:[%s1798 + $0xf70] sm:$0xff]
        %v2352 = vld [vmem:[%s1798 + $0xf78] sm:$0xff]
        %v2353 = vld [vmem:[%s1798 + $0xf80] sm:$0xff]
        %v2354 = vld [vmem:[%s1798 + $0xf88] sm:$0xff]
        %v2355 = vld [vmem:[%s1798 + $0xf90] sm:$0xff]
        %v2356 = vld [vmem:[%s1798 + $0xf98] sm:$0xff]
        %v2357 = vld [vmem:[%s1798 + $0xfa0] sm:$0xff]
        %v2358 = vld [vmem:[%s1798 + $0xfa8] sm:$0xff]
        %v2359 = vld [vmem:[%s1798 + $0xfb0] sm:$0xff]
        %v2360 = vld [vmem:[%s1798 + $0xfb8] sm:$0xff]
        %v2361 = vld [vmem:[%s1798 + $0xfc0] sm:$0xff]
        %v2362 = vld [vmem:[%s1798 + $0xfc8] sm:$0xff]
        %v2363 = vld [vmem:[%s1798 + $0xfd0] sm:$0xff]
        %v2364 = vld [vmem:[%s1798 + $0xfd8] sm:$0xff]
        %v2365 = vld [vmem:[%s1798 + $0xfe0] sm:$0xff]
        %v2366 = vld [vmem:[%s1798 + $0xfe8] sm:$0xff]
        %v2367 = vld [vmem:[%s1798 + $0xff0] sm:$0xff]
        %v2368 = vld [vmem:[%s1798 + $0xff8] sm:$0xff]
        %v2369 = vld [vmem:[%s1798 + $0x1000] sm:$0xff]
        %v2370 = vld [vmem:[%s1798 + $0x1008] sm:$0xff]
        %v2371 = vld [vmem:[%s1798 + $0x1010] sm:$0xff]
        %v2372 = vld [vmem:[%s1798 + $0x1018] sm:$0xff]
        %v2373 = vld [vmem:[%s1798 + $0x1020] sm:$0xff]
        %v2374 = vld [vmem:[%s1798 + $0x1028] sm:$0xff]
        %v2375 = vld [vmem:[%s1798 + $0x1030] sm:$0xff]
        %v2376 = vld [vmem:[%s1798 + $0x1038] sm:$0xff]
        %v2377 = vld [vmem:[%s1798 + $0x1040] sm:$0xff]
        %v2378 = vld [vmem:[%s1798 + $0x1048] sm:$0xff]
        %v2379 = vld [vmem:[%s1798 + $0x1050] sm:$0xff]
        %v2380 = vld [vmem:[%s1798 + $0x1058] sm:$0xff]
        %v2381 = vld [vmem:[%s1798 + $0x1060] sm:$0xff]
        %v2382 = vld [vmem:[%s1798 + $0x1068] sm:$0xff]
        %v2383 = vld [vmem:[%s1798 + $0x1070] sm:$0xff]
        %v2384 = vld [vmem:[%s1798 + $0x1078] sm:$0xff]
        %v2385 = vld [vmem:[%s1798 + $0x1080] sm:$0xff]
        %v2386 = vld [vmem:[%s1798 + $0x1088] sm:$0xff]
        %v2387 = vld [vmem:[%s1798 + $0x1090] sm:$0xff]
        %v2388 = vld [vmem:[%s1798 + $0x1098] sm:$0xff]
        %v2389 = vld [vmem:[%s1798 + $0x10a0] sm:$0xff]
        %v2390 = vld [vmem:[%s1798 + $0x10a8] sm:$0xff]
        %v2391 = vld [vmem:[%s1798 + $0x10b0] sm:$0xff]
        %v2392 = vld [vmem:[%s1798 + $0x10b8] sm:$0xff]
        %v2393 = vld [vmem:[%s1798 + $0x10c0] sm:$0xff]
        %v2394 = vld [vmem:[%s1798 + $0x10c8] sm:$0xff]
        %v2395 = vld [vmem:[%s1798 + $0x10d0] sm:$0xff]
        %v2396 = vld [vmem:[%s1798 + $0x10d8] sm:$0xff]
        %v2397 = vld [vmem:[%s1798 + $0x10e0] sm:$0xff]
        %v2398 = vld [vmem:[%s1798 + $0x10e8] sm:$0xff]
        %v2399 = vld [vmem:[%s1798 + $0x10f0] sm:$0xff]
        %v2400 = vld [vmem:[%s1798 + $0x10f8] sm:$0xff]
        %v2401 = vld [vmem:[%s1798 + $0x1100] sm:$0xff]
        %v2402 = vld [vmem:[%s1798 + $0x1108] sm:$0xff]
        %v2403 = vld [vmem:[%s1798 + $0x1110] sm:$0xff]
        %v2404 = vld [vmem:[%s1798 + $0x1118] sm:$0xff]
        %v2405 = vld [vmem:[%s1798 + $0x1120] sm:$0xff]
        %v2406 = vld [vmem:[%s1798 + $0x1128] sm:$0xff]
        %v2407 = vld [vmem:[%s1798 + $0x1130] sm:$0xff]
        %v2408 = vld [vmem:[%s1798 + $0x1138] sm:$0xff]
        %v2409 = vld [vmem:[%s1798 + $0x1140] sm:$0xff]
        %v2410 = vld [vmem:[%s1798 + $0x1148] sm:$0xff]
        %v2411 = vld [vmem:[%s1798 + $0x1150] sm:$0xff]
        %v2412 = vld [vmem:[%s1798 + $0x1158] sm:$0xff]
        %v2413 = vld [vmem:[%s1798 + $0x1160] sm:$0xff]
        %v2414 = vld [vmem:[%s1798 + $0x1168] sm:$0xff]
        %v2415 = vld [vmem:[%s1798 + $0x1170] sm:$0xff]
        %v2416 = vld [vmem:[%s1798 + $0x1178] sm:$0xff]
        %v2417 = vld [vmem:[%s1798 + $0x1180] sm:$0xff]
        %v2418 = vld [vmem:[%s1798 + $0x1188] sm:$0xff]
        %v2419 = vld [vmem:[%s1798 + $0x1190] sm:$0xff]
        %v2420 = vld [vmem:[%s1798 + $0x1198] sm:$0xff]
        %v2421 = vld [vmem:[%s1798 + $0x11a0] sm:$0xff]
        %v2422 = vld [vmem:[%s1798 + $0x11a8] sm:$0xff]
        %v2423 = vld [vmem:[%s1798 + $0x11b0] sm:$0xff]
        %v2424 = vld [vmem:[%s1798 + $0x11b8] sm:$0xff]
        %v2425 = vld [vmem:[%s1798 + $0x11c0] sm:$0xff]
        %v2426 = vld [vmem:[%s1798 + $0x11c8] sm:$0xff]
        %v2427 = vld [vmem:[%s1798 + $0x11d0] sm:$0xff]
        %v2428 = vld [vmem:[%s1798 + $0x11d8] sm:$0xff]
        %v2429 = vld [vmem:[%s1798 + $0x11e0] sm:$0xff]
        %v2430 = vld [vmem:[%s1798 + $0x11e8] sm:$0xff]
        %v2431 = vld [vmem:[%s1798 + $0x11f0] sm:$0xff]
        %v2432 = vld [vmem:[%s1798 + $0x11f8] sm:$0xff]
        %v2433 = vld [vmem:[%s1798 + $0x1200] sm:$0xff]
        %v2434 = vld [vmem:[%s1798 + $0x1208] sm:$0xff]
        %v2435 = vld [vmem:[%s1798 + $0x1210] sm:$0xff]
        %v2436 = vld [vmem:[%s1798 + $0x1218] sm:$0xff]
        %v2437 = vld [vmem:[%s1798 + $0x1220] sm:$0xff]
        %v2438 = vld [vmem:[%s1798 + $0x1228] sm:$0xff]
        %v2439 = vld [vmem:[%s1798 + $0x1230] sm:$0xff]
        %v2440 = vld [vmem:[%s1798 + $0x1238] sm:$0xff]
        %v2441 = vld [vmem:[%s1798 + $0x1240] sm:$0xff]
        %v2442 = vld [vmem:[%s1798 + $0x1248] sm:$0xff]
        %v2443 = vld [vmem:[%s1798 + $0x1250] sm:$0xff]
        %v2444 = vld [vmem:[%s1798 + $0x1258] sm:$0xff]
        %v2445 = vld [vmem:[%s1798 + $0x1260] sm:$0xff]
        %v2446 = vld [vmem:[%s1798 + $0x1268] sm:$0xff]
        %v2447 = vld [vmem:[%s1798 + $0x1270] sm:$0xff]
        %v2448 = vld [vmem:[%s1798 + $0x1278] sm:$0xff]
        %v2449 = vld [vmem:[%s1798 + $0x1280] sm:$0xff]
        %v2450 = vld [vmem:[%s1798 + $0x1288] sm:$0xff]
        %v2451 = vld [vmem:[%s1798 + $0x1290] sm:$0xff]
        %v2452 = vld [vmem:[%s1798 + $0x1298] sm:$0xff]
        %v2453 = vld [vmem:[%s1798 + $0x12a0] sm:$0xff]
        %v2454 = vld [vmem:[%s1798 + $0x12a8] sm:$0xff]
        %v2455 = vld [vmem:[%s1798 + $0x12b0] sm:$0xff]
        %v2456 = vld [vmem:[%s1798 + $0x12b8] sm:$0xff]
        %v2457 = vld [vmem:[%s1798 + $0x12c0] sm:$0xff]
        %v2458 = vld [vmem:[%s1798 + $0x12c8] sm:$0xff]
        %v2459 = vld [vmem:[%s1798 + $0x12d0] sm:$0xff]
        %v2460 = vld [vmem:[%s1798 + $0x12d8] sm:$0xff]
        %v2461 = vld [vmem:[%s1798 + $0x12e0] sm:$0xff]
        %v2462 = vld [vmem:[%s1798 + $0x12e8] sm:$0xff]
        %v2463 = vld [vmem:[%s1798 + $0x12f0] sm:$0xff]
        %v2464 = vld [vmem:[%s1798 + $0x12f8] sm:$0xff]
        %v2465 = vld [vmem:[%s1798 + $0x1300] sm:$0xff]
        %v2466 = vld [vmem:[%s1798 + $0x1308] sm:$0xff]
        %v2467 = vld [vmem:[%s1798 + $0x1310] sm:$0xff]
        %v2468 = vld [vmem:[%s1798 + $0x1318] sm:$0xff]
        %v2469 = vld [vmem:[%s1798 + $0x1320] sm:$0xff]
        %v2470 = vld [vmem:[%s1798 + $0x1328] sm:$0xff]
        %v2471 = vld [vmem:[%s1798 + $0x1330] sm:$0xff]
        %v2472 = vld [vmem:[%s1798 + $0x1338] sm:$0xff]
        %v2473 = vld [vmem:[%s1798 + $0x1340] sm:$0xff]
        %v2474 = vld [vmem:[%s1798 + $0x1348] sm:$0xff]
        %v2475 = vld [vmem:[%s1798 + $0x1350] sm:$0xff]
        %v2476 = vld [vmem:[%s1798 + $0x1358] sm:$0xff]
        %v2477 = vld [vmem:[%s1798 + $0x1360] sm:$0xff]
        %v2478 = vld [vmem:[%s1798 + $0x1368] sm:$0xff]
        %v2479 = vld [vmem:[%s1798 + $0x1370] sm:$0xff]
        %v2480 = vld [vmem:[%s1798 + $0x1378] sm:$0xff]
        %v2481 = vld [vmem:[%s1798 + $0x1380] sm:$0xff]
        %v2482 = vld [vmem:[%s1798 + $0x1388] sm:$0xff]
        %v2483 = vld [vmem:[%s1798 + $0x1390] sm:$0xff]
        %v2484 = vld [vmem:[%s1798 + $0x1398] sm:$0xff]
        %v2485 = vld [vmem:[%s1798 + $0x13a0] sm:$0xff]
        %v2486 = vld [vmem:[%s1798 + $0x13a8] sm:$0xff]
        %v2487 = vld [vmem:[%s1798 + $0x13b0] sm:$0xff]
        %v2488 = vld [vmem:[%s1798 + $0x13b8] sm:$0xff]
        %v2489 = vld [vmem:[%s1798 + $0x13c0] sm:$0xff]
        %v2490 = vld [vmem:[%s1798 + $0x13c8] sm:$0xff]
        %v2491 = vld [vmem:[%s1798 + $0x13d0] sm:$0xff]
        %v2492 = vld [vmem:[%s1798 + $0x13d8] sm:$0xff]
        %v2493 = vld [vmem:[%s1798 + $0x13e0] sm:$0xff]
        %v2494 = vld [vmem:[%s1798 + $0x13e8] sm:$0xff]
        %v2495 = vld [vmem:[%s1798 + $0x13f0] sm:$0xff]
        %v2496 = vld [vmem:[%s1798 + $0x13f8] sm:$0xff]
        %v2497 = vld [vmem:[%s1798 + $0x1400] sm:$0xff]
        %v2498 = vld [vmem:[%s1798 + $0x1408] sm:$0xff]
        %v2499 = vld [vmem:[%s1798 + $0x1410] sm:$0xff]
        %v2500 = vld [vmem:[%s1798 + $0x1418] sm:$0xff]
        %v2501 = vld [vmem:[%s1798 + $0x1420] sm:$0xff]
        %v2502 = vld [vmem:[%s1798 + $0x1428] sm:$0xff]
        %v2503 = vld [vmem:[%s1798 + $0x1430] sm:$0xff]
        %v2504 = vld [vmem:[%s1798 + $0x1438] sm:$0xff]
        %v2505 = vld [vmem:[%s1798 + $0x1440] sm:$0xff]
        %v2506 = vld [vmem:[%s1798 + $0x1448] sm:$0xff]
        %v2507 = vld [vmem:[%s1798 + $0x1450] sm:$0xff]
        %v2508 = vld [vmem:[%s1798 + $0x1458] sm:$0xff]
        %v2509 = vld [vmem:[%s1798 + $0x1460] sm:$0xff]
        %v2510 = vld [vmem:[%s1798 + $0x1468] sm:$0xff]
        %v2511 = vld [vmem:[%s1798 + $0x1470] sm:$0xff]
        %v2512 = vld [vmem:[%s1798 + $0x1478] sm:$0xff]
        %v2513 = vld [vmem:[%s1798 + $0x1480] sm:$0xff]
        %v2514 = vld [vmem:[%s1798 + $0x1488] sm:$0xff]
        %v2515 = vld [vmem:[%s1798 + $0x1490] sm:$0xff]
        %v2516 = vld [vmem:[%s1798 + $0x1498] sm:$0xff]
        %v2517 = vld [vmem:[%s1798 + $0x14a0] sm:$0xff]
        %v2518 = vld [vmem:[%s1798 + $0x14a8] sm:$0xff]
        %v2519 = vld [vmem:[%s1798 + $0x14b0] sm:$0xff]
        %v2520 = vld [vmem:[%s1798 + $0x14b8] sm:$0xff]
        %v2521 = vld [vmem:[%s1798 + $0x14c0] sm:$0xff]
        %v2522 = vld [vmem:[%s1798 + $0x14c8] sm:$0xff]
        %v2523 = vld [vmem:[%s1798 + $0x14d0] sm:$0xff]
        %v2524 = vld [vmem:[%s1798 + $0x14d8] sm:$0xff]
        %v2525 = vld [vmem:[%s1798 + $0x14e0] sm:$0xff]
        %v2526 = vld [vmem:[%s1798 + $0x14e8] sm:$0xff]
        %v2527 = vld [vmem:[%s1798 + $0x14f0] sm:$0xff]
        %v2528 = vld [vmem:[%s1798 + $0x14f8] sm:$0xff]
        %v2529 = vld [vmem:[%s1798 + $0x1500] sm:$0xff]
        %v2530 = vld [vmem:[%s1798 + $0x1508] sm:$0xff]
        %v2531 = vld [vmem:[%s1798 + $0x1510] sm:$0xff]
        %v2532 = vld [vmem:[%s1798 + $0x1518] sm:$0xff]
        %v2533 = vld [vmem:[%s1798 + $0x1520] sm:$0xff]
        %v2534 = vld [vmem:[%s1798 + $0x1528] sm:$0xff]
        %v2535 = vld [vmem:[%s1798 + $0x1530] sm:$0xff]
        %v2536 = vld [vmem:[%s1798 + $0x1538] sm:$0xff]
        %v2537 = vld [vmem:[%s1798 + $0x1540] sm:$0xff]
        %v2538 = vld [vmem:[%s1798 + $0x1548] sm:$0xff]
        %v2539 = vld [vmem:[%s1798 + $0x1550] sm:$0xff]
        %v2540 = vld [vmem:[%s1798 + $0x1558] sm:$0xff]
        %v2541 = vld [vmem:[%s1798 + $0x1560] sm:$0xff]
        %v2542 = vld [vmem:[%s1798 + $0x1568] sm:$0xff]
        %v2543 = vld [vmem:[%s1798 + $0x1570] sm:$0xff]
        %v2544 = vld [vmem:[%s1798 + $0x1578] sm:$0xff]
        %v2545 = vld [vmem:[%s1798 + $0x1580] sm:$0xff]
        %v2546 = vld [vmem:[%s1798 + $0x1588] sm:$0xff]
        %v2547 = vld [vmem:[%s1798 + $0x1590] sm:$0xff]
        %v2548 = vld [vmem:[%s1798 + $0x1598] sm:$0xff]
        %v2549 = vld [vmem:[%s1798 + $0x15a0] sm:$0xff]
        %v2550 = vld [vmem:[%s1798 + $0x15a8] sm:$0xff]
        %v2551 = vld [vmem:[%s1798 + $0x15b0] sm:$0xff]
        %v2552 = vld [vmem:[%s1798 + $0x15b8] sm:$0xff]
        %v2553 = vld [vmem:[%s1798 + $0x15c0] sm:$0xff]
        %v2554 = vld [vmem:[%s1798 + $0x15c8] sm:$0xff]
        %v2555 = vld [vmem:[%s1798 + $0x15d0] sm:$0xff]
        %v2556 = vld [vmem:[%s1798 + $0x15d8] sm:$0xff]
        %v2557 = vld [vmem:[%s1798 + $0x15e0] sm:$0xff]
        %v2558 = vld [vmem:[%s1798 + $0x15e8] sm:$0xff]
        %v2559 = vld [vmem:[%s1798 + $0x15f0] sm:$0xff]
        %v2560 = vld [vmem:[%s1798 + $0x15f8] sm:$0xff]
        %v2561 = vld [vmem:[%s1798 + $0x1600] sm:$0xff]
        %v2562 = vld [vmem:[%s1798 + $0x1608] sm:$0xff]
        %v2563 = vld [vmem:[%s1798 + $0x1610] sm:$0xff]
        %v2564 = vld [vmem:[%s1798 + $0x1618] sm:$0xff]
        %v2565 = vld [vmem:[%s1798 + $0x1620] sm:$0xff]
        %v2566 = vld [vmem:[%s1798 + $0x1628] sm:$0xff]
        %v2567 = vld [vmem:[%s1798 + $0x1630] sm:$0xff]
        %v2568 = vld [vmem:[%s1798 + $0x1638] sm:$0xff]
        %v2569 = vld [vmem:[%s1798 + $0x1640] sm:$0xff]
        %v2570 = vld [vmem:[%s1798 + $0x1648] sm:$0xff]
        %v2571 = vld [vmem:[%s1798 + $0x1650] sm:$0xff]
        %v2572 = vld [vmem:[%s1798 + $0x1658] sm:$0xff]
        %v2573 = vld [vmem:[%s1798 + $0x1660] sm:$0xff]
        %v2574 = vld [vmem:[%s1798 + $0x1668] sm:$0xff]
        %v2575 = vld [vmem:[%s1798 + $0x1670] sm:$0xff]
        %v2576 = vld [vmem:[%s1798 + $0x1678] sm:$0xff]
        %v2577 = vld [vmem:[%s1798 + $0x1680] sm:$0xff]
        %v2578 = vld [vmem:[%s1798 + $0x1688] sm:$0xff]
        %v2579 = vld [vmem:[%s1798 + $0x1690] sm:$0xff]
        %v2580 = vld [vmem:[%s1798 + $0x1698] sm:$0xff]
        %v2581 = vld [vmem:[%s1798 + $0x16a0] sm:$0xff]
        %v2582 = vld [vmem:[%s1798 + $0x16a8] sm:$0xff]
        %v2583 = vld [vmem:[%s1798 + $0x16b0] sm:$0xff]
        %v2584 = vld [vmem:[%s1798 + $0x16b8] sm:$0xff]
        %v2585 = vld [vmem:[%s1798 + $0x16c0] sm:$0xff]
        %v2586 = vld [vmem:[%s1798 + $0x16c8] sm:$0xff]
        %v2587 = vld [vmem:[%s1798 + $0x16d0] sm:$0xff]
        %v2588 = vld [vmem:[%s1798 + $0x16d8] sm:$0xff]
        %v2589 = vld [vmem:[%s1798 + $0x16e0] sm:$0xff]
        %v2590 = vld [vmem:[%s1798 + $0x16e8] sm:$0xff]
        %v2591 = vld [vmem:[%s1798 + $0x16f0] sm:$0xff]
        %v2592 = vld [vmem:[%s1798 + $0x16f8] sm:$0xff]
        %v2593 = vld [vmem:[%s1798 + $0x1700] sm:$0xff]
        %v2594 = vld [vmem:[%s1798 + $0x1708] sm:$0xff]
        %v2595 = vld [vmem:[%s1798 + $0x1710] sm:$0xff]
        %v2596 = vld [vmem:[%s1798 + $0x1718] sm:$0xff]
        %v2597 = vld [vmem:[%s1798 + $0x1720] sm:$0xff]
        %v2598 = vld [vmem:[%s1798 + $0x1728] sm:$0xff]
        %v2599 = vld [vmem:[%s1798 + $0x1730] sm:$0xff]
        %v2600 = vld [vmem:[%s1798 + $0x1738] sm:$0xff]
        %v2601 = vld [vmem:[%s1798 + $0x1740] sm:$0xff]
        %v2602 = vld [vmem:[%s1798 + $0x1748] sm:$0xff]
        %v2603 = vld [vmem:[%s1798 + $0x1750] sm:$0xff]
        %v2604 = vld [vmem:[%s1798 + $0x1758] sm:$0xff]
        %v2605 = vld [vmem:[%s1798 + $0x1760] sm:$0xff]
        %v2606 = vld [vmem:[%s1798 + $0x1768] sm:$0xff]
        %v2607 = vld [vmem:[%s1798 + $0x1770] sm:$0xff]
        %v2608 = vld [vmem:[%s1798 + $0x1778] sm:$0xff]
        %v2609 = vld [vmem:[%s1798 + $0x1780] sm:$0xff]
        %v2610 = vld [vmem:[%s1798 + $0x1788] sm:$0xff]
        %v2611 = vld [vmem:[%s1798 + $0x1790] sm:$0xff]
        %v2612 = vld [vmem:[%s1798 + $0x1798] sm:$0xff]
        %v2613 = vld [vmem:[%s1798 + $0x17a0] sm:$0xff]
        %v2614 = vld [vmem:[%s1798 + $0x17a8] sm:$0xff]
        %v2615 = vld [vmem:[%s1798 + $0x17b0] sm:$0xff]
        %v2616 = vld [vmem:[%s1798 + $0x17b8] sm:$0xff]
        %v2617 = vld [vmem:[%s1798 + $0x17c0] sm:$0xff]
        %v2618 = vld [vmem:[%s1798 + $0x17c8] sm:$0xff]
        %v2619 = vld [vmem:[%s1798 + $0x17d0] sm:$0xff]
        %v2620 = vld [vmem:[%s1798 + $0x17d8] sm:$0xff]
        %v2621 = vld [vmem:[%s1798 + $0x17e0] sm:$0xff]
        %v2622 = vld [vmem:[%s1798 + $0x17e8] sm:$0xff]
        %v2623 = vld [vmem:[%s1798 + $0x17f0] sm:$0xff]
        %v2624 = vld [vmem:[%s1798 + $0x17f8] sm:$0xff]
        %v2625 = vld [vmem:[%s1798 + $0x1800] sm:$0xff]
        %v2626 = vld [vmem:[%s1798 + $0x1808] sm:$0xff]
        %v2627 = vld [vmem:[%s1798 + $0x1810] sm:$0xff]
        %v2628 = vld [vmem:[%s1798 + $0x1818] sm:$0xff]
        %v2629 = vld [vmem:[%s1798 + $0x1820] sm:$0xff]
        %v2630 = vld [vmem:[%s1798 + $0x1828] sm:$0xff]
        %v2631 = vld [vmem:[%s1798 + $0x1830] sm:$0xff]
        %v2632 = vld [vmem:[%s1798 + $0x1838] sm:$0xff]
        %v2633 = vld [vmem:[%s1798 + $0x1840] sm:$0xff]
        %v2634 = vld [vmem:[%s1798 + $0x1848] sm:$0xff]
        %v2635 = vld [vmem:[%s1798 + $0x1850] sm:$0xff]
        %v2636 = vld [vmem:[%s1798 + $0x1858] sm:$0xff]
        %v2637 = vld [vmem:[%s1798 + $0x1860] sm:$0xff]
        %v2638 = vld [vmem:[%s1798 + $0x1868] sm:$0xff]
        %v2639 = vld [vmem:[%s1798 + $0x1870] sm:$0xff]
        %v2640 = vld [vmem:[%s1798 + $0x1878] sm:$0xff]
        %v2641 = vld [vmem:[%s1831] sm:$0xf]
        %v2643 = vlaneseq
        %v2644 = vshrl.u32 %v2643, 7
        %v2645 = vsub.s32 0, %v2644
        %v2646 = vrot.slane %v2641, %v2645
        %v2647 = vlaneseq
        %v2648 = vshrl.u32 %v2647, 7
        %v2649 = vsub.s32 1, %v2648
        %v2650 = vrot.slane %v2641, %v2649
        %v2651 = vlaneseq
        %v2652 = vshrl.u32 %v2651, 7
        %v2653 = vsub.s32 2, %v2652
        %v2654 = vrot.slane %v2641, %v2653
        %v2655 = vlaneseq
        %v2656 = vshrl.u32 %v2655, 7
        %v2657 = vsub.s32 3, %v2656
        %v2658 = vrot.slane %v2641, %v2657
        %v2667 = vcombine.high %v1853, %v1853
        %v2669 = vunpack.c.l.s4 1966171168
        %v2670 = vunpack.c.0.s8 %v2669
        %v2671 = vlaneseq
        %v2672 = vshrl.u32 %v2671, 7
        %v2673 = vsub.s32 %v2670, %v2672
        %v2674 = vrot.slane %v1853, %v2673
        %v2676 = vunpack.c.l.s4 1966171168
        %v2677 = vunpack.c.0.s8 %v2676
        %v2678 = vlaneseq
        %v2679 = vshrl.u32 %v2678, 7
        %v2680 = vsub.s32 %v2677, %v2679
        %v2681 = vrot.slane %v2667, %v2680
        %v2682 = vcombine.high %v2674, %v2674
        %v2683 = vcombine.high %v2681, %v2681
        %v2685 = vunpack.c.l.s4 1966171168
        %v2686 = vunpack.c.0.s8 %v2685
        %v2687 = vlaneseq
        %v2688 = vshrl.u32 %v2687, 7
        %v2689 = vsub.s32 %v2686, %v2688
        %v2690 = vrot.slane %v2674, %v2689
        %v2692 = vunpack.c.l.s4 1966171168
        %v2693 = vunpack.c.0.s8 %v2692
        %v2694 = vlaneseq
        %v2695 = vshrl.u32 %v2694, 7
        %v2696 = vsub.s32 %v2693, %v2695
        %v2697 = vrot.slane %v2681, %v2696
        %v2699 = vunpack.c.l.s4 1966171168
        %v2700 = vunpack.c.0.s8 %v2699
        %v2701 = vlaneseq
        %v2702 = vshrl.u32 %v2701, 7
        %v2703 = vsub.s32 %v2700, %v2702
        %v2704 = vrot.slane %v2682, %v2703
        %v2706 = vunpack.c.l.s4 1966171168
        %v2707 = vunpack.c.0.s8 %v2706
        %v2708 = vlaneseq
        %v2709 = vshrl.u32 %v2708, 7
        %v2710 = vsub.s32 %v2707, %v2709
        %v2711 = vrot.slane %v2683, %v2710
        %v2712 = vcombine.high %v2690, %v2690
        %v2713 = vcombine.high %v2697, %v2697
        %v2714 = vcombine.high %v2704, %v2704
        %v2715 = vcombine.high %v2711, %v2711
        %v2716 = vcombine.high %v1854, %v1854
        %v2718 = vunpack.c.l.s4 1966171168
        %v2719 = vunpack.c.0.s8 %v2718
        %v2720 = vlaneseq
        %v2721 = vshrl.u32 %v2720, 7
        %v2722 = vsub.s32 %v2719, %v2721
        %v2723 = vrot.slane %v1854, %v2722
        %v2725 = vunpack.c.l.s4 1966171168
        %v2726 = vunpack.c.0.s8 %v2725
        %v2727 = vlaneseq
        %v2728 = vshrl.u32 %v2727, 7
        %v2729 = vsub.s32 %v2726, %v2728
        %v2730 = vrot.slane %v2716, %v2729
        %v2731 = vcombine.high %v2723, %v2723
        %v2732 = vcombine.high %v2730, %v2730
        %v2734 = vunpack.c.l.s4 1966171168
        %v2735 = vunpack.c.0.s8 %v2734
        %v2736 = vlaneseq
        %v2737 = vshrl.u32 %v2736, 7
        %v2738 = vsub.s32 %v2735, %v2737
        %v2739 = vrot.slane %v2723, %v2738
        %v2741 = vunpack.c.l.s4 1966171168
        %v2742 = vunpack.c.0.s8 %v2741
        %v2743 = vlaneseq
        %v2744 = vshrl.u32 %v2743, 7
        %v2745 = vsub.s32 %v2742, %v2744
        %v2746 = vrot.slane %v2730, %v2745
        %v2748 = vunpack.c.l.s4 1966171168
        %v2749 = vunpack.c.0.s8 %v2748
        %v2750 = vlaneseq
        %v2751 = vshrl.u32 %v2750, 7
        %v2752 = vsub.s32 %v2749, %v2751
        %v2753 = vrot.slane %v2731, %v2752
        %v2755 = vunpack.c.l.s4 1966171168
        %v2756 = vunpack.c.0.s8 %v2755
        %v2757 = vlaneseq
        %v2758 = vshrl.u32 %v2757, 7
        %v2759 = vsub.s32 %v2756, %v2758
        %v2760 = vrot.slane %v2732, %v2759
        %v2761 = vcombine.high %v2739, %v2739
        %v2762 = vcombine.high %v2746, %v2746
        %v2763 = vcombine.high %v2753, %v2753
        %v2764 = vcombine.high %v2760, %v2760
        %v2765 = vcombine.high %v1855, %v1855
        %v2767 = vunpack.c.l.s4 1966171168
        %v2768 = vunpack.c.0.s8 %v2767
        %v2769 = vlaneseq
        %v2770 = vshrl.u32 %v2769, 7
        %v2771 = vsub.s32 %v2768, %v2770
        %v2772 = vrot.slane %v1855, %v2771
        %v2774 = vunpack.c.l.s4 1966171168
        %v2775 = vunpack.c.0.s8 %v2774
        %v2776 = vlaneseq
        %v2777 = vshrl.u32 %v2776, 7
        %v2778 = vsub.s32 %v2775, %v2777
        %v2779 = vrot.slane %v2765, %v2778
        %v2780 = vcombine.high %v2772, %v2772
        %v2781 = vcombine.high %v2779, %v2779
        %v2783 = vunpack.c.l.s4 1966171168
        %v2784 = vunpack.c.0.s8 %v2783
        %v2785 = vlaneseq
        %v2786 = vshrl.u32 %v2785, 7
        %v2787 = vsub.s32 %v2784, %v2786
        %v2788 = vrot.slane %v2772, %v2787
        %v2790 = vunpack.c.l.s4 1966171168
        %v2791 = vunpack.c.0.s8 %v2790
        %v2792 = vlaneseq
        %v2793 = vshrl.u32 %v2792, 7
        %v2794 = vsub.s32 %v2791, %v2793
        %v2795 = vrot.slane %v2779, %v2794
        %v2797 = vunpack.c.l.s4 1966171168
        %v2798 = vunpack.c.0.s8 %v2797
        %v2799 = vlaneseq
        %v2800 = vshrl.u32 %v2799, 7
        %v2801 = vsub.s32 %v2798, %v2800
        %v2802 = vrot.slane %v2780, %v2801
        %v2804 = vunpack.c.l.s4 1966171168
        %v2805 = vunpack.c.0.s8 %v2804
        %v2806 = vlaneseq
        %v2807 = vshrl.u32 %v2806, 7
        %v2808 = vsub.s32 %v2805, %v2807
        %v2809 = vrot.slane %v2781, %v2808
        %v2810 = vcombine.high %v2788, %v2788
        %v2811 = vcombine.high %v2795, %v2795
        %v2812 = vcombine.high %v2802, %v2802
        %v2813 = vcombine.high %v2809, %v2809
        %v2815 = vunpack.c.l.s4 1966171168
        %v2816 = vunpack.c.0.s8 %v2815
        %v2817 = vlaneseq
        %v2818 = vshrl.u32 %v2817, 7
        %v2819 = vsub.s32 %v2816, %v2818
        %v2820 = vrot.slane %v1856, %v2819
        %v2822 = vunpack.c.l.s4 1966171168
        %v2823 = vunpack.c.0.s8 %v2822
        %v2824 = vlaneseq
        %v2825 = vshrl.u32 %v2824, 7
        %v2826 = vsub.s32 %v2823, %v2825
        %v2827 = vrot.slane %v2820, %v2826
        %v3636 = vunpack.c.l.b16 %v1857
        %v3637 = vunpack.c.h.b16 %v1857
        %v3638 = vunpack.c.l.b16 %v1858
        %v3639 = vunpack.c.h.b16 %v1858
        %v3640 = vunpack.c.l.b16 %v1859
        %v3641 = vunpack.c.h.b16 %v1859
        %v3642 = vunpack.c.l.b16 %v1860
        %v3643 = vunpack.c.h.b16 %v1860
        %v3644 = vunpack.c.l.b16 %v1861
        %v3645 = vunpack.c.h.b16 %v1861
        %v3646 = vunpack.c.l.b16 %v1862
        %v3647 = vunpack.c.h.b16 %v1862
        %v3648 = vunpack.c.l.b16 %v1863
        %v3649 = vunpack.c.h.b16 %v1863
        %v3650 = vunpack.c.l.b16 %v1864
        %v3651 = vunpack.c.h.b16 %v1864
        %v3652 = vunpack.c.l.b16 %v1865
        %v3653 = vunpack.c.h.b16 %v1865
        %v3654 = vunpack.c.l.b16 %v1866
        %v3655 = vunpack.c.h.b16 %v1866
        %v3656 = vunpack.c.l.b16 %v1867
        %v3657 = vunpack.c.h.b16 %v1867
        %v3658 = vunpack.c.l.b16 %v1868
        %v3659 = vunpack.c.h.b16 %v1868
        %v3660 = vunpack.c.l.b16 %v1869
        %v3661 = vunpack.c.h.b16 %v1869
        %v3662 = vunpack.c.l.b16 %v1870
        %v3663 = vunpack.c.h.b16 %v1870
        %v3664 = vunpack.c.l.b16 %v1871
        %v3665 = vunpack.c.h.b16 %v1871
        %v3666 = vunpack.c.l.b16 %v1872
        %v3667 = vunpack.c.h.b16 %v1872
        %v3668 = vunpack.c.l.b16 %v1873
        %v3669 = vunpack.c.h.b16 %v1873
        %v3670 = vunpack.c.l.b16 %v1874
        %v3671 = vunpack.c.h.b16 %v1874
        %v3672 = vunpack.c.l.b16 %v1875
        %v3673 = vunpack.c.h.b16 %v1875
        %v3674 = vunpack.c.l.b16 %v1876
        %v3675 = vunpack.c.h.b16 %v1876
        %v3676 = vunpack.c.l.b16 %v1877
        %v3677 = vunpack.c.h.b16 %v1877
        %v3678 = vunpack.c.l.b16 %v1878
        %v3679 = vunpack.c.h.b16 %v1878
        %v3680 = vunpack.c.l.b16 %v1879
        %v3681 = vunpack.c.h.b16 %v1879
        %v3682 = vunpack.c.l.b16 %v1880
        %v3683 = vunpack.c.h.b16 %v1880
        %v3684 = vunpack.c.l.b16 %v1881
        %v3685 = vunpack.c.h.b16 %v1881
        %v3686 = vunpack.c.l.b16 %v1882
        %v3687 = vunpack.c.h.b16 %v1882
        %v3688 = vunpack.c.l.b16 %v1883
        %v3689 = vunpack.c.h.b16 %v1883
        %v3690 = vunpack.c.l.b16 %v1884
        %v3691 = vunpack.c.h.b16 %v1884
        %v3692 = vunpack.c.l.b16 %v1885
        %v3693 = vunpack.c.h.b16 %v1885
        %v3694 = vunpack.c.l.b16 %v1886
        %v3695 = vunpack.c.h.b16 %v1886
        %v3696 = vunpack.c.l.b16 %v1887
        %v3697 = vunpack.c.h.b16 %v1887
        %v3698 = vunpack.c.l.b16 %v1888
        %v3699 = vunpack.c.h.b16 %v1888
        %v3700 = vunpack.c.l.b16 %v1889
        %v3701 = vunpack.c.h.b16 %v1889
        %v3702 = vunpack.c.l.b16 %v1890
        %v3703 = vunpack.c.h.b16 %v1890
        %v3704 = vunpack.c.l.b16 %v1891
        %v3705 = vunpack.c.h.b16 %v1891
        %v3706 = vunpack.c.l.b16 %v1892
        %v3707 = vunpack.c.h.b16 %v1892
        %v3708 = vunpack.c.l.b16 %v1893
        %v3709 = vunpack.c.h.b16 %v1893
        %v3710 = vunpack.c.l.b16 %v1894
        %v3711 = vunpack.c.h.b16 %v1894
        %v3712 = vunpack.c.l.b16 %v1895
        %v3713 = vunpack.c.h.b16 %v1895
        %v3714 = vunpack.c.l.b16 %v1896
        %v3715 = vunpack.c.h.b16 %v1896
        %v3716 = vunpack.c.l.b16 %v1897
        %v3717 = vunpack.c.h.b16 %v1897
        %v3718 = vunpack.c.l.b16 %v1898
        %v3719 = vunpack.c.h.b16 %v1898
        %v3720 = vunpack.c.l.b16 %v1899
        %v3721 = vunpack.c.h.b16 %v1899
        %v3722 = vunpack.c.l.b16 %v1900
        %v3723 = vunpack.c.h.b16 %v1900
        %v3724 = vunpack.c.l.b16 %v1901
        %v3725 = vunpack.c.h.b16 %v1901
        %v3726 = vunpack.c.l.b16 %v1902
        %v3727 = vunpack.c.h.b16 %v1902
        %v3728 = vunpack.c.l.b16 %v1903
        %v3729 = vunpack.c.h.b16 %v1903
        %v3730 = vunpack.c.l.b16 %v1904
        %v3731 = vunpack.c.h.b16 %v1904
        %v3732 = vunpack.c.l.b16 %v1905
        %v3733 = vunpack.c.h.b16 %v1905
        %v3734 = vunpack.c.l.b16 %v1906
        %v3735 = vunpack.c.h.b16 %v1906
        %v3736 = vunpack.c.l.b16 %v1907
        %v3737 = vunpack.c.h.b16 %v1907
        %v3738 = vunpack.c.l.b16 %v1908
        %v3739 = vunpack.c.h.b16 %v1908
        %v3740 = vunpack.c.l.b16 %v1909
        %v3741 = vunpack.c.h.b16 %v1909
        %v3742 = vunpack.c.l.b16 %v1910
        %v3743 = vunpack.c.h.b16 %v1910
        %v3744 = vunpack.c.l.b16 %v1911
        %v3745 = vunpack.c.h.b16 %v1911
        %v3746 = vunpack.c.l.b16 %v1912
        %v3747 = vunpack.c.h.b16 %v1912
        %v3748 = vunpack.c.l.b16 %v1913
        %v3749 = vunpack.c.h.b16 %v1913
        %v3750 = vunpack.c.l.b16 %v1914
        %v3751 = vunpack.c.h.b16 %v1914
        %v3752 = vunpack.c.l.b16 %v1915
        %v3753 = vunpack.c.h.b16 %v1915
        %v3754 = vunpack.c.l.b16 %v1916
        %v3755 = vunpack.c.h.b16 %v1916
        %v3756 = vunpack.c.l.b16 %v1917
        %v3757 = vunpack.c.h.b16 %v1917
        %v3758 = vunpack.c.l.b16 %v1918
        %v3759 = vunpack.c.h.b16 %v1918
        %v3760 = vunpack.c.l.b16 %v1919
        %v3761 = vunpack.c.h.b16 %v1919
        %v3762 = vunpack.c.l.b16 %v1920
        %v3763 = vunpack.c.h.b16 %v1920
        %v3764 = vunpack.c.l.b16 %v1921
        %v3765 = vunpack.c.h.b16 %v1921
        %v3766 = vunpack.c.l.b16 %v1922
        %v3767 = vunpack.c.h.b16 %v1922
        %v3768 = vunpack.c.l.b16 %v1923
        %v3769 = vunpack.c.h.b16 %v1923
        %v3770 = vunpack.c.l.b16 %v1924
        %v3771 = vunpack.c.h.b16 %v1924
        %v3772 = vunpack.c.l.b16 %v1925
        %v3773 = vunpack.c.h.b16 %v1925
        %v3774 = vunpack.c.l.b16 %v1926
        %v3775 = vunpack.c.h.b16 %v1926
        %v3776 = vunpack.c.l.b16 %v1927
        %v3777 = vunpack.c.h.b16 %v1927
        %v3778 = vunpack.c.l.b16 %v1928
        %v3779 = vunpack.c.h.b16 %v1928
        %v3780 = vunpack.c.l.b16 %v1929
        %v3781 = vunpack.c.h.b16 %v1929
        %v3782 = vunpack.c.l.b16 %v1930
        %v3783 = vunpack.c.h.b16 %v1930
        %v3784 = vunpack.c.l.b16 %v1931
        %v3785 = vunpack.c.h.b16 %v1931
        %v3786 = vunpack.c.l.b16 %v1932
        %v3787 = vunpack.c.h.b16 %v1932
        %v3788 = vunpack.c.l.b16 %v1933
        %v3789 = vunpack.c.h.b16 %v1933
        %v3790 = vunpack.c.l.b16 %v1934
        %v3791 = vunpack.c.h.b16 %v1934
        %v3792 = vunpack.c.l.b16 %v1935
        %v3793 = vunpack.c.h.b16 %v1935
        %v3794 = vunpack.c.l.b16 %v1936
        %v3795 = vunpack.c.h.b16 %v1936
        %v3796 = vunpack.c.l.b16 %v1937
        %v3797 = vunpack.c.h.b16 %v1937
        %v3798 = vunpack.c.l.b16 %v1938
        %v3799 = vunpack.c.h.b16 %v1938
        %v3800 = vunpack.c.l.b16 %v1939
        %v3801 = vunpack.c.h.b16 %v1939
        %v3802 = vunpack.c.l.b16 %v1940
        %v3803 = vunpack.c.h.b16 %v1940
        %v3804 = vunpack.c.l.b16 %v1941
        %v3805 = vunpack.c.h.b16 %v1941
        %v3806 = vunpack.c.l.b16 %v1942
        %v3807 = vunpack.c.h.b16 %v1942
        %v3808 = vunpack.c.l.b16 %v1943
        %v3809 = vunpack.c.h.b16 %v1943
        %v3810 = vunpack.c.l.b16 %v1944
        %v3811 = vunpack.c.h.b16 %v1944
        %v3812 = vunpack.c.l.b16 %v1945
        %v3813 = vunpack.c.h.b16 %v1945
        %v3814 = vunpack.c.l.b16 %v1946
        %v3815 = vunpack.c.h.b16 %v1946
        %v3816 = vunpack.c.l.b16 %v1947
        %v3817 = vunpack.c.h.b16 %v1947
        %v3818 = vunpack.c.l.b16 %v1948
        %v3819 = vunpack.c.h.b16 %v1948
        %v3820 = vunpack.c.l.b16 %v1949
        %v3821 = vunpack.c.h.b16 %v1949
        %v3822 = vunpack.c.l.b16 %v1950
        %v3823 = vunpack.c.h.b16 %v1950
        %v3824 = vunpack.c.l.b16 %v1951
        %v3825 = vunpack.c.h.b16 %v1951
        %v3826 = vunpack.c.l.b16 %v1952
        %v3827 = vunpack.c.h.b16 %v1952
        %v3828 = vunpack.c.l.b16 %v1953
        %v3829 = vunpack.c.h.b16 %v1953
        %v3830 = vunpack.c.l.b16 %v1954
        %v3831 = vunpack.c.h.b16 %v1954
        %v3832 = vunpack.c.l.b16 %v1955
        %v3833 = vunpack.c.h.b16 %v1955
        %v3834 = vunpack.c.l.b16 %v1956
        %v3835 = vunpack.c.h.b16 %v1956
        %v3836 = vunpack.c.l.b16 %v1957
        %v3837 = vunpack.c.h.b16 %v1957
        %v3838 = vunpack.c.l.b16 %v1958
        %v3839 = vunpack.c.h.b16 %v1958
        %v3840 = vunpack.c.l.b16 %v1959
        %v3841 = vunpack.c.h.b16 %v1959
        %v3842 = vunpack.c.l.b16 %v1960
        %v3843 = vunpack.c.h.b16 %v1960
        %v3844 = vunpack.c.l.b16 %v1961
        %v3845 = vunpack.c.h.b16 %v1961
        %v3846 = vunpack.c.l.b16 %v1962
        %v3847 = vunpack.c.h.b16 %v1962
        %v3848 = vunpack.c.l.b16 %v1963
        %v3849 = vunpack.c.h.b16 %v1963
        %v3850 = vunpack.c.l.b16 %v1964
        %v3851 = vunpack.c.h.b16 %v1964
        %v3852 = vunpack.c.l.b16 %v1965
        %v3853 = vunpack.c.h.b16 %v1965
        %v3854 = vunpack.c.l.b16 %v1966
        %v3855 = vunpack.c.h.b16 %v1966
        %v3856 = vunpack.c.l.b16 %v1967
        %v3857 = vunpack.c.h.b16 %v1967
        %v3858 = vunpack.c.l.b16 %v1968
        %v3859 = vunpack.c.h.b16 %v1968
        %v3860 = vunpack.c.l.b16 %v1969
        %v3861 = vunpack.c.h.b16 %v1969
        %v3862 = vunpack.c.l.b16 %v1970
        %v3863 = vunpack.c.h.b16 %v1970
        %v3864 = vunpack.c.l.b16 %v1971
        %v3865 = vunpack.c.h.b16 %v1971
        %v3866 = vunpack.c.l.b16 %v1972
        %v3867 = vunpack.c.h.b16 %v1972
        %v3868 = vunpack.c.l.b16 %v1973
        %v3869 = vunpack.c.h.b16 %v1973
        %v3870 = vunpack.c.l.b16 %v1974
        %v3871 = vunpack.c.h.b16 %v1974
        %v3872 = vunpack.c.l.b16 %v1975
        %v3873 = vunpack.c.h.b16 %v1975
        %v3874 = vunpack.c.l.b16 %v1976
        %v3875 = vunpack.c.h.b16 %v1976
        %v3876 = vunpack.c.l.b16 %v1977
        %v3877 = vunpack.c.h.b16 %v1977
        %v3878 = vunpack.c.l.b16 %v1978
        %v3879 = vunpack.c.h.b16 %v1978
        %v3880 = vunpack.c.l.b16 %v1979
        %v3881 = vunpack.c.h.b16 %v1979
        %v3882 = vunpack.c.l.b16 %v1980
        %v3883 = vunpack.c.h.b16 %v1980
        %v3884 = vunpack.c.l.b16 %v1981
        %v3885 = vunpack.c.h.b16 %v1981
        %v3886 = vunpack.c.l.b16 %v1982
        %v3887 = vunpack.c.h.b16 %v1982
        %v3888 = vunpack.c.l.b16 %v1983
        %v3889 = vunpack.c.h.b16 %v1983
        %v3890 = vunpack.c.l.b16 %v1984
        %v3891 = vunpack.c.h.b16 %v1984
        %v3892 = vunpack.c.l.b16 %v1985
        %v3893 = vunpack.c.h.b16 %v1985
        %v3894 = vunpack.c.l.b16 %v1986
        %v3895 = vunpack.c.h.b16 %v1986
        %v3896 = vunpack.c.l.b16 %v1987
        %v3897 = vunpack.c.h.b16 %v1987
        %v3898 = vunpack.c.l.b16 %v1988
        %v3899 = vunpack.c.h.b16 %v1988
        %v3900 = vunpack.c.l.b16 %v1989
        %v3901 = vunpack.c.h.b16 %v1989
        %v3902 = vunpack.c.l.b16 %v1990
        %v3903 = vunpack.c.h.b16 %v1990
        %v3904 = vunpack.c.l.b16 %v1991
        %v3905 = vunpack.c.h.b16 %v1991
        %v3906 = vunpack.c.l.b16 %v1992
        %v3907 = vunpack.c.h.b16 %v1992
        %v3908 = vunpack.c.l.b16 %v1993
        %v3909 = vunpack.c.h.b16 %v1993
        %v3910 = vunpack.c.l.b16 %v1994
        %v3911 = vunpack.c.h.b16 %v1994
        %v3912 = vunpack.c.l.b16 %v1995
        %v3913 = vunpack.c.h.b16 %v1995
        %v3914 = vunpack.c.l.b16 %v1996
        %v3915 = vunpack.c.h.b16 %v1996
        %v3916 = vunpack.c.l.b16 %v1997
        %v3917 = vunpack.c.h.b16 %v1997
        %v3918 = vunpack.c.l.b16 %v1998
        %v3919 = vunpack.c.h.b16 %v1998
        %v3920 = vunpack.c.l.b16 %v1999
        %v3921 = vunpack.c.h.b16 %v1999
        %v3922 = vunpack.c.l.b16 %v2000
        %v3923 = vunpack.c.h.b16 %v2000
        %v3924 = vunpack.c.l.b16 %v2001
        %v3925 = vunpack.c.h.b16 %v2001
        %v3926 = vunpack.c.l.b16 %v2002
        %v3927 = vunpack.c.h.b16 %v2002
        %v3928 = vunpack.c.l.b16 %v2003
        %v3929 = vunpack.c.h.b16 %v2003
        %v3930 = vunpack.c.l.b16 %v2004
        %v3931 = vunpack.c.h.b16 %v2004
        %v3932 = vunpack.c.l.b16 %v2005
        %v3933 = vunpack.c.h.b16 %v2005
        %v3934 = vunpack.c.l.b16 %v2006
        %v3935 = vunpack.c.h.b16 %v2006
        %v3936 = vunpack.c.l.b16 %v2007
        %v3937 = vunpack.c.h.b16 %v2007
        %v3938 = vunpack.c.l.b16 %v2008
        %v3939 = vunpack.c.h.b16 %v2008
        %v3940 = vunpack.c.l.b16 %v2009
        %v3941 = vunpack.c.h.b16 %v2009
        %v3942 = vunpack.c.l.b16 %v2010
        %v3943 = vunpack.c.h.b16 %v2010
        %v3944 = vunpack.c.l.b16 %v2011
        %v3945 = vunpack.c.h.b16 %v2011
        %v3946 = vunpack.c.l.b16 %v2012
        %v3947 = vunpack.c.h.b16 %v2012
        %v3948 = vunpack.c.l.b16 %v2013
        %v3949 = vunpack.c.h.b16 %v2013
        %v3950 = vunpack.c.l.b16 %v2014
        %v3951 = vunpack.c.h.b16 %v2014
        %v3952 = vunpack.c.l.b16 %v2015
        %v3953 = vunpack.c.h.b16 %v2015
        %v3954 = vunpack.c.l.b16 %v2016
        %v3955 = vunpack.c.h.b16 %v2016
        %v3956 = vunpack.c.l.b16 %v2017
        %v3957 = vunpack.c.h.b16 %v2017
        %v3958 = vunpack.c.l.b16 %v2018
        %v3959 = vunpack.c.h.b16 %v2018
        %v3960 = vunpack.c.l.b16 %v2019
        %v3961 = vunpack.c.h.b16 %v2019
        %v3962 = vunpack.c.l.b16 %v2020
        %v3963 = vunpack.c.h.b16 %v2020
        %v3964 = vunpack.c.l.b16 %v2021
        %v3965 = vunpack.c.h.b16 %v2021
        %v3966 = vunpack.c.l.b16 %v2022
        %v3967 = vunpack.c.h.b16 %v2022
        %v3968 = vunpack.c.l.b16 %v2023
        %v3969 = vunpack.c.h.b16 %v2023
        %v3970 = vunpack.c.l.b16 %v2024
        %v3971 = vunpack.c.h.b16 %v2024
        %v3972 = vunpack.c.l.b16 %v2025
        %v3973 = vunpack.c.h.b16 %v2025
        %v3974 = vunpack.c.l.b16 %v2026
        %v3975 = vunpack.c.h.b16 %v2026
        %v3976 = vunpack.c.l.b16 %v2027
        %v3977 = vunpack.c.h.b16 %v2027
        %v3978 = vunpack.c.l.b16 %v2028
        %v3979 = vunpack.c.h.b16 %v2028
        %v3980 = vunpack.c.l.b16 %v2029
        %v3981 = vunpack.c.h.b16 %v2029
        %v3982 = vunpack.c.l.b16 %v2030
        %v3983 = vunpack.c.h.b16 %v2030
        %v3984 = vunpack.c.l.b16 %v2031
        %v3985 = vunpack.c.h.b16 %v2031
        %v3986 = vunpack.c.l.b16 %v2032
        %v3987 = vunpack.c.h.b16 %v2032
        %v3988 = vunpack.c.l.b16 %v2033
        %v3989 = vunpack.c.h.b16 %v2033
        %v3990 = vunpack.c.l.b16 %v2034
        %v3991 = vunpack.c.h.b16 %v2034
        %v3992 = vunpack.c.l.b16 %v2035
        %v3993 = vunpack.c.h.b16 %v2035
        %v3994 = vunpack.c.l.b16 %v2036
        %v3995 = vunpack.c.h.b16 %v2036
        %v3996 = vunpack.c.l.b16 %v2037
        %v3997 = vunpack.c.h.b16 %v2037
        %v3998 = vunpack.c.l.b16 %v2038
        %v3999 = vunpack.c.h.b16 %v2038
        %v4000 = vunpack.c.l.b16 %v2039
        %v4001 = vunpack.c.h.b16 %v2039
        %v4002 = vunpack.c.l.b16 %v2040
        %v4003 = vunpack.c.h.b16 %v2040
        %v4004 = vunpack.c.l.b16 %v2041
        %v4005 = vunpack.c.h.b16 %v2041
        %v4006 = vunpack.c.l.b16 %v2042
        %v4007 = vunpack.c.h.b16 %v2042
        %v4008 = vunpack.c.l.b16 %v2043
        %v4009 = vunpack.c.h.b16 %v2043
        %v4010 = vunpack.c.l.b16 %v2044
        %v4011 = vunpack.c.h.b16 %v2044
        %v4012 = vunpack.c.l.b16 %v2045
        %v4013 = vunpack.c.h.b16 %v2045
        %v4014 = vunpack.c.l.b16 %v2046
        %v4015 = vunpack.c.h.b16 %v2046
        %v4016 = vunpack.c.l.b16 %v2047
        %v4017 = vunpack.c.h.b16 %v2047
        %v4018 = vunpack.c.l.b16 %v2048
        %v4019 = vunpack.c.h.b16 %v2048
        %v4020 = vunpack.c.l.b16 %v2049
        %v4021 = vunpack.c.h.b16 %v2049
        %v4022 = vunpack.c.l.b16 %v2050
        %v4023 = vunpack.c.h.b16 %v2050
        %v4024 = vunpack.c.l.b16 %v2051
        %v4025 = vunpack.c.h.b16 %v2051
        %v4026 = vunpack.c.l.b16 %v2052
        %v4027 = vunpack.c.h.b16 %v2052
        %v4028 = vunpack.c.l.b16 %v2053
        %v4029 = vunpack.c.h.b16 %v2053
        %v4030 = vunpack.c.l.b16 %v2054
        %v4031 = vunpack.c.h.b16 %v2054
        %v4032 = vunpack.c.l.b16 %v2055
        %v4033 = vunpack.c.h.b16 %v2055
        %v4034 = vunpack.c.l.b16 %v2056
        %v4035 = vunpack.c.h.b16 %v2056
        %v4036 = vunpack.c.l.b16 %v2057
        %v4037 = vunpack.c.h.b16 %v2057
        %v4038 = vunpack.c.l.b16 %v2058
        %v4039 = vunpack.c.h.b16 %v2058
        %v4040 = vunpack.c.l.b16 %v2059
        %v4041 = vunpack.c.h.b16 %v2059
        %v4042 = vunpack.c.l.b16 %v2060
        %v4043 = vunpack.c.h.b16 %v2060
        %v4044 = vunpack.c.l.b16 %v2061
        %v4045 = vunpack.c.h.b16 %v2061
        %v4046 = vunpack.c.l.b16 %v2062
        %v4047 = vunpack.c.h.b16 %v2062
        %v4048 = vunpack.c.l.b16 %v2063
        %v4049 = vunpack.c.h.b16 %v2063
        %v4050 = vunpack.c.l.b16 %v2064
        %v4051 = vunpack.c.h.b16 %v2064
        %v4052 = vunpack.c.l.b16 %v2065
        %v4053 = vunpack.c.h.b16 %v2065
        %v4054 = vunpack.c.l.b16 %v2066
        %v4055 = vunpack.c.h.b16 %v2066
        %v4056 = vunpack.c.l.b16 %v2067
        %v4057 = vunpack.c.h.b16 %v2067
        %v4058 = vunpack.c.l.b16 %v2068
        %v4059 = vunpack.c.h.b16 %v2068
        %v4060 = vunpack.c.l.b16 %v2069
        %v4061 = vunpack.c.h.b16 %v2069
        %v4062 = vunpack.c.l.b16 %v2070
        %v4063 = vunpack.c.h.b16 %v2070
        %v4064 = vunpack.c.l.b16 %v2071
        %v4065 = vunpack.c.h.b16 %v2071
        %v4066 = vunpack.c.l.b16 %v2072
        %v4067 = vunpack.c.h.b16 %v2072
        %v4068 = vunpack.c.l.b16 %v2073
        %v4069 = vunpack.c.h.b16 %v2073
        %v4070 = vunpack.c.l.b16 %v2074
        %v4071 = vunpack.c.h.b16 %v2074
        %v4072 = vunpack.c.l.b16 %v2075
        %v4073 = vunpack.c.h.b16 %v2075
        %v4074 = vunpack.c.l.b16 %v2076
        %v4075 = vunpack.c.h.b16 %v2076
        %v4076 = vunpack.c.l.b16 %v2077
        %v4077 = vunpack.c.h.b16 %v2077
        %v4078 = vunpack.c.l.b16 %v2078
        %v4079 = vunpack.c.h.b16 %v2078
        %v4080 = vunpack.c.l.b16 %v2079
        %v4081 = vunpack.c.h.b16 %v2079
        %v4082 = vunpack.c.l.b16 %v2080
        %v4083 = vunpack.c.h.b16 %v2080
        %v4084 = vunpack.c.l.b16 %v2081
        %v4085 = vunpack.c.h.b16 %v2081
        %v4086 = vunpack.c.l.b16 %v2082
        %v4087 = vunpack.c.h.b16 %v2082
        %v4088 = vunpack.c.l.b16 %v2083
        %v4089 = vunpack.c.h.b16 %v2083
        %v4090 = vunpack.c.l.b16 %v2084
        %v4091 = vunpack.c.h.b16 %v2084
        %v4092 = vunpack.c.l.b16 %v2085
        %v4093 = vunpack.c.h.b16 %v2085
        %v4094 = vunpack.c.l.b16 %v2086
        %v4095 = vunpack.c.h.b16 %v2086
        %v4096 = vunpack.c.l.b16 %v2087
        %v4097 = vunpack.c.h.b16 %v2087
        %v4098 = vunpack.c.l.b16 %v2088
        %v4099 = vunpack.c.h.b16 %v2088
        %v4100 = vunpack.c.l.b16 %v2089
        %v4101 = vunpack.c.h.b16 %v2089
        %v4102 = vunpack.c.l.b16 %v2090
        %v4103 = vunpack.c.h.b16 %v2090
        %v4104 = vunpack.c.l.b16 %v2091
        %v4105 = vunpack.c.h.b16 %v2091
        %v4106 = vunpack.c.l.b16 %v2092
        %v4107 = vunpack.c.h.b16 %v2092
        %v4108 = vunpack.c.l.b16 %v2093
        %v4109 = vunpack.c.h.b16 %v2093
        %v4110 = vunpack.c.l.b16 %v2094
        %v4111 = vunpack.c.h.b16 %v2094
        %v4112 = vunpack.c.l.b16 %v2095
        %v4113 = vunpack.c.h.b16 %v2095
        %v4114 = vunpack.c.l.b16 %v2096
        %v4115 = vunpack.c.h.b16 %v2096
        %v4116 = vunpack.c.l.b16 %v2097
        %v4117 = vunpack.c.h.b16 %v2097
        %v4118 = vunpack.c.l.b16 %v2098
        %v4119 = vunpack.c.h.b16 %v2098
        %v4120 = vunpack.c.l.b16 %v2099
        %v4121 = vunpack.c.h.b16 %v2099
        %v4122 = vunpack.c.l.b16 %v2100
        %v4123 = vunpack.c.h.b16 %v2100
        %v4124 = vunpack.c.l.b16 %v2101
        %v4125 = vunpack.c.h.b16 %v2101
        %v4126 = vunpack.c.l.b16 %v2102
        %v4127 = vunpack.c.h.b16 %v2102
        %v4128 = vunpack.c.l.b16 %v2103
        %v4129 = vunpack.c.h.b16 %v2103
        %v4130 = vunpack.c.l.b16 %v2104
        %v4131 = vunpack.c.h.b16 %v2104
        %v4132 = vunpack.c.l.b16 %v2105
        %v4133 = vunpack.c.h.b16 %v2105
        %v4134 = vunpack.c.l.b16 %v2106
        %v4135 = vunpack.c.h.b16 %v2106
        %v4136 = vunpack.c.l.b16 %v2107
        %v4137 = vunpack.c.h.b16 %v2107
        %v4138 = vunpack.c.l.b16 %v2108
        %v4139 = vunpack.c.h.b16 %v2108
        %v4140 = vunpack.c.l.b16 %v2109
        %v4141 = vunpack.c.h.b16 %v2109
        %v4142 = vunpack.c.l.b16 %v2110
        %v4143 = vunpack.c.h.b16 %v2110
        %v4144 = vunpack.c.l.b16 %v2111
        %v4145 = vunpack.c.h.b16 %v2111
        %v4146 = vunpack.c.l.b16 %v2112
        %v4147 = vunpack.c.h.b16 %v2112
        %v4148 = vunpack.c.l.b16 %v2113
        %v4149 = vunpack.c.h.b16 %v2113
        %v4150 = vunpack.c.l.b16 %v2114
        %v4151 = vunpack.c.h.b16 %v2114
        %v4152 = vunpack.c.l.b16 %v2115
        %v4153 = vunpack.c.h.b16 %v2115
        %v4154 = vunpack.c.l.b16 %v2116
        %v4155 = vunpack.c.h.b16 %v2116
        %v4156 = vunpack.c.l.b16 %v2117
        %v4157 = vunpack.c.h.b16 %v2117
        %v4158 = vunpack.c.l.b16 %v2118
        %v4159 = vunpack.c.h.b16 %v2118
        %v4160 = vunpack.c.l.b16 %v2119
        %v4161 = vunpack.c.h.b16 %v2119
        %v4162 = vunpack.c.l.b16 %v2120
        %v4163 = vunpack.c.h.b16 %v2120
        %v4164 = vunpack.c.l.b16 %v2121
        %v4165 = vunpack.c.h.b16 %v2121
        %v4166 = vunpack.c.l.b16 %v2122
        %v4167 = vunpack.c.h.b16 %v2122
        %v4168 = vunpack.c.l.b16 %v2123
        %v4169 = vunpack.c.h.b16 %v2123
        %v4170 = vunpack.c.l.b16 %v2124
        %v4171 = vunpack.c.h.b16 %v2124
        %v4172 = vunpack.c.l.b16 %v2125
        %v4173 = vunpack.c.h.b16 %v2125
        %v4174 = vunpack.c.l.b16 %v2126
        %v4175 = vunpack.c.h.b16 %v2126
        %v4176 = vunpack.c.l.b16 %v2127
        %v4177 = vunpack.c.h.b16 %v2127
        %v4178 = vunpack.c.l.b16 %v2128
        %v4179 = vunpack.c.h.b16 %v2128
        %v4180 = vunpack.c.l.b16 %v2129
        %v4181 = vunpack.c.h.b16 %v2129
        %v4182 = vunpack.c.l.b16 %v2130
        %v4183 = vunpack.c.h.b16 %v2130
        %v4184 = vunpack.c.l.b16 %v2131
        %v4185 = vunpack.c.h.b16 %v2131
        %v4186 = vunpack.c.l.b16 %v2132
        %v4187 = vunpack.c.h.b16 %v2132
        %v4188 = vunpack.c.l.b16 %v2133
        %v4189 = vunpack.c.h.b16 %v2133
        %v4190 = vunpack.c.l.b16 %v2134
        %v4191 = vunpack.c.h.b16 %v2134
        %v4192 = vunpack.c.l.b16 %v2135
        %v4193 = vunpack.c.h.b16 %v2135
        %v4194 = vunpack.c.l.b16 %v2136
        %v4195 = vunpack.c.h.b16 %v2136
        %v4196 = vunpack.c.l.b16 %v2137
        %v4197 = vunpack.c.h.b16 %v2137
        %v4198 = vunpack.c.l.b16 %v2138
        %v4199 = vunpack.c.h.b16 %v2138
        %v4200 = vunpack.c.l.b16 %v2139
        %v4201 = vunpack.c.h.b16 %v2139
        %v4202 = vunpack.c.l.b16 %v2140
        %v4203 = vunpack.c.h.b16 %v2140
        %v4204 = vunpack.c.l.b16 %v2141
        %v4205 = vunpack.c.h.b16 %v2141
        %v4206 = vunpack.c.l.b16 %v2142
        %v4207 = vunpack.c.h.b16 %v2142
        %v4208 = vunpack.c.l.b16 %v2143
        %v4209 = vunpack.c.h.b16 %v2143
        %v4210 = vunpack.c.l.b16 %v2144
        %v4211 = vunpack.c.h.b16 %v2144
        %v4212 = vunpack.c.l.b16 %v2145
        %v4213 = vunpack.c.h.b16 %v2145
        %v4214 = vunpack.c.l.b16 %v2146
        %v4215 = vunpack.c.h.b16 %v2146
        %v4216 = vunpack.c.l.b16 %v2147
        %v4217 = vunpack.c.h.b16 %v2147
        %v4218 = vunpack.c.l.b16 %v2148
        %v4219 = vunpack.c.h.b16 %v2148
        %v4220 = vunpack.c.l.b16 %v2149
        %v4221 = vunpack.c.h.b16 %v2149
        %v4222 = vunpack.c.l.b16 %v2150
        %v4223 = vunpack.c.h.b16 %v2150
        %v4224 = vunpack.c.l.b16 %v2151
        %v4225 = vunpack.c.h.b16 %v2151
        %v4226 = vunpack.c.l.b16 %v2152
        %v4227 = vunpack.c.h.b16 %v2152
        %v4228 = vunpack.c.l.b16 %v2153
        %v4229 = vunpack.c.h.b16 %v2153
        %v4230 = vunpack.c.l.b16 %v2154
        %v4231 = vunpack.c.h.b16 %v2154
        %v4232 = vunpack.c.l.b16 %v2155
        %v4233 = vunpack.c.h.b16 %v2155
        %v4234 = vunpack.c.l.b16 %v2156
        %v4235 = vunpack.c.h.b16 %v2156
        %v4236 = vunpack.c.l.b16 %v2157
        %v4237 = vunpack.c.h.b16 %v2157
        %v4238 = vunpack.c.l.b16 %v2158
        %v4239 = vunpack.c.h.b16 %v2158
        %v4240 = vunpack.c.l.b16 %v2159
        %v4241 = vunpack.c.h.b16 %v2159
        %v4242 = vunpack.c.l.b16 %v2160
        %v4243 = vunpack.c.h.b16 %v2160
        %v4244 = vunpack.c.l.b16 %v2161
        %v4245 = vunpack.c.h.b16 %v2161
        %v4246 = vunpack.c.l.b16 %v2162
        %v4247 = vunpack.c.h.b16 %v2162
        %v4248 = vunpack.c.l.b16 %v2163
        %v4249 = vunpack.c.h.b16 %v2163
        %v4250 = vunpack.c.l.b16 %v2164
        %v4251 = vunpack.c.h.b16 %v2164
        %v4252 = vunpack.c.l.b16 %v2165
        %v4253 = vunpack.c.h.b16 %v2165
        %v4254 = vunpack.c.l.b16 %v2166
        %v4255 = vunpack.c.h.b16 %v2166
        %v4256 = vunpack.c.l.b16 %v2167
        %v4257 = vunpack.c.h.b16 %v2167
        %v4258 = vunpack.c.l.b16 %v2168
        %v4259 = vunpack.c.h.b16 %v2168
        %v4260 = vunpack.c.l.b16 %v2169
        %v4261 = vunpack.c.h.b16 %v2169
        %v4262 = vunpack.c.l.b16 %v2170
        %v4263 = vunpack.c.h.b16 %v2170
        %v4264 = vunpack.c.l.b16 %v2171
        %v4265 = vunpack.c.h.b16 %v2171
        %v4266 = vunpack.c.l.b16 %v2172
        %v4267 = vunpack.c.h.b16 %v2172
        %v4268 = vunpack.c.l.b16 %v2173
        %v4269 = vunpack.c.h.b16 %v2173
        %v4270 = vunpack.c.l.b16 %v2174
        %v4271 = vunpack.c.h.b16 %v2174
        %v4272 = vunpack.c.l.b16 %v2175
        %v4273 = vunpack.c.h.b16 %v2175
        %v4274 = vunpack.c.l.b16 %v2176
        %v4275 = vunpack.c.h.b16 %v2176
        %v4276 = vunpack.c.l.b16 %v2177
        %v4277 = vunpack.c.h.b16 %v2177
        %v4278 = vunpack.c.l.b16 %v2178
        %v4279 = vunpack.c.h.b16 %v2178
        %v4280 = vunpack.c.l.b16 %v2179
        %v4281 = vunpack.c.h.b16 %v2179
        %v4282 = vunpack.c.l.b16 %v2180
        %v4283 = vunpack.c.h.b16 %v2180
        %v4284 = vunpack.c.l.b16 %v2181
        %v4285 = vunpack.c.h.b16 %v2181
        %v4286 = vunpack.c.l.b16 %v2182
        %v4287 = vunpack.c.h.b16 %v2182
        %v4288 = vunpack.c.l.b16 %v2183
        %v4289 = vunpack.c.h.b16 %v2183
        %v4290 = vunpack.c.l.b16 %v2184
        %v4291 = vunpack.c.h.b16 %v2184
        %v4292 = vunpack.c.l.b16 %v2185
        %v4293 = vunpack.c.h.b16 %v2185
        %v4294 = vunpack.c.l.b16 %v2186
        %v4295 = vunpack.c.h.b16 %v2186
        %v4296 = vunpack.c.l.b16 %v2187
        %v4297 = vunpack.c.h.b16 %v2187
        %v4298 = vunpack.c.l.b16 %v2188
        %v4299 = vunpack.c.h.b16 %v2188
        %v4300 = vunpack.c.l.b16 %v2189
        %v4301 = vunpack.c.h.b16 %v2189
        %v4302 = vunpack.c.l.b16 %v2190
        %v4303 = vunpack.c.h.b16 %v2190
        %v4304 = vunpack.c.l.b16 %v2191
        %v4305 = vunpack.c.h.b16 %v2191
        %v4306 = vunpack.c.l.b16 %v2192
        %v4307 = vunpack.c.h.b16 %v2192
        %v4308 = vunpack.c.l.b16 %v2193
        %v4309 = vunpack.c.h.b16 %v2193
        %v4310 = vunpack.c.l.b16 %v2194
        %v4311 = vunpack.c.h.b16 %v2194
        %v4312 = vunpack.c.l.b16 %v2195
        %v4313 = vunpack.c.h.b16 %v2195
        %v4314 = vunpack.c.l.b16 %v2196
        %v4315 = vunpack.c.h.b16 %v2196
        %v4316 = vunpack.c.l.b16 %v2197
        %v4317 = vunpack.c.h.b16 %v2197
        %v4318 = vunpack.c.l.b16 %v2198
        %v4319 = vunpack.c.h.b16 %v2198
        %v4320 = vunpack.c.l.b16 %v2199
        %v4321 = vunpack.c.h.b16 %v2199
        %v4322 = vunpack.c.l.b16 %v2200
        %v4323 = vunpack.c.h.b16 %v2200
        %v4324 = vunpack.c.l.b16 %v2201
        %v4325 = vunpack.c.h.b16 %v2201
        %v4326 = vunpack.c.l.b16 %v2202
        %v4327 = vunpack.c.h.b16 %v2202
        %v4328 = vunpack.c.l.b16 %v2203
        %v4329 = vunpack.c.h.b16 %v2203
        %v4330 = vunpack.c.l.b16 %v2204
        %v4331 = vunpack.c.h.b16 %v2204
        %v4332 = vunpack.c.l.b16 %v2205
        %v4333 = vunpack.c.h.b16 %v2205
        %v4334 = vunpack.c.l.b16 %v2206
        %v4335 = vunpack.c.h.b16 %v2206
        %v4336 = vunpack.c.l.b16 %v2207
        %v4337 = vunpack.c.h.b16 %v2207
        %v4338 = vunpack.c.l.b16 %v2208
        %v4339 = vunpack.c.h.b16 %v2208
        %v4340 = vunpack.c.l.b16 %v2209
        %v4341 = vunpack.c.h.b16 %v2209
        %v4342 = vunpack.c.l.b16 %v2210
        %v4343 = vunpack.c.h.b16 %v2210
        %v4344 = vunpack.c.l.b16 %v2211
        %v4345 = vunpack.c.h.b16 %v2211
        %v4346 = vunpack.c.l.b16 %v2212
        %v4347 = vunpack.c.h.b16 %v2212
        %v4348 = vunpack.c.l.b16 %v2213
        %v4349 = vunpack.c.h.b16 %v2213
        %v4350 = vunpack.c.l.b16 %v2214
        %v4351 = vunpack.c.h.b16 %v2214
        %v4352 = vunpack.c.l.b16 %v2215
        %v4353 = vunpack.c.h.b16 %v2215
        %v4354 = vunpack.c.l.b16 %v2216
        %v4355 = vunpack.c.h.b16 %v2216
        %v4356 = vunpack.c.l.b16 %v2217
        %v4357 = vunpack.c.h.b16 %v2217
        %v4358 = vunpack.c.l.b16 %v2218
        %v4359 = vunpack.c.h.b16 %v2218
        %v4360 = vunpack.c.l.b16 %v2219
        %v4361 = vunpack.c.h.b16 %v2219
        %v4362 = vunpack.c.l.b16 %v2220
        %v4363 = vunpack.c.h.b16 %v2220
        %v4364 = vunpack.c.l.b16 %v2221
        %v4365 = vunpack.c.h.b16 %v2221
        %v4366 = vunpack.c.l.b16 %v2222
        %v4367 = vunpack.c.h.b16 %v2222
        %v4368 = vunpack.c.l.b16 %v2223
        %v4369 = vunpack.c.h.b16 %v2223
        %v4370 = vunpack.c.l.b16 %v2224
        %v4371 = vunpack.c.h.b16 %v2224
        %v4372 = vunpack.c.l.b16 %v2225
        %v4373 = vunpack.c.h.b16 %v2225
        %v4374 = vunpack.c.l.b16 %v2226
        %v4375 = vunpack.c.h.b16 %v2226
        %v4376 = vunpack.c.l.b16 %v2227
        %v4377 = vunpack.c.h.b16 %v2227
        %v4378 = vunpack.c.l.b16 %v2228
        %v4379 = vunpack.c.h.b16 %v2228
        %v4380 = vunpack.c.l.b16 %v2229
        %v4381 = vunpack.c.h.b16 %v2229
        %v4382 = vunpack.c.l.b16 %v2230
        %v4383 = vunpack.c.h.b16 %v2230
        %v4384 = vunpack.c.l.b16 %v2231
        %v4385 = vunpack.c.h.b16 %v2231
        %v4386 = vunpack.c.l.b16 %v2232
        %v4387 = vunpack.c.h.b16 %v2232
        %v4388 = vunpack.c.l.b16 %v2233
        %v4389 = vunpack.c.h.b16 %v2233
        %v4390 = vunpack.c.l.b16 %v2234
        %v4391 = vunpack.c.h.b16 %v2234
        %v4392 = vunpack.c.l.b16 %v2235
        %v4393 = vunpack.c.h.b16 %v2235
        %v4394 = vunpack.c.l.b16 %v2236
        %v4395 = vunpack.c.h.b16 %v2236
        %v4396 = vunpack.c.l.b16 %v2237
        %v4397 = vunpack.c.h.b16 %v2237
        %v4398 = vunpack.c.l.b16 %v2238
        %v4399 = vunpack.c.h.b16 %v2238
        %v4400 = vunpack.c.l.b16 %v2239
        %v4401 = vunpack.c.h.b16 %v2239
        %v4402 = vunpack.c.l.b16 %v2240
        %v4403 = vunpack.c.h.b16 %v2240
        %v4404 = vunpack.c.l.b16 %v2241
        %v4405 = vunpack.c.h.b16 %v2241
        %v4406 = vunpack.c.l.b16 %v2242
        %v4407 = vunpack.c.h.b16 %v2242
        %v4408 = vunpack.c.l.b16 %v2243
        %v4409 = vunpack.c.h.b16 %v2243
        %v4410 = vunpack.c.l.b16 %v2244
        %v4411 = vunpack.c.h.b16 %v2244
        %v4412 = vunpack.c.l.b16 %v2245
        %v4413 = vunpack.c.h.b16 %v2245
        %v4414 = vunpack.c.l.b16 %v2246
        %v4415 = vunpack.c.h.b16 %v2246
        %v4416 = vunpack.c.l.b16 %v2247
        %v4417 = vunpack.c.h.b16 %v2247
        %v4418 = vunpack.c.l.b16 %v2248
        %v4419 = vunpack.c.h.b16 %v2248
        %v4420 = vunpack.c.l.b16 %v2249
        %v4421 = vunpack.c.h.b16 %v2249
        %v4422 = vunpack.c.l.b16 %v2250
        %v4423 = vunpack.c.h.b16 %v2250
        %v4424 = vunpack.c.l.b16 %v2251
        %v4425 = vunpack.c.h.b16 %v2251
        %v4426 = vunpack.c.l.b16 %v2252
        %v4427 = vunpack.c.h.b16 %v2252
        %v4428 = vunpack.c.l.b16 %v2253
        %v4429 = vunpack.c.h.b16 %v2253
        %v4430 = vunpack.c.l.b16 %v2254
        %v4431 = vunpack.c.h.b16 %v2254
        %v4432 = vunpack.c.l.b16 %v2255
        %v4433 = vunpack.c.h.b16 %v2255
        %v4434 = vunpack.c.l.b16 %v2256
        %v4435 = vunpack.c.h.b16 %v2256
        %v4436 = vunpack.c.l.b16 %v2257
        %v4437 = vunpack.c.h.b16 %v2257
        %v4438 = vunpack.c.l.b16 %v2258
        %v4439 = vunpack.c.h.b16 %v2258
        %v4440 = vunpack.c.l.b16 %v2259
        %v4441 = vunpack.c.h.b16 %v2259
        %v4442 = vunpack.c.l.b16 %v2260
        %v4443 = vunpack.c.h.b16 %v2260
        %v4444 = vunpack.c.l.b16 %v2261
        %v4445 = vunpack.c.h.b16 %v2261
        %v4446 = vunpack.c.l.b16 %v2262
        %v4447 = vunpack.c.h.b16 %v2262
        %v4448 = vunpack.c.l.b16 %v2263
        %v4449 = vunpack.c.h.b16 %v2263
        %v4450 = vunpack.c.l.b16 %v2264
        %v4451 = vunpack.c.h.b16 %v2264
        %v4452 = vunpack.c.l.b16 %v2265
        %v4453 = vunpack.c.h.b16 %v2265
        %v4454 = vunpack.c.l.b16 %v2266
        %v4455 = vunpack.c.h.b16 %v2266
        %v4456 = vunpack.c.l.b16 %v2267
        %v4457 = vunpack.c.h.b16 %v2267
        %v4458 = vunpack.c.l.b16 %v2268
        %v4459 = vunpack.c.h.b16 %v2268
        %v4460 = vunpack.c.l.b16 %v2269
        %v4461 = vunpack.c.h.b16 %v2269
        %v4462 = vunpack.c.l.b16 %v2270
        %v4463 = vunpack.c.h.b16 %v2270
        %v4464 = vunpack.c.l.b16 %v2271
        %v4465 = vunpack.c.h.b16 %v2271
        %v4466 = vunpack.c.l.b16 %v2272
        %v4467 = vunpack.c.h.b16 %v2272
        %v4468 = vunpack.c.l.b16 %v2273
        %v4469 = vunpack.c.h.b16 %v2273
        %v4470 = vunpack.c.l.b16 %v2274
        %v4471 = vunpack.c.h.b16 %v2274
        %v4472 = vunpack.c.l.b16 %v2275
        %v4473 = vunpack.c.h.b16 %v2275
        %v4474 = vunpack.c.l.b16 %v2276
        %v4475 = vunpack.c.h.b16 %v2276
        %v4476 = vunpack.c.l.b16 %v2277
        %v4477 = vunpack.c.h.b16 %v2277
        %v4478 = vunpack.c.l.b16 %v2278
        %v4479 = vunpack.c.h.b16 %v2278
        %v4480 = vunpack.c.l.b16 %v2279
        %v4481 = vunpack.c.h.b16 %v2279
        %v4482 = vunpack.c.l.b16 %v2280
        %v4483 = vunpack.c.h.b16 %v2280
        %v4484 = vunpack.c.l.b16 %v2281
        %v4485 = vunpack.c.h.b16 %v2281
        %v4486 = vunpack.c.l.b16 %v2282
        %v4487 = vunpack.c.h.b16 %v2282
        %v4488 = vunpack.c.l.b16 %v2283
        %v4489 = vunpack.c.h.b16 %v2283
        %v4490 = vunpack.c.l.b16 %v2284
        %v4491 = vunpack.c.h.b16 %v2284
        %v4492 = vunpack.c.l.b16 %v2285
        %v4493 = vunpack.c.h.b16 %v2285
        %v4494 = vunpack.c.l.b16 %v2286
        %v4495 = vunpack.c.h.b16 %v2286
        %v4496 = vunpack.c.l.b16 %v2287
        %v4497 = vunpack.c.h.b16 %v2287
        %v4498 = vunpack.c.l.b16 %v2288
        %v4499 = vunpack.c.h.b16 %v2288
        %v4500 = vunpack.c.l.b16 %v2289
        %v4501 = vunpack.c.h.b16 %v2289
        %v4502 = vunpack.c.l.b16 %v2290
        %v4503 = vunpack.c.h.b16 %v2290
        %v4504 = vunpack.c.l.b16 %v2291
        %v4505 = vunpack.c.h.b16 %v2291
        %v4506 = vunpack.c.l.b16 %v2292
        %v4507 = vunpack.c.h.b16 %v2292
        %v4508 = vunpack.c.l.b16 %v2293
        %v4509 = vunpack.c.h.b16 %v2293
        %v4510 = vunpack.c.l.b16 %v2294
        %v4511 = vunpack.c.h.b16 %v2294
        %v4512 = vunpack.c.l.b16 %v2295
        %v4513 = vunpack.c.h.b16 %v2295
        %v4514 = vunpack.c.l.b16 %v2296
        %v4515 = vunpack.c.h.b16 %v2296
        %v4516 = vunpack.c.l.b16 %v2297
        %v4517 = vunpack.c.h.b16 %v2297
        %v4518 = vunpack.c.l.b16 %v2298
        %v4519 = vunpack.c.h.b16 %v2298
        %v4520 = vunpack.c.l.b16 %v2299
        %v4521 = vunpack.c.h.b16 %v2299
        %v4522 = vunpack.c.l.b16 %v2300
        %v4523 = vunpack.c.h.b16 %v2300
        %v4524 = vunpack.c.l.b16 %v2301
        %v4525 = vunpack.c.h.b16 %v2301
        %v4526 = vunpack.c.l.b16 %v2302
        %v4527 = vunpack.c.h.b16 %v2302
        %v4528 = vunpack.c.l.b16 %v2303
        %v4529 = vunpack.c.h.b16 %v2303
        %v4530 = vunpack.c.l.b16 %v2304
        %v4531 = vunpack.c.h.b16 %v2304
        %v4532 = vunpack.c.l.b16 %v2305
        %v4533 = vunpack.c.h.b16 %v2305
        %v4534 = vunpack.c.l.b16 %v2306
        %v4535 = vunpack.c.h.b16 %v2306
        %v4536 = vunpack.c.l.b16 %v2307
        %v4537 = vunpack.c.h.b16 %v2307
        %v4538 = vunpack.c.l.b16 %v2308
        %v4539 = vunpack.c.h.b16 %v2308
        %v4540 = vunpack.c.l.b16 %v2309
        %v4541 = vunpack.c.h.b16 %v2309
        %v4542 = vunpack.c.l.b16 %v2310
        %v4543 = vunpack.c.h.b16 %v2310
        %v4544 = vunpack.c.l.b16 %v2311
        %v4545 = vunpack.c.h.b16 %v2311
        %v4546 = vunpack.c.l.b16 %v2312
        %v4547 = vunpack.c.h.b16 %v2312
        %v4548 = vunpack.c.l.b16 %v2313
        %v4549 = vunpack.c.h.b16 %v2313
        %v4550 = vunpack.c.l.b16 %v2314
        %v4551 = vunpack.c.h.b16 %v2314
        %v4552 = vunpack.c.l.b16 %v2315
        %v4553 = vunpack.c.h.b16 %v2315
        %v4554 = vunpack.c.l.b16 %v2316
        %v4555 = vunpack.c.h.b16 %v2316
        %v4556 = vunpack.c.l.b16 %v2317
        %v4557 = vunpack.c.h.b16 %v2317
        %v4558 = vunpack.c.l.b16 %v2318
        %v4559 = vunpack.c.h.b16 %v2318
        %v4560 = vunpack.c.l.b16 %v2319
        %v4561 = vunpack.c.h.b16 %v2319
        %v4562 = vunpack.c.l.b16 %v2320
        %v4563 = vunpack.c.h.b16 %v2320
        %v4564 = vunpack.c.l.b16 %v2321
        %v4565 = vunpack.c.h.b16 %v2321
        %v4566 = vunpack.c.l.b16 %v2322
        %v4567 = vunpack.c.h.b16 %v2322
        %v4568 = vunpack.c.l.b16 %v2323
        %v4569 = vunpack.c.h.b16 %v2323
        %v4570 = vunpack.c.l.b16 %v2324
        %v4571 = vunpack.c.h.b16 %v2324
        %v4572 = vunpack.c.l.b16 %v2325
        %v4573 = vunpack.c.h.b16 %v2325
        %v4574 = vunpack.c.l.b16 %v2326
        %v4575 = vunpack.c.h.b16 %v2326
        %v4576 = vunpack.c.l.b16 %v2327
        %v4577 = vunpack.c.h.b16 %v2327
        %v4578 = vunpack.c.l.b16 %v2328
        %v4579 = vunpack.c.h.b16 %v2328
        %v4580 = vunpack.c.l.b16 %v2329
        %v4581 = vunpack.c.h.b16 %v2329
        %v4582 = vunpack.c.l.b16 %v2330
        %v4583 = vunpack.c.h.b16 %v2330
        %v4584 = vunpack.c.l.b16 %v2331
        %v4585 = vunpack.c.h.b16 %v2331
        %v4586 = vunpack.c.l.b16 %v2332
        %v4587 = vunpack.c.h.b16 %v2332
        %v4588 = vunpack.c.l.b16 %v2333
        %v4589 = vunpack.c.h.b16 %v2333
        %v4590 = vunpack.c.l.b16 %v2334
        %v4591 = vunpack.c.h.b16 %v2334
        %v4592 = vunpack.c.l.b16 %v2335
        %v4593 = vunpack.c.h.b16 %v2335
        %v4594 = vunpack.c.l.b16 %v2336
        %v4595 = vunpack.c.h.b16 %v2336
        %v4596 = vunpack.c.l.b16 %v2337
        %v4597 = vunpack.c.h.b16 %v2337
        %v4598 = vunpack.c.l.b16 %v2338
        %v4599 = vunpack.c.h.b16 %v2338
        %v4600 = vunpack.c.l.b16 %v2339
        %v4601 = vunpack.c.h.b16 %v2339
        %v4602 = vunpack.c.l.b16 %v2340
        %v4603 = vunpack.c.h.b16 %v2340
        %v4604 = vunpack.c.l.b16 %v2341
        %v4605 = vunpack.c.h.b16 %v2341
        %v4606 = vunpack.c.l.b16 %v2342
        %v4607 = vunpack.c.h.b16 %v2342
        %v4608 = vunpack.c.l.b16 %v2343
        %v4609 = vunpack.c.h.b16 %v2343
        %v4610 = vunpack.c.l.b16 %v2344
        %v4611 = vunpack.c.h.b16 %v2344
        %v4612 = vunpack.c.l.b16 %v2345
        %v4613 = vunpack.c.h.b16 %v2345
        %v4614 = vunpack.c.l.b16 %v2346
        %v4615 = vunpack.c.h.b16 %v2346
        %v4616 = vunpack.c.l.b16 %v2347
        %v4617 = vunpack.c.h.b16 %v2347
        %v4618 = vunpack.c.l.b16 %v2348
        %v4619 = vunpack.c.h.b16 %v2348
        %v4620 = vunpack.c.l.b16 %v2349
        %v4621 = vunpack.c.h.b16 %v2349
        %v4622 = vunpack.c.l.b16 %v2350
        %v4623 = vunpack.c.h.b16 %v2350
        %v4624 = vunpack.c.l.b16 %v2351
        %v4625 = vunpack.c.h.b16 %v2351
        %v4626 = vunpack.c.l.b16 %v2352
        %v4627 = vunpack.c.h.b16 %v2352
        %v4628 = vunpack.c.l.b16 %v2353
        %v4629 = vunpack.c.h.b16 %v2353
        %v4630 = vunpack.c.l.b16 %v2354
        %v4631 = vunpack.c.h.b16 %v2354
        %v4632 = vunpack.c.l.b16 %v2355
        %v4633 = vunpack.c.h.b16 %v2355
        %v4634 = vunpack.c.l.b16 %v2356
        %v4635 = vunpack.c.h.b16 %v2356
        %v4636 = vunpack.c.l.b16 %v2357
        %v4637 = vunpack.c.h.b16 %v2357
        %v4638 = vunpack.c.l.b16 %v2358
        %v4639 = vunpack.c.h.b16 %v2358
        %v4640 = vunpack.c.l.b16 %v2359
        %v4641 = vunpack.c.h.b16 %v2359
        %v4642 = vunpack.c.l.b16 %v2360
        %v4643 = vunpack.c.h.b16 %v2360
        %v4644 = vunpack.c.l.b16 %v2361
        %v4645 = vunpack.c.h.b16 %v2361
        %v4646 = vunpack.c.l.b16 %v2362
        %v4647 = vunpack.c.h.b16 %v2362
        %v4648 = vunpack.c.l.b16 %v2363
        %v4649 = vunpack.c.h.b16 %v2363
        %v4650 = vunpack.c.l.b16 %v2364
        %v4651 = vunpack.c.h.b16 %v2364
        %v4652 = vunpack.c.l.b16 %v2365
        %v4653 = vunpack.c.h.b16 %v2365
        %v4654 = vunpack.c.l.b16 %v2366
        %v4655 = vunpack.c.h.b16 %v2366
        %v4656 = vunpack.c.l.b16 %v2367
        %v4657 = vunpack.c.h.b16 %v2367
        %v4658 = vunpack.c.l.b16 %v2368
        %v4659 = vunpack.c.h.b16 %v2368
        %v4660 = vunpack.c.l.b16 %v2369
        %v4661 = vunpack.c.h.b16 %v2369
        %v4662 = vunpack.c.l.b16 %v2370
        %v4663 = vunpack.c.h.b16 %v2370
        %v4664 = vunpack.c.l.b16 %v2371
        %v4665 = vunpack.c.h.b16 %v2371
        %v4666 = vunpack.c.l.b16 %v2372
        %v4667 = vunpack.c.h.b16 %v2372
        %v4668 = vunpack.c.l.b16 %v2373
        %v4669 = vunpack.c.h.b16 %v2373
        %v4670 = vunpack.c.l.b16 %v2374
        %v4671 = vunpack.c.h.b16 %v2374
        %v4672 = vunpack.c.l.b16 %v2375
        %v4673 = vunpack.c.h.b16 %v2375
        %v4674 = vunpack.c.l.b16 %v2376
        %v4675 = vunpack.c.h.b16 %v2376
        %v4676 = vunpack.c.l.b16 %v2377
        %v4677 = vunpack.c.h.b16 %v2377
        %v4678 = vunpack.c.l.b16 %v2378
        %v4679 = vunpack.c.h.b16 %v2378
        %v4680 = vunpack.c.l.b16 %v2379
        %v4681 = vunpack.c.h.b16 %v2379
        %v4682 = vunpack.c.l.b16 %v2380
        %v4683 = vunpack.c.h.b16 %v2380
        %v4684 = vunpack.c.l.b16 %v2381
        %v4685 = vunpack.c.h.b16 %v2381
        %v4686 = vunpack.c.l.b16 %v2382
        %v4687 = vunpack.c.h.b16 %v2382
        %v4688 = vunpack.c.l.b16 %v2383
        %v4689 = vunpack.c.h.b16 %v2383
        %v4690 = vunpack.c.l.b16 %v2384
        %v4691 = vunpack.c.h.b16 %v2384
        %v4692 = vunpack.c.l.b16 %v2385
        %v4693 = vunpack.c.h.b16 %v2385
        %v4694 = vunpack.c.l.b16 %v2386
        %v4695 = vunpack.c.h.b16 %v2386
        %v4696 = vunpack.c.l.b16 %v2387
        %v4697 = vunpack.c.h.b16 %v2387
        %v4698 = vunpack.c.l.b16 %v2388
        %v4699 = vunpack.c.h.b16 %v2388
        %v4700 = vunpack.c.l.b16 %v2389
        %v4701 = vunpack.c.h.b16 %v2389
        %v4702 = vunpack.c.l.b16 %v2390
        %v4703 = vunpack.c.h.b16 %v2390
        %v4704 = vunpack.c.l.b16 %v2391
        %v4705 = vunpack.c.h.b16 %v2391
        %v4706 = vunpack.c.l.b16 %v2392
        %v4707 = vunpack.c.h.b16 %v2392
        %v4708 = vunpack.c.l.b16 %v2393
        %v4709 = vunpack.c.h.b16 %v2393
        %v4710 = vunpack.c.l.b16 %v2394
        %v4711 = vunpack.c.h.b16 %v2394
        %v4712 = vunpack.c.l.b16 %v2395
        %v4713 = vunpack.c.h.b16 %v2395
        %v4714 = vunpack.c.l.b16 %v2396
        %v4715 = vunpack.c.h.b16 %v2396
        %v4716 = vunpack.c.l.b16 %v2397
        %v4717 = vunpack.c.h.b16 %v2397
        %v4718 = vunpack.c.l.b16 %v2398
        %v4719 = vunpack.c.h.b16 %v2398
        %v4720 = vunpack.c.l.b16 %v2399
        %v4721 = vunpack.c.h.b16 %v2399
        %v4722 = vunpack.c.l.b16 %v2400
        %v4723 = vunpack.c.h.b16 %v2400
        %v4724 = vunpack.c.l.b16 %v2401
        %v4725 = vunpack.c.h.b16 %v2401
        %v4726 = vunpack.c.l.b16 %v2402
        %v4727 = vunpack.c.h.b16 %v2402
        %v4728 = vunpack.c.l.b16 %v2403
        %v4729 = vunpack.c.h.b16 %v2403
        %v4730 = vunpack.c.l.b16 %v2404
        %v4731 = vunpack.c.h.b16 %v2404
        %v4732 = vunpack.c.l.b16 %v2405
        %v4733 = vunpack.c.h.b16 %v2405
        %v4734 = vunpack.c.l.b16 %v2406
        %v4735 = vunpack.c.h.b16 %v2406
        %v4736 = vunpack.c.l.b16 %v2407
        %v4737 = vunpack.c.h.b16 %v2407
        %v4738 = vunpack.c.l.b16 %v2408
        %v4739 = vunpack.c.h.b16 %v2408
        %v4740 = vunpack.c.l.b16 %v2409
        %v4741 = vunpack.c.h.b16 %v2409
        %v4742 = vunpack.c.l.b16 %v2410
        %v4743 = vunpack.c.h.b16 %v2410
        %v4744 = vunpack.c.l.b16 %v2411
        %v4745 = vunpack.c.h.b16 %v2411
        %v4746 = vunpack.c.l.b16 %v2412
        %v4747 = vunpack.c.h.b16 %v2412
        %v4748 = vunpack.c.l.b16 %v2413
        %v4749 = vunpack.c.h.b16 %v2413
        %v4750 = vunpack.c.l.b16 %v2414
        %v4751 = vunpack.c.h.b16 %v2414
        %v4752 = vunpack.c.l.b16 %v2415
        %v4753 = vunpack.c.h.b16 %v2415
        %v4754 = vunpack.c.l.b16 %v2416
        %v4755 = vunpack.c.h.b16 %v2416
        %v4756 = vunpack.c.l.b16 %v2417
        %v4757 = vunpack.c.h.b16 %v2417
        %v4758 = vunpack.c.l.b16 %v2418
        %v4759 = vunpack.c.h.b16 %v2418
        %v4760 = vunpack.c.l.b16 %v2419
        %v4761 = vunpack.c.h.b16 %v2419
        %v4762 = vunpack.c.l.b16 %v2420
        %v4763 = vunpack.c.h.b16 %v2420
        %v4764 = vunpack.c.l.b16 %v2421
        %v4765 = vunpack.c.h.b16 %v2421
        %v4766 = vunpack.c.l.b16 %v2422
        %v4767 = vunpack.c.h.b16 %v2422
        %v4768 = vunpack.c.l.b16 %v2423
        %v4769 = vunpack.c.h.b16 %v2423
        %v4770 = vunpack.c.l.b16 %v2424
        %v4771 = vunpack.c.h.b16 %v2424
        %v4772 = vunpack.c.l.b16 %v2425
        %v4773 = vunpack.c.h.b16 %v2425
        %v4774 = vunpack.c.l.b16 %v2426
        %v4775 = vunpack.c.h.b16 %v2426
        %v4776 = vunpack.c.l.b16 %v2427
        %v4777 = vunpack.c.h.b16 %v2427
        %v4778 = vunpack.c.l.b16 %v2428
        %v4779 = vunpack.c.h.b16 %v2428
        %v4780 = vunpack.c.l.b16 %v2429
        %v4781 = vunpack.c.h.b16 %v2429
        %v4782 = vunpack.c.l.b16 %v2430
        %v4783 = vunpack.c.h.b16 %v2430
        %v4784 = vunpack.c.l.b16 %v2431
        %v4785 = vunpack.c.h.b16 %v2431
        %v4786 = vunpack.c.l.b16 %v2432
        %v4787 = vunpack.c.h.b16 %v2432
        %v4788 = vunpack.c.l.b16 %v2433
        %v4789 = vunpack.c.h.b16 %v2433
        %v4790 = vunpack.c.l.b16 %v2434
        %v4791 = vunpack.c.h.b16 %v2434
        %v4792 = vunpack.c.l.b16 %v2435
        %v4793 = vunpack.c.h.b16 %v2435
        %v4794 = vunpack.c.l.b16 %v2436
        %v4795 = vunpack.c.h.b16 %v2436
        %v4796 = vunpack.c.l.b16 %v2437
        %v4797 = vunpack.c.h.b16 %v2437
        %v4798 = vunpack.c.l.b16 %v2438
        %v4799 = vunpack.c.h.b16 %v2438
        %v4800 = vunpack.c.l.b16 %v2439
        %v4801 = vunpack.c.h.b16 %v2439
        %v4802 = vunpack.c.l.b16 %v2440
        %v4803 = vunpack.c.h.b16 %v2440
        %v4804 = vunpack.c.l.b16 %v2441
        %v4805 = vunpack.c.h.b16 %v2441
        %v4806 = vunpack.c.l.b16 %v2442
        %v4807 = vunpack.c.h.b16 %v2442
        %v4808 = vunpack.c.l.b16 %v2443
        %v4809 = vunpack.c.h.b16 %v2443
        %v4810 = vunpack.c.l.b16 %v2444
        %v4811 = vunpack.c.h.b16 %v2444
        %v4812 = vunpack.c.l.b16 %v2445
        %v4813 = vunpack.c.h.b16 %v2445
        %v4814 = vunpack.c.l.b16 %v2446
        %v4815 = vunpack.c.h.b16 %v2446
        %v4816 = vunpack.c.l.b16 %v2447
        %v4817 = vunpack.c.h.b16 %v2447
        %v4818 = vunpack.c.l.b16 %v2448
        %v4819 = vunpack.c.h.b16 %v2448
        %v4820 = vunpack.c.l.b16 %v2449
        %v4821 = vunpack.c.h.b16 %v2449
        %v4822 = vunpack.c.l.b16 %v2450
        %v4823 = vunpack.c.h.b16 %v2450
        %v4824 = vunpack.c.l.b16 %v2451
        %v4825 = vunpack.c.h.b16 %v2451
        %v4826 = vunpack.c.l.b16 %v2452
        %v4827 = vunpack.c.h.b16 %v2452
        %v4828 = vunpack.c.l.b16 %v2453
        %v4829 = vunpack.c.h.b16 %v2453
        %v4830 = vunpack.c.l.b16 %v2454
        %v4831 = vunpack.c.h.b16 %v2454
        %v4832 = vunpack.c.l.b16 %v2455
        %v4833 = vunpack.c.h.b16 %v2455
        %v4834 = vunpack.c.l.b16 %v2456
        %v4835 = vunpack.c.h.b16 %v2456
        %v4836 = vunpack.c.l.b16 %v2457
        %v4837 = vunpack.c.h.b16 %v2457
        %v4838 = vunpack.c.l.b16 %v2458
        %v4839 = vunpack.c.h.b16 %v2458
        %v4840 = vunpack.c.l.b16 %v2459
        %v4841 = vunpack.c.h.b16 %v2459
        %v4842 = vunpack.c.l.b16 %v2460
        %v4843 = vunpack.c.h.b16 %v2460
        %v4844 = vunpack.c.l.b16 %v2461
        %v4845 = vunpack.c.h.b16 %v2461
        %v4846 = vunpack.c.l.b16 %v2462
        %v4847 = vunpack.c.h.b16 %v2462
        %v4848 = vunpack.c.l.b16 %v2463
        %v4849 = vunpack.c.h.b16 %v2463
        %v4850 = vunpack.c.l.b16 %v2464
        %v4851 = vunpack.c.h.b16 %v2464
        %v4852 = vunpack.c.l.b16 %v2465
        %v4853 = vunpack.c.h.b16 %v2465
        %v4854 = vunpack.c.l.b16 %v2466
        %v4855 = vunpack.c.h.b16 %v2466
        %v4856 = vunpack.c.l.b16 %v2467
        %v4857 = vunpack.c.h.b16 %v2467
        %v4858 = vunpack.c.l.b16 %v2468
        %v4859 = vunpack.c.h.b16 %v2468
        %v4860 = vunpack.c.l.b16 %v2469
        %v4861 = vunpack.c.h.b16 %v2469
        %v4862 = vunpack.c.l.b16 %v2470
        %v4863 = vunpack.c.h.b16 %v2470
        %v4864 = vunpack.c.l.b16 %v2471
        %v4865 = vunpack.c.h.b16 %v2471
        %v4866 = vunpack.c.l.b16 %v2472
        %v4867 = vunpack.c.h.b16 %v2472
        %v4868 = vunpack.c.l.b16 %v2473
        %v4869 = vunpack.c.h.b16 %v2473
        %v4870 = vunpack.c.l.b16 %v2474
        %v4871 = vunpack.c.h.b16 %v2474
        %v4872 = vunpack.c.l.b16 %v2475
        %v4873 = vunpack.c.h.b16 %v2475
        %v4874 = vunpack.c.l.b16 %v2476
        %v4875 = vunpack.c.h.b16 %v2476
        %v4876 = vunpack.c.l.b16 %v2477
        %v4877 = vunpack.c.h.b16 %v2477
        %v4878 = vunpack.c.l.b16 %v2478
        %v4879 = vunpack.c.h.b16 %v2478
        %v4880 = vunpack.c.l.b16 %v2479
        %v4881 = vunpack.c.h.b16 %v2479
        %v4882 = vunpack.c.l.b16 %v2480
        %v4883 = vunpack.c.h.b16 %v2480
        %v4884 = vunpack.c.l.b16 %v2481
        %v4885 = vunpack.c.h.b16 %v2481
        %v4886 = vunpack.c.l.b16 %v2482
        %v4887 = vunpack.c.h.b16 %v2482
        %v4888 = vunpack.c.l.b16 %v2483
        %v4889 = vunpack.c.h.b16 %v2483
        %v4890 = vunpack.c.l.b16 %v2484
        %v4891 = vunpack.c.h.b16 %v2484
        %v4892 = vunpack.c.l.b16 %v2485
        %v4893 = vunpack.c.h.b16 %v2485
        %v4894 = vunpack.c.l.b16 %v2486
        %v4895 = vunpack.c.h.b16 %v2486
        %v4896 = vunpack.c.l.b16 %v2487
        %v4897 = vunpack.c.h.b16 %v2487
        %v4898 = vunpack.c.l.b16 %v2488
        %v4899 = vunpack.c.h.b16 %v2488
        %v4900 = vunpack.c.l.b16 %v2489
        %v4901 = vunpack.c.h.b16 %v2489
        %v4902 = vunpack.c.l.b16 %v2490
        %v4903 = vunpack.c.h.b16 %v2490
        %v4904 = vunpack.c.l.b16 %v2491
        %v4905 = vunpack.c.h.b16 %v2491
        %v4906 = vunpack.c.l.b16 %v2492
        %v4907 = vunpack.c.h.b16 %v2492
        %v4908 = vunpack.c.l.b16 %v2493
        %v4909 = vunpack.c.h.b16 %v2493
        %v4910 = vunpack.c.l.b16 %v2494
        %v4911 = vunpack.c.h.b16 %v2494
        %v4912 = vunpack.c.l.b16 %v2495
        %v4913 = vunpack.c.h.b16 %v2495
        %v4914 = vunpack.c.l.b16 %v2496
        %v4915 = vunpack.c.h.b16 %v2496
        %v4916 = vunpack.c.l.b16 %v2497
        %v4917 = vunpack.c.h.b16 %v2497
        %v4918 = vunpack.c.l.b16 %v2498
        %v4919 = vunpack.c.h.b16 %v2498
        %v4920 = vunpack.c.l.b16 %v2499
        %v4921 = vunpack.c.h.b16 %v2499
        %v4922 = vunpack.c.l.b16 %v2500
        %v4923 = vunpack.c.h.b16 %v2500
        %v4924 = vunpack.c.l.b16 %v2501
        %v4925 = vunpack.c.h.b16 %v2501
        %v4926 = vunpack.c.l.b16 %v2502
        %v4927 = vunpack.c.h.b16 %v2502
        %v4928 = vunpack.c.l.b16 %v2503
        %v4929 = vunpack.c.h.b16 %v2503
        %v4930 = vunpack.c.l.b16 %v2504
        %v4931 = vunpack.c.h.b16 %v2504
        %v4932 = vunpack.c.l.b16 %v2505
        %v4933 = vunpack.c.h.b16 %v2505
        %v4934 = vunpack.c.l.b16 %v2506
        %v4935 = vunpack.c.h.b16 %v2506
        %v4936 = vunpack.c.l.b16 %v2507
        %v4937 = vunpack.c.h.b16 %v2507
        %v4938 = vunpack.c.l.b16 %v2508
        %v4939 = vunpack.c.h.b16 %v2508
        %v4940 = vunpack.c.l.b16 %v2509
        %v4941 = vunpack.c.h.b16 %v2509
        %v4942 = vunpack.c.l.b16 %v2510
        %v4943 = vunpack.c.h.b16 %v2510
        %v4944 = vunpack.c.l.b16 %v2511
        %v4945 = vunpack.c.h.b16 %v2511
        %v4946 = vunpack.c.l.b16 %v2512
        %v4947 = vunpack.c.h.b16 %v2512
        %v4948 = vunpack.c.l.b16 %v2513
        %v4949 = vunpack.c.h.b16 %v2513
        %v4950 = vunpack.c.l.b16 %v2514
        %v4951 = vunpack.c.h.b16 %v2514
        %v4952 = vunpack.c.l.b16 %v2515
        %v4953 = vunpack.c.h.b16 %v2515
        %v4954 = vunpack.c.l.b16 %v2516
        %v4955 = vunpack.c.h.b16 %v2516
        %v4956 = vunpack.c.l.b16 %v2517
        %v4957 = vunpack.c.h.b16 %v2517
        %v4958 = vunpack.c.l.b16 %v2518
        %v4959 = vunpack.c.h.b16 %v2518
        %v4960 = vunpack.c.l.b16 %v2519
        %v4961 = vunpack.c.h.b16 %v2519
        %v4962 = vunpack.c.l.b16 %v2520
        %v4963 = vunpack.c.h.b16 %v2520
        %v4964 = vunpack.c.l.b16 %v2521
        %v4965 = vunpack.c.h.b16 %v2521
        %v4966 = vunpack.c.l.b16 %v2522
        %v4967 = vunpack.c.h.b16 %v2522
        %v4968 = vunpack.c.l.b16 %v2523
        %v4969 = vunpack.c.h.b16 %v2523
        %v4970 = vunpack.c.l.b16 %v2524
        %v4971 = vunpack.c.h.b16 %v2524
        %v4972 = vunpack.c.l.b16 %v2525
        %v4973 = vunpack.c.h.b16 %v2525
        %v4974 = vunpack.c.l.b16 %v2526
        %v4975 = vunpack.c.h.b16 %v2526
        %v4976 = vunpack.c.l.b16 %v2527
        %v4977 = vunpack.c.h.b16 %v2527
        %v4978 = vunpack.c.l.b16 %v2528
        %v4979 = vunpack.c.h.b16 %v2528
        %v4980 = vunpack.c.l.b16 %v2529
        %v4981 = vunpack.c.h.b16 %v2529
        %v4982 = vunpack.c.l.b16 %v2530
        %v4983 = vunpack.c.h.b16 %v2530
        %v4984 = vunpack.c.l.b16 %v2531
        %v4985 = vunpack.c.h.b16 %v2531
        %v4986 = vunpack.c.l.b16 %v2532
        %v4987 = vunpack.c.h.b16 %v2532
        %v4988 = vunpack.c.l.b16 %v2533
        %v4989 = vunpack.c.h.b16 %v2533
        %v4990 = vunpack.c.l.b16 %v2534
        %v4991 = vunpack.c.h.b16 %v2534
        %v4992 = vunpack.c.l.b16 %v2535
        %v4993 = vunpack.c.h.b16 %v2535
        %v4994 = vunpack.c.l.b16 %v2536
        %v4995 = vunpack.c.h.b16 %v2536
        %v4996 = vunpack.c.l.b16 %v2537
        %v4997 = vunpack.c.h.b16 %v2537
        %v4998 = vunpack.c.l.b16 %v2538
        %v4999 = vunpack.c.h.b16 %v2538
        %v5000 = vunpack.c.l.b16 %v2539
        %v5001 = vunpack.c.h.b16 %v2539
        %v5002 = vunpack.c.l.b16 %v2540
        %v5003 = vunpack.c.h.b16 %v2540
        %v5004 = vunpack.c.l.b16 %v2541
        %v5005 = vunpack.c.h.b16 %v2541
        %v5006 = vunpack.c.l.b16 %v2542
        %v5007 = vunpack.c.h.b16 %v2542
        %v5008 = vunpack.c.l.b16 %v2543
        %v5009 = vunpack.c.h.b16 %v2543
        %v5010 = vunpack.c.l.b16 %v2544
        %v5011 = vunpack.c.h.b16 %v2544
        %v5012 = vunpack.c.l.b16 %v2545
        %v5013 = vunpack.c.h.b16 %v2545
        %v5014 = vunpack.c.l.b16 %v2546
        %v5015 = vunpack.c.h.b16 %v2546
        %v5016 = vunpack.c.l.b16 %v2547
        %v5017 = vunpack.c.h.b16 %v2547
        %v5018 = vunpack.c.l.b16 %v2548
        %v5019 = vunpack.c.h.b16 %v2548
        %v5020 = vunpack.c.l.b16 %v2549
        %v5021 = vunpack.c.h.b16 %v2549
        %v5022 = vunpack.c.l.b16 %v2550
        %v5023 = vunpack.c.h.b16 %v2550
        %v5024 = vunpack.c.l.b16 %v2551
        %v5025 = vunpack.c.h.b16 %v2551
        %v5026 = vunpack.c.l.b16 %v2552
        %v5027 = vunpack.c.h.b16 %v2552
        %v5028 = vunpack.c.l.b16 %v2553
        %v5029 = vunpack.c.h.b16 %v2553
        %v5030 = vunpack.c.l.b16 %v2554
        %v5031 = vunpack.c.h.b16 %v2554
        %v5032 = vunpack.c.l.b16 %v2555
        %v5033 = vunpack.c.h.b16 %v2555
        %v5034 = vunpack.c.l.b16 %v2556
        %v5035 = vunpack.c.h.b16 %v2556
        %v5036 = vunpack.c.l.b16 %v2557
        %v5037 = vunpack.c.h.b16 %v2557
        %v5038 = vunpack.c.l.b16 %v2558
        %v5039 = vunpack.c.h.b16 %v2558
        %v5040 = vunpack.c.l.b16 %v2559
        %v5041 = vunpack.c.h.b16 %v2559
        %v5042 = vunpack.c.l.b16 %v2560
        %v5043 = vunpack.c.h.b16 %v2560
        %v5044 = vunpack.c.l.b16 %v2561
        %v5045 = vunpack.c.h.b16 %v2561
        %v5046 = vunpack.c.l.b16 %v2562
        %v5047 = vunpack.c.h.b16 %v2562
        %v5048 = vunpack.c.l.b16 %v2563
        %v5049 = vunpack.c.h.b16 %v2563
        %v5050 = vunpack.c.l.b16 %v2564
        %v5051 = vunpack.c.h.b16 %v2564
        %v5052 = vunpack.c.l.b16 %v2565
        %v5053 = vunpack.c.h.b16 %v2565
        %v5054 = vunpack.c.l.b16 %v2566
        %v5055 = vunpack.c.h.b16 %v2566
        %v5056 = vunpack.c.l.b16 %v2567
        %v5057 = vunpack.c.h.b16 %v2567
        %v5058 = vunpack.c.l.b16 %v2568
        %v5059 = vunpack.c.h.b16 %v2568
        %v5060 = vunpack.c.l.b16 %v2569
        %v5061 = vunpack.c.h.b16 %v2569
        %v5062 = vunpack.c.l.b16 %v2570
        %v5063 = vunpack.c.h.b16 %v2570
        %v5064 = vunpack.c.l.b16 %v2571
        %v5065 = vunpack.c.h.b16 %v2571
        %v5066 = vunpack.c.l.b16 %v2572
        %v5067 = vunpack.c.h.b16 %v2572
        %v5068 = vunpack.c.l.b16 %v2573
        %v5069 = vunpack.c.h.b16 %v2573
        %v5070 = vunpack.c.l.b16 %v2574
        %v5071 = vunpack.c.h.b16 %v2574
        %v5072 = vunpack.c.l.b16 %v2575
        %v5073 = vunpack.c.h.b16 %v2575
        %v5074 = vunpack.c.l.b16 %v2576
        %v5075 = vunpack.c.h.b16 %v2576
        %v5076 = vunpack.c.l.b16 %v2577
        %v5077 = vunpack.c.h.b16 %v2577
        %v5078 = vunpack.c.l.b16 %v2578
        %v5079 = vunpack.c.h.b16 %v2578
        %v5080 = vunpack.c.l.b16 %v2579
        %v5081 = vunpack.c.h.b16 %v2579
        %v5082 = vunpack.c.l.b16 %v2580
        %v5083 = vunpack.c.h.b16 %v2580
        %v5084 = vunpack.c.l.b16 %v2581
        %v5085 = vunpack.c.h.b16 %v2581
        %v5086 = vunpack.c.l.b16 %v2582
        %v5087 = vunpack.c.h.b16 %v2582
        %v5088 = vunpack.c.l.b16 %v2583
        %v5089 = vunpack.c.h.b16 %v2583
        %v5090 = vunpack.c.l.b16 %v2584
        %v5091 = vunpack.c.h.b16 %v2584
        %v5092 = vunpack.c.l.b16 %v2585
        %v5093 = vunpack.c.h.b16 %v2585
        %v5094 = vunpack.c.l.b16 %v2586
        %v5095 = vunpack.c.h.b16 %v2586
        %v5096 = vunpack.c.l.b16 %v2587
        %v5097 = vunpack.c.h.b16 %v2587
        %v5098 = vunpack.c.l.b16 %v2588
        %v5099 = vunpack.c.h.b16 %v2588
        %v5100 = vunpack.c.l.b16 %v2589
        %v5101 = vunpack.c.h.b16 %v2589
        %v5102 = vunpack.c.l.b16 %v2590
        %v5103 = vunpack.c.h.b16 %v2590
        %v5104 = vunpack.c.l.b16 %v2591
        %v5105 = vunpack.c.h.b16 %v2591
        %v5106 = vunpack.c.l.b16 %v2592
        %v5107 = vunpack.c.h.b16 %v2592
        %v5108 = vunpack.c.l.b16 %v2593
        %v5109 = vunpack.c.h.b16 %v2593
        %v5110 = vunpack.c.l.b16 %v2594
        %v5111 = vunpack.c.h.b16 %v2594
        %v5112 = vunpack.c.l.b16 %v2595
        %v5113 = vunpack.c.h.b16 %v2595
        %v5114 = vunpack.c.l.b16 %v2596
        %v5115 = vunpack.c.h.b16 %v2596
        %v5116 = vunpack.c.l.b16 %v2597
        %v5117 = vunpack.c.h.b16 %v2597
        %v5118 = vunpack.c.l.b16 %v2598
        %v5119 = vunpack.c.h.b16 %v2598
        %v5120 = vunpack.c.l.b16 %v2599
        %v5121 = vunpack.c.h.b16 %v2599
        %v5122 = vunpack.c.l.b16 %v2600
        %v5123 = vunpack.c.h.b16 %v2600
        %v5124 = vunpack.c.l.b16 %v2601
        %v5125 = vunpack.c.h.b16 %v2601
        %v5126 = vunpack.c.l.b16 %v2602
        %v5127 = vunpack.c.h.b16 %v2602
        %v5128 = vunpack.c.l.b16 %v2603
        %v5129 = vunpack.c.h.b16 %v2603
        %v5130 = vunpack.c.l.b16 %v2604
        %v5131 = vunpack.c.h.b16 %v2604
        %v5132 = vunpack.c.l.b16 %v2605
        %v5133 = vunpack.c.h.b16 %v2605
        %v5134 = vunpack.c.l.b16 %v2606
        %v5135 = vunpack.c.h.b16 %v2606
        %v5136 = vunpack.c.l.b16 %v2607
        %v5137 = vunpack.c.h.b16 %v2607
        %v5138 = vunpack.c.l.b16 %v2608
        %v5139 = vunpack.c.h.b16 %v2608
        %v5140 = vunpack.c.l.b16 %v2609
        %v5141 = vunpack.c.h.b16 %v2609
        %v5142 = vunpack.c.l.b16 %v2610
        %v5143 = vunpack.c.h.b16 %v2610
        %v5144 = vunpack.c.l.b16 %v2611
        %v5145 = vunpack.c.h.b16 %v2611
        %v5146 = vunpack.c.l.b16 %v2612
        %v5147 = vunpack.c.h.b16 %v2612
        %v5148 = vunpack.c.l.b16 %v2613
        %v5149 = vunpack.c.h.b16 %v2613
        %v5150 = vunpack.c.l.b16 %v2614
        %v5151 = vunpack.c.h.b16 %v2614
        %v5152 = vunpack.c.l.b16 %v2615
        %v5153 = vunpack.c.h.b16 %v2615
        %v5154 = vunpack.c.l.b16 %v2616
        %v5155 = vunpack.c.h.b16 %v2616
        %v5156 = vunpack.c.l.b16 %v2617
        %v5157 = vunpack.c.h.b16 %v2617
        %v5158 = vunpack.c.l.b16 %v2618
        %v5159 = vunpack.c.h.b16 %v2618
        %v5160 = vunpack.c.l.b16 %v2619
        %v5161 = vunpack.c.h.b16 %v2619
        %v5162 = vunpack.c.l.b16 %v2620
        %v5163 = vunpack.c.h.b16 %v2620
        %v5164 = vunpack.c.l.b16 %v2621
        %v5165 = vunpack.c.h.b16 %v2621
        %v5166 = vunpack.c.l.b16 %v2622
        %v5167 = vunpack.c.h.b16 %v2622
        %v5168 = vunpack.c.l.b16 %v2623
        %v5169 = vunpack.c.h.b16 %v2623
        %v5170 = vunpack.c.l.b16 %v2624
        %v5171 = vunpack.c.h.b16 %v2624
        %v5172 = vunpack.c.l.b16 %v2625
        %v5173 = vunpack.c.h.b16 %v2625
        %v5174 = vunpack.c.l.b16 %v2626
        %v5175 = vunpack.c.h.b16 %v2626
        %v5176 = vunpack.c.l.b16 %v2627
        %v5177 = vunpack.c.h.b16 %v2627
        %v5178 = vunpack.c.l.b16 %v2628
        %v5179 = vunpack.c.h.b16 %v2628
        %v5180 = vunpack.c.l.b16 %v2629
        %v5181 = vunpack.c.h.b16 %v2629
        %v5182 = vunpack.c.l.b16 %v2630
        %v5183 = vunpack.c.h.b16 %v2630
        %v5184 = vunpack.c.l.b16 %v2631
        %v5185 = vunpack.c.h.b16 %v2631
        %v5186 = vunpack.c.l.b16 %v2632
        %v5187 = vunpack.c.h.b16 %v2632
        %v5188 = vunpack.c.l.b16 %v2633
        %v5189 = vunpack.c.h.b16 %v2633
        %v5190 = vunpack.c.l.b16 %v2634
        %v5191 = vunpack.c.h.b16 %v2634
        %v5192 = vunpack.c.l.b16 %v2635
        %v5193 = vunpack.c.h.b16 %v2635
        %v5194 = vunpack.c.l.b16 %v2636
        %v5195 = vunpack.c.h.b16 %v2636
        %v5196 = vunpack.c.l.b16 %v2637
        %v5197 = vunpack.c.h.b16 %v2637
        %v5198 = vunpack.c.l.b16 %v2638
        %v5199 = vunpack.c.h.b16 %v2638
        %v5200 = vunpack.c.l.b16 %v2639
        %v5201 = vunpack.c.h.b16 %v2639
        %v5202 = vunpack.c.l.b16 %v2640
        %v5203 = vunpack.c.h.b16 %v2640
        %v5204 = vpack.c.b16 %v3640, %v3636
        %v5205 = vpack.c.b16 %v3641, %v3637
        %v5206 = vpack.c.b16 %v3642, %v3638
        %v5207 = vpack.c.b16 %v3643, %v3639
        %v5208 = vpack.c.b16 %v3648, %v3644
        %v5209 = vpack.c.b16 %v3649, %v3645
        %v5210 = vpack.c.b16 %v3650, %v3646
        %v5211 = vpack.c.b16 %v3651, %v3647
        %v5212 = vpack.c.b16 %v3656, %v3652
        %v5213 = vpack.c.b16 %v3657, %v3653
        %v5214 = vpack.c.b16 %v3658, %v3654
        %v5215 = vpack.c.b16 %v3659, %v3655
        %v5216 = vpack.c.b16 %v3664, %v3660
        %v5217 = vpack.c.b16 %v3665, %v3661
        %v5218 = vpack.c.b16 %v3666, %v3662
        %v5219 = vpack.c.b16 %v3667, %v3663
        %v5220 = vpack.c.b16 %v3672, %v3668
        %v5221 = vpack.c.b16 %v3673, %v3669
        %v5222 = vpack.c.b16 %v3674, %v3670
        %v5223 = vpack.c.b16 %v3675, %v3671
        %v5224 = vpack.c.b16 %v3680, %v3676
        %v5225 = vpack.c.b16 %v3681, %v3677
        %v5226 = vpack.c.b16 %v3682, %v3678
        %v5227 = vpack.c.b16 %v3683, %v3679
        %v5228 = vpack.c.b16 %v3688, %v3684
        %v5229 = vpack.c.b16 %v3689, %v3685
        %v5230 = vpack.c.b16 %v3690, %v3686
        %v5231 = vpack.c.b16 %v3691, %v3687
        %v5232 = vpack.c.b16 %v3696, %v3692
        %v5233 = vpack.c.b16 %v3697, %v3693
        %v5234 = vpack.c.b16 %v3698, %v3694
        %v5235 = vpack.c.b16 %v3699, %v3695
        %v5236 = vpack.c.b16 %v3704, %v3700
        %v5237 = vpack.c.b16 %v3705, %v3701
        %v5238 = vpack.c.b16 %v3706, %v3702
        %v5239 = vpack.c.b16 %v3707, %v3703
        %v5240 = vpack.c.b16 %v3712, %v3708
        %v5241 = vpack.c.b16 %v3713, %v3709
        %v5242 = vpack.c.b16 %v3714, %v3710
        %v5243 = vpack.c.b16 %v3715, %v3711
        %v5244 = vpack.c.b16 %v3720, %v3716
        %v5245 = vpack.c.b16 %v3721, %v3717
        %v5246 = vpack.c.b16 %v3722, %v3718
        %v5247 = vpack.c.b16 %v3723, %v3719
        %v5248 = vpack.c.b16 %v3728, %v3724
        %v5249 = vpack.c.b16 %v3729, %v3725
        %v5250 = vpack.c.b16 %v3730, %v3726
        %v5251 = vpack.c.b16 %v3731, %v3727
        %v5252 = vpack.c.b16 %v3736, %v3732
        %v5253 = vpack.c.b16 %v3737, %v3733
        %v5254 = vpack.c.b16 %v3738, %v3734
        %v5255 = vpack.c.b16 %v3739, %v3735
        %v5256 = vpack.c.b16 %v3744, %v3740
        %v5257 = vpack.c.b16 %v3745, %v3741
        %v5258 = vpack.c.b16 %v3746, %v3742
        %v5259 = vpack.c.b16 %v3747, %v3743
        %v5260 = vpack.c.b16 %v3752, %v3748
        %v5261 = vpack.c.b16 %v3753, %v3749
        %v5262 = vpack.c.b16 %v3754, %v3750
        %v5263 = vpack.c.b16 %v3755, %v3751
        %v5264 = vpack.c.b16 %v3760, %v3756
        %v5265 = vpack.c.b16 %v3761, %v3757
        %v5266 = vpack.c.b16 %v3762, %v3758
        %v5267 = vpack.c.b16 %v3763, %v3759
        %v5268 = vpack.c.b16 %v3768, %v3764
        %v5269 = vpack.c.b16 %v3769, %v3765
        %v5270 = vpack.c.b16 %v3770, %v3766
        %v5271 = vpack.c.b16 %v3771, %v3767
        %v5272 = vpack.c.b16 %v3776, %v3772
        %v5273 = vpack.c.b16 %v3777, %v3773
        %v5274 = vpack.c.b16 %v3778, %v3774
        %v5275 = vpack.c.b16 %v3779, %v3775
        %v5276 = vpack.c.b16 %v3784, %v3780
        %v5277 = vpack.c.b16 %v3785, %v3781
        %v5278 = vpack.c.b16 %v3786, %v3782
        %v5279 = vpack.c.b16 %v3787, %v3783
        %v5280 = vpack.c.b16 %v3792, %v3788
        %v5281 = vpack.c.b16 %v3793, %v3789
        %v5282 = vpack.c.b16 %v3794, %v3790
        %v5283 = vpack.c.b16 %v3795, %v3791
        %v5284 = vpack.c.b16 %v3800, %v3796
        %v5285 = vpack.c.b16 %v3801, %v3797
        %v5286 = vpack.c.b16 %v3802, %v3798
        %v5287 = vpack.c.b16 %v3803, %v3799
        %v5288 = vpack.c.b16 %v3808, %v3804
        %v5289 = vpack.c.b16 %v3809, %v3805
        %v5290 = vpack.c.b16 %v3810, %v3806
        %v5291 = vpack.c.b16 %v3811, %v3807
        %v5292 = vpack.c.b16 %v3816, %v3812
        %v5293 = vpack.c.b16 %v3817, %v3813
        %v5294 = vpack.c.b16 %v3818, %v3814
        %v5295 = vpack.c.b16 %v3819, %v3815
        %v5296 = vpack.c.b16 %v3824, %v3820
        %v5297 = vpack.c.b16 %v3825, %v3821
        %v5298 = vpack.c.b16 %v3826, %v3822
        %v5299 = vpack.c.b16 %v3827, %v3823
        %v5300 = vpack.c.b16 %v3832, %v3828
        %v5301 = vpack.c.b16 %v3833, %v3829
        %v5302 = vpack.c.b16 %v3834, %v3830
        %v5303 = vpack.c.b16 %v3835, %v3831
        %v5304 = vpack.c.b16 %v3840, %v3836
        %v5305 = vpack.c.b16 %v3841, %v3837
        %v5306 = vpack.c.b16 %v3842, %v3838
        %v5307 = vpack.c.b16 %v3843, %v3839
        %v5308 = vpack.c.b16 %v3848, %v3844
        %v5309 = vpack.c.b16 %v3849, %v3845
        %v5310 = vpack.c.b16 %v3850, %v3846
        %v5311 = vpack.c.b16 %v3851, %v3847
        %v5312 = vpack.c.b16 %v3856, %v3852
        %v5313 = vpack.c.b16 %v3857, %v3853
        %v5314 = vpack.c.b16 %v3858, %v3854
        %v5315 = vpack.c.b16 %v3859, %v3855
        %v5316 = vpack.c.b16 %v3864, %v3860
        %v5317 = vpack.c.b16 %v3865, %v3861
        %v5318 = vpack.c.b16 %v3866, %v3862
        %v5319 = vpack.c.b16 %v3867, %v3863
        %v5320 = vpack.c.b16 %v3872, %v3868
        %v5321 = vpack.c.b16 %v3873, %v3869
        %v5322 = vpack.c.b16 %v3874, %v3870
        %v5323 = vpack.c.b16 %v3875, %v3871
        %v5324 = vpack.c.b16 %v3880, %v3876
        %v5325 = vpack.c.b16 %v3881, %v3877
        %v5326 = vpack.c.b16 %v3882, %v3878
        %v5327 = vpack.c.b16 %v3883, %v3879
        %v5328 = vpack.c.b16 %v3888, %v3884
        %v5329 = vpack.c.b16 %v3889, %v3885
        %v5330 = vpack.c.b16 %v3890, %v3886
        %v5331 = vpack.c.b16 %v3891, %v3887
        %v5332 = vpack.c.b16 %v3896, %v3892
        %v5333 = vpack.c.b16 %v3897, %v3893
        %v5334 = vpack.c.b16 %v3898, %v3894
        %v5335 = vpack.c.b16 %v3899, %v3895
        %v5336 = vpack.c.b16 %v3904, %v3900
        %v5337 = vpack.c.b16 %v3905, %v3901
        %v5338 = vpack.c.b16 %v3906, %v3902
        %v5339 = vpack.c.b16 %v3907, %v3903
        %v5340 = vpack.c.b16 %v3912, %v3908
        %v5341 = vpack.c.b16 %v3913, %v3909
        %v5342 = vpack.c.b16 %v3914, %v3910
        %v5343 = vpack.c.b16 %v3915, %v3911
        %v5344 = vpack.c.b16 %v3920, %v3916
        %v5345 = vpack.c.b16 %v3921, %v3917
        %v5346 = vpack.c.b16 %v3922, %v3918
        %v5347 = vpack.c.b16 %v3923, %v3919
        %v5348 = vpack.c.b16 %v3928, %v3924
        %v5349 = vpack.c.b16 %v3929, %v3925
        %v5350 = vpack.c.b16 %v3930, %v3926
        %v5351 = vpack.c.b16 %v3931, %v3927
        %v5352 = vpack.c.b16 %v3936, %v3932
        %v5353 = vpack.c.b16 %v3937, %v3933
        %v5354 = vpack.c.b16 %v3938, %v3934
        %v5355 = vpack.c.b16 %v3939, %v3935
        %v5356 = vpack.c.b16 %v3944, %v3940
        %v5357 = vpack.c.b16 %v3945, %v3941
        %v5358 = vpack.c.b16 %v3946, %v3942
        %v5359 = vpack.c.b16 %v3947, %v3943
        %v5360 = vpack.c.b16 %v3952, %v3948
        %v5361 = vpack.c.b16 %v3953, %v3949
        %v5362 = vpack.c.b16 %v3954, %v3950
        %v5363 = vpack.c.b16 %v3955, %v3951
        %v5364 = vpack.c.b16 %v3960, %v3956
        %v5365 = vpack.c.b16 %v3961, %v3957
        %v5366 = vpack.c.b16 %v3962, %v3958
        %v5367 = vpack.c.b16 %v3963, %v3959
        %v5368 = vpack.c.b16 %v3968, %v3964
        %v5369 = vpack.c.b16 %v3969, %v3965
        %v5370 = vpack.c.b16 %v3970, %v3966
        %v5371 = vpack.c.b16 %v3971, %v3967
        %v5372 = vpack.c.b16 %v3976, %v3972
        %v5373 = vpack.c.b16 %v3977, %v3973
        %v5374 = vpack.c.b16 %v3978, %v3974
        %v5375 = vpack.c.b16 %v3979, %v3975
        %v5376 = vpack.c.b16 %v3984, %v3980
        %v5377 = vpack.c.b16 %v3985, %v3981
        %v5378 = vpack.c.b16 %v3986, %v3982
        %v5379 = vpack.c.b16 %v3987, %v3983
        %v5380 = vpack.c.b16 %v3992, %v3988
        %v5381 = vpack.c.b16 %v3993, %v3989
        %v5382 = vpack.c.b16 %v3994, %v3990
        %v5383 = vpack.c.b16 %v3995, %v3991
        %v5384 = vpack.c.b16 %v4000, %v3996
        %v5385 = vpack.c.b16 %v4001, %v3997
        %v5386 = vpack.c.b16 %v4002, %v3998
        %v5387 = vpack.c.b16 %v4003, %v3999
        %v5388 = vpack.c.b16 %v4008, %v4004
        %v5389 = vpack.c.b16 %v4009, %v4005
        %v5390 = vpack.c.b16 %v4010, %v4006
        %v5391 = vpack.c.b16 %v4011, %v4007
        %v5392 = vpack.c.b16 %v4016, %v4012
        %v5393 = vpack.c.b16 %v4017, %v4013
        %v5394 = vpack.c.b16 %v4018, %v4014
        %v5395 = vpack.c.b16 %v4019, %v4015
        %v5396 = vpack.c.b16 %v4024, %v4020
        %v5397 = vpack.c.b16 %v4025, %v4021
        %v5398 = vpack.c.b16 %v4026, %v4022
        %v5399 = vpack.c.b16 %v4027, %v4023
        %v5400 = vpack.c.b16 %v4032, %v4028
        %v5401 = vpack.c.b16 %v4033, %v4029
        %v5402 = vpack.c.b16 %v4034, %v4030
        %v5403 = vpack.c.b16 %v4035, %v4031
        %v5404 = vpack.c.b16 %v4040, %v4036
        %v5405 = vpack.c.b16 %v4041, %v4037
        %v5406 = vpack.c.b16 %v4042, %v4038
        %v5407 = vpack.c.b16 %v4043, %v4039
        %v5408 = vpack.c.b16 %v4048, %v4044
        %v5409 = vpack.c.b16 %v4049, %v4045
        %v5410 = vpack.c.b16 %v4050, %v4046
        %v5411 = vpack.c.b16 %v4051, %v4047
        %v5412 = vpack.c.b16 %v4056, %v4052
        %v5413 = vpack.c.b16 %v4057, %v4053
        %v5414 = vpack.c.b16 %v4058, %v4054
        %v5415 = vpack.c.b16 %v4059, %v4055
        %v5416 = vpack.c.b16 %v4064, %v4060
        %v5417 = vpack.c.b16 %v4065, %v4061
        %v5418 = vpack.c.b16 %v4066, %v4062
        %v5419 = vpack.c.b16 %v4067, %v4063
        %v5420 = vpack.c.b16 %v4072, %v4068
        %v5421 = vpack.c.b16 %v4073, %v4069
        %v5422 = vpack.c.b16 %v4074, %v4070
        %v5423 = vpack.c.b16 %v4075, %v4071
        %v5424 = vpack.c.b16 %v4080, %v4076
        %v5425 = vpack.c.b16 %v4081, %v4077
        %v5426 = vpack.c.b16 %v4082, %v4078
        %v5427 = vpack.c.b16 %v4083, %v4079
        %v5428 = vpack.c.b16 %v4088, %v4084
        %v5429 = vpack.c.b16 %v4089, %v4085
        %v5430 = vpack.c.b16 %v4090, %v4086
        %v5431 = vpack.c.b16 %v4091, %v4087
        %v5432 = vpack.c.b16 %v4096, %v4092
        %v5433 = vpack.c.b16 %v4097, %v4093
        %v5434 = vpack.c.b16 %v4098, %v4094
        %v5435 = vpack.c.b16 %v4099, %v4095
        %v5436 = vpack.c.b16 %v4104, %v4100
        %v5437 = vpack.c.b16 %v4105, %v4101
        %v5438 = vpack.c.b16 %v4106, %v4102
        %v5439 = vpack.c.b16 %v4107, %v4103
        %v5440 = vpack.c.b16 %v4112, %v4108
        %v5441 = vpack.c.b16 %v4113, %v4109
        %v5442 = vpack.c.b16 %v4114, %v4110
        %v5443 = vpack.c.b16 %v4115, %v4111
        %v5444 = vpack.c.b16 %v4120, %v4116
        %v5445 = vpack.c.b16 %v4121, %v4117
        %v5446 = vpack.c.b16 %v4122, %v4118
        %v5447 = vpack.c.b16 %v4123, %v4119
        %v5448 = vpack.c.b16 %v4128, %v4124
        %v5449 = vpack.c.b16 %v4129, %v4125
        %v5450 = vpack.c.b16 %v4130, %v4126
        %v5451 = vpack.c.b16 %v4131, %v4127
        %v5452 = vpack.c.b16 %v4136, %v4132
        %v5453 = vpack.c.b16 %v4137, %v4133
        %v5454 = vpack.c.b16 %v4138, %v4134
        %v5455 = vpack.c.b16 %v4139, %v4135
        %v5456 = vpack.c.b16 %v4144, %v4140
        %v5457 = vpack.c.b16 %v4145, %v4141
        %v5458 = vpack.c.b16 %v4146, %v4142
        %v5459 = vpack.c.b16 %v4147, %v4143
        %v5460 = vpack.c.b16 %v4152, %v4148
        %v5461 = vpack.c.b16 %v4153, %v4149
        %v5462 = vpack.c.b16 %v4154, %v4150
        %v5463 = vpack.c.b16 %v4155, %v4151
        %v5464 = vpack.c.b16 %v4160, %v4156
        %v5465 = vpack.c.b16 %v4161, %v4157
        %v5466 = vpack.c.b16 %v4162, %v4158
        %v5467 = vpack.c.b16 %v4163, %v4159
        %v5468 = vpack.c.b16 %v4168, %v4164
        %v5469 = vpack.c.b16 %v4169, %v4165
        %v5470 = vpack.c.b16 %v4170, %v4166
        %v5471 = vpack.c.b16 %v4171, %v4167
        %v5472 = vpack.c.b16 %v4176, %v4172
        %v5473 = vpack.c.b16 %v4177, %v4173
        %v5474 = vpack.c.b16 %v4178, %v4174
        %v5475 = vpack.c.b16 %v4179, %v4175
        %v5476 = vpack.c.b16 %v4184, %v4180
        %v5477 = vpack.c.b16 %v4185, %v4181
        %v5478 = vpack.c.b16 %v4186, %v4182
        %v5479 = vpack.c.b16 %v4187, %v4183
        %v5480 = vpack.c.b16 %v4192, %v4188
        %v5481 = vpack.c.b16 %v4193, %v4189
        %v5482 = vpack.c.b16 %v4194, %v4190
        %v5483 = vpack.c.b16 %v4195, %v4191
        %v5484 = vpack.c.b16 %v4200, %v4196
        %v5485 = vpack.c.b16 %v4201, %v4197
        %v5486 = vpack.c.b16 %v4202, %v4198
        %v5487 = vpack.c.b16 %v4203, %v4199
        %v5488 = vpack.c.b16 %v4208, %v4204
        %v5489 = vpack.c.b16 %v4209, %v4205
        %v5490 = vpack.c.b16 %v4210, %v4206
        %v5491 = vpack.c.b16 %v4211, %v4207
        %v5492 = vpack.c.b16 %v4216, %v4212
        %v5493 = vpack.c.b16 %v4217, %v4213
        %v5494 = vpack.c.b16 %v4218, %v4214
        %v5495 = vpack.c.b16 %v4219, %v4215
        %v5496 = vpack.c.b16 %v4224, %v4220
        %v5497 = vpack.c.b16 %v4225, %v4221
        %v5498 = vpack.c.b16 %v4226, %v4222
        %v5499 = vpack.c.b16 %v4227, %v4223
        %v5500 = vpack.c.b16 %v4232, %v4228
        %v5501 = vpack.c.b16 %v4233, %v4229
        %v5502 = vpack.c.b16 %v4234, %v4230
        %v5503 = vpack.c.b16 %v4235, %v4231
        %v5504 = vpack.c.b16 %v4240, %v4236
        %v5505 = vpack.c.b16 %v4241, %v4237
        %v5506 = vpack.c.b16 %v4242, %v4238
        %v5507 = vpack.c.b16 %v4243, %v4239
        %v5508 = vpack.c.b16 %v4248, %v4244
        %v5509 = vpack.c.b16 %v4249, %v4245
        %v5510 = vpack.c.b16 %v4250, %v4246
        %v5511 = vpack.c.b16 %v4251, %v4247
        %v5512 = vpack.c.b16 %v4256, %v4252
        %v5513 = vpack.c.b16 %v4257, %v4253
        %v5514 = vpack.c.b16 %v4258, %v4254
        %v5515 = vpack.c.b16 %v4259, %v4255
        %v5516 = vpack.c.b16 %v4264, %v4260
        %v5517 = vpack.c.b16 %v4265, %v4261
        %v5518 = vpack.c.b16 %v4266, %v4262
        %v5519 = vpack.c.b16 %v4267, %v4263
        %v5520 = vpack.c.b16 %v4272, %v4268
        %v5521 = vpack.c.b16 %v4273, %v4269
        %v5522 = vpack.c.b16 %v4274, %v4270
        %v5523 = vpack.c.b16 %v4275, %v4271
        %v5524 = vpack.c.b16 %v4280, %v4276
        %v5525 = vpack.c.b16 %v4281, %v4277
        %v5526 = vpack.c.b16 %v4282, %v4278
        %v5527 = vpack.c.b16 %v4283, %v4279
        %v5528 = vpack.c.b16 %v4288, %v4284
        %v5529 = vpack.c.b16 %v4289, %v4285
        %v5530 = vpack.c.b16 %v4290, %v4286
        %v5531 = vpack.c.b16 %v4291, %v4287
        %v5532 = vpack.c.b16 %v4296, %v4292
        %v5533 = vpack.c.b16 %v4297, %v4293
        %v5534 = vpack.c.b16 %v4298, %v4294
        %v5535 = vpack.c.b16 %v4299, %v4295
        %v5536 = vpack.c.b16 %v4304, %v4300
        %v5537 = vpack.c.b16 %v4305, %v4301
        %v5538 = vpack.c.b16 %v4306, %v4302
        %v5539 = vpack.c.b16 %v4307, %v4303
        %v5540 = vpack.c.b16 %v4312, %v4308
        %v5541 = vpack.c.b16 %v4313, %v4309
        %v5542 = vpack.c.b16 %v4314, %v4310
        %v5543 = vpack.c.b16 %v4315, %v4311
        %v5544 = vpack.c.b16 %v4320, %v4316
        %v5545 = vpack.c.b16 %v4321, %v4317
        %v5546 = vpack.c.b16 %v4322, %v4318
        %v5547 = vpack.c.b16 %v4323, %v4319
        %v5548 = vpack.c.b16 %v4328, %v4324
        %v5549 = vpack.c.b16 %v4329, %v4325
        %v5550 = vpack.c.b16 %v4330, %v4326
        %v5551 = vpack.c.b16 %v4331, %v4327
        %v5552 = vpack.c.b16 %v4336, %v4332
        %v5553 = vpack.c.b16 %v4337, %v4333
        %v5554 = vpack.c.b16 %v4338, %v4334
        %v5555 = vpack.c.b16 %v4339, %v4335
        %v5556 = vpack.c.b16 %v4344, %v4340
        %v5557 = vpack.c.b16 %v4345, %v4341
        %v5558 = vpack.c.b16 %v4346, %v4342
        %v5559 = vpack.c.b16 %v4347, %v4343
        %v5560 = vpack.c.b16 %v4352, %v4348
        %v5561 = vpack.c.b16 %v4353, %v4349
        %v5562 = vpack.c.b16 %v4354, %v4350
        %v5563 = vpack.c.b16 %v4355, %v4351
        %v5564 = vpack.c.b16 %v4360, %v4356
        %v5565 = vpack.c.b16 %v4361, %v4357
        %v5566 = vpack.c.b16 %v4362, %v4358
        %v5567 = vpack.c.b16 %v4363, %v4359
        %v5568 = vpack.c.b16 %v4368, %v4364
        %v5569 = vpack.c.b16 %v4369, %v4365
        %v5570 = vpack.c.b16 %v4370, %v4366
        %v5571 = vpack.c.b16 %v4371, %v4367
        %v5572 = vpack.c.b16 %v4376, %v4372
        %v5573 = vpack.c.b16 %v4377, %v4373
        %v5574 = vpack.c.b16 %v4378, %v4374
        %v5575 = vpack.c.b16 %v4379, %v4375
        %v5576 = vpack.c.b16 %v4384, %v4380
        %v5577 = vpack.c.b16 %v4385, %v4381
        %v5578 = vpack.c.b16 %v4386, %v4382
        %v5579 = vpack.c.b16 %v4387, %v4383
        %v5580 = vpack.c.b16 %v4392, %v4388
        %v5581 = vpack.c.b16 %v4393, %v4389
        %v5582 = vpack.c.b16 %v4394, %v4390
        %v5583 = vpack.c.b16 %v4395, %v4391
        %v5584 = vpack.c.b16 %v4400, %v4396
        %v5585 = vpack.c.b16 %v4401, %v4397
        %v5586 = vpack.c.b16 %v4402, %v4398
        %v5587 = vpack.c.b16 %v4403, %v4399
        %v5588 = vpack.c.b16 %v4408, %v4404
        %v5589 = vpack.c.b16 %v4409, %v4405
        %v5590 = vpack.c.b16 %v4410, %v4406
        %v5591 = vpack.c.b16 %v4411, %v4407
        %v5592 = vpack.c.b16 %v4416, %v4412
        %v5593 = vpack.c.b16 %v4417, %v4413
        %v5594 = vpack.c.b16 %v4418, %v4414
        %v5595 = vpack.c.b16 %v4419, %v4415
        %v5596 = vpack.c.b16 %v4424, %v4420
        %v5597 = vpack.c.b16 %v4425, %v4421
        %v5598 = vpack.c.b16 %v4426, %v4422
        %v5599 = vpack.c.b16 %v4427, %v4423
        %v5600 = vpack.c.b16 %v4432, %v4428
        %v5601 = vpack.c.b16 %v4433, %v4429
        %v5602 = vpack.c.b16 %v4434, %v4430
        %v5603 = vpack.c.b16 %v4435, %v4431
        %v5604 = vpack.c.b16 %v4440, %v4436
        %v5605 = vpack.c.b16 %v4441, %v4437
        %v5606 = vpack.c.b16 %v4442, %v4438
        %v5607 = vpack.c.b16 %v4443, %v4439
        %v5608 = vpack.c.b16 %v4448, %v4444
        %v5609 = vpack.c.b16 %v4449, %v4445
        %v5610 = vpack.c.b16 %v4450, %v4446
        %v5611 = vpack.c.b16 %v4451, %v4447
        %v5612 = vpack.c.b16 %v4456, %v4452
        %v5613 = vpack.c.b16 %v4457, %v4453
        %v5614 = vpack.c.b16 %v4458, %v4454
        %v5615 = vpack.c.b16 %v4459, %v4455
        %v5616 = vpack.c.b16 %v4464, %v4460
        %v5617 = vpack.c.b16 %v4465, %v4461
        %v5618 = vpack.c.b16 %v4466, %v4462
        %v5619 = vpack.c.b16 %v4467, %v4463
        %v5620 = vpack.c.b16 %v4472, %v4468
        %v5621 = vpack.c.b16 %v4473, %v4469
        %v5622 = vpack.c.b16 %v4474, %v4470
        %v5623 = vpack.c.b16 %v4475, %v4471
        %v5624 = vpack.c.b16 %v4480, %v4476
        %v5625 = vpack.c.b16 %v4481, %v4477
        %v5626 = vpack.c.b16 %v4482, %v4478
        %v5627 = vpack.c.b16 %v4483, %v4479
        %v5628 = vpack.c.b16 %v4488, %v4484
        %v5629 = vpack.c.b16 %v4489, %v4485
        %v5630 = vpack.c.b16 %v4490, %v4486
        %v5631 = vpack.c.b16 %v4491, %v4487
        %v5632 = vpack.c.b16 %v4496, %v4492
        %v5633 = vpack.c.b16 %v4497, %v4493
        %v5634 = vpack.c.b16 %v4498, %v4494
        %v5635 = vpack.c.b16 %v4499, %v4495
        %v5636 = vpack.c.b16 %v4504, %v4500
        %v5637 = vpack.c.b16 %v4505, %v4501
        %v5638 = vpack.c.b16 %v4506, %v4502
        %v5639 = vpack.c.b16 %v4507, %v4503
        %v5640 = vpack.c.b16 %v4512, %v4508
        %v5641 = vpack.c.b16 %v4513, %v4509
        %v5642 = vpack.c.b16 %v4514, %v4510
        %v5643 = vpack.c.b16 %v4515, %v4511
        %v5644 = vpack.c.b16 %v4520, %v4516
        %v5645 = vpack.c.b16 %v4521, %v4517
        %v5646 = vpack.c.b16 %v4522, %v4518
        %v5647 = vpack.c.b16 %v4523, %v4519
        %v5648 = vpack.c.b16 %v4528, %v4524
        %v5649 = vpack.c.b16 %v4529, %v4525
        %v5650 = vpack.c.b16 %v4530, %v4526
        %v5651 = vpack.c.b16 %v4531, %v4527
        %v5652 = vpack.c.b16 %v4536, %v4532
        %v5653 = vpack.c.b16 %v4537, %v4533
        %v5654 = vpack.c.b16 %v4538, %v4534
        %v5655 = vpack.c.b16 %v4539, %v4535
        %v5656 = vpack.c.b16 %v4544, %v4540
        %v5657 = vpack.c.b16 %v4545, %v4541
        %v5658 = vpack.c.b16 %v4546, %v4542
        %v5659 = vpack.c.b16 %v4547, %v4543
        %v5660 = vpack.c.b16 %v4552, %v4548
        %v5661 = vpack.c.b16 %v4553, %v4549
        %v5662 = vpack.c.b16 %v4554, %v4550
        %v5663 = vpack.c.b16 %v4555, %v4551
        %v5664 = vpack.c.b16 %v4560, %v4556
        %v5665 = vpack.c.b16 %v4561, %v4557
        %v5666 = vpack.c.b16 %v4562, %v4558
        %v5667 = vpack.c.b16 %v4563, %v4559
        %v5668 = vpack.c.b16 %v4568, %v4564
        %v5669 = vpack.c.b16 %v4569, %v4565
        %v5670 = vpack.c.b16 %v4570, %v4566
        %v5671 = vpack.c.b16 %v4571, %v4567
        %v5672 = vpack.c.b16 %v4576, %v4572
        %v5673 = vpack.c.b16 %v4577, %v4573
        %v5674 = vpack.c.b16 %v4578, %v4574
        %v5675 = vpack.c.b16 %v4579, %v4575
        %v5676 = vpack.c.b16 %v4584, %v4580
        %v5677 = vpack.c.b16 %v4585, %v4581
        %v5678 = vpack.c.b16 %v4586, %v4582
        %v5679 = vpack.c.b16 %v4587, %v4583
        %v5680 = vpack.c.b16 %v4592, %v4588
        %v5681 = vpack.c.b16 %v4593, %v4589
        %v5682 = vpack.c.b16 %v4594, %v4590
        %v5683 = vpack.c.b16 %v4595, %v4591
        %v5684 = vpack.c.b16 %v4600, %v4596
        %v5685 = vpack.c.b16 %v4601, %v4597
        %v5686 = vpack.c.b16 %v4602, %v4598
        %v5687 = vpack.c.b16 %v4603, %v4599
        %v5688 = vpack.c.b16 %v4608, %v4604
        %v5689 = vpack.c.b16 %v4609, %v4605
        %v5690 = vpack.c.b16 %v4610, %v4606
        %v5691 = vpack.c.b16 %v4611, %v4607
        %v5692 = vpack.c.b16 %v4616, %v4612
        %v5693 = vpack.c.b16 %v4617, %v4613
        %v5694 = vpack.c.b16 %v4618, %v4614
        %v5695 = vpack.c.b16 %v4619, %v4615
        %v5696 = vpack.c.b16 %v4624, %v4620
        %v5697 = vpack.c.b16 %v4625, %v4621
        %v5698 = vpack.c.b16 %v4626, %v4622
        %v5699 = vpack.c.b16 %v4627, %v4623
        %v5700 = vpack.c.b16 %v4632, %v4628
        %v5701 = vpack.c.b16 %v4633, %v4629
        %v5702 = vpack.c.b16 %v4634, %v4630
        %v5703 = vpack.c.b16 %v4635, %v4631
        %v5704 = vpack.c.b16 %v4640, %v4636
        %v5705 = vpack.c.b16 %v4641, %v4637
        %v5706 = vpack.c.b16 %v4642, %v4638
        %v5707 = vpack.c.b16 %v4643, %v4639
        %v5708 = vpack.c.b16 %v4648, %v4644
        %v5709 = vpack.c.b16 %v4649, %v4645
        %v5710 = vpack.c.b16 %v4650, %v4646
        %v5711 = vpack.c.b16 %v4651, %v4647
        %v5712 = vpack.c.b16 %v4656, %v4652
        %v5713 = vpack.c.b16 %v4657, %v4653
        %v5714 = vpack.c.b16 %v4658, %v4654
        %v5715 = vpack.c.b16 %v4659, %v4655
        %v5716 = vpack.c.b16 %v4664, %v4660
        %v5717 = vpack.c.b16 %v4665, %v4661
        %v5718 = vpack.c.b16 %v4666, %v4662
        %v5719 = vpack.c.b16 %v4667, %v4663
        %v5720 = vpack.c.b16 %v4672, %v4668
        %v5721 = vpack.c.b16 %v4673, %v4669
        %v5722 = vpack.c.b16 %v4674, %v4670
        %v5723 = vpack.c.b16 %v4675, %v4671
        %v5724 = vpack.c.b16 %v4680, %v4676
        %v5725 = vpack.c.b16 %v4681, %v4677
        %v5726 = vpack.c.b16 %v4682, %v4678
        %v5727 = vpack.c.b16 %v4683, %v4679
        %v5728 = vpack.c.b16 %v4688, %v4684
        %v5729 = vpack.c.b16 %v4689, %v4685
        %v5730 = vpack.c.b16 %v4690, %v4686
        %v5731 = vpack.c.b16 %v4691, %v4687
        %v5732 = vpack.c.b16 %v4696, %v4692
        %v5733 = vpack.c.b16 %v4697, %v4693
        %v5734 = vpack.c.b16 %v4698, %v4694
        %v5735 = vpack.c.b16 %v4699, %v4695
        %v5736 = vpack.c.b16 %v4704, %v4700
        %v5737 = vpack.c.b16 %v4705, %v4701
        %v5738 = vpack.c.b16 %v4706, %v4702
        %v5739 = vpack.c.b16 %v4707, %v4703
        %v5740 = vpack.c.b16 %v4712, %v4708
        %v5741 = vpack.c.b16 %v4713, %v4709
        %v5742 = vpack.c.b16 %v4714, %v4710
        %v5743 = vpack.c.b16 %v4715, %v4711
        %v5744 = vpack.c.b16 %v4720, %v4716
        %v5745 = vpack.c.b16 %v4721, %v4717
        %v5746 = vpack.c.b16 %v4722, %v4718
        %v5747 = vpack.c.b16 %v4723, %v4719
        %v5748 = vpack.c.b16 %v4728, %v4724
        %v5749 = vpack.c.b16 %v4729, %v4725
        %v5750 = vpack.c.b16 %v4730, %v4726
        %v5751 = vpack.c.b16 %v4731, %v4727
        %v5752 = vpack.c.b16 %v4736, %v4732
        %v5753 = vpack.c.b16 %v4737, %v4733
        %v5754 = vpack.c.b16 %v4738, %v4734
        %v5755 = vpack.c.b16 %v4739, %v4735
        %v5756 = vpack.c.b16 %v4744, %v4740
        %v5757 = vpack.c.b16 %v4745, %v4741
        %v5758 = vpack.c.b16 %v4746, %v4742
        %v5759 = vpack.c.b16 %v4747, %v4743
        %v5760 = vpack.c.b16 %v4752, %v4748
        %v5761 = vpack.c.b16 %v4753, %v4749
        %v5762 = vpack.c.b16 %v4754, %v4750
        %v5763 = vpack.c.b16 %v4755, %v4751
        %v5764 = vpack.c.b16 %v4760, %v4756
        %v5765 = vpack.c.b16 %v4761, %v4757
        %v5766 = vpack.c.b16 %v4762, %v4758
        %v5767 = vpack.c.b16 %v4763, %v4759
        %v5768 = vpack.c.b16 %v4768, %v4764
        %v5769 = vpack.c.b16 %v4769, %v4765
        %v5770 = vpack.c.b16 %v4770, %v4766
        %v5771 = vpack.c.b16 %v4771, %v4767
        %v5772 = vpack.c.b16 %v4776, %v4772
        %v5773 = vpack.c.b16 %v4777, %v4773
        %v5774 = vpack.c.b16 %v4778, %v4774
        %v5775 = vpack.c.b16 %v4779, %v4775
        %v5776 = vpack.c.b16 %v4784, %v4780
        %v5777 = vpack.c.b16 %v4785, %v4781
        %v5778 = vpack.c.b16 %v4786, %v4782
        %v5779 = vpack.c.b16 %v4787, %v4783
        %v5780 = vpack.c.b16 %v4792, %v4788
        %v5781 = vpack.c.b16 %v4793, %v4789
        %v5782 = vpack.c.b16 %v4794, %v4790
        %v5783 = vpack.c.b16 %v4795, %v4791
        %v5784 = vpack.c.b16 %v4800, %v4796
        %v5785 = vpack.c.b16 %v4801, %v4797
        %v5786 = vpack.c.b16 %v4802, %v4798
        %v5787 = vpack.c.b16 %v4803, %v4799
        %v5788 = vpack.c.b16 %v4808, %v4804
        %v5789 = vpack.c.b16 %v4809, %v4805
        %v5790 = vpack.c.b16 %v4810, %v4806
        %v5791 = vpack.c.b16 %v4811, %v4807
        %v5792 = vpack.c.b16 %v4816, %v4812
        %v5793 = vpack.c.b16 %v4817, %v4813
        %v5794 = vpack.c.b16 %v4818, %v4814
        %v5795 = vpack.c.b16 %v4819, %v4815
        %v5796 = vpack.c.b16 %v4824, %v4820
        %v5797 = vpack.c.b16 %v4825, %v4821
        %v5798 = vpack.c.b16 %v4826, %v4822
        %v5799 = vpack.c.b16 %v4827, %v4823
        %v5800 = vpack.c.b16 %v4832, %v4828
        %v5801 = vpack.c.b16 %v4833, %v4829
        %v5802 = vpack.c.b16 %v4834, %v4830
        %v5803 = vpack.c.b16 %v4835, %v4831
        %v5804 = vpack.c.b16 %v4840, %v4836
        %v5805 = vpack.c.b16 %v4841, %v4837
        %v5806 = vpack.c.b16 %v4842, %v4838
        %v5807 = vpack.c.b16 %v4843, %v4839
        %v5808 = vpack.c.b16 %v4848, %v4844
        %v5809 = vpack.c.b16 %v4849, %v4845
        %v5810 = vpack.c.b16 %v4850, %v4846
        %v5811 = vpack.c.b16 %v4851, %v4847
        %v5812 = vpack.c.b16 %v4856, %v4852
        %v5813 = vpack.c.b16 %v4857, %v4853
        %v5814 = vpack.c.b16 %v4858, %v4854
        %v5815 = vpack.c.b16 %v4859, %v4855
        %v5816 = vpack.c.b16 %v4864, %v4860
        %v5817 = vpack.c.b16 %v4865, %v4861
        %v5818 = vpack.c.b16 %v4866, %v4862
        %v5819 = vpack.c.b16 %v4867, %v4863
        %v5820 = vpack.c.b16 %v4872, %v4868
        %v5821 = vpack.c.b16 %v4873, %v4869
        %v5822 = vpack.c.b16 %v4874, %v4870
        %v5823 = vpack.c.b16 %v4875, %v4871
        %v5824 = vpack.c.b16 %v4880, %v4876
        %v5825 = vpack.c.b16 %v4881, %v4877
        %v5826 = vpack.c.b16 %v4882, %v4878
        %v5827 = vpack.c.b16 %v4883, %v4879
        %v5828 = vpack.c.b16 %v4888, %v4884
        %v5829 = vpack.c.b16 %v4889, %v4885
        %v5830 = vpack.c.b16 %v4890, %v4886
        %v5831 = vpack.c.b16 %v4891, %v4887
        %v5832 = vpack.c.b16 %v4896, %v4892
        %v5833 = vpack.c.b16 %v4897, %v4893
        %v5834 = vpack.c.b16 %v4898, %v4894
        %v5835 = vpack.c.b16 %v4899, %v4895
        %v5836 = vpack.c.b16 %v4904, %v4900
        %v5837 = vpack.c.b16 %v4905, %v4901
        %v5838 = vpack.c.b16 %v4906, %v4902
        %v5839 = vpack.c.b16 %v4907, %v4903
        %v5840 = vpack.c.b16 %v4912, %v4908
        %v5841 = vpack.c.b16 %v4913, %v4909
        %v5842 = vpack.c.b16 %v4914, %v4910
        %v5843 = vpack.c.b16 %v4915, %v4911
        %v5844 = vpack.c.b16 %v4920, %v4916
        %v5845 = vpack.c.b16 %v4921, %v4917
        %v5846 = vpack.c.b16 %v4922, %v4918
        %v5847 = vpack.c.b16 %v4923, %v4919
        %v5848 = vpack.c.b16 %v4928, %v4924
        %v5849 = vpack.c.b16 %v4929, %v4925
        %v5850 = vpack.c.b16 %v4930, %v4926
        %v5851 = vpack.c.b16 %v4931, %v4927
        %v5852 = vpack.c.b16 %v4936, %v4932
        %v5853 = vpack.c.b16 %v4937, %v4933
        %v5854 = vpack.c.b16 %v4938, %v4934
        %v5855 = vpack.c.b16 %v4939, %v4935
        %v5856 = vpack.c.b16 %v4944, %v4940
        %v5857 = vpack.c.b16 %v4945, %v4941
        %v5858 = vpack.c.b16 %v4946, %v4942
        %v5859 = vpack.c.b16 %v4947, %v4943
        %v5860 = vpack.c.b16 %v4952, %v4948
        %v5861 = vpack.c.b16 %v4953, %v4949
        %v5862 = vpack.c.b16 %v4954, %v4950
        %v5863 = vpack.c.b16 %v4955, %v4951
        %v5864 = vpack.c.b16 %v4960, %v4956
        %v5865 = vpack.c.b16 %v4961, %v4957
        %v5866 = vpack.c.b16 %v4962, %v4958
        %v5867 = vpack.c.b16 %v4963, %v4959
        %v5868 = vpack.c.b16 %v4968, %v4964
        %v5869 = vpack.c.b16 %v4969, %v4965
        %v5870 = vpack.c.b16 %v4970, %v4966
        %v5871 = vpack.c.b16 %v4971, %v4967
        %v5872 = vpack.c.b16 %v4976, %v4972
        %v5873 = vpack.c.b16 %v4977, %v4973
        %v5874 = vpack.c.b16 %v4978, %v4974
        %v5875 = vpack.c.b16 %v4979, %v4975
        %v5876 = vpack.c.b16 %v4984, %v4980
        %v5877 = vpack.c.b16 %v4985, %v4981
        %v5878 = vpack.c.b16 %v4986, %v4982
        %v5879 = vpack.c.b16 %v4987, %v4983
        %v5880 = vpack.c.b16 %v4992, %v4988
        %v5881 = vpack.c.b16 %v4993, %v4989
        %v5882 = vpack.c.b16 %v4994, %v4990
        %v5883 = vpack.c.b16 %v4995, %v4991
        %v5884 = vpack.c.b16 %v5000, %v4996
        %v5885 = vpack.c.b16 %v5001, %v4997
        %v5886 = vpack.c.b16 %v5002, %v4998
        %v5887 = vpack.c.b16 %v5003, %v4999
        %v5888 = vpack.c.b16 %v5008, %v5004
        %v5889 = vpack.c.b16 %v5009, %v5005
        %v5890 = vpack.c.b16 %v5010, %v5006
        %v5891 = vpack.c.b16 %v5011, %v5007
        %v5892 = vpack.c.b16 %v5016, %v5012
        %v5893 = vpack.c.b16 %v5017, %v5013
        %v5894 = vpack.c.b16 %v5018, %v5014
        %v5895 = vpack.c.b16 %v5019, %v5015
        %v5896 = vpack.c.b16 %v5024, %v5020
        %v5897 = vpack.c.b16 %v5025, %v5021
        %v5898 = vpack.c.b16 %v5026, %v5022
        %v5899 = vpack.c.b16 %v5027, %v5023
        %v5900 = vpack.c.b16 %v5032, %v5028
        %v5901 = vpack.c.b16 %v5033, %v5029
        %v5902 = vpack.c.b16 %v5034, %v5030
        %v5903 = vpack.c.b16 %v5035, %v5031
        %v5904 = vpack.c.b16 %v5040, %v5036
        %v5905 = vpack.c.b16 %v5041, %v5037
        %v5906 = vpack.c.b16 %v5042, %v5038
        %v5907 = vpack.c.b16 %v5043, %v5039
        %v5908 = vpack.c.b16 %v5048, %v5044
        %v5909 = vpack.c.b16 %v5049, %v5045
        %v5910 = vpack.c.b16 %v5050, %v5046
        %v5911 = vpack.c.b16 %v5051, %v5047
        %v5912 = vpack.c.b16 %v5056, %v5052
        %v5913 = vpack.c.b16 %v5057, %v5053
        %v5914 = vpack.c.b16 %v5058, %v5054
        %v5915 = vpack.c.b16 %v5059, %v5055
        %v5916 = vpack.c.b16 %v5064, %v5060
        %v5917 = vpack.c.b16 %v5065, %v5061
        %v5918 = vpack.c.b16 %v5066, %v5062
        %v5919 = vpack.c.b16 %v5067, %v5063
        %v5920 = vpack.c.b16 %v5072, %v5068
        %v5921 = vpack.c.b16 %v5073, %v5069
        %v5922 = vpack.c.b16 %v5074, %v5070
        %v5923 = vpack.c.b16 %v5075, %v5071
        %v5924 = vpack.c.b16 %v5080, %v5076
        %v5925 = vpack.c.b16 %v5081, %v5077
        %v5926 = vpack.c.b16 %v5082, %v5078
        %v5927 = vpack.c.b16 %v5083, %v5079
        %v5928 = vpack.c.b16 %v5088, %v5084
        %v5929 = vpack.c.b16 %v5089, %v5085
        %v5930 = vpack.c.b16 %v5090, %v5086
        %v5931 = vpack.c.b16 %v5091, %v5087
        %v5932 = vpack.c.b16 %v5096, %v5092
        %v5933 = vpack.c.b16 %v5097, %v5093
        %v5934 = vpack.c.b16 %v5098, %v5094
        %v5935 = vpack.c.b16 %v5099, %v5095
        %v5936 = vpack.c.b16 %v5104, %v5100
        %v5937 = vpack.c.b16 %v5105, %v5101
        %v5938 = vpack.c.b16 %v5106, %v5102
        %v5939 = vpack.c.b16 %v5107, %v5103
        %v5940 = vpack.c.b16 %v5112, %v5108
        %v5941 = vpack.c.b16 %v5113, %v5109
        %v5942 = vpack.c.b16 %v5114, %v5110
        %v5943 = vpack.c.b16 %v5115, %v5111
        %v5944 = vpack.c.b16 %v5120, %v5116
        %v5945 = vpack.c.b16 %v5121, %v5117
        %v5946 = vpack.c.b16 %v5122, %v5118
        %v5947 = vpack.c.b16 %v5123, %v5119
        %v5948 = vpack.c.b16 %v5128, %v5124
        %v5949 = vpack.c.b16 %v5129, %v5125
        %v5950 = vpack.c.b16 %v5130, %v5126
        %v5951 = vpack.c.b16 %v5131, %v5127
        %v5952 = vpack.c.b16 %v5136, %v5132
        %v5953 = vpack.c.b16 %v5137, %v5133
        %v5954 = vpack.c.b16 %v5138, %v5134
        %v5955 = vpack.c.b16 %v5139, %v5135
        %v5956 = vpack.c.b16 %v5144, %v5140
        %v5957 = vpack.c.b16 %v5145, %v5141
        %v5958 = vpack.c.b16 %v5146, %v5142
        %v5959 = vpack.c.b16 %v5147, %v5143
        %v5960 = vpack.c.b16 %v5152, %v5148
        %v5961 = vpack.c.b16 %v5153, %v5149
        %v5962 = vpack.c.b16 %v5154, %v5150
        %v5963 = vpack.c.b16 %v5155, %v5151
        %v5964 = vpack.c.b16 %v5160, %v5156
        %v5965 = vpack.c.b16 %v5161, %v5157
        %v5966 = vpack.c.b16 %v5162, %v5158
        %v5967 = vpack.c.b16 %v5163, %v5159
        %v5968 = vpack.c.b16 %v5168, %v5164
        %v5969 = vpack.c.b16 %v5169, %v5165
        %v5970 = vpack.c.b16 %v5170, %v5166
        %v5971 = vpack.c.b16 %v5171, %v5167
        %v5972 = vpack.c.b16 %v5176, %v5172
        %v5973 = vpack.c.b16 %v5177, %v5173
        %v5974 = vpack.c.b16 %v5178, %v5174
        %v5975 = vpack.c.b16 %v5179, %v5175
        %v5976 = vpack.c.b16 %v5184, %v5180
        %v5977 = vpack.c.b16 %v5185, %v5181
        %v5978 = vpack.c.b16 %v5186, %v5182
        %v5979 = vpack.c.b16 %v5187, %v5183
        %v5980 = vpack.c.b16 %v5192, %v5188
        %v5981 = vpack.c.b16 %v5193, %v5189
        %v5982 = vpack.c.b16 %v5194, %v5190
        %v5983 = vpack.c.b16 %v5195, %v5191
        %v5984 = vpack.c.b16 %v5200, %v5196
        %v5985 = vpack.c.b16 %v5201, %v5197
        %v5986 = vpack.c.b16 %v5202, %v5198
        %v5987 = vpack.c.b16 %v5203, %v5199
        %vm6772 = vcmask 523264
        %v6774 = vsel %vm6772, %v2827, 0
        %6776 = vmatprep.subr.bf16.mxu0 %v5233
        %6777 = vmatpush1.bf16.msra.mxu0 %v5232
        %6778 = vmatprep.subr.bf16.mxu0 %v5229
        %6779 = vmatpush1.bf16.msra.mxu0 %v5228
        %6780 = vmatprep.subr.bf16.mxu0 %v5225
        %6781 = vmatpush1.bf16.msra.mxu0 %v5224
        %6782 = vmatprep.subr.bf16.mxu0 %v5221
        %6783 = vmatpush1.bf16.msra.mxu0 %v5220
        %6784 = vmatprep.subr.bf16.mxu0 %v5217
        %6785 = vmatpush1.bf16.msra.mxu0 %v5216
        %6786 = vmatprep.subr.bf16.mxu0 %v5213
        %6787 = vmatpush1.bf16.msra.mxu0 %v5212
        %6788 = vmatprep.subr.bf16.mxu0 %v5209
        %6789 = vmatpush1.bf16.msra.mxu0 %v5208
        %6790 = vmatprep.subr.bf16.mxu0 %v5205
        %6791 = vmatpush1.bf16.msra.mxu0 %v5204
        %6792 = vmatprep.subr.bf16.mxu0 %v5265
        %6793 = vmatpush2.bf16.msra.mxu0 %v5264
        %6794 = vmatprep.subr.bf16.mxu0 %v5261
        %6795 = vmatpush2.bf16.msra.mxu0 %v5260
        %6796 = vmatprep.subr.bf16.mxu0 %v5257
        %6797 = vmatpush2.bf16.msra.mxu0 %v5256
        %6798 = vmatprep.subr.bf16.mxu0 %v5253
        %6799 = vmatpush2.bf16.msra.mxu0 %v5252
        %6800 = vmatprep.subr.bf16.mxu0 %v5249
        %6801 = vmatpush2.bf16.msra.mxu0 %v5248
        %6802 = vmatprep.subr.bf16.mxu0 %v5245
        %6803 = vmatpush2.bf16.msra.mxu0 %v5244
        %6804 = vmatprep.subr.bf16.mxu0 %v5241
        %6805 = vmatpush2.bf16.msra.mxu0 %v5240
        %6806 = vmatprep.subr.bf16.mxu0 %v5237
        %6807 = vmatpush2.bf16.msra.mxu0 %v5236
        %6808 = vmatprep.mubr.bf16.mxu0 %v2704
        %6809 = vmatmul.mubr.bf16.gmra.mxu0 %v2690
        %v6810 = vpop.f32.mrf.mxu0
        %v6811 = vadd.f32 %v2646, %v6810
        %v6812 = vpop.f32.mrf.mxu0
        %v6813 = vadd.f32 %v2650, %v6812
        %v6814 = vpop.f32.mrf.mxu0
        %v6815 = vpop.f32.mrf.mxu0
        %6816 = vdwg.mxu0
        %6817 = vmatprep.subr.bf16.mxu0 %v5297
        %6818 = vmatpush1.bf16.msra.mxu0 %v5296
        %6819 = vmatprep.subr.bf16.mxu0 %v5293
        %6820 = vmatpush1.bf16.msra.mxu0 %v5292
        %6821 = vmatprep.subr.bf16.mxu0 %v5289
        %6822 = vmatpush1.bf16.msra.mxu0 %v5288
        %6823 = vmatprep.subr.bf16.mxu0 %v5285
        %6824 = vmatpush1.bf16.msra.mxu0 %v5284
        %6825 = vmatprep.subr.bf16.mxu0 %v5281
        %6826 = vmatpush1.bf16.msra.mxu0 %v5280
        %6827 = vmatprep.subr.bf16.mxu0 %v5277
        %6828 = vmatpush1.bf16.msra.mxu0 %v5276
        %6829 = vmatprep.subr.bf16.mxu0 %v5273
        %6830 = vmatpush1.bf16.msra.mxu0 %v5272
        %6831 = vmatprep.subr.bf16.mxu0 %v5269
        %6832 = vmatpush1.bf16.msra.mxu0 %v5268
        %6833 = vmatprep.subr.bf16.mxu0 %v5329
        %6834 = vmatpush2.bf16.msra.mxu0 %v5328
        %6835 = vmatprep.subr.bf16.mxu0 %v5325
        %6836 = vmatpush2.bf16.msra.mxu0 %v5324
        %6837 = vmatprep.subr.bf16.mxu0 %v5321
        %6838 = vmatpush2.bf16.msra.mxu0 %v5320
        %6839 = vmatprep.subr.bf16.mxu0 %v5317
        %6840 = vmatpush2.bf16.msra.mxu0 %v5316
        %6841 = vmatprep.subr.bf16.mxu0 %v5313
        %6842 = vmatpush2.bf16.msra.mxu0 %v5312
        %6843 = vmatprep.subr.bf16.mxu0 %v5309
        %6844 = vmatpush2.bf16.msra.mxu0 %v5308
        %6845 = vmatprep.subr.bf16.mxu0 %v5305
        %6846 = vmatpush2.bf16.msra.mxu0 %v5304
        %6847 = vmatprep.subr.bf16.mxu0 %v5301
        %6848 = vmatpush2.bf16.msra.mxu0 %v5300
        %6849 = vmatprep.mubr.bf16.mxu0 %v2714
        %6850 = vmatmul.mubr.bf16.gmra.mxu0 %v2712
        %v6851 = vpop.f32.mrf.mxu0
        %v6852 = vadd.f32 %v6811, %v6851
        %v6853 = vpop.f32.mrf.mxu0
        %v6854 = vadd.f32 %v6813, %v6853
        %v6855 = vpop.f32.mrf.mxu0
        %v6856 = vpop.f32.mrf.mxu0
        %6857 = vdwg.mxu0
        %6858 = vmatprep.subr.bf16.mxu0 %v5361
        %6859 = vmatpush1.bf16.msra.mxu0 %v5360
        %6860 = vmatprep.subr.bf16.mxu0 %v5357
        %6861 = vmatpush1.bf16.msra.mxu0 %v5356
        %6862 = vmatprep.subr.bf16.mxu0 %v5353
        %6863 = vmatpush1.bf16.msra.mxu0 %v5352
        %6864 = vmatprep.subr.bf16.mxu0 %v5349
        %6865 = vmatpush1.bf16.msra.mxu0 %v5348
        %6866 = vmatprep.subr.bf16.mxu0 %v5345
        %6867 = vmatpush1.bf16.msra.mxu0 %v5344
        %6868 = vmatprep.subr.bf16.mxu0 %v5341
        %6869 = vmatpush1.bf16.msra.mxu0 %v5340
        %6870 = vmatprep.subr.bf16.mxu0 %v5337
        %6871 = vmatpush1.bf16.msra.mxu0 %v5336
        %6872 = vmatprep.subr.bf16.mxu0 %v5333
        %6873 = vmatpush1.bf16.msra.mxu0 %v5332
        %6874 = vmatprep.subr.bf16.mxu0 %v5393
        %6875 = vmatpush2.bf16.msra.mxu0 %v5392
        %6876 = vmatprep.subr.bf16.mxu0 %v5389
        %6877 = vmatpush2.bf16.msra.mxu0 %v5388
        %6878 = vmatprep.subr.bf16.mxu0 %v5385
        %6879 = vmatpush2.bf16.msra.mxu0 %v5384
        %6880 = vmatprep.subr.bf16.mxu0 %v5381
        %6881 = vmatpush2.bf16.msra.mxu0 %v5380
        %6882 = vmatprep.subr.bf16.mxu0 %v5377
        %6883 = vmatpush2.bf16.msra.mxu0 %v5376
        %6884 = vmatprep.subr.bf16.mxu0 %v5373
        %6885 = vmatpush2.bf16.msra.mxu0 %v5372
        %6886 = vmatprep.subr.bf16.mxu0 %v5369
        %6887 = vmatpush2.bf16.msra.mxu0 %v5368
        %6888 = vmatprep.subr.bf16.mxu0 %v5365
        %6889 = vmatpush2.bf16.msra.mxu0 %v5364
        %6890 = vmatprep.mubr.bf16.mxu0 %v2711
        %6891 = vmatmul.mubr.bf16.gmra.mxu0 %v2697
        %v6892 = vpop.f32.mrf.mxu0
        %v6893 = vadd.f32 %v6852, %v6892
        %v6894 = vpop.f32.mrf.mxu0
        %v6895 = vadd.f32 %v6854, %v6894
        %v6896 = vpop.f32.mrf.mxu0
        %v6897 = vpop.f32.mrf.mxu0
        %6898 = vdwg.mxu0
        %6899 = vmatprep.subr.bf16.mxu0 %v5425
        %6900 = vmatpush1.bf16.msra.mxu0 %v5424
        %6901 = vmatprep.subr.bf16.mxu0 %v5421
        %6902 = vmatpush1.bf16.msra.mxu0 %v5420
        %6903 = vmatprep.subr.bf16.mxu0 %v5417
        %6904 = vmatpush1.bf16.msra.mxu0 %v5416
        %6905 = vmatprep.subr.bf16.mxu0 %v5413
        %6906 = vmatpush1.bf16.msra.mxu0 %v5412
        %6907 = vmatprep.subr.bf16.mxu0 %v5409
        %6908 = vmatpush1.bf16.msra.mxu0 %v5408
        %6909 = vmatprep.subr.bf16.mxu0 %v5405
        %6910 = vmatpush1.bf16.msra.mxu0 %v5404
        %6911 = vmatprep.subr.bf16.mxu0 %v5401
        %6912 = vmatpush1.bf16.msra.mxu0 %v5400
        %6913 = vmatprep.subr.bf16.mxu0 %v5397
        %6914 = vmatpush1.bf16.msra.mxu0 %v5396
        %6915 = vmatprep.subr.bf16.mxu0 %v5457
        %6916 = vmatpush2.bf16.msra.mxu0 %v5456
        %6917 = vmatprep.subr.bf16.mxu0 %v5453
        %6918 = vmatpush2.bf16.msra.mxu0 %v5452
        %6919 = vmatprep.subr.bf16.mxu0 %v5449
        %6920 = vmatpush2.bf16.msra.mxu0 %v5448
        %6921 = vmatprep.subr.bf16.mxu0 %v5445
        %6922 = vmatpush2.bf16.msra.mxu0 %v5444
        %6923 = vmatprep.subr.bf16.mxu0 %v5441
        %6924 = vmatpush2.bf16.msra.mxu0 %v5440
        %6925 = vmatprep.subr.bf16.mxu0 %v5437
        %6926 = vmatpush2.bf16.msra.mxu0 %v5436
        %6927 = vmatprep.subr.bf16.mxu0 %v5433
        %6928 = vmatpush2.bf16.msra.mxu0 %v5432
        %6929 = vmatprep.subr.bf16.mxu0 %v5429
        %6930 = vmatpush2.bf16.msra.mxu0 %v5428
        %6931 = vmatprep.mubr.bf16.mxu0 %v2715
        %6932 = vmatmul.mubr.bf16.gmra.mxu0 %v2713
        %v6933 = vpop.f32.mrf.mxu0
        %v6934 = vadd.f32 %v6893, %v6933
        %v6935 = vpop.f32.mrf.mxu0
        %v6936 = vadd.f32 %v6895, %v6935
        %v6937 = vpop.f32.mrf.mxu0
        %v6938 = vpop.f32.mrf.mxu0
        %6939 = vdwg.mxu0
        %6940 = vmatprep.subr.bf16.mxu0 %v5489
        %6941 = vmatpush1.bf16.msra.mxu0 %v5488
        %6942 = vmatprep.subr.bf16.mxu0 %v5485
        %6943 = vmatpush1.bf16.msra.mxu0 %v5484
        %6944 = vmatprep.subr.bf16.mxu0 %v5481
        %6945 = vmatpush1.bf16.msra.mxu0 %v5480
        %6946 = vmatprep.subr.bf16.mxu0 %v5477
        %6947 = vmatpush1.bf16.msra.mxu0 %v5476
        %6948 = vmatprep.subr.bf16.mxu0 %v5473
        %6949 = vmatpush1.bf16.msra.mxu0 %v5472
        %6950 = vmatprep.subr.bf16.mxu0 %v5469
        %6951 = vmatpush1.bf16.msra.mxu0 %v5468
        %6952 = vmatprep.subr.bf16.mxu0 %v5465
        %6953 = vmatpush1.bf16.msra.mxu0 %v5464
        %6954 = vmatprep.subr.bf16.mxu0 %v5461
        %6955 = vmatpush1.bf16.msra.mxu0 %v5460
        %6956 = vmatprep.subr.bf16.mxu0 %v5521
        %6957 = vmatpush2.bf16.msra.mxu0 %v5520
        %6958 = vmatprep.subr.bf16.mxu0 %v5517
        %6959 = vmatpush2.bf16.msra.mxu0 %v5516
        %6960 = vmatprep.subr.bf16.mxu0 %v5513
        %6961 = vmatpush2.bf16.msra.mxu0 %v5512
        %6962 = vmatprep.subr.bf16.mxu0 %v5509
        %6963 = vmatpush2.bf16.msra.mxu0 %v5508
        %6964 = vmatprep.subr.bf16.mxu0 %v5505
        %6965 = vmatpush2.bf16.msra.mxu0 %v5504
        %6966 = vmatprep.subr.bf16.mxu0 %v5501
        %6967 = vmatpush2.bf16.msra.mxu0 %v5500
        %6968 = vmatprep.subr.bf16.mxu0 %v5497
        %6969 = vmatpush2.bf16.msra.mxu0 %v5496
        %6970 = vmatprep.subr.bf16.mxu0 %v5493
        %6971 = vmatpush2.bf16.msra.mxu0 %v5492
        %6972 = vmatprep.mubr.bf16.mxu0 %v2753
        %6973 = vmatmul.mubr.bf16.gmra.mxu0 %v2739
        %v6974 = vpop.f32.mrf.mxu0
        %v6975 = vadd.f32 %v6934, %v6974
        %v6976 = vpop.f32.mrf.mxu0
        %v6977 = vadd.f32 %v6936, %v6976
        %v6978 = vpop.f32.mrf.mxu0
        %v6979 = vpop.f32.mrf.mxu0
        %6980 = vdwg.mxu0
        %6981 = vmatprep.subr.bf16.mxu0 %v5553
        %6982 = vmatpush1.bf16.msra.mxu0 %v5552
        %6983 = vmatprep.subr.bf16.mxu0 %v5549
        %6984 = vmatpush1.bf16.msra.mxu0 %v5548
        %6985 = vmatprep.subr.bf16.mxu0 %v5545
        %6986 = vmatpush1.bf16.msra.mxu0 %v5544
        %6987 = vmatprep.subr.bf16.mxu0 %v5541
        %6988 = vmatpush1.bf16.msra.mxu0 %v5540
        %6989 = vmatprep.subr.bf16.mxu0 %v5537
        %6990 = vmatpush1.bf16.msra.mxu0 %v5536
        %6991 = vmatprep.subr.bf16.mxu0 %v5533
        %6992 = vmatpush1.bf16.msra.mxu0 %v5532
        %6993 = vmatprep.subr.bf16.mxu0 %v5529
        %6994 = vmatpush1.bf16.msra.mxu0 %v5528
        %6995 = vmatprep.subr.bf16.mxu0 %v5525
        %6996 = vmatpush1.bf16.msra.mxu0 %v5524
        %6997 = vmatprep.subr.bf16.mxu0 %v5585
        %6998 = vmatpush2.bf16.msra.mxu0 %v5584
        %6999 = vmatprep.subr.bf16.mxu0 %v5581
        %7000 = vmatpush2.bf16.msra.mxu0 %v5580
        %7001 = vmatprep.subr.bf16.mxu0 %v5577
        %7002 = vmatpush2.bf16.msra.mxu0 %v5576
        %7003 = vmatprep.subr.bf16.mxu0 %v5573
        %7004 = vmatpush2.bf16.msra.mxu0 %v5572
        %7005 = vmatprep.subr.bf16.mxu0 %v5569
        %7006 = vmatpush2.bf16.msra.mxu0 %v5568
        %7007 = vmatprep.subr.bf16.mxu0 %v5565
        %7008 = vmatpush2.bf16.msra.mxu0 %v5564
        %7009 = vmatprep.subr.bf16.mxu0 %v5561
        %7010 = vmatpush2.bf16.msra.mxu0 %v5560
        %7011 = vmatprep.subr.bf16.mxu0 %v5557
        %7012 = vmatpush2.bf16.msra.mxu0 %v5556
        %7013 = vmatprep.mubr.bf16.mxu0 %v2763
        %7014 = vmatmul.mubr.bf16.gmra.mxu0 %v2761
        %v7015 = vpop.f32.mrf.mxu0
        %v7016 = vadd.f32 %v6975, %v7015
        %v7017 = vpop.f32.mrf.mxu0
        %v7018 = vadd.f32 %v6977, %v7017
        %v7019 = vpop.f32.mrf.mxu0
        %v7020 = vpop.f32.mrf.mxu0
        %7021 = vdwg.mxu0
        %7022 = vmatprep.subr.bf16.mxu0 %v5617
        %7023 = vmatpush1.bf16.msra.mxu0 %v5616
        %7024 = vmatprep.subr.bf16.mxu0 %v5613
        %7025 = vmatpush1.bf16.msra.mxu0 %v5612
        %7026 = vmatprep.subr.bf16.mxu0 %v5609
        %7027 = vmatpush1.bf16.msra.mxu0 %v5608
        %7028 = vmatprep.subr.bf16.mxu0 %v5605
        %7029 = vmatpush1.bf16.msra.mxu0 %v5604
        %7030 = vmatprep.subr.bf16.mxu0 %v5601
        %7031 = vmatpush1.bf16.msra.mxu0 %v5600
        %7032 = vmatprep.subr.bf16.mxu0 %v5597
        %7033 = vmatpush1.bf16.msra.mxu0 %v5596
        %7034 = vmatprep.subr.bf16.mxu0 %v5593
        %7035 = vmatpush1.bf16.msra.mxu0 %v5592
        %7036 = vmatprep.subr.bf16.mxu0 %v5589
        %7037 = vmatpush1.bf16.msra.mxu0 %v5588
        %7038 = vmatprep.subr.bf16.mxu0 %v5649
        %7039 = vmatpush2.bf16.msra.mxu0 %v5648
        %7040 = vmatprep.subr.bf16.mxu0 %v5645
        %7041 = vmatpush2.bf16.msra.mxu0 %v5644
        %7042 = vmatprep.subr.bf16.mxu0 %v5641
        %7043 = vmatpush2.bf16.msra.mxu0 %v5640
        %7044 = vmatprep.subr.bf16.mxu0 %v5637
        %7045 = vmatpush2.bf16.msra.mxu0 %v5636
        %7046 = vmatprep.subr.bf16.mxu0 %v5633
        %7047 = vmatpush2.bf16.msra.mxu0 %v5632
        %7048 = vmatprep.subr.bf16.mxu0 %v5629
        %7049 = vmatpush2.bf16.msra.mxu0 %v5628
        %7050 = vmatprep.subr.bf16.mxu0 %v5625
        %7051 = vmatpush2.bf16.msra.mxu0 %v5624
        %7052 = vmatprep.subr.bf16.mxu0 %v5621
        %7053 = vmatpush2.bf16.msra.mxu0 %v5620
        %7054 = vmatprep.mubr.bf16.mxu0 %v2760
        %7055 = vmatmul.mubr.bf16.gmra.mxu0 %v2746
        %v7056 = vpop.f32.mrf.mxu0
        %v7057 = vadd.f32 %v7016, %v7056
        %v7058 = vpop.f32.mrf.mxu0
        %v7059 = vadd.f32 %v7018, %v7058
        %v7060 = vpop.f32.mrf.mxu0
        %v7061 = vpop.f32.mrf.mxu0
        %7062 = vdwg.mxu0
        %7063 = vmatprep.subr.bf16.mxu0 %v5681
        %7064 = vmatpush1.bf16.msra.mxu0 %v5680
        %7065 = vmatprep.subr.bf16.mxu0 %v5677
        %7066 = vmatpush1.bf16.msra.mxu0 %v5676
        %7067 = vmatprep.subr.bf16.mxu0 %v5673
        %7068 = vmatpush1.bf16.msra.mxu0 %v5672
        %7069 = vmatprep.subr.bf16.mxu0 %v5669
        %7070 = vmatpush1.bf16.msra.mxu0 %v5668
        %7071 = vmatprep.subr.bf16.mxu0 %v5665
        %7072 = vmatpush1.bf16.msra.mxu0 %v5664
        %7073 = vmatprep.subr.bf16.mxu0 %v5661
        %7074 = vmatpush1.bf16.msra.mxu0 %v5660
        %7075 = vmatprep.subr.bf16.mxu0 %v5657
        %7076 = vmatpush1.bf16.msra.mxu0 %v5656
        %7077 = vmatprep.subr.bf16.mxu0 %v5653
        %7078 = vmatpush1.bf16.msra.mxu0 %v5652
        %7079 = vmatprep.subr.bf16.mxu0 %v5713
        %7080 = vmatpush2.bf16.msra.mxu0 %v5712
        %7081 = vmatprep.subr.bf16.mxu0 %v5709
        %7082 = vmatpush2.bf16.msra.mxu0 %v5708
        %7083 = vmatprep.subr.bf16.mxu0 %v5705
        %7084 = vmatpush2.bf16.msra.mxu0 %v5704
        %7085 = vmatprep.subr.bf16.mxu0 %v5701
        %7086 = vmatpush2.bf16.msra.mxu0 %v5700
        %7087 = vmatprep.subr.bf16.mxu0 %v5697
        %7088 = vmatpush2.bf16.msra.mxu0 %v5696
        %7089 = vmatprep.subr.bf16.mxu0 %v5693
        %7090 = vmatpush2.bf16.msra.mxu0 %v5692
        %7091 = vmatprep.subr.bf16.mxu0 %v5689
        %7092 = vmatpush2.bf16.msra.mxu0 %v5688
        %7093 = vmatprep.subr.bf16.mxu0 %v5685
        %7094 = vmatpush2.bf16.msra.mxu0 %v5684
        %7095 = vmatprep.mubr.bf16.mxu0 %v2764
        %7096 = vmatmul.mubr.bf16.gmra.mxu0 %v2762
        %v7097 = vpop.f32.mrf.mxu0
        %v7098 = vadd.f32 %v7057, %v7097
        %v7099 = vpop.f32.mrf.mxu0
        %v7100 = vadd.f32 %v7059, %v7099
        %v7101 = vpop.f32.mrf.mxu0
        %v7102 = vpop.f32.mrf.mxu0
        %7103 = vdwg.mxu0
        %7104 = vmatprep.subr.bf16.mxu0 %v5745
        %7105 = vmatpush1.bf16.msra.mxu0 %v5744
        %7106 = vmatprep.subr.bf16.mxu0 %v5741
        %7107 = vmatpush1.bf16.msra.mxu0 %v5740
        %7108 = vmatprep.subr.bf16.mxu0 %v5737
        %7109 = vmatpush1.bf16.msra.mxu0 %v5736
        %7110 = vmatprep.subr.bf16.mxu0 %v5733
        %7111 = vmatpush1.bf16.msra.mxu0 %v5732
        %7112 = vmatprep.subr.bf16.mxu0 %v5729
        %7113 = vmatpush1.bf16.msra.mxu0 %v5728
        %7114 = vmatprep.subr.bf16.mxu0 %v5725
        %7115 = vmatpush1.bf16.msra.mxu0 %v5724
        %7116 = vmatprep.subr.bf16.mxu0 %v5721
        %7117 = vmatpush1.bf16.msra.mxu0 %v5720
        %7118 = vmatprep.subr.bf16.mxu0 %v5717
        %7119 = vmatpush1.bf16.msra.mxu0 %v5716
        %7120 = vmatprep.subr.bf16.mxu0 %v5777
        %7121 = vmatpush2.bf16.msra.mxu0 %v5776
        %7122 = vmatprep.subr.bf16.mxu0 %v5773
        %7123 = vmatpush2.bf16.msra.mxu0 %v5772
        %7124 = vmatprep.subr.bf16.mxu0 %v5769
        %7125 = vmatpush2.bf16.msra.mxu0 %v5768
        %7126 = vmatprep.subr.bf16.mxu0 %v5765
        %7127 = vmatpush2.bf16.msra.mxu0 %v5764
        %7128 = vmatprep.subr.bf16.mxu0 %v5761
        %7129 = vmatpush2.bf16.msra.mxu0 %v5760
        %7130 = vmatprep.subr.bf16.mxu0 %v5757
        %7131 = vmatpush2.bf16.msra.mxu0 %v5756
        %7132 = vmatprep.subr.bf16.mxu0 %v5753
        %7133 = vmatpush2.bf16.msra.mxu0 %v5752
        %7134 = vmatprep.subr.bf16.mxu0 %v5749
        %7135 = vmatpush2.bf16.msra.mxu0 %v5748
        %7136 = vmatprep.mubr.bf16.mxu0 %v2802
        %7137 = vmatmul.mubr.bf16.gmra.mxu0 %v2788
        %v7138 = vpop.f32.mrf.mxu0
        %v7139 = vadd.f32 %v7098, %v7138
        %v7140 = vpop.f32.mrf.mxu0
        %v7141 = vadd.f32 %v7100, %v7140
        %v7142 = vpop.f32.mrf.mxu0
        %v7143 = vpop.f32.mrf.mxu0
        %7144 = vdwg.mxu0
        %7145 = vmatprep.subr.bf16.mxu0 %v5809
        %7146 = vmatpush1.bf16.msra.mxu0 %v5808
        %7147 = vmatprep.subr.bf16.mxu0 %v5805
        %7148 = vmatpush1.bf16.msra.mxu0 %v5804
        %7149 = vmatprep.subr.bf16.mxu0 %v5801
        %7150 = vmatpush1.bf16.msra.mxu0 %v5800
        %7151 = vmatprep.subr.bf16.mxu0 %v5797
        %7152 = vmatpush1.bf16.msra.mxu0 %v5796
        %7153 = vmatprep.subr.bf16.mxu0 %v5793
        %7154 = vmatpush1.bf16.msra.mxu0 %v5792
        %7155 = vmatprep.subr.bf16.mxu0 %v5789
        %7156 = vmatpush1.bf16.msra.mxu0 %v5788
        %7157 = vmatprep.subr.bf16.mxu0 %v5785
        %7158 = vmatpush1.bf16.msra.mxu0 %v5784
        %7159 = vmatprep.subr.bf16.mxu0 %v5781
        %7160 = vmatpush1.bf16.msra.mxu0 %v5780
        %7161 = vmatprep.subr.bf16.mxu0 %v5841
        %7162 = vmatpush2.bf16.msra.mxu0 %v5840
        %7163 = vmatprep.subr.bf16.mxu0 %v5837
        %7164 = vmatpush2.bf16.msra.mxu0 %v5836
        %7165 = vmatprep.subr.bf16.mxu0 %v5833
        %7166 = vmatpush2.bf16.msra.mxu0 %v5832
        %7167 = vmatprep.subr.bf16.mxu0 %v5829
        %7168 = vmatpush2.bf16.msra.mxu0 %v5828
        %7169 = vmatprep.subr.bf16.mxu0 %v5825
        %7170 = vmatpush2.bf16.msra.mxu0 %v5824
        %7171 = vmatprep.subr.bf16.mxu0 %v5821
        %7172 = vmatpush2.bf16.msra.mxu0 %v5820
        %7173 = vmatprep.subr.bf16.mxu0 %v5817
        %7174 = vmatpush2.bf16.msra.mxu0 %v5816
        %7175 = vmatprep.subr.bf16.mxu0 %v5813
        %7176 = vmatpush2.bf16.msra.mxu0 %v5812
        %7177 = vmatprep.mubr.bf16.mxu0 %v2812
        %7178 = vmatmul.mubr.bf16.gmra.mxu0 %v2810
        %v7179 = vpop.f32.mrf.mxu0
        %v7180 = vadd.f32 %v7139, %v7179
        %v7181 = vpop.f32.mrf.mxu0
        %v7182 = vadd.f32 %v7141, %v7181
        %v7183 = vpop.f32.mrf.mxu0
        %v7184 = vpop.f32.mrf.mxu0
        %7185 = vdwg.mxu0
        %7186 = vmatprep.subr.bf16.mxu0 %v5873
        %7187 = vmatpush1.bf16.msra.mxu0 %v5872
        %7188 = vmatprep.subr.bf16.mxu0 %v5869
        %7189 = vmatpush1.bf16.msra.mxu0 %v5868
        %7190 = vmatprep.subr.bf16.mxu0 %v5865
        %7191 = vmatpush1.bf16.msra.mxu0 %v5864
        %7192 = vmatprep.subr.bf16.mxu0 %v5861
        %7193 = vmatpush1.bf16.msra.mxu0 %v5860
        %7194 = vmatprep.subr.bf16.mxu0 %v5857
        %7195 = vmatpush1.bf16.msra.mxu0 %v5856
        %7196 = vmatprep.subr.bf16.mxu0 %v5853
        %7197 = vmatpush1.bf16.msra.mxu0 %v5852
        %7198 = vmatprep.subr.bf16.mxu0 %v5849
        %7199 = vmatpush1.bf16.msra.mxu0 %v5848
        %7200 = vmatprep.subr.bf16.mxu0 %v5845
        %7201 = vmatpush1.bf16.msra.mxu0 %v5844
        %7202 = vmatprep.subr.bf16.mxu0 %v5905
        %7203 = vmatpush2.bf16.msra.mxu0 %v5904
        %7204 = vmatprep.subr.bf16.mxu0 %v5901
        %7205 = vmatpush2.bf16.msra.mxu0 %v5900
        %7206 = vmatprep.subr.bf16.mxu0 %v5897
        %7207 = vmatpush2.bf16.msra.mxu0 %v5896
        %7208 = vmatprep.subr.bf16.mxu0 %v5893
        %7209 = vmatpush2.bf16.msra.mxu0 %v5892
        %7210 = vmatprep.subr.bf16.mxu0 %v5889
        %7211 = vmatpush2.bf16.msra.mxu0 %v5888
        %7212 = vmatprep.subr.bf16.mxu0 %v5885
        %7213 = vmatpush2.bf16.msra.mxu0 %v5884
        %7214 = vmatprep.subr.bf16.mxu0 %v5881
        %7215 = vmatpush2.bf16.msra.mxu0 %v5880
        %7216 = vmatprep.subr.bf16.mxu0 %v5877
        %7217 = vmatpush2.bf16.msra.mxu0 %v5876
        %7218 = vmatprep.mubr.bf16.mxu0 %v2809
        %7219 = vmatmul.mubr.bf16.gmra.mxu0 %v2795
        %v7220 = vpop.f32.mrf.mxu0
        %v7221 = vadd.f32 %v7180, %v7220
        %v7222 = vpop.f32.mrf.mxu0
        %v7223 = vadd.f32 %v7182, %v7222
        %v7224 = vpop.f32.mrf.mxu0
        %v7225 = vpop.f32.mrf.mxu0
        %7226 = vdwg.mxu0
        %7227 = vmatprep.subr.bf16.mxu0 %v5937
        %7228 = vmatpush1.bf16.msra.mxu0 %v5936
        %7229 = vmatprep.subr.bf16.mxu0 %v5933
        %7230 = vmatpush1.bf16.msra.mxu0 %v5932
        %7231 = vmatprep.subr.bf16.mxu0 %v5929
        %7232 = vmatpush1.bf16.msra.mxu0 %v5928
        %7233 = vmatprep.subr.bf16.mxu0 %v5925
        %7234 = vmatpush1.bf16.msra.mxu0 %v5924
        %7235 = vmatprep.subr.bf16.mxu0 %v5921
        %7236 = vmatpush1.bf16.msra.mxu0 %v5920
        %7237 = vmatprep.subr.bf16.mxu0 %v5917
        %7238 = vmatpush1.bf16.msra.mxu0 %v5916
        %7239 = vmatprep.subr.bf16.mxu0 %v5913
        %7240 = vmatpush1.bf16.msra.mxu0 %v5912
        %7241 = vmatprep.subr.bf16.mxu0 %v5909
        %7242 = vmatpush1.bf16.msra.mxu0 %v5908
        %7243 = vmatprep.subr.bf16.mxu0 %v5969
        %7244 = vmatpush2.bf16.msra.mxu0 %v5968
        %7245 = vmatprep.subr.bf16.mxu0 %v5965
        %7246 = vmatpush2.bf16.msra.mxu0 %v5964
        %7247 = vmatprep.subr.bf16.mxu0 %v5961
        %7248 = vmatpush2.bf16.msra.mxu0 %v5960
        %7249 = vmatprep.subr.bf16.mxu0 %v5957
        %7250 = vmatpush2.bf16.msra.mxu0 %v5956
        %7251 = vmatprep.subr.bf16.mxu0 %v5953
        %7252 = vmatpush2.bf16.msra.mxu0 %v5952
        %7253 = vmatprep.subr.bf16.mxu0 %v5949
        %7254 = vmatpush2.bf16.msra.mxu0 %v5948
        %7255 = vmatprep.subr.bf16.mxu0 %v5945
        %7256 = vmatpush2.bf16.msra.mxu0 %v5944
        %7257 = vmatprep.subr.bf16.mxu0 %v5941
        %7258 = vmatpush2.bf16.msra.mxu0 %v5940
        %7259 = vmatprep.mubr.bf16.mxu0 %v2813
        %7260 = vmatmul.mubr.bf16.gmra.mxu0 %v2811
        %v7261 = vpop.f32.mrf.mxu0
        %v7262 = vadd.f32 %v7221, %v7261
        %v7263 = vpop.f32.mrf.mxu0
        %v7264 = vadd.f32 %v7223, %v7263
        %v7265 = vpop.f32.mrf.mxu0
        %v7266 = vpop.f32.mrf.mxu0
        %7267 = vdwg.mxu0
        %7268 = vmatprep.subr.bf16.mxu0 0
        %7269 = vmatpush1.bf16.msra.mxu0 0
        %7270 = vmatprep.subr.bf16.mxu0 0
        %7271 = vmatpush1.bf16.msra.mxu0 0
        %7272 = vmatprep.subr.bf16.mxu0 0
        %7273 = vmatpush1.bf16.msra.mxu0 0
        %7274 = vmatprep.subr.bf16.mxu0 0
        %7275 = vmatpush1.bf16.msra.mxu0 0
        %7276 = vmatprep.subr.bf16.mxu0 %v5985
        %7277 = vmatpush1.bf16.msra.mxu0 %v5984
        %7278 = vmatprep.subr.bf16.mxu0 %v5981
        %7279 = vmatpush1.bf16.msra.mxu0 %v5980
        %7280 = vmatprep.subr.bf16.mxu0 %v5977
        %7281 = vmatpush1.bf16.msra.mxu0 %v5976
        %7282 = vmatprep.subr.bf16.mxu0 %v5973
        %7283 = vmatpush1.bf16.msra.mxu0 %v5972
        %7284 = vmatprep.subr.bf16.mxu0 0
        %7285 = vmatpush2.bf16.msra.mxu0 0
        %7286 = vmatprep.subr.bf16.mxu0 0
        %7287 = vmatpush2.bf16.msra.mxu0 0
        %7288 = vmatprep.subr.bf16.mxu0 0
        %7289 = vmatpush2.bf16.msra.mxu0 0
        %7290 = vmatprep.subr.bf16.mxu0 0
        %7291 = vmatpush2.bf16.msra.mxu0 0
        %7292 = vmatprep.subr.bf16.mxu0 0
        %7293 = vmatpush2.bf16.msra.mxu0 0
        %7294 = vmatprep.subr.bf16.mxu0 0
        %7295 = vmatpush2.bf16.msra.mxu0 0
        %7296 = vmatprep.subr.bf16.mxu0 0
        %7297 = vmatpush2.bf16.msra.mxu0 0
        %7298 = vmatprep.subr.bf16.mxu0 0
        %7299 = vmatpush2.bf16.msra.mxu0 0
        %7300 = vmatprep.mubr.bf16.mxu0 0
        %7301 = vmatmul.mubr.bf16.gmra.mxu0 %v6774
        %v7302 = vpop.f32.mrf.mxu0
        %v7303 = vadd.f32 %v7262, %v7302
        %v7304 = vpop.f32.mrf.mxu0
        %v7305 = vadd.f32 %v7264, %v7304
        %v7306 = vpop.f32.mrf.mxu0
        %v7307 = vpop.f32.mrf.mxu0
        %7308 = vdwg.mxu0
        %7309 = vmatprep.subr.bf16.mxu0 %v5235
        %7310 = vmatpush1.bf16.msra.mxu0 %v5234
        %7311 = vmatprep.subr.bf16.mxu0 %v5231
        %7312 = vmatpush1.bf16.msra.mxu0 %v5230
        %7313 = vmatprep.subr.bf16.mxu0 %v5227
        %7314 = vmatpush1.bf16.msra.mxu0 %v5226
        %7315 = vmatprep.subr.bf16.mxu0 %v5223
        %7316 = vmatpush1.bf16.msra.mxu0 %v5222
        %7317 = vmatprep.subr.bf16.mxu0 %v5219
        %7318 = vmatpush1.bf16.msra.mxu0 %v5218
        %7319 = vmatprep.subr.bf16.mxu0 %v5215
        %7320 = vmatpush1.bf16.msra.mxu0 %v5214
        %7321 = vmatprep.subr.bf16.mxu0 %v5211
        %7322 = vmatpush1.bf16.msra.mxu0 %v5210
        %7323 = vmatprep.subr.bf16.mxu0 %v5207
        %7324 = vmatpush1.bf16.msra.mxu0 %v5206
        %7325 = vmatprep.subr.bf16.mxu0 %v5267
        %7326 = vmatpush2.bf16.msra.mxu0 %v5266
        %7327 = vmatprep.subr.bf16.mxu0 %v5263
        %7328 = vmatpush2.bf16.msra.mxu0 %v5262
        %7329 = vmatprep.subr.bf16.mxu0 %v5259
        %7330 = vmatpush2.bf16.msra.mxu0 %v5258
        %7331 = vmatprep.subr.bf16.mxu0 %v5255
        %7332 = vmatpush2.bf16.msra.mxu0 %v5254
        %7333 = vmatprep.subr.bf16.mxu0 %v5251
        %7334 = vmatpush2.bf16.msra.mxu0 %v5250
        %7335 = vmatprep.subr.bf16.mxu0 %v5247
        %7336 = vmatpush2.bf16.msra.mxu0 %v5246
        %7337 = vmatprep.subr.bf16.mxu0 %v5243
        %7338 = vmatpush2.bf16.msra.mxu0 %v5242
        %7339 = vmatprep.subr.bf16.mxu0 %v5239
        %7340 = vmatpush2.bf16.msra.mxu0 %v5238
        %7341 = vmatprep.mubr.bf16.mxu0 %v2704
        %7342 = vmatmul.mubr.bf16.gmra.mxu0 %v2690
        %v7343 = vpop.f32.mrf.mxu0
        %v7344 = vadd.f32 %v2654, %v7343
        %v7345 = vpop.f32.mrf.mxu0
        %v7346 = vadd.f32 %v2658, %v7345
        %v7347 = vpop.f32.mrf.mxu0
        %v7348 = vpop.f32.mrf.mxu0
        %7349 = vdwg.mxu0
        %7350 = vmatprep.subr.bf16.mxu0 %v5299
        %7351 = vmatpush1.bf16.msra.mxu0 %v5298
        %7352 = vmatprep.subr.bf16.mxu0 %v5295
        %7353 = vmatpush1.bf16.msra.mxu0 %v5294
        %7354 = vmatprep.subr.bf16.mxu0 %v5291
        %7355 = vmatpush1.bf16.msra.mxu0 %v5290
        %7356 = vmatprep.subr.bf16.mxu0 %v5287
        %7357 = vmatpush1.bf16.msra.mxu0 %v5286
        %7358 = vmatprep.subr.bf16.mxu0 %v5283
        %7359 = vmatpush1.bf16.msra.mxu0 %v5282
        %7360 = vmatprep.subr.bf16.mxu0 %v5279
        %7361 = vmatpush1.bf16.msra.mxu0 %v5278
        %7362 = vmatprep.subr.bf16.mxu0 %v5275
        %7363 = vmatpush1.bf16.msra.mxu0 %v5274
        %7364 = vmatprep.subr.bf16.mxu0 %v5271
        %7365 = vmatpush1.bf16.msra.mxu0 %v5270
        %7366 = vmatprep.subr.bf16.mxu0 %v5331
        %7367 = vmatpush2.bf16.msra.mxu0 %v5330
        %7368 = vmatprep.subr.bf16.mxu0 %v5327
        %7369 = vmatpush2.bf16.msra.mxu0 %v5326
        %7370 = vmatprep.subr.bf16.mxu0 %v5323
        %7371 = vmatpush2.bf16.msra.mxu0 %v5322
        %7372 = vmatprep.subr.bf16.mxu0 %v5319
        %7373 = vmatpush2.bf16.msra.mxu0 %v5318
        %7374 = vmatprep.subr.bf16.mxu0 %v5315
        %7375 = vmatpush2.bf16.msra.mxu0 %v5314
        %7376 = vmatprep.subr.bf16.mxu0 %v5311
        %7377 = vmatpush2.bf16.msra.mxu0 %v5310
        %7378 = vmatprep.subr.bf16.mxu0 %v5307
        %7379 = vmatpush2.bf16.msra.mxu0 %v5306
        %7380 = vmatprep.subr.bf16.mxu0 %v5303
        %7381 = vmatpush2.bf16.msra.mxu0 %v5302
        %7382 = vmatprep.mubr.bf16.mxu0 %v2714
        %7383 = vmatmul.mubr.bf16.gmra.mxu0 %v2712
        %v7384 = vpop.f32.mrf.mxu0
        %v7385 = vadd.f32 %v7344, %v7384
        %v7386 = vpop.f32.mrf.mxu0
        %v7387 = vadd.f32 %v7346, %v7386
        %v7388 = vpop.f32.mrf.mxu0
        %v7389 = vpop.f32.mrf.mxu0
        %7390 = vdwg.mxu0
        %7391 = vmatprep.subr.bf16.mxu0 %v5363
        %7392 = vmatpush1.bf16.msra.mxu0 %v5362
        %7393 = vmatprep.subr.bf16.mxu0 %v5359
        %7394 = vmatpush1.bf16.msra.mxu0 %v5358
        %7395 = vmatprep.subr.bf16.mxu0 %v5355
        %7396 = vmatpush1.bf16.msra.mxu0 %v5354
        %7397 = vmatprep.subr.bf16.mxu0 %v5351
        %7398 = vmatpush1.bf16.msra.mxu0 %v5350
        %7399 = vmatprep.subr.bf16.mxu0 %v5347
        %7400 = vmatpush1.bf16.msra.mxu0 %v5346
        %7401 = vmatprep.subr.bf16.mxu0 %v5343
        %7402 = vmatpush1.bf16.msra.mxu0 %v5342
        %7403 = vmatprep.subr.bf16.mxu0 %v5339
        %7404 = vmatpush1.bf16.msra.mxu0 %v5338
        %7405 = vmatprep.subr.bf16.mxu0 %v5335
        %7406 = vmatpush1.bf16.msra.mxu0 %v5334
        %7407 = vmatprep.subr.bf16.mxu0 %v5395
        %7408 = vmatpush2.bf16.msra.mxu0 %v5394
        %7409 = vmatprep.subr.bf16.mxu0 %v5391
        %7410 = vmatpush2.bf16.msra.mxu0 %v5390
        %7411 = vmatprep.subr.bf16.mxu0 %v5387
        %7412 = vmatpush2.bf16.msra.mxu0 %v5386
        %7413 = vmatprep.subr.bf16.mxu0 %v5383
        %7414 = vmatpush2.bf16.msra.mxu0 %v5382
        %7415 = vmatprep.subr.bf16.mxu0 %v5379
        %7416 = vmatpush2.bf16.msra.mxu0 %v5378
        %7417 = vmatprep.subr.bf16.mxu0 %v5375
        %7418 = vmatpush2.bf16.msra.mxu0 %v5374
        %7419 = vmatprep.subr.bf16.mxu0 %v5371
        %7420 = vmatpush2.bf16.msra.mxu0 %v5370
        %7421 = vmatprep.subr.bf16.mxu0 %v5367
        %7422 = vmatpush2.bf16.msra.mxu0 %v5366
        %7423 = vmatprep.mubr.bf16.mxu0 %v2711
        %7424 = vmatmul.mubr.bf16.gmra.mxu0 %v2697
        %v7425 = vpop.f32.mrf.mxu0
        %v7426 = vadd.f32 %v7385, %v7425
        %v7427 = vpop.f32.mrf.mxu0
        %v7428 = vadd.f32 %v7387, %v7427
        %v7429 = vpop.f32.mrf.mxu0
        %v7430 = vpop.f32.mrf.mxu0
        %7431 = vdwg.mxu0
        %7432 = vmatprep.subr.bf16.mxu0 %v5427
        %7433 = vmatpush1.bf16.msra.mxu0 %v5426
        %7434 = vmatprep.subr.bf16.mxu0 %v5423
        %7435 = vmatpush1.bf16.msra.mxu0 %v5422
        %7436 = vmatprep.subr.bf16.mxu0 %v5419
        %7437 = vmatpush1.bf16.msra.mxu0 %v5418
        %7438 = vmatprep.subr.bf16.mxu0 %v5415
        %7439 = vmatpush1.bf16.msra.mxu0 %v5414
        %7440 = vmatprep.subr.bf16.mxu0 %v5411
        %7441 = vmatpush1.bf16.msra.mxu0 %v5410
        %7442 = vmatprep.subr.bf16.mxu0 %v5407
        %7443 = vmatpush1.bf16.msra.mxu0 %v5406
        %7444 = vmatprep.subr.bf16.mxu0 %v5403
        %7445 = vmatpush1.bf16.msra.mxu0 %v5402
        %7446 = vmatprep.subr.bf16.mxu0 %v5399
        %7447 = vmatpush1.bf16.msra.mxu0 %v5398
        %7448 = vmatprep.subr.bf16.mxu0 %v5459
        %7449 = vmatpush2.bf16.msra.mxu0 %v5458
        %7450 = vmatprep.subr.bf16.mxu0 %v5455
        %7451 = vmatpush2.bf16.msra.mxu0 %v5454
        %7452 = vmatprep.subr.bf16.mxu0 %v5451
        %7453 = vmatpush2.bf16.msra.mxu0 %v5450
        %7454 = vmatprep.subr.bf16.mxu0 %v5447
        %7455 = vmatpush2.bf16.msra.mxu0 %v5446
        %7456 = vmatprep.subr.bf16.mxu0 %v5443
        %7457 = vmatpush2.bf16.msra.mxu0 %v5442
        %7458 = vmatprep.subr.bf16.mxu0 %v5439
        %7459 = vmatpush2.bf16.msra.mxu0 %v5438
        %7460 = vmatprep.subr.bf16.mxu0 %v5435
        %7461 = vmatpush2.bf16.msra.mxu0 %v5434
        %7462 = vmatprep.subr.bf16.mxu0 %v5431
        %7463 = vmatpush2.bf16.msra.mxu0 %v5430
        %7464 = vmatprep.mubr.bf16.mxu0 %v2715
        %7465 = vmatmul.mubr.bf16.gmra.mxu0 %v2713
        %v7466 = vpop.f32.mrf.mxu0
        %v7467 = vadd.f32 %v7426, %v7466
        %v7468 = vpop.f32.mrf.mxu0
        %v7469 = vadd.f32 %v7428, %v7468
        %v7470 = vpop.f32.mrf.mxu0
        %v7471 = vpop.f32.mrf.mxu0
        %7472 = vdwg.mxu0
        %7473 = vmatprep.subr.bf16.mxu0 %v5491
        %7474 = vmatpush1.bf16.msra.mxu0 %v5490
        %7475 = vmatprep.subr.bf16.mxu0 %v5487
        %7476 = vmatpush1.bf16.msra.mxu0 %v5486
        %7477 = vmatprep.subr.bf16.mxu0 %v5483
        %7478 = vmatpush1.bf16.msra.mxu0 %v5482
        %7479 = vmatprep.subr.bf16.mxu0 %v5479
        %7480 = vmatpush1.bf16.msra.mxu0 %v5478
        %7481 = vmatprep.subr.bf16.mxu0 %v5475
        %7482 = vmatpush1.bf16.msra.mxu0 %v5474
        %7483 = vmatprep.subr.bf16.mxu0 %v5471
        %7484 = vmatpush1.bf16.msra.mxu0 %v5470
        %7485 = vmatprep.subr.bf16.mxu0 %v5467
        %7486 = vmatpush1.bf16.msra.mxu0 %v5466
        %7487 = vmatprep.subr.bf16.mxu0 %v5463
        %7488 = vmatpush1.bf16.msra.mxu0 %v5462
        %7489 = vmatprep.subr.bf16.mxu0 %v5523
        %7490 = vmatpush2.bf16.msra.mxu0 %v5522
        %7491 = vmatprep.subr.bf16.mxu0 %v5519
        %7492 = vmatpush2.bf16.msra.mxu0 %v5518
        %7493 = vmatprep.subr.bf16.mxu0 %v5515
        %7494 = vmatpush2.bf16.msra.mxu0 %v5514
        %7495 = vmatprep.subr.bf16.mxu0 %v5511
        %7496 = vmatpush2.bf16.msra.mxu0 %v5510
        %7497 = vmatprep.subr.bf16.mxu0 %v5507
        %7498 = vmatpush2.bf16.msra.mxu0 %v5506
        %7499 = vmatprep.subr.bf16.mxu0 %v5503
        %7500 = vmatpush2.bf16.msra.mxu0 %v5502
        %7501 = vmatprep.subr.bf16.mxu0 %v5499
        %7502 = vmatpush2.bf16.msra.mxu0 %v5498
        %7503 = vmatprep.subr.bf16.mxu0 %v5495
        %7504 = vmatpush2.bf16.msra.mxu0 %v5494
        %7505 = vmatprep.mubr.bf16.mxu0 %v2753
        %7506 = vmatmul.mubr.bf16.gmra.mxu0 %v2739
        %v7507 = vpop.f32.mrf.mxu0
        %v7508 = vadd.f32 %v7467, %v7507
        %v7509 = vpop.f32.mrf.mxu0
        %v7510 = vadd.f32 %v7469, %v7509
        %v7511 = vpop.f32.mrf.mxu0
        %v7512 = vpop.f32.mrf.mxu0
        %7513 = vdwg.mxu0
        %7514 = vmatprep.subr.bf16.mxu0 %v5555
        %7515 = vmatpush1.bf16.msra.mxu0 %v5554
        %7516 = vmatprep.subr.bf16.mxu0 %v5551
        %7517 = vmatpush1.bf16.msra.mxu0 %v5550
        %7518 = vmatprep.subr.bf16.mxu0 %v5547
        %7519 = vmatpush1.bf16.msra.mxu0 %v5546
        %7520 = vmatprep.subr.bf16.mxu0 %v5543
        %7521 = vmatpush1.bf16.msra.mxu0 %v5542
        %7522 = vmatprep.subr.bf16.mxu0 %v5539
        %7523 = vmatpush1.bf16.msra.mxu0 %v5538
        %7524 = vmatprep.subr.bf16.mxu0 %v5535
        %7525 = vmatpush1.bf16.msra.mxu0 %v5534
        %7526 = vmatprep.subr.bf16.mxu0 %v5531
        %7527 = vmatpush1.bf16.msra.mxu0 %v5530
        %7528 = vmatprep.subr.bf16.mxu0 %v5527
        %7529 = vmatpush1.bf16.msra.mxu0 %v5526
        %7530 = vmatprep.subr.bf16.mxu0 %v5587
        %7531 = vmatpush2.bf16.msra.mxu0 %v5586
        %7532 = vmatprep.subr.bf16.mxu0 %v5583
        %7533 = vmatpush2.bf16.msra.mxu0 %v5582
        %7534 = vmatprep.subr.bf16.mxu0 %v5579
        %7535 = vmatpush2.bf16.msra.mxu0 %v5578
        %7536 = vmatprep.subr.bf16.mxu0 %v5575
        %7537 = vmatpush2.bf16.msra.mxu0 %v5574
        %7538 = vmatprep.subr.bf16.mxu0 %v5571
        %7539 = vmatpush2.bf16.msra.mxu0 %v5570
        %7540 = vmatprep.subr.bf16.mxu0 %v5567
        %7541 = vmatpush2.bf16.msra.mxu0 %v5566
        %7542 = vmatprep.subr.bf16.mxu0 %v5563
        %7543 = vmatpush2.bf16.msra.mxu0 %v5562
        %7544 = vmatprep.subr.bf16.mxu0 %v5559
        %7545 = vmatpush2.bf16.msra.mxu0 %v5558
        %7546 = vmatprep.mubr.bf16.mxu0 %v2763
        %7547 = vmatmul.mubr.bf16.gmra.mxu0 %v2761
        %v7548 = vpop.f32.mrf.mxu0
        %v7549 = vadd.f32 %v7508, %v7548
        %v7550 = vpop.f32.mrf.mxu0
        %v7551 = vadd.f32 %v7510, %v7550
        %v7552 = vpop.f32.mrf.mxu0
        %v7553 = vpop.f32.mrf.mxu0
        %7554 = vdwg.mxu0
        %7555 = vmatprep.subr.bf16.mxu0 %v5619
        %7556 = vmatpush1.bf16.msra.mxu0 %v5618
        %7557 = vmatprep.subr.bf16.mxu0 %v5615
        %7558 = vmatpush1.bf16.msra.mxu0 %v5614
        %7559 = vmatprep.subr.bf16.mxu0 %v5611
        %7560 = vmatpush1.bf16.msra.mxu0 %v5610
        %7561 = vmatprep.subr.bf16.mxu0 %v5607
        %7562 = vmatpush1.bf16.msra.mxu0 %v5606
        %7563 = vmatprep.subr.bf16.mxu0 %v5603
        %7564 = vmatpush1.bf16.msra.mxu0 %v5602
        %7565 = vmatprep.subr.bf16.mxu0 %v5599
        %7566 = vmatpush1.bf16.msra.mxu0 %v5598
        %7567 = vmatprep.subr.bf16.mxu0 %v5595
        %7568 = vmatpush1.bf16.msra.mxu0 %v5594
        %7569 = vmatprep.subr.bf16.mxu0 %v5591
        %7570 = vmatpush1.bf16.msra.mxu0 %v5590
        %7571 = vmatprep.subr.bf16.mxu0 %v5651
        %7572 = vmatpush2.bf16.msra.mxu0 %v5650
        %7573 = vmatprep.subr.bf16.mxu0 %v5647
        %7574 = vmatpush2.bf16.msra.mxu0 %v5646
        %7575 = vmatprep.subr.bf16.mxu0 %v5643
        %7576 = vmatpush2.bf16.msra.mxu0 %v5642
        %7577 = vmatprep.subr.bf16.mxu0 %v5639
        %7578 = vmatpush2.bf16.msra.mxu0 %v5638
        %7579 = vmatprep.subr.bf16.mxu0 %v5635
        %7580 = vmatpush2.bf16.msra.mxu0 %v5634
        %7581 = vmatprep.subr.bf16.mxu0 %v5631
        %7582 = vmatpush2.bf16.msra.mxu0 %v5630
        %7583 = vmatprep.subr.bf16.mxu0 %v5627
        %7584 = vmatpush2.bf16.msra.mxu0 %v5626
        %7585 = vmatprep.subr.bf16.mxu0 %v5623
        %7586 = vmatpush2.bf16.msra.mxu0 %v5622
        %7587 = vmatprep.mubr.bf16.mxu0 %v2760
        %7588 = vmatmul.mubr.bf16.gmra.mxu0 %v2746
        %v7589 = vpop.f32.mrf.mxu0
        %v7590 = vadd.f32 %v7549, %v7589
        %v7591 = vpop.f32.mrf.mxu0
        %v7592 = vadd.f32 %v7551, %v7591
        %v7593 = vpop.f32.mrf.mxu0
        %v7594 = vpop.f32.mrf.mxu0
        %7595 = vdwg.mxu0
        %7596 = vmatprep.subr.bf16.mxu0 %v5683
        %7597 = vmatpush1.bf16.msra.mxu0 %v5682
        %7598 = vmatprep.subr.bf16.mxu0 %v5679
        %7599 = vmatpush1.bf16.msra.mxu0 %v5678
        %7600 = vmatprep.subr.bf16.mxu0 %v5675
        %7601 = vmatpush1.bf16.msra.mxu0 %v5674
        %7602 = vmatprep.subr.bf16.mxu0 %v5671
        %7603 = vmatpush1.bf16.msra.mxu0 %v5670
        %7604 = vmatprep.subr.bf16.mxu0 %v5667
        %7605 = vmatpush1.bf16.msra.mxu0 %v5666
        %7606 = vmatprep.subr.bf16.mxu0 %v5663
        %7607 = vmatpush1.bf16.msra.mxu0 %v5662
        %7608 = vmatprep.subr.bf16.mxu0 %v5659
        %7609 = vmatpush1.bf16.msra.mxu0 %v5658
        %7610 = vmatprep.subr.bf16.mxu0 %v5655
        %7611 = vmatpush1.bf16.msra.mxu0 %v5654
        %7612 = vmatprep.subr.bf16.mxu0 %v5715
        %7613 = vmatpush2.bf16.msra.mxu0 %v5714
        %7614 = vmatprep.subr.bf16.mxu0 %v5711
        %7615 = vmatpush2.bf16.msra.mxu0 %v5710
        %7616 = vmatprep.subr.bf16.mxu0 %v5707
        %7617 = vmatpush2.bf16.msra.mxu0 %v5706
        %7618 = vmatprep.subr.bf16.mxu0 %v5703
        %7619 = vmatpush2.bf16.msra.mxu0 %v5702
        %7620 = vmatprep.subr.bf16.mxu0 %v5699
        %7621 = vmatpush2.bf16.msra.mxu0 %v5698
        %7622 = vmatprep.subr.bf16.mxu0 %v5695
        %7623 = vmatpush2.bf16.msra.mxu0 %v5694
        %7624 = vmatprep.subr.bf16.mxu0 %v5691
        %7625 = vmatpush2.bf16.msra.mxu0 %v5690
        %7626 = vmatprep.subr.bf16.mxu0 %v5687
        %7627 = vmatpush2.bf16.msra.mxu0 %v5686
        %7628 = vmatprep.mubr.bf16.mxu0 %v2764
        %7629 = vmatmul.mubr.bf16.gmra.mxu0 %v2762
        %v7630 = vpop.f32.mrf.mxu0
        %v7631 = vadd.f32 %v7590, %v7630
        %v7632 = vpop.f32.mrf.mxu0
        %v7633 = vadd.f32 %v7592, %v7632
        %v7634 = vpop.f32.mrf.mxu0
        %v7635 = vpop.f32.mrf.mxu0
        %7636 = vdwg.mxu0
        %7637 = vmatprep.subr.bf16.mxu0 %v5747
        %7638 = vmatpush1.bf16.msra.mxu0 %v5746
        %7639 = vmatprep.subr.bf16.mxu0 %v5743
        %7640 = vmatpush1.bf16.msra.mxu0 %v5742
        %7641 = vmatprep.subr.bf16.mxu0 %v5739
        %7642 = vmatpush1.bf16.msra.mxu0 %v5738
        %7643 = vmatprep.subr.bf16.mxu0 %v5735
        %7644 = vmatpush1.bf16.msra.mxu0 %v5734
        %7645 = vmatprep.subr.bf16.mxu0 %v5731
        %7646 = vmatpush1.bf16.msra.mxu0 %v5730
        %7647 = vmatprep.subr.bf16.mxu0 %v5727
        %7648 = vmatpush1.bf16.msra.mxu0 %v5726
        %7649 = vmatprep.subr.bf16.mxu0 %v5723
        %7650 = vmatpush1.bf16.msra.mxu0 %v5722
        %7651 = vmatprep.subr.bf16.mxu0 %v5719
        %7652 = vmatpush1.bf16.msra.mxu0 %v5718
        %7653 = vmatprep.subr.bf16.mxu0 %v5779
        %7654 = vmatpush2.bf16.msra.mxu0 %v5778
        %7655 = vmatprep.subr.bf16.mxu0 %v5775
        %7656 = vmatpush2.bf16.msra.mxu0 %v5774
        %7657 = vmatprep.subr.bf16.mxu0 %v5771
        %7658 = vmatpush2.bf16.msra.mxu0 %v5770
        %7659 = vmatprep.subr.bf16.mxu0 %v5767
        %7660 = vmatpush2.bf16.msra.mxu0 %v5766
        %7661 = vmatprep.subr.bf16.mxu0 %v5763
        %7662 = vmatpush2.bf16.msra.mxu0 %v5762
        %7663 = vmatprep.subr.bf16.mxu0 %v5759
        %7664 = vmatpush2.bf16.msra.mxu0 %v5758
        %7665 = vmatprep.subr.bf16.mxu0 %v5755
        %7666 = vmatpush2.bf16.msra.mxu0 %v5754
        %7667 = vmatprep.subr.bf16.mxu0 %v5751
        %7668 = vmatpush2.bf16.msra.mxu0 %v5750
        %7669 = vmatprep.mubr.bf16.mxu0 %v2802
        %7670 = vmatmul.mubr.bf16.gmra.mxu0 %v2788
        %v7671 = vpop.f32.mrf.mxu0
        %v7672 = vadd.f32 %v7631, %v7671
        %v7673 = vpop.f32.mrf.mxu0
        %v7674 = vadd.f32 %v7633, %v7673
        %v7675 = vpop.f32.mrf.mxu0
        %v7676 = vpop.f32.mrf.mxu0
        %7677 = vdwg.mxu0
        %7678 = vmatprep.subr.bf16.mxu0 %v5811
        %7679 = vmatpush1.bf16.msra.mxu0 %v5810
        %7680 = vmatprep.subr.bf16.mxu0 %v5807
        %7681 = vmatpush1.bf16.msra.mxu0 %v5806
        %7682 = vmatprep.subr.bf16.mxu0 %v5803
        %7683 = vmatpush1.bf16.msra.mxu0 %v5802
        %7684 = vmatprep.subr.bf16.mxu0 %v5799
        %7685 = vmatpush1.bf16.msra.mxu0 %v5798
        %7686 = vmatprep.subr.bf16.mxu0 %v5795
        %7687 = vmatpush1.bf16.msra.mxu0 %v5794
        %7688 = vmatprep.subr.bf16.mxu0 %v5791
        %7689 = vmatpush1.bf16.msra.mxu0 %v5790
        %7690 = vmatprep.subr.bf16.mxu0 %v5787
        %7691 = vmatpush1.bf16.msra.mxu0 %v5786
        %7692 = vmatprep.subr.bf16.mxu0 %v5783
        %7693 = vmatpush1.bf16.msra.mxu0 %v5782
        %7694 = vmatprep.subr.bf16.mxu0 %v5843
        %7695 = vmatpush2.bf16.msra.mxu0 %v5842
        %7696 = vmatprep.subr.bf16.mxu0 %v5839
        %7697 = vmatpush2.bf16.msra.mxu0 %v5838
        %7698 = vmatprep.subr.bf16.mxu0 %v5835
        %7699 = vmatpush2.bf16.msra.mxu0 %v5834
        %7700 = vmatprep.subr.bf16.mxu0 %v5831
        %7701 = vmatpush2.bf16.msra.mxu0 %v5830
        %7702 = vmatprep.subr.bf16.mxu0 %v5827
        %7703 = vmatpush2.bf16.msra.mxu0 %v5826
        %7704 = vmatprep.subr.bf16.mxu0 %v5823
        %7705 = vmatpush2.bf16.msra.mxu0 %v5822
        %7706 = vmatprep.subr.bf16.mxu0 %v5819
        %7707 = vmatpush2.bf16.msra.mxu0 %v5818
        %7708 = vmatprep.subr.bf16.mxu0 %v5815
        %7709 = vmatpush2.bf16.msra.mxu0 %v5814
        %7710 = vmatprep.mubr.bf16.mxu0 %v2812
        %7711 = vmatmul.mubr.bf16.gmra.mxu0 %v2810
        %v7712 = vpop.f32.mrf.mxu0
        %v7713 = vadd.f32 %v7672, %v7712
        %v7714 = vpop.f32.mrf.mxu0
        %v7715 = vadd.f32 %v7674, %v7714
        %v7716 = vpop.f32.mrf.mxu0
        %v7717 = vpop.f32.mrf.mxu0
        %7718 = vdwg.mxu0
        %7719 = vmatprep.subr.bf16.mxu0 %v5875
        %7720 = vmatpush1.bf16.msra.mxu0 %v5874
        %7721 = vmatprep.subr.bf16.mxu0 %v5871
        %7722 = vmatpush1.bf16.msra.mxu0 %v5870
        %7723 = vmatprep.subr.bf16.mxu0 %v5867
        %7724 = vmatpush1.bf16.msra.mxu0 %v5866
        %7725 = vmatprep.subr.bf16.mxu0 %v5863
        %7726 = vmatpush1.bf16.msra.mxu0 %v5862
        %7727 = vmatprep.subr.bf16.mxu0 %v5859
        %7728 = vmatpush1.bf16.msra.mxu0 %v5858
        %7729 = vmatprep.subr.bf16.mxu0 %v5855
        %7730 = vmatpush1.bf16.msra.mxu0 %v5854
        %7731 = vmatprep.subr.bf16.mxu0 %v5851
        %7732 = vmatpush1.bf16.msra.mxu0 %v5850
        %7733 = vmatprep.subr.bf16.mxu0 %v5847
        %7734 = vmatpush1.bf16.msra.mxu0 %v5846
        %7735 = vmatprep.subr.bf16.mxu0 %v5907
        %7736 = vmatpush2.bf16.msra.mxu0 %v5906
        %7737 = vmatprep.subr.bf16.mxu0 %v5903
        %7738 = vmatpush2.bf16.msra.mxu0 %v5902
        %7739 = vmatprep.subr.bf16.mxu0 %v5899
        %7740 = vmatpush2.bf16.msra.mxu0 %v5898
        %7741 = vmatprep.subr.bf16.mxu0 %v5895
        %7742 = vmatpush2.bf16.msra.mxu0 %v5894
        %7743 = vmatprep.subr.bf16.mxu0 %v5891
        %7744 = vmatpush2.bf16.msra.mxu0 %v5890
        %7745 = vmatprep.subr.bf16.mxu0 %v5887
        %7746 = vmatpush2.bf16.msra.mxu0 %v5886
        %7747 = vmatprep.subr.bf16.mxu0 %v5883
        %7748 = vmatpush2.bf16.msra.mxu0 %v5882
        %7749 = vmatprep.subr.bf16.mxu0 %v5879
        %7750 = vmatpush2.bf16.msra.mxu0 %v5878
        %7751 = vmatprep.mubr.bf16.mxu0 %v2809
        %7752 = vmatmul.mubr.bf16.gmra.mxu0 %v2795
        %v7753 = vpop.f32.mrf.mxu0
        %v7754 = vadd.f32 %v7713, %v7753
        %v7755 = vpop.f32.mrf.mxu0
        %v7756 = vadd.f32 %v7715, %v7755
        %v7757 = vpop.f32.mrf.mxu0
        %v7758 = vpop.f32.mrf.mxu0
        %7759 = vdwg.mxu0
        %7760 = vmatprep.subr.bf16.mxu0 %v5939
        %7761 = vmatpush1.bf16.msra.mxu0 %v5938
        %7762 = vmatprep.subr.bf16.mxu0 %v5935
        %7763 = vmatpush1.bf16.msra.mxu0 %v5934
        %7764 = vmatprep.subr.bf16.mxu0 %v5931
        %7765 = vmatpush1.bf16.msra.mxu0 %v5930
        %7766 = vmatprep.subr.bf16.mxu0 %v5927
        %7767 = vmatpush1.bf16.msra.mxu0 %v5926
        %7768 = vmatprep.subr.bf16.mxu0 %v5923
        %7769 = vmatpush1.bf16.msra.mxu0 %v5922
        %7770 = vmatprep.subr.bf16.mxu0 %v5919
        %7771 = vmatpush1.bf16.msra.mxu0 %v5918
        %7772 = vmatprep.subr.bf16.mxu0 %v5915
        %7773 = vmatpush1.bf16.msra.mxu0 %v5914
        %7774 = vmatprep.subr.bf16.mxu0 %v5911
        %7775 = vmatpush1.bf16.msra.mxu0 %v5910
        %7776 = vmatprep.subr.bf16.mxu0 %v5971
        %7777 = vmatpush2.bf16.msra.mxu0 %v5970
        %7778 = vmatprep.subr.bf16.mxu0 %v5967
        %7779 = vmatpush2.bf16.msra.mxu0 %v5966
        %7780 = vmatprep.subr.bf16.mxu0 %v5963
        %7781 = vmatpush2.bf16.msra.mxu0 %v5962
        %7782 = vmatprep.subr.bf16.mxu0 %v5959
        %7783 = vmatpush2.bf16.msra.mxu0 %v5958
        %7784 = vmatprep.subr.bf16.mxu0 %v5955
        %7785 = vmatpush2.bf16.msra.mxu0 %v5954
        %7786 = vmatprep.subr.bf16.mxu0 %v5951
        %7787 = vmatpush2.bf16.msra.mxu0 %v5950
        %7788 = vmatprep.subr.bf16.mxu0 %v5947
        %7789 = vmatpush2.bf16.msra.mxu0 %v5946
        %7790 = vmatprep.subr.bf16.mxu0 %v5943
        %7791 = vmatpush2.bf16.msra.mxu0 %v5942
        %7792 = vmatprep.mubr.bf16.mxu0 %v2813
        %7793 = vmatmul.mubr.bf16.gmra.mxu0 %v2811
        %v7794 = vpop.f32.mrf.mxu0
        %v7795 = vadd.f32 %v7754, %v7794
        %v7796 = vpop.f32.mrf.mxu0
        %v7797 = vadd.f32 %v7756, %v7796
        %v7798 = vpop.f32.mrf.mxu0
        %v7799 = vpop.f32.mrf.mxu0
        %7800 = vdwg.mxu0
        %7801 = vmatprep.subr.bf16.mxu0 0
        %7802 = vmatpush1.bf16.msra.mxu0 0
        %7803 = vmatprep.subr.bf16.mxu0 0
        %7804 = vmatpush1.bf16.msra.mxu0 0
        %7805 = vmatprep.subr.bf16.mxu0 0
        %7806 = vmatpush1.bf16.msra.mxu0 0
        %7807 = vmatprep.subr.bf16.mxu0 0
        %7808 = vmatpush1.bf16.msra.mxu0 0
        %7809 = vmatprep.subr.bf16.mxu0 %v5987
        %7810 = vmatpush1.bf16.msra.mxu0 %v5986
        %7811 = vmatprep.subr.bf16.mxu0 %v5983
        %7812 = vmatpush1.bf16.msra.mxu0 %v5982
        %7813 = vmatprep.subr.bf16.mxu0 %v5979
        %7814 = vmatpush1.bf16.msra.mxu0 %v5978
        %7815 = vmatprep.subr.bf16.mxu0 %v5975
        %7816 = vmatpush1.bf16.msra.mxu0 %v5974
        %7817 = vmatprep.subr.bf16.mxu0 0
        %7818 = vmatpush2.bf16.msra.mxu0 0
        %7819 = vmatprep.subr.bf16.mxu0 0
        %7820 = vmatpush2.bf16.msra.mxu0 0
        %7821 = vmatprep.subr.bf16.mxu0 0
        %7822 = vmatpush2.bf16.msra.mxu0 0
        %7823 = vmatprep.subr.bf16.mxu0 0
        %7824 = vmatpush2.bf16.msra.mxu0 0
        %7825 = vmatprep.subr.bf16.mxu0 0
        %7826 = vmatpush2.bf16.msra.mxu0 0
        %7827 = vmatprep.subr.bf16.mxu0 0
        %7828 = vmatpush2.bf16.msra.mxu0 0
        %7829 = vmatprep.subr.bf16.mxu0 0
        %7830 = vmatpush2.bf16.msra.mxu0 0
        %7831 = vmatprep.subr.bf16.mxu0 0
        %7832 = vmatpush2.bf16.msra.mxu0 0
        %7833 = vmatprep.mubr.bf16.mxu0 0
        %7834 = vmatmul.mubr.bf16.gmra.mxu0 %v6774
        %v7835 = vpop.f32.mrf.mxu0
        %v7836 = vadd.f32 %v7795, %v7835
        %v7837 = vpop.f32.mrf.mxu0
        %v7838 = vadd.f32 %v7797, %v7837
        %v7839 = vpop.f32.mrf.mxu0
        %v7840 = vpop.f32.mrf.mxu0
        %7841 = vdwg.mxu0
        %v7842 = vmax.f32 %v7303, 0.0
        %v7843 = vmax.f32 %v7305, 0.0
        %v7844 = vmax.f32 %v7836, 0.0
        %v7845 = vmax.f32 %v7838, 0.0
        %v7846 = vld [vmem:[#allocation3] sm:$0x3]
        %v7847 = vld [vmem:[%s1837] sm:$0xff]
        %v7848 = vld [vmem:[%s1837 + $0x8] sm:$0xff]
        %v7849 = vld [vmem:[%s1837 + $0x10] sm:$0xff]
        %v7850 = vld [vmem:[%s1837 + $0x18] sm:$0xff]
        %v7851 = vld [vmem:[%s1837 + $0x20] sm:$0xff]
        %v7852 = vld [vmem:[%s1837 + $0x28] sm:$0xff]
        %v7853 = vld [vmem:[%s1837 + $0x30] sm:$0xff]
        %v7854 = vld [vmem:[%s1837 + $0x38] sm:$0xff]
        %v7855 = vld [vmem:[%s1837 + $0x40] sm:$0xff]
        %v7856 = vld [vmem:[%s1837 + $0x48] sm:$0xff]
        %v7857 = vld [vmem:[%s1837 + $0x50] sm:$0xff]
        %v7858 = vld [vmem:[%s1837 + $0x58] sm:$0xff]
        %v7859 = vld [vmem:[%s1837 + $0x60] sm:$0xff]
        %v7860 = vld [vmem:[%s1837 + $0x68] sm:$0xff]
        %v7861 = vld [vmem:[%s1837 + $0x70] sm:$0xff]
        %v7862 = vld [vmem:[%s1837 + $0x78] sm:$0xff]
        %v7863 = vld [vmem:[%s1837 + $0x80] sm:$0xff]
        %v7864 = vld [vmem:[%s1837 + $0x88] sm:$0xff]
        %v7865 = vld [vmem:[%s1837 + $0x90] sm:$0xff]
        %v7866 = vld [vmem:[%s1837 + $0x98] sm:$0xff]
        %v7867 = vld [vmem:[%s1837 + $0xa0] sm:$0xff]
        %v7868 = vld [vmem:[%s1837 + $0xa8] sm:$0xff]
        %v7869 = vld [vmem:[%s1837 + $0xb0] sm:$0xff]
        %v7870 = vld [vmem:[%s1837 + $0xb8] sm:$0xff]
        %v7871 = vld [vmem:[%s1837 + $0xc0] sm:$0xff]
        %v7872 = vld [vmem:[%s1837 + $0xc8] sm:$0xff]
        %v7873 = vld [vmem:[%s1837 + $0xd0] sm:$0xff]
        %v7874 = vld [vmem:[%s1837 + $0xd8] sm:$0xff]
        %v7875 = vld [vmem:[%s1837 + $0xe0] sm:$0xff]
        %v7876 = vld [vmem:[%s1837 + $0xe8] sm:$0xff]
        %v7877 = vld [vmem:[%s1837 + $0xf0] sm:$0xff]
        %v7878 = vld [vmem:[%s1837 + $0xf8] sm:$0xff]
        %v7879 = vld [vmem:[%s1837 + $0x100] sm:$0xff]
        %v7880 = vld [vmem:[%s1837 + $0x108] sm:$0xff]
        %v7881 = vld [vmem:[%s1837 + $0x110] sm:$0xff]
        %v7882 = vld [vmem:[%s1837 + $0x118] sm:$0xff]
        %v7883 = vld [vmem:[%s1837 + $0x120] sm:$0xff]
        %v7884 = vld [vmem:[%s1837 + $0x128] sm:$0xff]
        %v7885 = vld [vmem:[%s1837 + $0x130] sm:$0xff]
        %v7886 = vld [vmem:[%s1837 + $0x138] sm:$0xff]
        %v7887 = vld [vmem:[%s1837 + $0x140] sm:$0xff]
        %v7888 = vld [vmem:[%s1837 + $0x148] sm:$0xff]
        %v7889 = vld [vmem:[%s1837 + $0x150] sm:$0xff]
        %v7890 = vld [vmem:[%s1837 + $0x158] sm:$0xff]
        %v7891 = vld [vmem:[%s1837 + $0x160] sm:$0xff]
        %v7892 = vld [vmem:[%s1837 + $0x168] sm:$0xff]
        %v7893 = vld [vmem:[%s1837 + $0x170] sm:$0xff]
        %v7894 = vld [vmem:[%s1837 + $0x178] sm:$0xff]
        %v7895 = vld [vmem:[%s1837 + $0x180] sm:$0xff]
        %v7896 = vld [vmem:[%s1837 + $0x188] sm:$0xff]
        %v7897 = vld [vmem:[%s1837 + $0x190] sm:$0xff]
        %v7898 = vld [vmem:[%s1837 + $0x198] sm:$0xff]
        %v7899 = vld [vmem:[%s1837 + $0x1a0] sm:$0xff]
        %v7900 = vld [vmem:[%s1837 + $0x1a8] sm:$0xff]
        %v7901 = vld [vmem:[%s1837 + $0x1b0] sm:$0xff]
        %v7902 = vld [vmem:[%s1837 + $0x1b8] sm:$0xff]
        %v7903 = vld [vmem:[%s1837 + $0x1c0] sm:$0xff]
        %v7904 = vld [vmem:[%s1837 + $0x1c8] sm:$0xff]
        %v7905 = vld [vmem:[%s1837 + $0x1d0] sm:$0xff]
        %v7906 = vld [vmem:[%s1837 + $0x1d8] sm:$0xff]
        %v7907 = vld [vmem:[%s1837 + $0x1e0] sm:$0xff]
        %v7908 = vld [vmem:[%s1837 + $0x1e8] sm:$0xff]
        %v7909 = vld [vmem:[%s1837 + $0x1f0] sm:$0xff]
        %v7910 = vld [vmem:[%s1837 + $0x1f8] sm:$0xff]
        %7911 = vmatprep.subr.mxu0 0.0
        %7912 = vmatpush1.msra.mxu0 %v7862
        %7913 = vmatprep.subr.mxu0 0.0
        %7914 = vmatpush1.msra.mxu0 %v7861
        %7915 = vmatprep.subr.mxu0 0.0
        %7916 = vmatpush1.msra.mxu0 %v7860
        %7917 = vmatprep.subr.mxu0 0.0
        %7918 = vmatpush1.msra.mxu0 %v7859
        %7919 = vmatprep.subr.mxu0 0.0
        %7920 = vmatpush1.msra.mxu0 %v7858
        %7921 = vmatprep.subr.mxu0 0.0
        %7922 = vmatpush1.msra.mxu0 %v7857
        %7923 = vmatprep.subr.mxu0 0.0
        %7924 = vmatpush1.msra.mxu0 %v7856
        %7925 = vmatprep.subr.mxu0 0.0
        %7926 = vmatpush1.msra.mxu0 %v7855
        %7927 = vmatprep.subr.mxu0 0.0
        %7928 = vmatpush1.msra.mxu0 %v7854
        %7929 = vmatprep.subr.mxu0 0.0
        %7930 = vmatpush1.msra.mxu0 %v7853
        %7931 = vmatprep.subr.mxu0 0.0
        %7932 = vmatpush1.msra.mxu0 %v7852
        %7933 = vmatprep.subr.mxu0 0.0
        %7934 = vmatpush1.msra.mxu0 %v7851
        %7935 = vmatprep.subr.mxu0 0.0
        %7936 = vmatpush1.msra.mxu0 %v7850
        %7937 = vmatprep.subr.mxu0 0.0
        %7938 = vmatpush1.msra.mxu0 %v7849
        %7939 = vmatprep.subr.mxu0 0.0
        %7940 = vmatpush1.msra.mxu0 %v7848
        %7941 = vmatprep.subr.mxu0 0.0
        %7942 = vmatpush1.msra.mxu0 %v7847
        %7943 = vmatprep.subr.mxu0 0.0
        %7944 = vmatpush2.msra.mxu0 %v7878
        %7945 = vmatprep.subr.mxu0 0.0
        %7946 = vmatpush2.msra.mxu0 %v7877
        %7947 = vmatprep.subr.mxu0 0.0
        %7948 = vmatpush2.msra.mxu0 %v7876
        %7949 = vmatprep.subr.mxu0 0.0
        %7950 = vmatpush2.msra.mxu0 %v7875
        %7951 = vmatprep.subr.mxu0 0.0
        %7952 = vmatpush2.msra.mxu0 %v7874
        %7953 = vmatprep.subr.mxu0 0.0
        %7954 = vmatpush2.msra.mxu0 %v7873
        %7955 = vmatprep.subr.mxu0 0.0
        %7956 = vmatpush2.msra.mxu0 %v7872
        %7957 = vmatprep.subr.mxu0 0.0
        %7958 = vmatpush2.msra.mxu0 %v7871
        %7959 = vmatprep.subr.mxu0 0.0
        %7960 = vmatpush2.msra.mxu0 %v7870
        %7961 = vmatprep.subr.mxu0 0.0
        %7962 = vmatpush2.msra.mxu0 %v7869
        %7963 = vmatprep.subr.mxu0 0.0
        %7964 = vmatpush2.msra.mxu0 %v7868
        %7965 = vmatprep.subr.mxu0 0.0
        %7966 = vmatpush2.msra.mxu0 %v7867
        %7967 = vmatprep.subr.mxu0 0.0
        %7968 = vmatpush2.msra.mxu0 %v7866
        %7969 = vmatprep.subr.mxu0 0.0
        %7970 = vmatpush2.msra.mxu0 %v7865
        %7971 = vmatprep.subr.mxu0 0.0
        %7972 = vmatpush2.msra.mxu0 %v7864
        %7973 = vmatprep.subr.mxu0 0.0
        %7974 = vmatpush2.msra.mxu0 %v7863
        %7975 = vmatprep.mubr.f32.mxu0 %v7843
        %7976 = vmatmul.mubr.f32.gmra.mxu0 %v7842
        %v7977 = vpop.f32.mrf.mxu0
        %v7978 = vadd.f32 0.0, %v7977
        %v7979 = vpop.f32.mrf.mxu0
        %7980 = vdwg.mxu0
        %7981 = vmatprep.subr.mxu0 0.0
        %7982 = vmatpush1.msra.mxu0 %v7894
        %7983 = vmatprep.subr.mxu0 0.0
        %7984 = vmatpush1.msra.mxu0 %v7893
        %7985 = vmatprep.subr.mxu0 0.0
        %7986 = vmatpush1.msra.mxu0 %v7892
        %7987 = vmatprep.subr.mxu0 0.0
        %7988 = vmatpush1.msra.mxu0 %v7891
        %7989 = vmatprep.subr.mxu0 0.0
        %7990 = vmatpush1.msra.mxu0 %v7890
        %7991 = vmatprep.subr.mxu0 0.0
        %7992 = vmatpush1.msra.mxu0 %v7889
        %7993 = vmatprep.subr.mxu0 0.0
        %7994 = vmatpush1.msra.mxu0 %v7888
        %7995 = vmatprep.subr.mxu0 0.0
        %7996 = vmatpush1.msra.mxu0 %v7887
        %7997 = vmatprep.subr.mxu0 0.0
        %7998 = vmatpush1.msra.mxu0 %v7886
        %7999 = vmatprep.subr.mxu0 0.0
        %8000 = vmatpush1.msra.mxu0 %v7885
        %8001 = vmatprep.subr.mxu0 0.0
        %8002 = vmatpush1.msra.mxu0 %v7884
        %8003 = vmatprep.subr.mxu0 0.0
        %8004 = vmatpush1.msra.mxu0 %v7883
        %8005 = vmatprep.subr.mxu0 0.0
        %8006 = vmatpush1.msra.mxu0 %v7882
        %8007 = vmatprep.subr.mxu0 0.0
        %8008 = vmatpush1.msra.mxu0 %v7881
        %8009 = vmatprep.subr.mxu0 0.0
        %8010 = vmatpush1.msra.mxu0 %v7880
        %8011 = vmatprep.subr.mxu0 0.0
        %8012 = vmatpush1.msra.mxu0 %v7879
        %8013 = vmatprep.subr.mxu0 0.0
        %8014 = vmatpush2.msra.mxu0 %v7910
        %8015 = vmatprep.subr.mxu0 0.0
        %8016 = vmatpush2.msra.mxu0 %v7909
        %8017 = vmatprep.subr.mxu0 0.0
        %8018 = vmatpush2.msra.mxu0 %v7908
        %8019 = vmatprep.subr.mxu0 0.0
        %8020 = vmatpush2.msra.mxu0 %v7907
        %8021 = vmatprep.subr.mxu0 0.0
        %8022 = vmatpush2.msra.mxu0 %v7906
        %8023 = vmatprep.subr.mxu0 0.0
        %8024 = vmatpush2.msra.mxu0 %v7905
        %8025 = vmatprep.subr.mxu0 0.0
        %8026 = vmatpush2.msra.mxu0 %v7904
        %8027 = vmatprep.subr.mxu0 0.0
        %8028 = vmatpush2.msra.mxu0 %v7903
        %8029 = vmatprep.subr.mxu0 0.0
        %8030 = vmatpush2.msra.mxu0 %v7902
        %8031 = vmatprep.subr.mxu0 0.0
        %8032 = vmatpush2.msra.mxu0 %v7901
        %8033 = vmatprep.subr.mxu0 0.0
        %8034 = vmatpush2.msra.mxu0 %v7900
        %8035 = vmatprep.subr.mxu0 0.0
        %8036 = vmatpush2.msra.mxu0 %v7899
        %8037 = vmatprep.subr.mxu0 0.0
        %8038 = vmatpush2.msra.mxu0 %v7898
        %8039 = vmatprep.subr.mxu0 0.0
        %8040 = vmatpush2.msra.mxu0 %v7897
        %8041 = vmatprep.subr.mxu0 0.0
        %8042 = vmatpush2.msra.mxu0 %v7896
        %8043 = vmatprep.subr.mxu0 0.0
        %8044 = vmatpush2.msra.mxu0 %v7895
        %8045 = vmatprep.mubr.f32.mxu0 %v7845
        %8046 = vmatmul.mubr.f32.gmra.mxu0 %v7844
        %v8047 = vpop.f32.mrf.mxu0
        %v8048 = vadd.f32 %v7978, %v8047
        %v8049 = vpop.f32.mrf.mxu0
        %8050 = vdwg.mxu0
        %v8051 = vadd.f32 %v7846, %v8048
        %vm8052 = vcmask 74752
        %8053 = vst.msk [vmem:[#allocation3] sm:$0x3] %vm8052, %v8051
        // Predicated region
        $region68: #{cnn_forward.5} parent=58 // pred_check
          %p8054 = pneg %p150
        $region69: #{cnn_forward.5} parent=58 // pred_check_branch
          %8056 = sbr.rel (%p8054) target = $region71
        $region70: #{cnn_forward.5} parent=58 // pred_region
          %s8058 = ssub.s32 32, 32
          %8059 = vsyncadd [#allocation4], %s8058
          %s8061 = sshll.u32 [#allocation3], 4
          %s8062 = int_to_ptr.vmem [resolvable:$true] %s8061
          %8064 = dma.vmem_to_hbm [thread:$0]  %s8062, 32, %s5, [#allocation4]
        $region71: #{cnn_forward.5} parent=58 // pred_fallthru
          _
        // Predicated region
        $region72: #{cnn_forward.5} parent=58 // pred_check
          %p8065 = pneg %p150
        $region73: #{cnn_forward.5} parent=58 // pred_check_branch
          %8067 = sbr.rel (%p8065) target = $region75
        $region74: #{cnn_forward.5} parent=58 // pred_region
          %8068 = dma.done [#allocation4], 32
        $region75: #{cnn_forward.5} parent=58 // pred_fallthru
          _
      $region59: #{cnn_forward.5} parent=5 // pred_fallthru
        _
      %p8069 = scmp.le.s32.totalorder 2, %s12
      // Predicated region
      $region76: #{cnn_forward.5} parent=5 // pred_check
        %p8070 = pneg %p8069
      $region77: #{cnn_forward.5} parent=5 // pred_check_branch
        %8072 = sbr.rel (%p8070) target = $region79
      $region78: #{cnn_forward.5} parent=5 // pred_region
        %s8073 = ssub.s32 %s12, 2
      $region79: #{cnn_forward.5} parent=5 // pred_fallthru
        _
    $region6: #{cnn_forward.5} parent=1 // loop_footer
      %s16 = sadd.s32 1, %s12
    $region7: #{cnn_forward.5} parent=1 // loop_footer_branch
      %11 = sbr.rel target = $region3
    $region8: #{cnn_forward.5} parent=1 // loop_exit
      _
    %8074 = vsyncpa [#allocation4], 1
    %s8075 = scalar_lea.sflag [#allocation4], 1
    %8076 = vsyncpa %s8075, 1

</llo_original>
